<compile_context>
chip_gen: v7x
topology: tpu7x:2x2x1
jax: 0.10.0
libtpu: 0.0.40
codegen_flags: <defaults>
</compile_context>

<pallas_src>
import functools

import jax
import jax.numpy as jnp
import numpy as np
from jax.experimental import pallas as pl
from jax.experimental.pallas import tpu as pltpu


_GUARD = 128  # lane-aligned guard on both sides of each halo-padded activation buffer


# -----------------------------------------------------------------------------
# Trace-time constant builders (hoisted out of the kernel / time loop)
# -----------------------------------------------------------------------------
def _conv_w_slab(w_oihw):
    """OIHW (Cout,Cin,3,3) -> (Cout, 9*Cin) bf16, column = (kh*3+kw)*Cin + ci."""
    cout, cin = w_oihw.shape[0], w_oihw.shape[1]
    return jnp.transpose(w_oihw, (0, 2, 3, 1)).reshape(cout, 9 * cin).astype(jnp.bfloat16)


def _bias_col(b):
    return b.reshape(-1, 1).astype(jnp.float32)


def _interior_mask(B, Hi, Wi):
    """(1, B*(Hi+2)*(Wi+2)) f32: 1 at interior pixels of the padded grid, 0 at halos."""
    m = np.zeros((Hi + 2, Wi + 2), np.float32)
    m[1:-1, 1:-1] = 1.0
    return jnp.asarray(np.tile(m.reshape(-1), B)[None, :])


def _pool2x2_matrix(B, Hi, Wi):
    """(B*(Hi+2)*(Wi+2), B*(Hi//2+2)*(Wi//2+2)) bf16 AvgPool2d(2) between padded grids."""
    Ho, Wo = Hi // 2, Wi // 2
    Pi, Po = (Hi + 2) * (Wi + 2), (Ho + 2) * (Wo + 2)
    P = np.zeros((B * Pi, B * Po), np.float32)
    for b in range(B):
        for ho in range(Ho):
            for wo in range(Wo):
                o = b * Po + (ho + 1) * (Wo + 2) + (wo + 1)
                for dh in range(2):
                    for dw in range(2):
                        i = b * Pi + (2 * ho + dh + 1) * (Wi + 2) + (2 * wo + dw + 1)
                        P[i, o] = 0.25
    return jnp.asarray(P, dtype=jnp.bfloat16)


def _flatten_consts(B, Hq, Wq, C5):
    """Constants for the NCHW flatten of conv5 spikes (C5, B*(Hq+2)*(Wq+2)).

       x_flat^T (D, B) = ((rrep @ s5) * mflat) @ oneb,   D = C5*Hq*Wq.
    """
    HWq = Hq * Wq
    D = C5 * HWq
    Pq = (Hq + 2) * (Wq + 2)
    M2p = B * Pq
    rrep = np.zeros((D, C5), np.float32)
    mflat = np.zeros((D, M2p), np.float32)
    for c in range(C5):
        for q in range(HWq):
            d = c * HWq + q
            rrep[d, c] = 1.0
            pidx = (q // Wq + 1) * (Wq + 2) + (q % Wq + 1)
            for b in range(B):
                mflat[d, b * Pq + pidx] = 1.0
    oneb = np.zeros((M2p, B), np.float32)
    for b in range(B):
        oneb[b * Pq:(b + 1) * Pq, b] = 1.0
    return (jnp.asarray(rrep, jnp.bfloat16),
            jnp.asarray(mflat, jnp.float32),
            jnp.asarray(oneb, jnp.bfloat16))


def _image_im2col(x_nchw, guard):
    """Constant conv1 im2col: (9*Cin, B*(H+2)*(W+2)) bf16 on the padded flat grid."""
    B, Cin, H, W = x_nchw.shape
    wpad = W + 2
    m0p = B * (H + 2) * wpad
    x_cm = jnp.transpose(x_nchw.astype(jnp.float32), (1, 0, 2, 3))
    x_pad = jnp.pad(x_cm, ((0, 0), (0, 0), (1, 1), (1, 1)))
    x_ext = jnp.pad(x_pad.reshape(Cin, m0p), ((0, 0), (guard, guard)))
    views = [x_ext[:, guard + dh * wpad + dw: guard + dh * wpad + dw + m0p]
             for dh in (-1, 0, 1) for dw in (-1, 0, 1)]
    return jnp.concatenate(views, axis=0).astype(jnp.bfloat16)


# -----------------------------------------------------------------------------
# In-kernel helpers
# -----------------------------------------------------------------------------
def _if_fire(mem_ref, z, thresh):
    """IF neuron: integrate, fire thresh-valued spike, subtractive reset."""
    # TODO(synk): if the reference SPIKE_layer emits binary {0,1} spikes, replace `thresh` by 1.0 below.
    mem = mem_ref[...] + z
    spike = jnp.where(mem >= thresh, thresh, jnp.float32(0.0))
    mem_ref[...] = mem - spike
    return spike


def _conv3x3(ext_ref, w_ref, b_ref, mask_ref, wpad, mp):
    """3x3 conv: 9 shifted slices of the halo buffer -> one (Cout,9Cin)@(9Cin,M) matmul."""
    views = []
    for dh in (-1, 0, 1):
        for dw in (-1, 0, 1):
            s = dh * wpad + dw
            views.append(ext_ref[:, _GUARD + s:_GUARD + s + mp])
    im = jnp.concatenate(views, axis=0).astype(jnp.bfloat16)
    z = jnp.dot(w_ref[...], im, preferred_element_type=jnp.float32)
    return (z + b_ref[...]) * mask_ref[...]


# -----------------------------------------------------------------------------
# Fused Pallas kernel: one grid step == one checkpoint (`step` SNN timesteps)
# -----------------------------------------------------------------------------
def _snn_kernel(thr_ref, imx_ref,
                w1_ref, b1_ref, w2_ref, b2_ref, w3_ref, b3_ref,
                w4_ref, b4_ref, w5_ref, b5_ref,
                wf1_ref, bf1_ref, wf2_ref, bf2_ref, wf3_ref, bf3_ref,
                p1_ref, p2_ref, m0_ref, m1_ref, m2_ref,
                rrep_ref, mflat_ref, oneb_ref,
                res_ref,
                z1_ref, mem1_ref, mem2_ref, mem3_ref, mem4_ref, mem5_ref,
                memf1_ref, memf2_ref, memf3_ref, osum_ref,
                ext2_ref, ext3_ref, ext4_ref, ext5_ref,
                *, step, wpads, mps):
    r = pl.program_id(0)
    wp0, wp1, wp2 = wpads
    m0p, m1p, m2p = mps

    @pl.when(r == 0)
    def _init():
        # conv1 pre-activation depends only on the constant input image -> cache it.
        z1_ref[...] = (jnp.dot(w1_ref[...], imx_ref[...],
                               preferred_element_type=jnp.float32)
                       + b1_ref[...]) * m0_ref[...]
        for ref in (mem1_ref, mem2_ref, mem3_ref, mem4_ref, mem5_ref,
                    memf1_ref, memf2_ref, memf3_ref, osum_ref,
                    ext2_ref, ext3_ref, ext4_ref, ext5_ref):
            ref[...] = jnp.zeros_like(ref)

    for _ in range(step):                       # `step` timesteps per grid step
        # conv1 (cached pre-activation) + IF
        s1 = _if_fire(mem1_ref, z1_ref[...], thr_ref[0])
        # conv2 + IF
        ext2_ref[:, _GUARD:_GUARD + m0p] = s1
        s2 = _if_fire(mem2_ref,
                      _conv3x3(ext2_ref, w2_ref, b2_ref, m0_ref, wp0, m0p),
                      thr_ref[1])
        # avg-pool 2x2 (constant matmul between padded flat grids)
        s2p = jnp.dot(s2.astype(jnp.bfloat16), p1_ref[...],
                      preferred_element_type=jnp.float32)
        # conv3 + IF, pool
        ext3_ref[:, _GUARD:_GUARD + m1p] = s2p
        s3 = _if_fire(mem3_ref,
                      _conv3x3(ext3_ref, w3_ref, b3_ref, m1_ref, wp1, m1p),
                      thr_ref[2])
        s3p = jnp.dot(s3.astype(jnp.bfloat16), p2_ref[...],
                      preferred_element_type=jnp.float32)
        # conv4, conv5 + IF
        ext4_ref[:, _GUARD:_GUARD + m2p] = s3p
        s4 = _if_fire(mem4_ref,
                      _conv3x3(ext4_ref, w4_ref, b4_ref, m2_ref, wp2, m2p),
                      thr_ref[3])
        ext5_ref[:, _GUARD:_GUARD + m2p] = s4
        s5 = _if_fire(mem5_ref,
                      _conv3x3(ext5_ref, w5_ref, b5_ref, m2_ref, wp2, m2p),
                      thr_ref[4])

        # NCHW flatten -> (D, B) via two tiny constant matmuls (no 16x concat)
        rep = jnp.dot(rrep_ref[...], s5.astype(jnp.bfloat16),
                      preferred_element_type=jnp.float32)                  # (D, M2p)
        xft = jnp.dot((rep * mflat_ref[...]).astype(jnp.bfloat16), oneb_ref[...],
                      preferred_element_type=jnp.float32)                  # (D, B)

        # FC layers, feature-major (F, B)
        sf1 = _if_fire(memf1_ref,
                       jnp.dot(wf1_ref[...], xft.astype(jnp.bfloat16),
                               preferred_element_type=jnp.float32) + bf1_ref[...],
                       thr_ref[5])
        sf2 = _if_fire(memf2_ref,
                       jnp.dot(wf2_ref[...], sf1.astype(jnp.bfloat16),
                               preferred_element_type=jnp.float32) + bf2_ref[...],
                       thr_ref[6])
        sf3 = _if_fire(memf3_ref,
                       jnp.dot(wf3_ref[...], sf2.astype(jnp.bfloat16),
                               preferred_element_type=jnp.float32) + bf3_ref[...],
                       thr_ref[7])
        osum_ref[...] = osum_ref[...] + sf3

    # checkpoint: out_spike_sum / (time + 1); here time + 1 == (r + 1) * step
    denom = ((r + 1) * step).astype(jnp.float32)
    res_ref[0] = osum_ref[...] / denom


# -----------------------------------------------------------------------------
# Wrapper: trace-time layout work + single pallas_call
# -----------------------------------------------------------------------------
def cifarnet_spiking_forward(x_nchw, params, thresh_list, T, step):
    B, Cin, H, W = x_nchw.shape
    assert H % 4 == 0 and W % 4 == 0
    Hp, Wp = H // 2, W // 2
    Hq, Wq = Hp // 2, Wp // 2
    wp0, wp1, wp2 = W + 2, Wp + 2, Wq + 2
    M0p = B * (H + 2) * wp0
    M1p = B * (Hp + 2) * wp1
    M2p = B * (Hq + 2) * wp2
    assert _GUARD >= wp0 + 1

    C1, C2, C3, C4, C5 = (params[f"conv{i}_w"].shape[0] for i in range(1, 6))
    F1, F2, F3 = (params[f"fc{i}_w"].shape[0] for i in range(1, 4))
    assert params["fc1_w"].shape[1] == C5 * Hq * Wq

    R = T // step
    assert R >= 1
    # Like the reference, trailing T % step timesteps never reach a checkpoint
    # and cannot influence the returned values, so they are skipped.

    # ---- hoisted constant re-layouts (built once at trace time) --------------
    imx = _image_im2col(x_nchw, _GUARD)                               # (9*Cin, M0p) bf16
    w1, w2, w3, w4, w5 = (_conv_w_slab(params[f"conv{i}_w"]) for i in range(1, 6))
    b1, b2, b3, b4, b5 = (_bias_col(params[f"conv{i}_b"]) for i in range(1, 6))
    wf1, wf2, wf3 = (params[f"fc{i}_w"].astype(jnp.bfloat16) for i in range(1, 4))
    bf1, bf2, bf3 = (_bias_col(params[f"fc{i}_b"]) for i in range(1, 4))
    p1 = _pool2x2_matrix(B, H, W)                                     # (M0p, M1p) bf16
    p2 = _pool2x2_matrix(B, Hp, Wp)                                   # (M1p, M2p) bf16
    m0 = _interior_mask(B, H, W)
    m1 = _interior_mask(B, Hp, Wp)
    m2 = _interior_mask(B, Hq, Wq)
    rrep, mflat, oneb = _flatten_consts(B, Hq, Wq, C5)
    thr = jnp.asarray(thresh_list, jnp.float32)

    kern = functools.partial(_snn_kernel, step=step,
                             wpads=(wp0, wp1, wp2), mps=(M0p, M1p, M2p))

    vmem = pl.BlockSpec(memory_space=pltpu.MemorySpace.VMEM)
    smem = pl.BlockSpec(memory_space=pltpu.MemorySpace.SMEM)

    res = pl.pallas_call(
        kern,
        grid=(R,),
        out_shape=jax.ShapeDtypeStruct((R, F3, B), jnp.float32),
        in_specs=[smem] + [vmem] * 25,
        out_specs=pl.BlockSpec((1, F3, B), lambda r: (r, 0, 0)),
        scratch_shapes=[
            pltpu.VMEM((C1, M0p), jnp.float32),                  # z1 (cached conv1 pre-act)
            pltpu.VMEM((C1, M0p), jnp.float32),                  # mem conv1
            pltpu.VMEM((C2, M0p), jnp.float32),                  # mem conv2
            pltpu.VMEM((C3, M1p), jnp.float32),                  # mem conv3
            pltpu.VMEM((C4, M2p), jnp.float32),                  # mem conv4
            pltpu.VMEM((C5, M2p), jnp.float32),                  # mem conv5
            pltpu.VMEM((F1, B), jnp.float32),                    # mem fc1
            pltpu.VMEM((F2, B), jnp.float32),                    # mem fc2
            pltpu.VMEM((F3, B), jnp.float32),                    # mem fc3
            pltpu.VMEM((F3, B), jnp.float32),                    # out_spike_sum
            pltpu.VMEM((C1, M0p + 2 * _GUARD), jnp.float32),     # halo buf: conv2 input
            pltpu.VMEM((C2, M1p + 2 * _GUARD), jnp.float32),     # halo buf: conv3 input
            pltpu.VMEM((C3, M2p + 2 * _GUARD), jnp.float32),     # halo buf: conv4 input
            pltpu.VMEM((C4, M2p + 2 * _GUARD), jnp.float32),     # halo buf: conv5 input
        ],
        compiler_params=pltpu.CompilerParams(dimension_semantics=("arbitrary",)),
    )(thr, imx,
      w1, b1, w2, b2, w3, b3, w4, b4, w5, b5,
      wf1, bf1, wf2, bf2, wf3, bf3,
      p1, p2, m0, m1, m2, rrep, mflat, oneb)

    return [jnp.transpose(res[i]) for i in range(R)]


# -----------------------------------------------------------------------------
# Deterministic synthetic parameters (small shapes consistent with the module)
# -----------------------------------------------------------------------------
def init_params(key):
    def nrm(k, shape, scale=0.1):
        return scale * jax.random.normal(k, shape, dtype=jnp.float32)

    ks = jax.random.split(key, 16)
    # channels: 3 -> 8 -> 8 -(pool)-> 16 -(pool)-> 16 -> 8 ; flatten 8*4*4 = 128
    return {
        "conv1_w": nrm(ks[0], (8, 3, 3, 3)),   "conv1_b": nrm(ks[1], (8,)),
        "conv2_w": nrm(ks[2], (8, 8, 3, 3)),   "conv2_b": nrm(ks[3], (8,)),
        "conv3_w": nrm(ks[4], (16, 8, 3, 3)),  "conv3_b": nrm(ks[5], (16,)),
        "conv4_w": nrm(ks[6], (16, 16, 3, 3)), "conv4_b": nrm(ks[7], (16,)),
        "conv5_w": nrm(ks[8], (8, 16, 3, 3)),  "conv5_b": nrm(ks[9], (8,)),
        "fc1_w": nrm(ks[10], (32, 128)),       "fc1_b": nrm(ks[11], (32,)),
        "fc2_w": nrm(ks[12], (32, 32)),        "fc2_b": nrm(ks[13], (32,)),
        "fc3_w": nrm(ks[14], (10, 32)),        "fc3_b": nrm(ks[15], (10,)),
    }


if __name__ == "__main__":
    key = jax.random.PRNGKey(0)
    pkey, xkey = jax.random.split(key)
    params = init_params(pkey)
    thresh_list = [1.0, 0.9, 1.1, 1.0, 0.8, 1.0, 0.9, 1.0]

    # small CIFAR-style input: batch=2, 3 channels, 16x16
    x = jax.random.uniform(xkey, (2, 3, 16, 16), dtype=jnp.float32)

    T, step = 4, 2   # stand-ins for args.T / args.step
    result_list = cifarnet_spiking_forward(x, params, thresh_list, T=T, step=step)

    for r in result_list:
        jax.block_until_ready(r)
    assert len(result_list) == T // step
    assert result_list[0].shape == (2, 10)
    print("KERNEL_OK")
</pallas_src>

<mosaic_0001>
module attributes {stable_mosaic.version = 11 : i64} {
  func.func @_snn_kernel(%arg0: i32, %arg1: memref<8xf32, #tpu.memory_space<smem>>, %arg2: memref<27x648xbf16, #tpu.memory_space<vmem>>, %arg3: memref<8x27xbf16, #tpu.memory_space<vmem>>, %arg4: memref<8x1xf32, #tpu.memory_space<vmem>>, %arg5: memref<8x72xbf16, #tpu.memory_space<vmem>>, %arg6: memref<8x1xf32, #tpu.memory_space<vmem>>, %arg7: memref<16x72xbf16, #tpu.memory_space<vmem>>, %arg8: memref<16x1xf32, #tpu.memory_space<vmem>>, %arg9: memref<16x144xbf16, #tpu.memory_space<vmem>>, %arg10: memref<16x1xf32, #tpu.memory_space<vmem>>, %arg11: memref<8x144xbf16, #tpu.memory_space<vmem>>, %arg12: memref<8x1xf32, #tpu.memory_space<vmem>>, %arg13: memref<32x128xbf16, #tpu.memory_space<vmem>>, %arg14: memref<32x1xf32, #tpu.memory_space<vmem>>, %arg15: memref<32x32xbf16, #tpu.memory_space<vmem>>, %arg16: memref<32x1xf32, #tpu.memory_space<vmem>>, %arg17: memref<10x32xbf16, #tpu.memory_space<vmem>>, %arg18: memref<10x1xf32, #tpu.memory_space<vmem>>, %arg19: memref<648x200xbf16, #tpu.memory_space<vmem>>, %arg20: memref<200x72xbf16, #tpu.memory_space<vmem>>, %arg21: memref<1x648xf32, #tpu.memory_space<vmem>>, %arg22: memref<1x200xf32, #tpu.memory_space<vmem>>, %arg23: memref<1x72xf32, #tpu.memory_space<vmem>>, %arg24: memref<128x8xbf16, #tpu.memory_space<vmem>>, %arg25: memref<128x72xf32, #tpu.memory_space<vmem>>, %arg26: memref<72x2xbf16, #tpu.memory_space<vmem>>, %arg27: memref<1x10x2xf32, #tpu.memory_space<vmem>>, %arg28: memref<8x648xf32, #tpu.memory_space<vmem>>, %arg29: memref<8x648xf32, #tpu.memory_space<vmem>>, %arg30: memref<8x648xf32, #tpu.memory_space<vmem>>, %arg31: memref<16x200xf32, #tpu.memory_space<vmem>>, %arg32: memref<16x72xf32, #tpu.memory_space<vmem>>, %arg33: memref<8x72xf32, #tpu.memory_space<vmem>>, %arg34: memref<32x2xf32, #tpu.memory_space<vmem>>, %arg35: memref<32x2xf32, #tpu.memory_space<vmem>>, %arg36: memref<10x2xf32, #tpu.memory_space<vmem>>, %arg37: memref<10x2xf32, #tpu.memory_space<vmem>>, %arg38: memref<8x904xf32, #tpu.memory_space<vmem>>, %arg39: memref<8x456xf32, #tpu.memory_space<vmem>>, %arg40: memref<16x328xf32, #tpu.memory_space<vmem>>, %arg41: memref<16x328xf32, #tpu.memory_space<vmem>>) attributes {dimension_semantics = [#tpu.dimension_semantics<arbitrary>], iteration_bounds = array<i64: 2>, scalar_prefetch = 0 : i64, scratch_operands = 14 : i64, tpu.core_type = #tpu.core_type<tc>, window_params = [{transform_indices = @transform_0, window_bounds = array<i64: 8>}, {pipeline_mode = #tpu.pipeline_mode<synchronous>, transform_indices = @transform_1, window_bounds = array<i64: 27, 648>}, {pipeline_mode = #tpu.pipeline_mode<synchronous>, transform_indices = @transform_2, window_bounds = array<i64: 8, 27>}, {pipeline_mode = #tpu.pipeline_mode<synchronous>, transform_indices = @transform_3, window_bounds = array<i64: 8, 1>}, {pipeline_mode = #tpu.pipeline_mode<synchronous>, transform_indices = @transform_4, window_bounds = array<i64: 8, 72>}, {pipeline_mode = #tpu.pipeline_mode<synchronous>, transform_indices = @transform_5, window_bounds = array<i64: 8, 1>}, {pipeline_mode = #tpu.pipeline_mode<synchronous>, transform_indices = @transform_6, window_bounds = array<i64: 16, 72>}, {pipeline_mode = #tpu.pipeline_mode<synchronous>, transform_indices = @transform_7, window_bounds = array<i64: 16, 1>}, {pipeline_mode = #tpu.pipeline_mode<synchronous>, transform_indices = @transform_8, window_bounds = array<i64: 16, 144>}, {pipeline_mode = #tpu.pipeline_mode<synchronous>, transform_indices = @transform_9, window_bounds = array<i64: 16, 1>}, {pipeline_mode = #tpu.pipeline_mode<synchronous>, transform_indices = @transform_10, window_bounds = array<i64: 8, 144>}, {pipeline_mode = #tpu.pipeline_mode<synchronous>, transform_indices = @transform_11, window_bounds = array<i64: 8, 1>}, {pipeline_mode = #tpu.pipeline_mode<synchronous>, transform_indices = @transform_12, window_bounds = array<i64: 32, 128>}, {pipeline_mode = #tpu.pipeline_mode<synchronous>, transform_indices = @transform_13, window_bounds = array<i64: 32, 1>}, {pipeline_mode = #tpu.pipeline_mode<synchronous>, transform_indices = @transform_14, window_bounds = array<i64: 32, 32>}, {pipeline_mode = #tpu.pipeline_mode<synchronous>, transform_indices = @transform_15, window_bounds = array<i64: 32, 1>}, {pipeline_mode = #tpu.pipeline_mode<synchronous>, transform_indices = @transform_16, window_bounds = array<i64: 10, 32>}, {pipeline_mode = #tpu.pipeline_mode<synchronous>, transform_indices = @transform_17, window_bounds = array<i64: 10, 1>}, {pipeline_mode = #tpu.pipeline_mode<synchronous>, transform_indices = @transform_18, window_bounds = array<i64: 648, 200>}, {pipeline_mode = #tpu.pipeline_mode<synchronous>, transform_indices = @transform_19, window_bounds = array<i64: 200, 72>}, {pipeline_mode = #tpu.pipeline_mode<synchronous>, transform_indices = @transform_20, window_bounds = array<i64: 1, 648>}, {pipeline_mode = #tpu.pipeline_mode<synchronous>, transform_indices = @transform_21, window_bounds = array<i64: 1, 200>}, {pipeline_mode = #tpu.pipeline_mode<synchronous>, transform_indices = @transform_22, window_bounds = array<i64: 1, 72>}, {pipeline_mode = #tpu.pipeline_mode<synchronous>, transform_indices = @transform_23, window_bounds = array<i64: 128, 8>}, {pipeline_mode = #tpu.pipeline_mode<synchronous>, transform_indices = @transform_24, window_bounds = array<i64: 128, 72>}, {pipeline_mode = #tpu.pipeline_mode<synchronous>, transform_indices = @transform_25, window_bounds = array<i64: 72, 2>}, {transform_indices = @transform_26, window_bounds = array<i64: 1, 10, 2>}]} {
    %c0_i32 = arith.constant 0 : i32
    %0 = arith.cmpi eq, %arg0, %c0_i32 : i32
    %1 = arith.extui %0 : i1 to i32
    %c0_i32_0 = arith.constant 0 : i32
    %2 = arith.cmpi ne, %1, %c0_i32_0 : i32
    scf.if %2 {
      %c0_358 = arith.constant 0 : index
      %c0_359 = arith.constant 0 : index
      %404 = vector.load %arg3[%c0_358, %c0_359] : memref<8x27xbf16, #tpu.memory_space<vmem>>, vector<8x27xbf16>
      %c0_360 = arith.constant 0 : index
      %c0_361 = arith.constant 0 : index
      %405 = vector.load %arg2[%c0_360, %c0_361] : memref<27x648xbf16, #tpu.memory_space<vmem>>, vector<27x648xbf16>
      %cst_362 = arith.constant dense<0.000000e+00> : vector<8x648xf32>
      %406 = tpu.matmul %404, %405, %cst_362 {dimension_numbers = #tpu.dot_dimension_numbers<[1], [0], [0], [1], [0, 0, 1, 1], [], []>} : vector<8x27xbf16>, vector<27x648xbf16>, vector<8x648xf32> -> vector<8x648xf32>
      %c0_363 = arith.constant 0 : index
      %c0_364 = arith.constant 0 : index
      %407 = vector.load %arg4[%c0_363, %c0_364] : memref<8x1xf32, #tpu.memory_space<vmem>>, vector<8x1xf32>
      %408 = vector.broadcast %407 : vector<8x1xf32> to vector<8x648xf32>
      %409 = arith.addf %406, %408 : vector<8x648xf32>
      %c0_365 = arith.constant 0 : index
      %c0_366 = arith.constant 0 : index
      %410 = vector.load %arg21[%c0_365, %c0_366] : memref<1x648xf32, #tpu.memory_space<vmem>>, vector<1x648xf32>
      %411 = vector.broadcast %410 : vector<1x648xf32> to vector<8x648xf32>
      %412 = arith.mulf %409, %411 : vector<8x648xf32>
      %c0_367 = arith.constant 0 : index
      %c0_368 = arith.constant 0 : index
      %413 = vector.load %arg28[%c0_367, %c0_368] : memref<8x648xf32, #tpu.memory_space<vmem>>, vector<8x648xf32>
      tpu.vector_store %arg28[%c0_367, %c0_368], %412 {strides = array<i32>} : memref<8x648xf32, #tpu.memory_space<vmem>>, vector<8x648xf32>,
      %cst_369 = arith.constant 0.000000e+00 : f32
      %414 = vector.broadcast %cst_369 : f32 to vector<8x648xf32>
      %c0_370 = arith.constant 0 : index
      %c0_371 = arith.constant 0 : index
      %415 = vector.load %arg29[%c0_370, %c0_371] : memref<8x648xf32, #tpu.memory_space<vmem>>, vector<8x648xf32>
      tpu.vector_store %arg29[%c0_370, %c0_371], %414 {strides = array<i32>} : memref<8x648xf32, #tpu.memory_space<vmem>>, vector<8x648xf32>,
      %cst_372 = arith.constant 0.000000e+00 : f32
      %416 = vector.broadcast %cst_372 : f32 to vector<8x648xf32>
      %c0_373 = arith.constant 0 : index
      %c0_374 = arith.constant 0 : index
      %417 = vector.load %arg30[%c0_373, %c0_374] : memref<8x648xf32, #tpu.memory_space<vmem>>, vector<8x648xf32>
      tpu.vector_store %arg30[%c0_373, %c0_374], %416 {strides = array<i32>} : memref<8x648xf32, #tpu.memory_space<vmem>>, vector<8x648xf32>,
      %cst_375 = arith.constant 0.000000e+00 : f32
      %418 = vector.broadcast %cst_375 : f32 to vector<16x200xf32>
      %c0_376 = arith.constant 0 : index
      %c0_377 = arith.constant 0 : index
      %419 = vector.load %arg31[%c0_376, %c0_377] : memref<16x200xf32, #tpu.memory_space<vmem>>, vector<16x200xf32>
      tpu.vector_store %arg31[%c0_376, %c0_377], %418 {strides = array<i32>} : memref<16x200xf32, #tpu.memory_space<vmem>>, vector<16x200xf32>,
      %cst_378 = arith.constant 0.000000e+00 : f32
      %420 = vector.broadcast %cst_378 : f32 to vector<16x72xf32>
      %c0_379 = arith.constant 0 : index
      %c0_380 = arith.constant 0 : index
      %421 = vector.load %arg32[%c0_379, %c0_380] : memref<16x72xf32, #tpu.memory_space<vmem>>, vector<16x72xf32>
      tpu.vector_store %arg32[%c0_379, %c0_380], %420 {strides = array<i32>} : memref<16x72xf32, #tpu.memory_space<vmem>>, vector<16x72xf32>,
      %cst_381 = arith.constant 0.000000e+00 : f32
      %422 = vector.broadcast %cst_381 : f32 to vector<8x72xf32>
      %c0_382 = arith.constant 0 : index
      %c0_383 = arith.constant 0 : index
      %423 = vector.load %arg33[%c0_382, %c0_383] : memref<8x72xf32, #tpu.memory_space<vmem>>, vector<8x72xf32>
      tpu.vector_store %arg33[%c0_382, %c0_383], %422 {strides = array<i32>} : memref<8x72xf32, #tpu.memory_space<vmem>>, vector<8x72xf32>,
      %cst_384 = arith.constant 0.000000e+00 : f32
      %424 = vector.broadcast %cst_384 : f32 to vector<32x2xf32>
      %c0_385 = arith.constant 0 : index
      %c0_386 = arith.constant 0 : index
      %425 = vector.load %arg34[%c0_385, %c0_386] : memref<32x2xf32, #tpu.memory_space<vmem>>, vector<32x2xf32>
      tpu.vector_store %arg34[%c0_385, %c0_386], %424 {strides = array<i32>} : memref<32x2xf32, #tpu.memory_space<vmem>>, vector<32x2xf32>,
      %cst_387 = arith.constant 0.000000e+00 : f32
      %426 = vector.broadcast %cst_387 : f32 to vector<32x2xf32>
      %c0_388 = arith.constant 0 : index
      %c0_389 = arith.constant 0 : index
      %427 = vector.load %arg35[%c0_388, %c0_389] : memref<32x2xf32, #tpu.memory_space<vmem>>, vector<32x2xf32>
      tpu.vector_store %arg35[%c0_388, %c0_389], %426 {strides = array<i32>} : memref<32x2xf32, #tpu.memory_space<vmem>>, vector<32x2xf32>,
      %cst_390 = arith.constant 0.000000e+00 : f32
      %428 = vector.broadcast %cst_390 : f32 to vector<10x2xf32>
      %c0_391 = arith.constant 0 : index
      %c0_392 = arith.constant 0 : index
      %429 = vector.load %arg36[%c0_391, %c0_392] : memref<10x2xf32, #tpu.memory_space<vmem>>, vector<10x2xf32>
      tpu.vector_store %arg36[%c0_391, %c0_392], %428 {strides = array<i32>} : memref<10x2xf32, #tpu.memory_space<vmem>>, vector<10x2xf32>,
      %cst_393 = arith.constant 0.000000e+00 : f32
      %430 = vector.broadcast %cst_393 : f32 to vector<10x2xf32>
      %c0_394 = arith.constant 0 : index
      %c0_395 = arith.constant 0 : index
      %431 = vector.load %arg37[%c0_394, %c0_395] : memref<10x2xf32, #tpu.memory_space<vmem>>, vector<10x2xf32>
      tpu.vector_store %arg37[%c0_394, %c0_395], %430 {strides = array<i32>} : memref<10x2xf32, #tpu.memory_space<vmem>>, vector<10x2xf32>,
      %cst_396 = arith.constant 0.000000e+00 : f32
      %432 = vector.broadcast %cst_396 : f32 to vector<8x904xf32>
      %c0_397 = arith.constant 0 : index
      %c0_398 = arith.constant 0 : index
      %433 = vector.load %arg38[%c0_397, %c0_398] : memref<8x904xf32, #tpu.memory_space<vmem>>, vector<8x904xf32>
      tpu.vector_store %arg38[%c0_397, %c0_398], %432 {strides = array<i32>} : memref<8x904xf32, #tpu.memory_space<vmem>>, vector<8x904xf32>,
      %cst_399 = arith.constant 0.000000e+00 : f32
      %434 = vector.broadcast %cst_399 : f32 to vector<8x456xf32>
      %c0_400 = arith.constant 0 : index
      %c0_401 = arith.constant 0 : index
      %435 = vector.load %arg39[%c0_400, %c0_401] : memref<8x456xf32, #tpu.memory_space<vmem>>, vector<8x456xf32>
      tpu.vector_store %arg39[%c0_400, %c0_401], %434 {strides = array<i32>} : memref<8x456xf32, #tpu.memory_space<vmem>>, vector<8x456xf32>,
      %cst_402 = arith.constant 0.000000e+00 : f32
      %436 = vector.broadcast %cst_402 : f32 to vector<16x328xf32>
      %c0_403 = arith.constant 0 : index
      %c0_404 = arith.constant 0 : index
      %437 = vector.load %arg40[%c0_403, %c0_404] : memref<16x328xf32, #tpu.memory_space<vmem>>, vector<16x328xf32>
      tpu.vector_store %arg40[%c0_403, %c0_404], %436 {strides = array<i32>} : memref<16x328xf32, #tpu.memory_space<vmem>>, vector<16x328xf32>,
      %cst_405 = arith.constant 0.000000e+00 : f32
      %438 = vector.broadcast %cst_405 : f32 to vector<16x328xf32>
      %c0_406 = arith.constant 0 : index
      %c0_407 = arith.constant 0 : index
      %439 = vector.load %arg41[%c0_406, %c0_407] : memref<16x328xf32, #tpu.memory_space<vmem>>, vector<16x328xf32>
      tpu.vector_store %arg41[%c0_406, %c0_407], %438 {strides = array<i32>} : memref<16x328xf32, #tpu.memory_space<vmem>>, vector<16x328xf32>,
    } else {
    }
    %c0 = arith.constant 0 : index
    %c0_1 = arith.constant 0 : index
    %3 = vector.load %arg28[%c0, %c0_1] : memref<8x648xf32, #tpu.memory_space<vmem>>, vector<8x648xf32>
    %c0_2 = arith.constant 0 : index
    %4 = memref.load %arg1[%c0_2] : memref<8xf32, #tpu.memory_space<smem>>
    %c0_3 = arith.constant 0 : index
    %c0_4 = arith.constant 0 : index
    %5 = vector.load %arg29[%c0_3, %c0_4] : memref<8x648xf32, #tpu.memory_space<vmem>>, vector<8x648xf32>
    %6 = arith.addf %5, %3 : vector<8x648xf32>
    %7 = vector.broadcast %4 : f32 to vector<8x648xf32>
    %8 = arith.cmpf oge, %6, %7 : vector<8x648xf32>
    %cst = arith.constant 0.000000e+00 : f32
    %9 = vector.broadcast %4 : f32 to vector<8x648xf32>
    %10 = vector.broadcast %cst : f32 to vector<8x648xf32>
    %11 = arith.select %8, %9, %10 : vector<8x648xi1>, vector<8x648xf32>
    %12 = arith.subf %6, %11 : vector<8x648xf32>
    %c0_5 = arith.constant 0 : index
    %c0_6 = arith.constant 0 : index
    %13 = vector.load %arg29[%c0_5, %c0_6] : memref<8x648xf32, #tpu.memory_space<vmem>>, vector<8x648xf32>
    tpu.vector_store %arg29[%c0_5, %c0_6], %12 {strides = array<i32>} : memref<8x648xf32, #tpu.memory_space<vmem>>, vector<8x648xf32>,
    %c0_7 = arith.constant 0 : index
    %c128 = arith.constant 128 : index
    %14 = vector.load %arg38[%c0_7, %c128] : memref<8x904xf32, #tpu.memory_space<vmem>>, vector<8x648xf32>
    tpu.vector_store %arg38[%c0_7, %c128], %11 {strides = array<i32>} : memref<8x904xf32, #tpu.memory_space<vmem>>, vector<8x648xf32>,
    %c0_8 = arith.constant 0 : index
    %c109 = arith.constant 109 : index
    %15 = vector.load %arg38[%c0_8, %c109] : memref<8x904xf32, #tpu.memory_space<vmem>>, vector<8x648xf32>
    %c0_9 = arith.constant 0 : index
    %c110 = arith.constant 110 : index
    %16 = vector.load %arg38[%c0_9, %c110] : memref<8x904xf32, #tpu.memory_space<vmem>>, vector<8x648xf32>
    %c0_10 = arith.constant 0 : index
    %c111 = arith.constant 111 : index
    %17 = vector.load %arg38[%c0_10, %c111] : memref<8x904xf32, #tpu.memory_space<vmem>>, vector<8x648xf32>
    %c0_11 = arith.constant 0 : index
    %c127 = arith.constant 127 : index
    %18 = vector.load %arg38[%c0_11, %c127] : memref<8x904xf32, #tpu.memory_space<vmem>>, vector<8x648xf32>
    %c0_12 = arith.constant 0 : index
    %c128_13 = arith.constant 128 : index
    %19 = vector.load %arg38[%c0_12, %c128_13] : memref<8x904xf32, #tpu.memory_space<vmem>>, vector<8x648xf32>
    %c0_14 = arith.constant 0 : index
    %c129 = arith.constant 129 : index
    %20 = vector.load %arg38[%c0_14, %c129] : memref<8x904xf32, #tpu.memory_space<vmem>>, vector<8x648xf32>
    %c0_15 = arith.constant 0 : index
    %c145 = arith.constant 145 : index
    %21 = vector.load %arg38[%c0_15, %c145] : memref<8x904xf32, #tpu.memory_space<vmem>>, vector<8x648xf32>
    %c0_16 = arith.constant 0 : index
    %c146 = arith.constant 146 : index
    %22 = vector.load %arg38[%c0_16, %c146] : memref<8x904xf32, #tpu.memory_space<vmem>>, vector<8x648xf32>
    %c0_17 = arith.constant 0 : index
    %c147 = arith.constant 147 : index
    %23 = vector.load %arg38[%c0_17, %c147] : memref<8x904xf32, #tpu.memory_space<vmem>>, vector<8x648xf32>
    %24 = tpu.concatenate %15, %16, %17, %18, %19, %20, %21, %22, %23 in 0 : vector<8x648xf32>, vector<8x648xf32>, vector<8x648xf32>, vector<8x648xf32>, vector<8x648xf32>, vector<8x648xf32>, vector<8x648xf32>, vector<8x648xf32>, vector<8x648xf32> -> vector<72x648xf32>
    %25 = arith.truncf %24 : vector<72x648xf32> to vector<72x648xbf16>
    %c0_18 = arith.constant 0 : index
    %c0_19 = arith.constant 0 : index
    %26 = vector.load %arg5[%c0_18, %c0_19] : memref<8x72xbf16, #tpu.memory_space<vmem>>, vector<8x72xbf16>
    %cst_20 = arith.constant dense<0.000000e+00> : vector<8x648xf32>
    %27 = tpu.matmul %26, %25, %cst_20 {dimension_numbers = #tpu.dot_dimension_numbers<[1], [0], [0], [1], [0, 0, 1, 1], [], []>} : vector<8x72xbf16>, vector<72x648xbf16>, vector<8x648xf32> -> vector<8x648xf32>
    %c0_21 = arith.constant 0 : index
    %c0_22 = arith.constant 0 : index
    %28 = vector.load %arg6[%c0_21, %c0_22] : memref<8x1xf32, #tpu.memory_space<vmem>>, vector<8x1xf32>
    %29 = vector.broadcast %28 : vector<8x1xf32> to vector<8x648xf32>
    %30 = arith.addf %27, %29 : vector<8x648xf32>
    %c0_23 = arith.constant 0 : index
    %c0_24 = arith.constant 0 : index
    %31 = vector.load %arg21[%c0_23, %c0_24] : memref<1x648xf32, #tpu.memory_space<vmem>>, vector<1x648xf32>
    %32 = vector.broadcast %31 : vector<1x648xf32> to vector<8x648xf32>
    %33 = arith.mulf %30, %32 : vector<8x648xf32>
    %c1 = arith.constant 1 : index
    %34 = memref.load %arg1[%c1] : memref<8xf32, #tpu.memory_space<smem>>
    %c0_25 = arith.constant 0 : index
    %c0_26 = arith.constant 0 : index
    %35 = vector.load %arg30[%c0_25, %c0_26] : memref<8x648xf32, #tpu.memory_space<vmem>>, vector<8x648xf32>
    %36 = arith.addf %35, %33 : vector<8x648xf32>
    %37 = vector.broadcast %34 : f32 to vector<8x648xf32>
    %38 = arith.cmpf oge, %36, %37 : vector<8x648xf32>
    %cst_27 = arith.constant 0.000000e+00 : f32
    %39 = vector.broadcast %34 : f32 to vector<8x648xf32>
    %40 = vector.broadcast %cst_27 : f32 to vector<8x648xf32>
    %41 = arith.select %38, %39, %40 : vector<8x648xi1>, vector<8x648xf32>
    %42 = arith.subf %36, %41 : vector<8x648xf32>
    %c0_28 = arith.constant 0 : index
    %c0_29 = arith.constant 0 : index
    %43 = vector.load %arg30[%c0_28, %c0_29] : memref<8x648xf32, #tpu.memory_space<vmem>>, vector<8x648xf32>
    tpu.vector_store %arg30[%c0_28, %c0_29], %42 {strides = array<i32>} : memref<8x648xf32, #tpu.memory_space<vmem>>, vector<8x648xf32>,
    %44 = arith.truncf %41 : vector<8x648xf32> to vector<8x648xbf16>
    %c0_30 = arith.constant 0 : index
    %c0_31 = arith.constant 0 : index
    %45 = vector.load %arg19[%c0_30, %c0_31] : memref<648x200xbf16, #tpu.memory_space<vmem>>, vector<648x200xbf16>
    %cst_32 = arith.constant dense<0.000000e+00> : vector<8x200xf32>
    %46 = tpu.matmul %44, %45, %cst_32 {dimension_numbers = #tpu.dot_dimension_numbers<[1], [0], [0], [1], [0, 0, 1, 1], [], []>} : vector<8x648xbf16>, vector<648x200xbf16>, vector<8x200xf32> -> vector<8x200xf32>
    %c0_33 = arith.constant 0 : index
    %c128_34 = arith.constant 128 : index
    %47 = vector.load %arg39[%c0_33, %c128_34] : memref<8x456xf32, #tpu.memory_space<vmem>>, vector<8x200xf32>
    tpu.vector_store %arg39[%c0_33, %c128_34], %46 {strides = array<i32>} : memref<8x456xf32, #tpu.memory_space<vmem>>, vector<8x200xf32>,
    %c0_35 = arith.constant 0 : index
    %c117 = arith.constant 117 : index
    %48 = vector.load %arg39[%c0_35, %c117] : memref<8x456xf32, #tpu.memory_space<vmem>>, vector<8x200xf32>
    %c0_36 = arith.constant 0 : index
    %c118 = arith.constant 118 : index
    %49 = vector.load %arg39[%c0_36, %c118] : memref<8x456xf32, #tpu.memory_space<vmem>>, vector<8x200xf32>
    %c0_37 = arith.constant 0 : index
    %c119 = arith.constant 119 : index
    %50 = vector.load %arg39[%c0_37, %c119] : memref<8x456xf32, #tpu.memory_space<vmem>>, vector<8x200xf32>
    %c0_38 = arith.constant 0 : index
    %c127_39 = arith.constant 127 : index
    %51 = vector.load %arg39[%c0_38, %c127_39] : memref<8x456xf32, #tpu.memory_space<vmem>>, vector<8x200xf32>
    %c0_40 = arith.constant 0 : index
    %c128_41 = arith.constant 128 : index
    %52 = vector.load %arg39[%c0_40, %c128_41] : memref<8x456xf32, #tpu.memory_space<vmem>>, vector<8x200xf32>
    %c0_42 = arith.constant 0 : index
    %c129_43 = arith.constant 129 : index
    %53 = vector.load %arg39[%c0_42, %c129_43] : memref<8x456xf32, #tpu.memory_space<vmem>>, vector<8x200xf32>
    %c0_44 = arith.constant 0 : index
    %c137 = arith.constant 137 : index
    %54 = vector.load %arg39[%c0_44, %c137] : memref<8x456xf32, #tpu.memory_space<vmem>>, vector<8x200xf32>
    %c0_45 = arith.constant 0 : index
    %c138 = arith.constant 138 : index
    %55 = vector.load %arg39[%c0_45, %c138] : memref<8x456xf32, #tpu.memory_space<vmem>>, vector<8x200xf32>
    %c0_46 = arith.constant 0 : index
    %c139 = arith.constant 139 : index
    %56 = vector.load %arg39[%c0_46, %c139] : memref<8x456xf32, #tpu.memory_space<vmem>>, vector<8x200xf32>
    %57 = tpu.concatenate %48, %49, %50, %51, %52, %53, %54, %55, %56 in 0 : vector<8x200xf32>, vector<8x200xf32>, vector<8x200xf32>, vector<8x200xf32>, vector<8x200xf32>, vector<8x200xf32>, vector<8x200xf32>, vector<8x200xf32>, vector<8x200xf32> -> vector<72x200xf32>
    %58 = arith.truncf %57 : vector<72x200xf32> to vector<72x200xbf16>
    %c0_47 = arith.constant 0 : index
    %c0_48 = arith.constant 0 : index
    %59 = vector.load %arg7[%c0_47, %c0_48] : memref<16x72xbf16, #tpu.memory_space<vmem>>, vector<16x72xbf16>
    %cst_49 = arith.constant dense<0.000000e+00> : vector<16x200xf32>
    %60 = tpu.matmul %59, %58, %cst_49 {dimension_numbers = #tpu.dot_dimension_numbers<[1], [0], [0], [1], [0, 0, 1, 1], [], []>} : vector<16x72xbf16>, vector<72x200xbf16>, vector<16x200xf32> -> vector<16x200xf32>
    %c0_50 = arith.constant 0 : index
    %c0_51 = arith.constant 0 : index
    %61 = vector.load %arg8[%c0_50, %c0_51] : memref<16x1xf32, #tpu.memory_space<vmem>>, vector<16x1xf32>
    %62 = vector.broadcast %61 : vector<16x1xf32> to vector<16x200xf32>
    %63 = arith.addf %60, %62 : vector<16x200xf32>
    %c0_52 = arith.constant 0 : index
    %c0_53 = arith.constant 0 : index
    %64 = vector.load %arg22[%c0_52, %c0_53] : memref<1x200xf32, #tpu.memory_space<vmem>>, vector<1x200xf32>
    %65 = vector.broadcast %64 : vector<1x200xf32> to vector<16x200xf32>
    %66 = arith.mulf %63, %65 : vector<16x200xf32>
    %c2 = arith.constant 2 : index
    %67 = memref.load %arg1[%c2] : memref<8xf32, #tpu.memory_space<smem>>
    %c0_54 = arith.constant 0 : index
    %c0_55 = arith.constant 0 : index
    %68 = vector.load %arg31[%c0_54, %c0_55] : memref<16x200xf32, #tpu.memory_space<vmem>>, vector<16x200xf32>
    %69 = arith.addf %68, %66 : vector<16x200xf32>
    %70 = vector.broadcast %67 : f32 to vector<16x200xf32>
    %71 = arith.cmpf oge, %69, %70 : vector<16x200xf32>
    %cst_56 = arith.constant 0.000000e+00 : f32
    %72 = vector.broadcast %67 : f32 to vector<16x200xf32>
    %73 = vector.broadcast %cst_56 : f32 to vector<16x200xf32>
    %74 = arith.select %71, %72, %73 : vector<16x200xi1>, vector<16x200xf32>
    %75 = arith.subf %69, %74 : vector<16x200xf32>
    %c0_57 = arith.constant 0 : index
    %c0_58 = arith.constant 0 : index
    %76 = vector.load %arg31[%c0_57, %c0_58] : memref<16x200xf32, #tpu.memory_space<vmem>>, vector<16x200xf32>
    tpu.vector_store %arg31[%c0_57, %c0_58], %75 {strides = array<i32>} : memref<16x200xf32, #tpu.memory_space<vmem>>, vector<16x200xf32>,
    %77 = arith.truncf %74 : vector<16x200xf32> to vector<16x200xbf16>
    %c0_59 = arith.constant 0 : index
    %c0_60 = arith.constant 0 : index
    %78 = vector.load %arg20[%c0_59, %c0_60] : memref<200x72xbf16, #tpu.memory_space<vmem>>, vector<200x72xbf16>
    %cst_61 = arith.constant dense<0.000000e+00> : vector<16x72xf32>
    %79 = tpu.matmul %77, %78, %cst_61 {dimension_numbers = #tpu.dot_dimension_numbers<[1], [0], [0], [1], [0, 0, 1, 1], [], []>} : vector<16x200xbf16>, vector<200x72xbf16>, vector<16x72xf32> -> vector<16x72xf32>
    %c0_62 = arith.constant 0 : index
    %c128_63 = arith.constant 128 : index
    %80 = vector.load %arg40[%c0_62, %c128_63] : memref<16x328xf32, #tpu.memory_space<vmem>>, vector<16x72xf32>
    tpu.vector_store %arg40[%c0_62, %c128_63], %79 {strides = array<i32>} : memref<16x328xf32, #tpu.memory_space<vmem>>, vector<16x72xf32>,
    %c0_64 = arith.constant 0 : index
    %c121 = arith.constant 121 : index
    %81 = vector.load %arg40[%c0_64, %c121] : memref<16x328xf32, #tpu.memory_space<vmem>>, vector<16x72xf32>
    %c0_65 = arith.constant 0 : index
    %c122 = arith.constant 122 : index
    %82 = vector.load %arg40[%c0_65, %c122] : memref<16x328xf32, #tpu.memory_space<vmem>>, vector<16x72xf32>
    %c0_66 = arith.constant 0 : index
    %c123 = arith.constant 123 : index
    %83 = vector.load %arg40[%c0_66, %c123] : memref<16x328xf32, #tpu.memory_space<vmem>>, vector<16x72xf32>
    %c0_67 = arith.constant 0 : index
    %c127_68 = arith.constant 127 : index
    %84 = vector.load %arg40[%c0_67, %c127_68] : memref<16x328xf32, #tpu.memory_space<vmem>>, vector<16x72xf32>
    %c0_69 = arith.constant 0 : index
    %c128_70 = arith.constant 128 : index
    %85 = vector.load %arg40[%c0_69, %c128_70] : memref<16x328xf32, #tpu.memory_space<vmem>>, vector<16x72xf32>
    %c0_71 = arith.constant 0 : index
    %c129_72 = arith.constant 129 : index
    %86 = vector.load %arg40[%c0_71, %c129_72] : memref<16x328xf32, #tpu.memory_space<vmem>>, vector<16x72xf32>
    %c0_73 = arith.constant 0 : index
    %c133 = arith.constant 133 : index
    %87 = vector.load %arg40[%c0_73, %c133] : memref<16x328xf32, #tpu.memory_space<vmem>>, vector<16x72xf32>
    %c0_74 = arith.constant 0 : index
    %c134 = arith.constant 134 : index
    %88 = vector.load %arg40[%c0_74, %c134] : memref<16x328xf32, #tpu.memory_space<vmem>>, vector<16x72xf32>
    %c0_75 = arith.constant 0 : index
    %c135 = arith.constant 135 : index
    %89 = vector.load %arg40[%c0_75, %c135] : memref<16x328xf32, #tpu.memory_space<vmem>>, vector<16x72xf32>
    %90 = tpu.concatenate %81, %82, %83, %84, %85, %86, %87, %88, %89 in 0 : vector<16x72xf32>, vector<16x72xf32>, vector<16x72xf32>, vector<16x72xf32>, vector<16x72xf32>, vector<16x72xf32>, vector<16x72xf32>, vector<16x72xf32>, vector<16x72xf32> -> vector<144x72xf32>
    %91 = arith.truncf %90 : vector<144x72xf32> to vector<144x72xbf16>
    %c0_76 = arith.constant 0 : index
    %c0_77 = arith.constant 0 : index
    %92 = vector.load %arg9[%c0_76, %c0_77] : memref<16x144xbf16, #tpu.memory_space<vmem>>, vector<16x144xbf16>
    %cst_78 = arith.constant dense<0.000000e+00> : vector<16x72xf32>
    %93 = tpu.matmul %92, %91, %cst_78 {dimension_numbers = #tpu.dot_dimension_numbers<[1], [0], [0], [1], [0, 0, 1, 1], [], []>} : vector<16x144xbf16>, vector<144x72xbf16>, vector<16x72xf32> -> vector<16x72xf32>
    %c0_79 = arith.constant 0 : index
    %c0_80 = arith.constant 0 : index
    %94 = vector.load %arg10[%c0_79, %c0_80] : memref<16x1xf32, #tpu.memory_space<vmem>>, vector<16x1xf32>
    %95 = vector.broadcast %94 : vector<16x1xf32> to vector<16x72xf32>
    %96 = arith.addf %93, %95 : vector<16x72xf32>
    %c0_81 = arith.constant 0 : index
    %c0_82 = arith.constant 0 : index
    %97 = vector.load %arg23[%c0_81, %c0_82] : memref<1x72xf32, #tpu.memory_space<vmem>>, vector<1x72xf32>
    %98 = vector.broadcast %97 : vector<1x72xf32> to vector<16x72xf32>
    %99 = arith.mulf %96, %98 : vector<16x72xf32>
    %c3 = arith.constant 3 : index
    %100 = memref.load %arg1[%c3] : memref<8xf32, #tpu.memory_space<smem>>
    %c0_83 = arith.constant 0 : index
    %c0_84 = arith.constant 0 : index
    %101 = vector.load %arg32[%c0_83, %c0_84] : memref<16x72xf32, #tpu.memory_space<vmem>>, vector<16x72xf32>
    %102 = arith.addf %101, %99 : vector<16x72xf32>
    %103 = vector.broadcast %100 : f32 to vector<16x72xf32>
    %104 = arith.cmpf oge, %102, %103 : vector<16x72xf32>
    %cst_85 = arith.constant 0.000000e+00 : f32
    %105 = vector.broadcast %100 : f32 to vector<16x72xf32>
    %106 = vector.broadcast %cst_85 : f32 to vector<16x72xf32>
    %107 = arith.select %104, %105, %106 : vector<16x72xi1>, vector<16x72xf32>
    %108 = arith.subf %102, %107 : vector<16x72xf32>
    %c0_86 = arith.constant 0 : index
    %c0_87 = arith.constant 0 : index
    %109 = vector.load %arg32[%c0_86, %c0_87] : memref<16x72xf32, #tpu.memory_space<vmem>>, vector<16x72xf32>
    tpu.vector_store %arg32[%c0_86, %c0_87], %108 {strides = array<i32>} : memref<16x72xf32, #tpu.memory_space<vmem>>, vector<16x72xf32>,
    %c0_88 = arith.constant 0 : index
    %c128_89 = arith.constant 128 : index
    %110 = vector.load %arg41[%c0_88, %c128_89] : memref<16x328xf32, #tpu.memory_space<vmem>>, vector<16x72xf32>
    tpu.vector_store %arg41[%c0_88, %c128_89], %107 {strides = array<i32>} : memref<16x328xf32, #tpu.memory_space<vmem>>, vector<16x72xf32>,
    %c0_90 = arith.constant 0 : index
    %c121_91 = arith.constant 121 : index
    %111 = vector.load %arg41[%c0_90, %c121_91] : memref<16x328xf32, #tpu.memory_space<vmem>>, vector<16x72xf32>
    %c0_92 = arith.constant 0 : index
    %c122_93 = arith.constant 122 : index
    %112 = vector.load %arg41[%c0_92, %c122_93] : memref<16x328xf32, #tpu.memory_space<vmem>>, vector<16x72xf32>
    %c0_94 = arith.constant 0 : index
    %c123_95 = arith.constant 123 : index
    %113 = vector.load %arg41[%c0_94, %c123_95] : memref<16x328xf32, #tpu.memory_space<vmem>>, vector<16x72xf32>
    %c0_96 = arith.constant 0 : index
    %c127_97 = arith.constant 127 : index
    %114 = vector.load %arg41[%c0_96, %c127_97] : memref<16x328xf32, #tpu.memory_space<vmem>>, vector<16x72xf32>
    %c0_98 = arith.constant 0 : index
    %c128_99 = arith.constant 128 : index
    %115 = vector.load %arg41[%c0_98, %c128_99] : memref<16x328xf32, #tpu.memory_space<vmem>>, vector<16x72xf32>
    %c0_100 = arith.constant 0 : index
    %c129_101 = arith.constant 129 : index
    %116 = vector.load %arg41[%c0_100, %c129_101] : memref<16x328xf32, #tpu.memory_space<vmem>>, vector<16x72xf32>
    %c0_102 = arith.constant 0 : index
    %c133_103 = arith.constant 133 : index
    %117 = vector.load %arg41[%c0_102, %c133_103] : memref<16x328xf32, #tpu.memory_space<vmem>>, vector<16x72xf32>
    %c0_104 = arith.constant 0 : index
    %c134_105 = arith.constant 134 : index
    %118 = vector.load %arg41[%c0_104, %c134_105] : memref<16x328xf32, #tpu.memory_space<vmem>>, vector<16x72xf32>
    %c0_106 = arith.constant 0 : index
    %c135_107 = arith.constant 135 : index
    %119 = vector.load %arg41[%c0_106, %c135_107] : memref<16x328xf32, #tpu.memory_space<vmem>>, vector<16x72xf32>
    %120 = tpu.concatenate %111, %112, %113, %114, %115, %116, %117, %118, %119 in 0 : vector<16x72xf32>, vector<16x72xf32>, vector<16x72xf32>, vector<16x72xf32>, vector<16x72xf32>, vector<16x72xf32>, vector<16x72xf32>, vector<16x72xf32>, vector<16x72xf32> -> vector<144x72xf32>
    %121 = arith.truncf %120 : vector<144x72xf32> to vector<144x72xbf16>
    %c0_108 = arith.constant 0 : index
    %c0_109 = arith.constant 0 : index
    %122 = vector.load %arg11[%c0_108, %c0_109] : memref<8x144xbf16, #tpu.memory_space<vmem>>, vector<8x144xbf16>
    %cst_110 = arith.constant dense<0.000000e+00> : vector<8x72xf32>
    %123 = tpu.matmul %122, %121, %cst_110 {dimension_numbers = #tpu.dot_dimension_numbers<[1], [0], [0], [1], [0, 0, 1, 1], [], []>} : vector<8x144xbf16>, vector<144x72xbf16>, vector<8x72xf32> -> vector<8x72xf32>
    %c0_111 = arith.constant 0 : index
    %c0_112 = arith.constant 0 : index
    %124 = vector.load %arg12[%c0_111, %c0_112] : memref<8x1xf32, #tpu.memory_space<vmem>>, vector<8x1xf32>
    %125 = vector.broadcast %124 : vector<8x1xf32> to vector<8x72xf32>
    %126 = arith.addf %123, %125 : vector<8x72xf32>
    %c0_113 = arith.constant 0 : index
    %c0_114 = arith.constant 0 : index
    %127 = vector.load %arg23[%c0_113, %c0_114] : memref<1x72xf32, #tpu.memory_space<vmem>>, vector<1x72xf32>
    %128 = vector.broadcast %127 : vector<1x72xf32> to vector<8x72xf32>
    %129 = arith.mulf %126, %128 : vector<8x72xf32>
    %c4 = arith.constant 4 : index
    %130 = memref.load %arg1[%c4] : memref<8xf32, #tpu.memory_space<smem>>
    %c0_115 = arith.constant 0 : index
    %c0_116 = arith.constant 0 : index
    %131 = vector.load %arg33[%c0_115, %c0_116] : memref<8x72xf32, #tpu.memory_space<vmem>>, vector<8x72xf32>
    %132 = arith.addf %131, %129 : vector<8x72xf32>
    %133 = vector.broadcast %130 : f32 to vector<8x72xf32>
    %134 = arith.cmpf oge, %132, %133 : vector<8x72xf32>
    %cst_117 = arith.constant 0.000000e+00 : f32
    %135 = vector.broadcast %130 : f32 to vector<8x72xf32>
    %136 = vector.broadcast %cst_117 : f32 to vector<8x72xf32>
    %137 = arith.select %134, %135, %136 : vector<8x72xi1>, vector<8x72xf32>
    %138 = arith.subf %132, %137 : vector<8x72xf32>
    %c0_118 = arith.constant 0 : index
    %c0_119 = arith.constant 0 : index
    %139 = vector.load %arg33[%c0_118, %c0_119] : memref<8x72xf32, #tpu.memory_space<vmem>>, vector<8x72xf32>
    tpu.vector_store %arg33[%c0_118, %c0_119], %138 {strides = array<i32>} : memref<8x72xf32, #tpu.memory_space<vmem>>, vector<8x72xf32>,
    %c0_120 = arith.constant 0 : index
    %c0_121 = arith.constant 0 : index
    %140 = vector.load %arg24[%c0_120, %c0_121] : memref<128x8xbf16, #tpu.memory_space<vmem>>, vector<128x8xbf16>
    %141 = arith.truncf %137 : vector<8x72xf32> to vector<8x72xbf16>
    %cst_122 = arith.constant dense<0.000000e+00> : vector<128x72xf32>
    %142 = tpu.matmul %140, %141, %cst_122 {dimension_numbers = #tpu.dot_dimension_numbers<[1], [0], [0], [1], [0, 0, 1, 1], [], []>} : vector<128x8xbf16>, vector<8x72xbf16>, vector<128x72xf32> -> vector<128x72xf32>
    %c0_123 = arith.constant 0 : index
    %c0_124 = arith.constant 0 : index
    %143 = vector.load %arg25[%c0_123, %c0_124] : memref<128x72xf32, #tpu.memory_space<vmem>>, vector<128x72xf32>
    %144 = arith.mulf %142, %143 : vector<128x72xf32>
    %145 = arith.truncf %144 : vector<128x72xf32> to vector<128x72xbf16>
    %c0_125 = arith.constant 0 : index
    %c0_126 = arith.constant 0 : index
    %146 = vector.load %arg26[%c0_125, %c0_126] : memref<72x2xbf16, #tpu.memory_space<vmem>>, vector<72x2xbf16>
    %cst_127 = arith.constant dense<0.000000e+00> : vector<128x2xf32>
    %147 = tpu.matmul %145, %146, %cst_127 {dimension_numbers = #tpu.dot_dimension_numbers<[1], [0], [0], [1], [0, 0, 1, 1], [], []>} : vector<128x72xbf16>, vector<72x2xbf16>, vector<128x2xf32> -> vector<128x2xf32>
    %c0_128 = arith.constant 0 : index
    %c0_129 = arith.constant 0 : index
    %148 = vector.load %arg13[%c0_128, %c0_129] : memref<32x128xbf16, #tpu.memory_space<vmem>>, vector<32x128xbf16>
    %149 = arith.truncf %147 : vector<128x2xf32> to vector<128x2xbf16>
    %cst_130 = arith.constant dense<0.000000e+00> : vector<32x2xf32>
    %150 = tpu.matmul %148, %149, %cst_130 {dimension_numbers = #tpu.dot_dimension_numbers<[1], [0], [0], [1], [0, 0, 1, 1], [], []>} : vector<32x128xbf16>, vector<128x2xbf16>, vector<32x2xf32> -> vector<32x2xf32>
    %c0_131 = arith.constant 0 : index
    %c0_132 = arith.constant 0 : index
    %151 = vector.load %arg14[%c0_131, %c0_132] : memref<32x1xf32, #tpu.memory_space<vmem>>, vector<32x1xf32>
    %152 = vector.broadcast %151 : vector<32x1xf32> to vector<32x2xf32>
    %153 = arith.addf %150, %152 : vector<32x2xf32>
    %c5 = arith.constant 5 : index
    %154 = memref.load %arg1[%c5] : memref<8xf32, #tpu.memory_space<smem>>
    %c0_133 = arith.constant 0 : index
    %c0_134 = arith.constant 0 : index
    %155 = vector.load %arg34[%c0_133, %c0_134] : memref<32x2xf32, #tpu.memory_space<vmem>>, vector<32x2xf32>
    %156 = arith.addf %155, %153 : vector<32x2xf32>
    %157 = vector.broadcast %154 : f32 to vector<32x2xf32>
    %158 = arith.cmpf oge, %156, %157 : vector<32x2xf32>
    %cst_135 = arith.constant 0.000000e+00 : f32
    %159 = vector.broadcast %154 : f32 to vector<32x2xf32>
    %160 = vector.broadcast %cst_135 : f32 to vector<32x2xf32>
    %161 = arith.select %158, %159, %160 : vector<32x2xi1>, vector<32x2xf32>
    %162 = arith.subf %156, %161 : vector<32x2xf32>
    %c0_136 = arith.constant 0 : index
    %c0_137 = arith.constant 0 : index
    %163 = vector.load %arg34[%c0_136, %c0_137] : memref<32x2xf32, #tpu.memory_space<vmem>>, vector<32x2xf32>
    tpu.vector_store %arg34[%c0_136, %c0_137], %162 {strides = array<i32>} : memref<32x2xf32, #tpu.memory_space<vmem>>, vector<32x2xf32>,
    %c0_138 = arith.constant 0 : index
    %c0_139 = arith.constant 0 : index
    %164 = vector.load %arg15[%c0_138, %c0_139] : memref<32x32xbf16, #tpu.memory_space<vmem>>, vector<32x32xbf16>
    %165 = arith.truncf %161 : vector<32x2xf32> to vector<32x2xbf16>
    %cst_140 = arith.constant dense<0.000000e+00> : vector<32x2xf32>
    %166 = tpu.matmul %164, %165, %cst_140 {dimension_numbers = #tpu.dot_dimension_numbers<[1], [0], [0], [1], [0, 0, 1, 1], [], []>} : vector<32x32xbf16>, vector<32x2xbf16>, vector<32x2xf32> -> vector<32x2xf32>
    %c0_141 = arith.constant 0 : index
    %c0_142 = arith.constant 0 : index
    %167 = vector.load %arg16[%c0_141, %c0_142] : memref<32x1xf32, #tpu.memory_space<vmem>>, vector<32x1xf32>
    %168 = vector.broadcast %167 : vector<32x1xf32> to vector<32x2xf32>
    %169 = arith.addf %166, %168 : vector<32x2xf32>
    %c6 = arith.constant 6 : index
    %170 = memref.load %arg1[%c6] : memref<8xf32, #tpu.memory_space<smem>>
    %c0_143 = arith.constant 0 : index
    %c0_144 = arith.constant 0 : index
    %171 = vector.load %arg35[%c0_143, %c0_144] : memref<32x2xf32, #tpu.memory_space<vmem>>, vector<32x2xf32>
    %172 = arith.addf %171, %169 : vector<32x2xf32>
    %173 = vector.broadcast %170 : f32 to vector<32x2xf32>
    %174 = arith.cmpf oge, %172, %173 : vector<32x2xf32>
    %cst_145 = arith.constant 0.000000e+00 : f32
    %175 = vector.broadcast %170 : f32 to vector<32x2xf32>
    %176 = vector.broadcast %cst_145 : f32 to vector<32x2xf32>
    %177 = arith.select %174, %175, %176 : vector<32x2xi1>, vector<32x2xf32>
    %178 = arith.subf %172, %177 : vector<32x2xf32>
    %c0_146 = arith.constant 0 : index
    %c0_147 = arith.constant 0 : index
    %179 = vector.load %arg35[%c0_146, %c0_147] : memref<32x2xf32, #tpu.memory_space<vmem>>, vector<32x2xf32>
    tpu.vector_store %arg35[%c0_146, %c0_147], %178 {strides = array<i32>} : memref<32x2xf32, #tpu.memory_space<vmem>>, vector<32x2xf32>,
    %c0_148 = arith.constant 0 : index
    %c0_149 = arith.constant 0 : index
    %180 = vector.load %arg17[%c0_148, %c0_149] : memref<10x32xbf16, #tpu.memory_space<vmem>>, vector<10x32xbf16>
    %181 = arith.truncf %177 : vector<32x2xf32> to vector<32x2xbf16>
    %cst_150 = arith.constant dense<0.000000e+00> : vector<10x2xf32>
    %182 = tpu.matmul %180, %181, %cst_150 {dimension_numbers = #tpu.dot_dimension_numbers<[1], [0], [0], [1], [0, 0, 1, 1], [], []>} : vector<10x32xbf16>, vector<32x2xbf16>, vector<10x2xf32> -> vector<10x2xf32>
    %c0_151 = arith.constant 0 : index
    %c0_152 = arith.constant 0 : index
    %183 = vector.load %arg18[%c0_151, %c0_152] : memref<10x1xf32, #tpu.memory_space<vmem>>, vector<10x1xf32>
    %184 = vector.broadcast %183 : vector<10x1xf32> to vector<10x2xf32>
    %185 = arith.addf %182, %184 : vector<10x2xf32>
    %c7 = arith.constant 7 : index
    %186 = memref.load %arg1[%c7] : memref<8xf32, #tpu.memory_space<smem>>
    %c0_153 = arith.constant 0 : index
    %c0_154 = arith.constant 0 : index
    %187 = vector.load %arg36[%c0_153, %c0_154] : memref<10x2xf32, #tpu.memory_space<vmem>>, vector<10x2xf32>
    %188 = arith.addf %187, %185 : vector<10x2xf32>
    %189 = vector.broadcast %186 : f32 to vector<10x2xf32>
    %190 = arith.cmpf oge, %188, %189 : vector<10x2xf32>
    %cst_155 = arith.constant 0.000000e+00 : f32
    %191 = vector.broadcast %186 : f32 to vector<10x2xf32>
    %192 = vector.broadcast %cst_155 : f32 to vector<10x2xf32>
    %193 = arith.select %190, %191, %192 : vector<10x2xi1>, vector<10x2xf32>
    %194 = arith.subf %188, %193 : vector<10x2xf32>
    %c0_156 = arith.constant 0 : index
    %c0_157 = arith.constant 0 : index
    %195 = vector.load %arg36[%c0_156, %c0_157] : memref<10x2xf32, #tpu.memory_space<vmem>>, vector<10x2xf32>
    tpu.vector_store %arg36[%c0_156, %c0_157], %194 {strides = array<i32>} : memref<10x2xf32, #tpu.memory_space<vmem>>, vector<10x2xf32>,
    %c0_158 = arith.constant 0 : index
    %c0_159 = arith.constant 0 : index
    %196 = vector.load %arg37[%c0_158, %c0_159] : memref<10x2xf32, #tpu.memory_space<vmem>>, vector<10x2xf32>
    %197 = arith.addf %196, %193 : vector<10x2xf32>
    %c0_160 = arith.constant 0 : index
    %c0_161 = arith.constant 0 : index
    %198 = vector.load %arg37[%c0_160, %c0_161] : memref<10x2xf32, #tpu.memory_space<vmem>>, vector<10x2xf32>
    tpu.vector_store %arg37[%c0_160, %c0_161], %197 {strides = array<i32>} : memref<10x2xf32, #tpu.memory_space<vmem>>, vector<10x2xf32>,
    %c0_162 = arith.constant 0 : index
    %c0_163 = arith.constant 0 : index
    %199 = vector.load %arg28[%c0_162, %c0_163] : memref<8x648xf32, #tpu.memory_space<vmem>>, vector<8x648xf32>
    %c0_164 = arith.constant 0 : index
    %200 = memref.load %arg1[%c0_164] : memref<8xf32, #tpu.memory_space<smem>>
    %c0_165 = arith.constant 0 : index
    %c0_166 = arith.constant 0 : index
    %201 = vector.load %arg29[%c0_165, %c0_166] : memref<8x648xf32, #tpu.memory_space<vmem>>, vector<8x648xf32>
    %202 = arith.addf %201, %199 : vector<8x648xf32>
    %203 = vector.broadcast %200 : f32 to vector<8x648xf32>
    %204 = arith.cmpf oge, %202, %203 : vector<8x648xf32>
    %cst_167 = arith.constant 0.000000e+00 : f32
    %205 = vector.broadcast %200 : f32 to vector<8x648xf32>
    %206 = vector.broadcast %cst_167 : f32 to vector<8x648xf32>
    %207 = arith.select %204, %205, %206 : vector<8x648xi1>, vector<8x648xf32>
    %208 = arith.subf %202, %207 : vector<8x648xf32>
    %c0_168 = arith.constant 0 : index
    %c0_169 = arith.constant 0 : index
    %209 = vector.load %arg29[%c0_168, %c0_169] : memref<8x648xf32, #tpu.memory_space<vmem>>, vector<8x648xf32>
    tpu.vector_store %arg29[%c0_168, %c0_169], %208 {strides = array<i32>} : memref<8x648xf32, #tpu.memory_space<vmem>>, vector<8x648xf32>,
    %c0_170 = arith.constant 0 : index
    %c128_171 = arith.constant 128 : index
    %210 = vector.load %arg38[%c0_170, %c128_171] : memref<8x904xf32, #tpu.memory_space<vmem>>, vector<8x648xf32>
    tpu.vector_store %arg38[%c0_170, %c128_171], %207 {strides = array<i32>} : memref<8x904xf32, #tpu.memory_space<vmem>>, vector<8x648xf32>,
    %c0_172 = arith.constant 0 : index
    %c109_173 = arith.constant 109 : index
    %211 = vector.load %arg38[%c0_172, %c109_173] : memref<8x904xf32, #tpu.memory_space<vmem>>, vector<8x648xf32>
    %c0_174 = arith.constant 0 : index
    %c110_175 = arith.constant 110 : index
    %212 = vector.load %arg38[%c0_174, %c110_175] : memref<8x904xf32, #tpu.memory_space<vmem>>, vector<8x648xf32>
    %c0_176 = arith.constant 0 : index
    %c111_177 = arith.constant 111 : index
    %213 = vector.load %arg38[%c0_176, %c111_177] : memref<8x904xf32, #tpu.memory_space<vmem>>, vector<8x648xf32>
    %c0_178 = arith.constant 0 : index
    %c127_179 = arith.constant 127 : index
    %214 = vector.load %arg38[%c0_178, %c127_179] : memref<8x904xf32, #tpu.memory_space<vmem>>, vector<8x648xf32>
    %c0_180 = arith.constant 0 : index
    %c128_181 = arith.constant 128 : index
    %215 = vector.load %arg38[%c0_180, %c128_181] : memref<8x904xf32, #tpu.memory_space<vmem>>, vector<8x648xf32>
    %c0_182 = arith.constant 0 : index
    %c129_183 = arith.constant 129 : index
    %216 = vector.load %arg38[%c0_182, %c129_183] : memref<8x904xf32, #tpu.memory_space<vmem>>, vector<8x648xf32>
    %c0_184 = arith.constant 0 : index
    %c145_185 = arith.constant 145 : index
    %217 = vector.load %arg38[%c0_184, %c145_185] : memref<8x904xf32, #tpu.memory_space<vmem>>, vector<8x648xf32>
    %c0_186 = arith.constant 0 : index
    %c146_187 = arith.constant 146 : index
    %218 = vector.load %arg38[%c0_186, %c146_187] : memref<8x904xf32, #tpu.memory_space<vmem>>, vector<8x648xf32>
    %c0_188 = arith.constant 0 : index
    %c147_189 = arith.constant 147 : index
    %219 = vector.load %arg38[%c0_188, %c147_189] : memref<8x904xf32, #tpu.memory_space<vmem>>, vector<8x648xf32>
    %220 = tpu.concatenate %211, %212, %213, %214, %215, %216, %217, %218, %219 in 0 : vector<8x648xf32>, vector<8x648xf32>, vector<8x648xf32>, vector<8x648xf32>, vector<8x648xf32>, vector<8x648xf32>, vector<8x648xf32>, vector<8x648xf32>, vector<8x648xf32> -> vector<72x648xf32>
    %221 = arith.truncf %220 : vector<72x648xf32> to vector<72x648xbf16>
    %c0_190 = arith.constant 0 : index
    %c0_191 = arith.constant 0 : index
    %222 = vector.load %arg5[%c0_190, %c0_191] : memref<8x72xbf16, #tpu.memory_space<vmem>>, vector<8x72xbf16>
    %cst_192 = arith.constant dense<0.000000e+00> : vector<8x648xf32>
    %223 = tpu.matmul %222, %221, %cst_192 {dimension_numbers = #tpu.dot_dimension_numbers<[1], [0], [0], [1], [0, 0, 1, 1], [], []>} : vector<8x72xbf16>, vector<72x648xbf16>, vector<8x648xf32> -> vector<8x648xf32>
    %c0_193 = arith.constant 0 : index
    %c0_194 = arith.constant 0 : index
    %224 = vector.load %arg6[%c0_193, %c0_194] : memref<8x1xf32, #tpu.memory_space<vmem>>, vector<8x1xf32>
    %225 = vector.broadcast %224 : vector<8x1xf32> to vector<8x648xf32>
    %226 = arith.addf %223, %225 : vector<8x648xf32>
    %c0_195 = arith.constant 0 : index
    %c0_196 = arith.constant 0 : index
    %227 = vector.load %arg21[%c0_195, %c0_196] : memref<1x648xf32, #tpu.memory_space<vmem>>, vector<1x648xf32>
    %228 = vector.broadcast %227 : vector<1x648xf32> to vector<8x648xf32>
    %229 = arith.mulf %226, %228 : vector<8x648xf32>
    %c1_197 = arith.constant 1 : index
    %230 = memref.load %arg1[%c1_197] : memref<8xf32, #tpu.memory_space<smem>>
    %c0_198 = arith.constant 0 : index
    %c0_199 = arith.constant 0 : index
    %231 = vector.load %arg30[%c0_198, %c0_199] : memref<8x648xf32, #tpu.memory_space<vmem>>, vector<8x648xf32>
    %232 = arith.addf %231, %229 : vector<8x648xf32>
    %233 = vector.broadcast %230 : f32 to vector<8x648xf32>
    %234 = arith.cmpf oge, %232, %233 : vector<8x648xf32>
    %cst_200 = arith.constant 0.000000e+00 : f32
    %235 = vector.broadcast %230 : f32 to vector<8x648xf32>
    %236 = vector.broadcast %cst_200 : f32 to vector<8x648xf32>
    %237 = arith.select %234, %235, %236 : vector<8x648xi1>, vector<8x648xf32>
    %238 = arith.subf %232, %237 : vector<8x648xf32>
    %c0_201 = arith.constant 0 : index
    %c0_202 = arith.constant 0 : index
    %239 = vector.load %arg30[%c0_201, %c0_202] : memref<8x648xf32, #tpu.memory_space<vmem>>, vector<8x648xf32>
    tpu.vector_store %arg30[%c0_201, %c0_202], %238 {strides = array<i32>} : memref<8x648xf32, #tpu.memory_space<vmem>>, vector<8x648xf32>,
    %240 = arith.truncf %237 : vector<8x648xf32> to vector<8x648xbf16>
    %c0_203 = arith.constant 0 : index
    %c0_204 = arith.constant 0 : index
    %241 = vector.load %arg19[%c0_203, %c0_204] : memref<648x200xbf16, #tpu.memory_space<vmem>>, vector<648x200xbf16>
    %cst_205 = arith.constant dense<0.000000e+00> : vector<8x200xf32>
    %242 = tpu.matmul %240, %241, %cst_205 {dimension_numbers = #tpu.dot_dimension_numbers<[1], [0], [0], [1], [0, 0, 1, 1], [], []>} : vector<8x648xbf16>, vector<648x200xbf16>, vector<8x200xf32> -> vector<8x200xf32>
    %c0_206 = arith.constant 0 : index
    %c128_207 = arith.constant 128 : index
    %243 = vector.load %arg39[%c0_206, %c128_207] : memref<8x456xf32, #tpu.memory_space<vmem>>, vector<8x200xf32>
    tpu.vector_store %arg39[%c0_206, %c128_207], %242 {strides = array<i32>} : memref<8x456xf32, #tpu.memory_space<vmem>>, vector<8x200xf32>,
    %c0_208 = arith.constant 0 : index
    %c117_209 = arith.constant 117 : index
    %244 = vector.load %arg39[%c0_208, %c117_209] : memref<8x456xf32, #tpu.memory_space<vmem>>, vector<8x200xf32>
    %c0_210 = arith.constant 0 : index
    %c118_211 = arith.constant 118 : index
    %245 = vector.load %arg39[%c0_210, %c118_211] : memref<8x456xf32, #tpu.memory_space<vmem>>, vector<8x200xf32>
    %c0_212 = arith.constant 0 : index
    %c119_213 = arith.constant 119 : index
    %246 = vector.load %arg39[%c0_212, %c119_213] : memref<8x456xf32, #tpu.memory_space<vmem>>, vector<8x200xf32>
    %c0_214 = arith.constant 0 : index
    %c127_215 = arith.constant 127 : index
    %247 = vector.load %arg39[%c0_214, %c127_215] : memref<8x456xf32, #tpu.memory_space<vmem>>, vector<8x200xf32>
    %c0_216 = arith.constant 0 : index
    %c128_217 = arith.constant 128 : index
    %248 = vector.load %arg39[%c0_216, %c128_217] : memref<8x456xf32, #tpu.memory_space<vmem>>, vector<8x200xf32>
    %c0_218 = arith.constant 0 : index
    %c129_219 = arith.constant 129 : index
    %249 = vector.load %arg39[%c0_218, %c129_219] : memref<8x456xf32, #tpu.memory_space<vmem>>, vector<8x200xf32>
    %c0_220 = arith.constant 0 : index
    %c137_221 = arith.constant 137 : index
    %250 = vector.load %arg39[%c0_220, %c137_221] : memref<8x456xf32, #tpu.memory_space<vmem>>, vector<8x200xf32>
    %c0_222 = arith.constant 0 : index
    %c138_223 = arith.constant 138 : index
    %251 = vector.load %arg39[%c0_222, %c138_223] : memref<8x456xf32, #tpu.memory_space<vmem>>, vector<8x200xf32>
    %c0_224 = arith.constant 0 : index
    %c139_225 = arith.constant 139 : index
    %252 = vector.load %arg39[%c0_224, %c139_225] : memref<8x456xf32, #tpu.memory_space<vmem>>, vector<8x200xf32>
    %253 = tpu.concatenate %244, %245, %246, %247, %248, %249, %250, %251, %252 in 0 : vector<8x200xf32>, vector<8x200xf32>, vector<8x200xf32>, vector<8x200xf32>, vector<8x200xf32>, vector<8x200xf32>, vector<8x200xf32>, vector<8x200xf32>, vector<8x200xf32> -> vector<72x200xf32>
    %254 = arith.truncf %253 : vector<72x200xf32> to vector<72x200xbf16>
    %c0_226 = arith.constant 0 : index
    %c0_227 = arith.constant 0 : index
    %255 = vector.load %arg7[%c0_226, %c0_227] : memref<16x72xbf16, #tpu.memory_space<vmem>>, vector<16x72xbf16>
    %cst_228 = arith.constant dense<0.000000e+00> : vector<16x200xf32>
    %256 = tpu.matmul %255, %254, %cst_228 {dimension_numbers = #tpu.dot_dimension_numbers<[1], [0], [0], [1], [0, 0, 1, 1], [], []>} : vector<16x72xbf16>, vector<72x200xbf16>, vector<16x200xf32> -> vector<16x200xf32>
    %c0_229 = arith.constant 0 : index
    %c0_230 = arith.constant 0 : index
    %257 = vector.load %arg8[%c0_229, %c0_230] : memref<16x1xf32, #tpu.memory_space<vmem>>, vector<16x1xf32>
    %258 = vector.broadcast %257 : vector<16x1xf32> to vector<16x200xf32>
    %259 = arith.addf %256, %258 : vector<16x200xf32>
    %c0_231 = arith.constant 0 : index
    %c0_232 = arith.constant 0 : index
    %260 = vector.load %arg22[%c0_231, %c0_232] : memref<1x200xf32, #tpu.memory_space<vmem>>, vector<1x200xf32>
    %261 = vector.broadcast %260 : vector<1x200xf32> to vector<16x200xf32>
    %262 = arith.mulf %259, %261 : vector<16x200xf32>
    %c2_233 = arith.constant 2 : index
    %263 = memref.load %arg1[%c2_233] : memref<8xf32, #tpu.memory_space<smem>>
    %c0_234 = arith.constant 0 : index
    %c0_235 = arith.constant 0 : index
    %264 = vector.load %arg31[%c0_234, %c0_235] : memref<16x200xf32, #tpu.memory_space<vmem>>, vector<16x200xf32>
    %265 = arith.addf %264, %262 : vector<16x200xf32>
    %266 = vector.broadcast %263 : f32 to vector<16x200xf32>
    %267 = arith.cmpf oge, %265, %266 : vector<16x200xf32>
    %cst_236 = arith.constant 0.000000e+00 : f32
    %268 = vector.broadcast %263 : f32 to vector<16x200xf32>
    %269 = vector.broadcast %cst_236 : f32 to vector<16x200xf32>
    %270 = arith.select %267, %268, %269 : vector<16x200xi1>, vector<16x200xf32>
    %271 = arith.subf %265, %270 : vector<16x200xf32>
    %c0_237 = arith.constant 0 : index
    %c0_238 = arith.constant 0 : index
    %272 = vector.load %arg31[%c0_237, %c0_238] : memref<16x200xf32, #tpu.memory_space<vmem>>, vector<16x200xf32>
    tpu.vector_store %arg31[%c0_237, %c0_238], %271 {strides = array<i32>} : memref<16x200xf32, #tpu.memory_space<vmem>>, vector<16x200xf32>,
    %273 = arith.truncf %270 : vector<16x200xf32> to vector<16x200xbf16>
    %c0_239 = arith.constant 0 : index
    %c0_240 = arith.constant 0 : index
    %274 = vector.load %arg20[%c0_239, %c0_240] : memref<200x72xbf16, #tpu.memory_space<vmem>>, vector<200x72xbf16>
    %cst_241 = arith.constant dense<0.000000e+00> : vector<16x72xf32>
    %275 = tpu.matmul %273, %274, %cst_241 {dimension_numbers = #tpu.dot_dimension_numbers<[1], [0], [0], [1], [0, 0, 1, 1], [], []>} : vector<16x200xbf16>, vector<200x72xbf16>, vector<16x72xf32> -> vector<16x72xf32>
    %c0_242 = arith.constant 0 : index
    %c128_243 = arith.constant 128 : index
    %276 = vector.load %arg40[%c0_242, %c128_243] : memref<16x328xf32, #tpu.memory_space<vmem>>, vector<16x72xf32>
    tpu.vector_store %arg40[%c0_242, %c128_243], %275 {strides = array<i32>} : memref<16x328xf32, #tpu.memory_space<vmem>>, vector<16x72xf32>,
    %c0_244 = arith.constant 0 : index
    %c121_245 = arith.constant 121 : index
    %277 = vector.load %arg40[%c0_244, %c121_245] : memref<16x328xf32, #tpu.memory_space<vmem>>, vector<16x72xf32>
    %c0_246 = arith.constant 0 : index
    %c122_247 = arith.constant 122 : index
    %278 = vector.load %arg40[%c0_246, %c122_247] : memref<16x328xf32, #tpu.memory_space<vmem>>, vector<16x72xf32>
    %c0_248 = arith.constant 0 : index
    %c123_249 = arith.constant 123 : index
    %279 = vector.load %arg40[%c0_248, %c123_249] : memref<16x328xf32, #tpu.memory_space<vmem>>, vector<16x72xf32>
    %c0_250 = arith.constant 0 : index
    %c127_251 = arith.constant 127 : index
    %280 = vector.load %arg40[%c0_250, %c127_251] : memref<16x328xf32, #tpu.memory_space<vmem>>, vector<16x72xf32>
    %c0_252 = arith.constant 0 : index
    %c128_253 = arith.constant 128 : index
    %281 = vector.load %arg40[%c0_252, %c128_253] : memref<16x328xf32, #tpu.memory_space<vmem>>, vector<16x72xf32>
    %c0_254 = arith.constant 0 : index
    %c129_255 = arith.constant 129 : index
    %282 = vector.load %arg40[%c0_254, %c129_255] : memref<16x328xf32, #tpu.memory_space<vmem>>, vector<16x72xf32>
    %c0_256 = arith.constant 0 : index
    %c133_257 = arith.constant 133 : index
    %283 = vector.load %arg40[%c0_256, %c133_257] : memref<16x328xf32, #tpu.memory_space<vmem>>, vector<16x72xf32>
    %c0_258 = arith.constant 0 : index
    %c134_259 = arith.constant 134 : index
    %284 = vector.load %arg40[%c0_258, %c134_259] : memref<16x328xf32, #tpu.memory_space<vmem>>, vector<16x72xf32>
    %c0_260 = arith.constant 0 : index
    %c135_261 = arith.constant 135 : index
    %285 = vector.load %arg40[%c0_260, %c135_261] : memref<16x328xf32, #tpu.memory_space<vmem>>, vector<16x72xf32>
    %286 = tpu.concatenate %277, %278, %279, %280, %281, %282, %283, %284, %285 in 0 : vector<16x72xf32>, vector<16x72xf32>, vector<16x72xf32>, vector<16x72xf32>, vector<16x72xf32>, vector<16x72xf32>, vector<16x72xf32>, vector<16x72xf32>, vector<16x72xf32> -> vector<144x72xf32>
    %287 = arith.truncf %286 : vector<144x72xf32> to vector<144x72xbf16>
    %c0_262 = arith.constant 0 : index
    %c0_263 = arith.constant 0 : index
    %288 = vector.load %arg9[%c0_262, %c0_263] : memref<16x144xbf16, #tpu.memory_space<vmem>>, vector<16x144xbf16>
    %cst_264 = arith.constant dense<0.000000e+00> : vector<16x72xf32>
    %289 = tpu.matmul %288, %287, %cst_264 {dimension_numbers = #tpu.dot_dimension_numbers<[1], [0], [0], [1], [0, 0, 1, 1], [], []>} : vector<16x144xbf16>, vector<144x72xbf16>, vector<16x72xf32> -> vector<16x72xf32>
    %c0_265 = arith.constant 0 : index
    %c0_266 = arith.constant 0 : index
    %290 = vector.load %arg10[%c0_265, %c0_266] : memref<16x1xf32, #tpu.memory_space<vmem>>, vector<16x1xf32>
    %291 = vector.broadcast %290 : vector<16x1xf32> to vector<16x72xf32>
    %292 = arith.addf %289, %291 : vector<16x72xf32>
    %c0_267 = arith.constant 0 : index
    %c0_268 = arith.constant 0 : index
    %293 = vector.load %arg23[%c0_267, %c0_268] : memref<1x72xf32, #tpu.memory_space<vmem>>, vector<1x72xf32>
    %294 = vector.broadcast %293 : vector<1x72xf32> to vector<16x72xf32>
    %295 = arith.mulf %292, %294 : vector<16x72xf32>
    %c3_269 = arith.constant 3 : index
    %296 = memref.load %arg1[%c3_269] : memref<8xf32, #tpu.memory_space<smem>>
    %c0_270 = arith.constant 0 : index
    %c0_271 = arith.constant 0 : index
    %297 = vector.load %arg32[%c0_270, %c0_271] : memref<16x72xf32, #tpu.memory_space<vmem>>, vector<16x72xf32>
    %298 = arith.addf %297, %295 : vector<16x72xf32>
    %299 = vector.broadcast %296 : f32 to vector<16x72xf32>
    %300 = arith.cmpf oge, %298, %299 : vector<16x72xf32>
    %cst_272 = arith.constant 0.000000e+00 : f32
    %301 = vector.broadcast %296 : f32 to vector<16x72xf32>
    %302 = vector.broadcast %cst_272 : f32 to vector<16x72xf32>
    %303 = arith.select %300, %301, %302 : vector<16x72xi1>, vector<16x72xf32>
    %304 = arith.subf %298, %303 : vector<16x72xf32>
    %c0_273 = arith.constant 0 : index
    %c0_274 = arith.constant 0 : index
    %305 = vector.load %arg32[%c0_273, %c0_274] : memref<16x72xf32, #tpu.memory_space<vmem>>, vector<16x72xf32>
    tpu.vector_store %arg32[%c0_273, %c0_274], %304 {strides = array<i32>} : memref<16x72xf32, #tpu.memory_space<vmem>>, vector<16x72xf32>,
    %c0_275 = arith.constant 0 : index
    %c128_276 = arith.constant 128 : index
    %306 = vector.load %arg41[%c0_275, %c128_276] : memref<16x328xf32, #tpu.memory_space<vmem>>, vector<16x72xf32>
    tpu.vector_store %arg41[%c0_275, %c128_276], %303 {strides = array<i32>} : memref<16x328xf32, #tpu.memory_space<vmem>>, vector<16x72xf32>,
    %c0_277 = arith.constant 0 : index
    %c121_278 = arith.constant 121 : index
    %307 = vector.load %arg41[%c0_277, %c121_278] : memref<16x328xf32, #tpu.memory_space<vmem>>, vector<16x72xf32>
    %c0_279 = arith.constant 0 : index
    %c122_280 = arith.constant 122 : index
    %308 = vector.load %arg41[%c0_279, %c122_280] : memref<16x328xf32, #tpu.memory_space<vmem>>, vector<16x72xf32>
    %c0_281 = arith.constant 0 : index
    %c123_282 = arith.constant 123 : index
    %309 = vector.load %arg41[%c0_281, %c123_282] : memref<16x328xf32, #tpu.memory_space<vmem>>, vector<16x72xf32>
    %c0_283 = arith.constant 0 : index
    %c127_284 = arith.constant 127 : index
    %310 = vector.load %arg41[%c0_283, %c127_284] : memref<16x328xf32, #tpu.memory_space<vmem>>, vector<16x72xf32>
    %c0_285 = arith.constant 0 : index
    %c128_286 = arith.constant 128 : index
    %311 = vector.load %arg41[%c0_285, %c128_286] : memref<16x328xf32, #tpu.memory_space<vmem>>, vector<16x72xf32>
    %c0_287 = arith.constant 0 : index
    %c129_288 = arith.constant 129 : index
    %312 = vector.load %arg41[%c0_287, %c129_288] : memref<16x328xf32, #tpu.memory_space<vmem>>, vector<16x72xf32>
    %c0_289 = arith.constant 0 : index
    %c133_290 = arith.constant 133 : index
    %313 = vector.load %arg41[%c0_289, %c133_290] : memref<16x328xf32, #tpu.memory_space<vmem>>, vector<16x72xf32>
    %c0_291 = arith.constant 0 : index
    %c134_292 = arith.constant 134 : index
    %314 = vector.load %arg41[%c0_291, %c134_292] : memref<16x328xf32, #tpu.memory_space<vmem>>, vector<16x72xf32>
    %c0_293 = arith.constant 0 : index
    %c135_294 = arith.constant 135 : index
    %315 = vector.load %arg41[%c0_293, %c135_294] : memref<16x328xf32, #tpu.memory_space<vmem>>, vector<16x72xf32>
    %316 = tpu.concatenate %307, %308, %309, %310, %311, %312, %313, %314, %315 in 0 : vector<16x72xf32>, vector<16x72xf32>, vector<16x72xf32>, vector<16x72xf32>, vector<16x72xf32>, vector<16x72xf32>, vector<16x72xf32>, vector<16x72xf32>, vector<16x72xf32> -> vector<144x72xf32>
    %317 = arith.truncf %316 : vector<144x72xf32> to vector<144x72xbf16>
    %c0_295 = arith.constant 0 : index
    %c0_296 = arith.constant 0 : index
    %318 = vector.load %arg11[%c0_295, %c0_296] : memref<8x144xbf16, #tpu.memory_space<vmem>>, vector<8x144xbf16>
    %cst_297 = arith.constant dense<0.000000e+00> : vector<8x72xf32>
    %319 = tpu.matmul %318, %317, %cst_297 {dimension_numbers = #tpu.dot_dimension_numbers<[1], [0], [0], [1], [0, 0, 1, 1], [], []>} : vector<8x144xbf16>, vector<144x72xbf16>, vector<8x72xf32> -> vector<8x72xf32>
    %c0_298 = arith.constant 0 : index
    %c0_299 = arith.constant 0 : index
    %320 = vector.load %arg12[%c0_298, %c0_299] : memref<8x1xf32, #tpu.memory_space<vmem>>, vector<8x1xf32>
    %321 = vector.broadcast %320 : vector<8x1xf32> to vector<8x72xf32>
    %322 = arith.addf %319, %321 : vector<8x72xf32>
    %c0_300 = arith.constant 0 : index
    %c0_301 = arith.constant 0 : index
    %323 = vector.load %arg23[%c0_300, %c0_301] : memref<1x72xf32, #tpu.memory_space<vmem>>, vector<1x72xf32>
    %324 = vector.broadcast %323 : vector<1x72xf32> to vector<8x72xf32>
    %325 = arith.mulf %322, %324 : vector<8x72xf32>
    %c4_302 = arith.constant 4 : index
    %326 = memref.load %arg1[%c4_302] : memref<8xf32, #tpu.memory_space<smem>>
    %c0_303 = arith.constant 0 : index
    %c0_304 = arith.constant 0 : index
    %327 = vector.load %arg33[%c0_303, %c0_304] : memref<8x72xf32, #tpu.memory_space<vmem>>, vector<8x72xf32>
    %328 = arith.addf %327, %325 : vector<8x72xf32>
    %329 = vector.broadcast %326 : f32 to vector<8x72xf32>
    %330 = arith.cmpf oge, %328, %329 : vector<8x72xf32>
    %cst_305 = arith.constant 0.000000e+00 : f32
    %331 = vector.broadcast %326 : f32 to vector<8x72xf32>
    %332 = vector.broadcast %cst_305 : f32 to vector<8x72xf32>
    %333 = arith.select %330, %331, %332 : vector<8x72xi1>, vector<8x72xf32>
    %334 = arith.subf %328, %333 : vector<8x72xf32>
    %c0_306 = arith.constant 0 : index
    %c0_307 = arith.constant 0 : index
    %335 = vector.load %arg33[%c0_306, %c0_307] : memref<8x72xf32, #tpu.memory_space<vmem>>, vector<8x72xf32>
    tpu.vector_store %arg33[%c0_306, %c0_307], %334 {strides = array<i32>} : memref<8x72xf32, #tpu.memory_space<vmem>>, vector<8x72xf32>,
    %c0_308 = arith.constant 0 : index
    %c0_309 = arith.constant 0 : index
    %336 = vector.load %arg24[%c0_308, %c0_309] : memref<128x8xbf16, #tpu.memory_space<vmem>>, vector<128x8xbf16>
    %337 = arith.truncf %333 : vector<8x72xf32> to vector<8x72xbf16>
    %cst_310 = arith.constant dense<0.000000e+00> : vector<128x72xf32>
    %338 = tpu.matmul %336, %337, %cst_310 {dimension_numbers = #tpu.dot_dimension_numbers<[1], [0], [0], [1], [0, 0, 1, 1], [], []>} : vector<128x8xbf16>, vector<8x72xbf16>, vector<128x72xf32> -> vector<128x72xf32>
    %c0_311 = arith.constant 0 : index
    %c0_312 = arith.constant 0 : index
    %339 = vector.load %arg25[%c0_311, %c0_312] : memref<128x72xf32, #tpu.memory_space<vmem>>, vector<128x72xf32>
    %340 = arith.mulf %338, %339 : vector<128x72xf32>
    %341 = arith.truncf %340 : vector<128x72xf32> to vector<128x72xbf16>
    %c0_313 = arith.constant 0 : index
    %c0_314 = arith.constant 0 : index
    %342 = vector.load %arg26[%c0_313, %c0_314] : memref<72x2xbf16, #tpu.memory_space<vmem>>, vector<72x2xbf16>
    %cst_315 = arith.constant dense<0.000000e+00> : vector<128x2xf32>
    %343 = tpu.matmul %341, %342, %cst_315 {dimension_numbers = #tpu.dot_dimension_numbers<[1], [0], [0], [1], [0, 0, 1, 1], [], []>} : vector<128x72xbf16>, vector<72x2xbf16>, vector<128x2xf32> -> vector<128x2xf32>
    %c0_316 = arith.constant 0 : index
    %c0_317 = arith.constant 0 : index
    %344 = vector.load %arg13[%c0_316, %c0_317] : memref<32x128xbf16, #tpu.memory_space<vmem>>, vector<32x128xbf16>
    %345 = arith.truncf %343 : vector<128x2xf32> to vector<128x2xbf16>
    %cst_318 = arith.constant dense<0.000000e+00> : vector<32x2xf32>
    %346 = tpu.matmul %344, %345, %cst_318 {dimension_numbers = #tpu.dot_dimension_numbers<[1], [0], [0], [1], [0, 0, 1, 1], [], []>} : vector<32x128xbf16>, vector<128x2xbf16>, vector<32x2xf32> -> vector<32x2xf32>
    %c0_319 = arith.constant 0 : index
    %c0_320 = arith.constant 0 : index
    %347 = vector.load %arg14[%c0_319, %c0_320] : memref<32x1xf32, #tpu.memory_space<vmem>>, vector<32x1xf32>
    %348 = vector.broadcast %347 : vector<32x1xf32> to vector<32x2xf32>
    %349 = arith.addf %346, %348 : vector<32x2xf32>
    %c5_321 = arith.constant 5 : index
    %350 = memref.load %arg1[%c5_321] : memref<8xf32, #tpu.memory_space<smem>>
    %c0_322 = arith.constant 0 : index
    %c0_323 = arith.constant 0 : index
    %351 = vector.load %arg34[%c0_322, %c0_323] : memref<32x2xf32, #tpu.memory_space<vmem>>, vector<32x2xf32>
    %352 = arith.addf %351, %349 : vector<32x2xf32>
    %353 = vector.broadcast %350 : f32 to vector<32x2xf32>
    %354 = arith.cmpf oge, %352, %353 : vector<32x2xf32>
    %cst_324 = arith.constant 0.000000e+00 : f32
    %355 = vector.broadcast %350 : f32 to vector<32x2xf32>
    %356 = vector.broadcast %cst_324 : f32 to vector<32x2xf32>
    %357 = arith.select %354, %355, %356 : vector<32x2xi1>, vector<32x2xf32>
    %358 = arith.subf %352, %357 : vector<32x2xf32>
    %c0_325 = arith.constant 0 : index
    %c0_326 = arith.constant 0 : index
    %359 = vector.load %arg34[%c0_325, %c0_326] : memref<32x2xf32, #tpu.memory_space<vmem>>, vector<32x2xf32>
    tpu.vector_store %arg34[%c0_325, %c0_326], %358 {strides = array<i32>} : memref<32x2xf32, #tpu.memory_space<vmem>>, vector<32x2xf32>,
    %c0_327 = arith.constant 0 : index
    %c0_328 = arith.constant 0 : index
    %360 = vector.load %arg15[%c0_327, %c0_328] : memref<32x32xbf16, #tpu.memory_space<vmem>>, vector<32x32xbf16>
    %361 = arith.truncf %357 : vector<32x2xf32> to vector<32x2xbf16>
    %cst_329 = arith.constant dense<0.000000e+00> : vector<32x2xf32>
    %362 = tpu.matmul %360, %361, %cst_329 {dimension_numbers = #tpu.dot_dimension_numbers<[1], [0], [0], [1], [0, 0, 1, 1], [], []>} : vector<32x32xbf16>, vector<32x2xbf16>, vector<32x2xf32> -> vector<32x2xf32>
    %c0_330 = arith.constant 0 : index
    %c0_331 = arith.constant 0 : index
    %363 = vector.load %arg16[%c0_330, %c0_331] : memref<32x1xf32, #tpu.memory_space<vmem>>, vector<32x1xf32>
    %364 = vector.broadcast %363 : vector<32x1xf32> to vector<32x2xf32>
    %365 = arith.addf %362, %364 : vector<32x2xf32>
    %c6_332 = arith.constant 6 : index
    %366 = memref.load %arg1[%c6_332] : memref<8xf32, #tpu.memory_space<smem>>
    %c0_333 = arith.constant 0 : index
    %c0_334 = arith.constant 0 : index
    %367 = vector.load %arg35[%c0_333, %c0_334] : memref<32x2xf32, #tpu.memory_space<vmem>>, vector<32x2xf32>
    %368 = arith.addf %367, %365 : vector<32x2xf32>
    %369 = vector.broadcast %366 : f32 to vector<32x2xf32>
    %370 = arith.cmpf oge, %368, %369 : vector<32x2xf32>
    %cst_335 = arith.constant 0.000000e+00 : f32
    %371 = vector.broadcast %366 : f32 to vector<32x2xf32>
    %372 = vector.broadcast %cst_335 : f32 to vector<32x2xf32>
    %373 = arith.select %370, %371, %372 : vector<32x2xi1>, vector<32x2xf32>
    %374 = arith.subf %368, %373 : vector<32x2xf32>
    %c0_336 = arith.constant 0 : index
    %c0_337 = arith.constant 0 : index
    %375 = vector.load %arg35[%c0_336, %c0_337] : memref<32x2xf32, #tpu.memory_space<vmem>>, vector<32x2xf32>
    tpu.vector_store %arg35[%c0_336, %c0_337], %374 {strides = array<i32>} : memref<32x2xf32, #tpu.memory_space<vmem>>, vector<32x2xf32>,
    %c0_338 = arith.constant 0 : index
    %c0_339 = arith.constant 0 : index
    %376 = vector.load %arg17[%c0_338, %c0_339] : memref<10x32xbf16, #tpu.memory_space<vmem>>, vector<10x32xbf16>
    %377 = arith.truncf %373 : vector<32x2xf32> to vector<32x2xbf16>
    %cst_340 = arith.constant dense<0.000000e+00> : vector<10x2xf32>
    %378 = tpu.matmul %376, %377, %cst_340 {dimension_numbers = #tpu.dot_dimension_numbers<[1], [0], [0], [1], [0, 0, 1, 1], [], []>} : vector<10x32xbf16>, vector<32x2xbf16>, vector<10x2xf32> -> vector<10x2xf32>
    %c0_341 = arith.constant 0 : index
    %c0_342 = arith.constant 0 : index
    %379 = vector.load %arg18[%c0_341, %c0_342] : memref<10x1xf32, #tpu.memory_space<vmem>>, vector<10x1xf32>
    %380 = vector.broadcast %379 : vector<10x1xf32> to vector<10x2xf32>
    %381 = arith.addf %378, %380 : vector<10x2xf32>
    %c7_343 = arith.constant 7 : index
    %382 = memref.load %arg1[%c7_343] : memref<8xf32, #tpu.memory_space<smem>>
    %c0_344 = arith.constant 0 : index
    %c0_345 = arith.constant 0 : index
    %383 = vector.load %arg36[%c0_344, %c0_345] : memref<10x2xf32, #tpu.memory_space<vmem>>, vector<10x2xf32>
    %384 = arith.addf %383, %381 : vector<10x2xf32>
    %385 = vector.broadcast %382 : f32 to vector<10x2xf32>
    %386 = arith.cmpf oge, %384, %385 : vector<10x2xf32>
    %cst_346 = arith.constant 0.000000e+00 : f32
    %387 = vector.broadcast %382 : f32 to vector<10x2xf32>
    %388 = vector.broadcast %cst_346 : f32 to vector<10x2xf32>
    %389 = arith.select %386, %387, %388 : vector<10x2xi1>, vector<10x2xf32>
    %390 = arith.subf %384, %389 : vector<10x2xf32>
    %c0_347 = arith.constant 0 : index
    %c0_348 = arith.constant 0 : index
    %391 = vector.load %arg36[%c0_347, %c0_348] : memref<10x2xf32, #tpu.memory_space<vmem>>, vector<10x2xf32>
    tpu.vector_store %arg36[%c0_347, %c0_348], %390 {strides = array<i32>} : memref<10x2xf32, #tpu.memory_space<vmem>>, vector<10x2xf32>,
    %c0_349 = arith.constant 0 : index
    %c0_350 = arith.constant 0 : index
    %392 = vector.load %arg37[%c0_349, %c0_350] : memref<10x2xf32, #tpu.memory_space<vmem>>, vector<10x2xf32>
    %393 = arith.addf %392, %389 : vector<10x2xf32>
    %c0_351 = arith.constant 0 : index
    %c0_352 = arith.constant 0 : index
    %394 = vector.load %arg37[%c0_351, %c0_352] : memref<10x2xf32, #tpu.memory_space<vmem>>, vector<10x2xf32>
    tpu.vector_store %arg37[%c0_351, %c0_352], %393 {strides = array<i32>} : memref<10x2xf32, #tpu.memory_space<vmem>>, vector<10x2xf32>,
    %c1_i32 = arith.constant 1 : i32
    %395 = arith.addi %arg0, %c1_i32 : i32
    %c2_i32 = arith.constant 2 : i32
    %396 = arith.muli %395, %c2_i32 : i32
    %397 = arith.sitofp %396 : i32 to f32
    %c0_353 = arith.constant 0 : index
    %c0_354 = arith.constant 0 : index
    %398 = vector.load %arg37[%c0_353, %c0_354] : memref<10x2xf32, #tpu.memory_space<vmem>>, vector<10x2xf32>
    %399 = vector.broadcast %397 : f32 to vector<10x2xf32>
    %400 = arith.divf %398, %399 : vector<10x2xf32>
    %c0_355 = arith.constant 0 : index
    %c0_356 = arith.constant 0 : index
    %c0_357 = arith.constant 0 : index
    %401 = vector.load %arg27[%c0_355, %c0_356, %c0_357] : memref<1x10x2xf32, #tpu.memory_space<vmem>>, vector<1x10x2xf32>
    %402 = vector.shape_cast %401 : vector<1x10x2xf32> to vector<10x2xf32>
    %403 = vector.shape_cast %400 : vector<10x2xf32> to vector<1x10x2xf32>
    tpu.vector_store %arg27[%c0_355, %c0_356, %c0_357], %403 {strides = array<i32>} : memref<1x10x2xf32, #tpu.memory_space<vmem>>, vector<1x10x2xf32>,
    return
  }
  func.func @transform_0(%arg0: i32) -> i32 {
    %c0_i32 = arith.constant 0 : i32
    %c0_i32_0 = arith.constant 0 : i32
    return %c0_i32 : i32
  }
  func.func @transform_1(%arg0: i32) -> (i32, i32) {
    %c0_i32 = arith.constant 0 : i32
    %c0_i32_0 = arith.constant 0 : i32
    %c0_i32_1 = arith.constant 0 : i32
    return %c0_i32, %c0_i32_0 : i32, i32
  }
  func.func @transform_2(%arg0: i32) -> (i32, i32) {
    %c0_i32 = arith.constant 0 : i32
    %c0_i32_0 = arith.constant 0 : i32
    %c0_i32_1 = arith.constant 0 : i32
    return %c0_i32, %c0_i32_0 : i32, i32
  }
  func.func @transform_3(%arg0: i32) -> (i32, i32) {
    %c0_i32 = arith.constant 0 : i32
    %c0_i32_0 = arith.constant 0 : i32
    %c0_i32_1 = arith.constant 0 : i32
    return %c0_i32, %c0_i32_0 : i32, i32
  }
  func.func @transform_4(%arg0: i32) -> (i32, i32) {
    %c0_i32 = arith.constant 0 : i32
    %c0_i32_0 = arith.constant 0 : i32
    %c0_i32_1 = arith.constant 0 : i32
    return %c0_i32, %c0_i32_0 : i32, i32
  }
  func.func @transform_5(%arg0: i32) -> (i32, i32) {
    %c0_i32 = arith.constant 0 : i32
    %c0_i32_0 = arith.constant 0 : i32
    %c0_i32_1 = arith.constant 0 : i32
    return %c0_i32, %c0_i32_0 : i32, i32
  }
  func.func @transform_6(%arg0: i32) -> (i32, i32) {
    %c0_i32 = arith.constant 0 : i32
    %c0_i32_0 = arith.constant 0 : i32
    %c0_i32_1 = arith.constant 0 : i32
    return %c0_i32, %c0_i32_0 : i32, i32
  }
  func.func @transform_7(%arg0: i32) -> (i32, i32) {
    %c0_i32 = arith.constant 0 : i32
    %c0_i32_0 = arith.constant 0 : i32
    %c0_i32_1 = arith.constant 0 : i32
    return %c0_i32, %c0_i32_0 : i32, i32
  }
  func.func @transform_8(%arg0: i32) -> (i32, i32) {
    %c0_i32 = arith.constant 0 : i32
    %c0_i32_0 = arith.constant 0 : i32
    %c0_i32_1 = arith.constant 0 : i32
    return %c0_i32, %c0_i32_0 : i32, i32
  }
  func.func @transform_9(%arg0: i32) -> (i32, i32) {
    %c0_i32 = arith.constant 0 : i32
    %c0_i32_0 = arith.constant 0 : i32
    %c0_i32_1 = arith.constant 0 : i32
    return %c0_i32, %c0_i32_0 : i32, i32
  }
  func.func @transform_10(%arg0: i32) -> (i32, i32) {
    %c0_i32 = arith.constant 0 : i32
    %c0_i32_0 = arith.constant 0 : i32
    %c0_i32_1 = arith.constant 0 : i32
    return %c0_i32, %c0_i32_0 : i32, i32
  }
  func.func @transform_11(%arg0: i32) -> (i32, i32) {
    %c0_i32 = arith.constant 0 : i32
    %c0_i32_0 = arith.constant 0 : i32
    %c0_i32_1 = arith.constant 0 : i32
    return %c0_i32, %c0_i32_0 : i32, i32
  }
  func.func @transform_12(%arg0: i32) -> (i32, i32) {
    %c0_i32 = arith.constant 0 : i32
    %c0_i32_0 = arith.constant 0 : i32
    %c0_i32_1 = arith.constant 0 : i32
    return %c0_i32, %c0_i32_0 : i32, i32
  }
  func.func @transform_13(%arg0: i32) -> (i32, i32) {
    %c0_i32 = arith.constant 0 : i32
    %c0_i32_0 = arith.constant 0 : i32
    %c0_i32_1 = arith.constant 0 : i32
    return %c0_i32, %c0_i32_0 : i32, i32
  }
  func.func @transform_14(%arg0: i32) -> (i32, i32) {
    %c0_i32 = arith.constant 0 : i32
    %c0_i32_0 = arith.constant 0 : i32
    %c0_i32_1 = arith.constant 0 : i32
    return %c0_i32, %c0_i32_0 : i32, i32
  }
  func.func @transform_15(%arg0: i32) -> (i32, i32) {
    %c0_i32 = arith.constant 0 : i32
    %c0_i32_0 = arith.constant 0 : i32
    %c0_i32_1 = arith.constant 0 : i32
    return %c0_i32, %c0_i32_0 : i32, i32
  }
  func.func @transform_16(%arg0: i32) -> (i32, i32) {
    %c0_i32 = arith.constant 0 : i32
    %c0_i32_0 = arith.constant 0 : i32
    %c0_i32_1 = arith.constant 0 : i32
    return %c0_i32, %c0_i32_0 : i32, i32
  }
  func.func @transform_17(%arg0: i32) -> (i32, i32) {
    %c0_i32 = arith.constant 0 : i32
    %c0_i32_0 = arith.constant 0 : i32
    %c0_i32_1 = arith.constant 0 : i32
    return %c0_i32, %c0_i32_0 : i32, i32
  }
  func.func @transform_18(%arg0: i32) -> (i32, i32) {
    %c0_i32 = arith.constant 0 : i32
    %c0_i32_0 = arith.constant 0 : i32
    %c0_i32_1 = arith.constant 0 : i32
    return %c0_i32, %c0_i32_0 : i32, i32
  }
  func.func @transform_19(%arg0: i32) -> (i32, i32) {
    %c0_i32 = arith.constant 0 : i32
    %c0_i32_0 = arith.constant 0 : i32
    %c0_i32_1 = arith.constant 0 : i32
    return %c0_i32, %c0_i32_0 : i32, i32
  }
  func.func @transform_20(%arg0: i32) -> (i32, i32) {
    %c0_i32 = arith.constant 0 : i32
    %c0_i32_0 = arith.constant 0 : i32
    %c0_i32_1 = arith.constant 0 : i32
    return %c0_i32, %c0_i32_0 : i32, i32
  }
  func.func @transform_21(%arg0: i32) -> (i32, i32) {
    %c0_i32 = arith.constant 0 : i32
    %c0_i32_0 = arith.constant 0 : i32
    %c0_i32_1 = arith.constant 0 : i32
    return %c0_i32, %c0_i32_0 : i32, i32
  }
  func.func @transform_22(%arg0: i32) -> (i32, i32) {
    %c0_i32 = arith.constant 0 : i32
    %c0_i32_0 = arith.constant 0 : i32
    %c0_i32_1 = arith.constant 0 : i32
    return %c0_i32, %c0_i32_0 : i32, i32
  }
  func.func @transform_23(%arg0: i32) -> (i32, i32) {
    %c0_i32 = arith.constant 0 : i32
    %c0_i32_0 = arith.constant 0 : i32
    %c0_i32_1 = arith.constant 0 : i32
    return %c0_i32, %c0_i32_0 : i32, i32
  }
  func.func @transform_24(%arg0: i32) -> (i32, i32) {
    %c0_i32 = arith.constant 0 : i32
    %c0_i32_0 = arith.constant 0 : i32
    %c0_i32_1 = arith.constant 0 : i32
    return %c0_i32, %c0_i32_0 : i32, i32
  }
  func.func @transform_25(%arg0: i32) -> (i32, i32) {
    %c0_i32 = arith.constant 0 : i32
    %c0_i32_0 = arith.constant 0 : i32
    %c0_i32_1 = arith.constant 0 : i32
    return %c0_i32, %c0_i32_0 : i32, i32
  }
  func.func @transform_26(%arg0: i32) -> (i32, i32, i32) {
    %c0_i32 = arith.constant 0 : i32
    %c0_i32_0 = arith.constant 0 : i32
    %c0_i32_1 = arith.constant 0 : i32
    return %arg0, %c0_i32, %c0_i32_0 : i32, i32, i32
  }
}

</mosaic_0001>

<llo_original>
// kernel: tpu_custom_call.1
$region0: #{tpu_custom_call.1}
  #allocation0 [shape = 'u32[]', space=smem, size = 0x4, offset = 0x4, fixed_abs, tag = 'smem constant byte address 0x4 - core index']
  #allocation1 [shape = 'u32[144,128]{1,0:T(1,128)}', space=vmem, size = 0x12000, scoped, tag = 'internal scratch']
  #allocation2 [shape = 'f32[8,648]{1,0:T(8,128)}', space=vmem, size = 0x6000, scoped, tag = 'scratch operand']
  #allocation3 [shape = 'f32[8,648]{1,0:T(8,128)}', space=vmem, size = 0x6000, scoped, tag = 'scratch operand']
  #allocation4 [shape = 'f32[8,648]{1,0:T(8,128)}', space=vmem, size = 0x6000, scoped, tag = 'scratch operand']
  #allocation5 [shape = 'f32[16,200]{1,0:T(8,128)}', space=vmem, size = 0x4000, scoped, tag = 'scratch operand']
  #allocation6 [shape = 'f32[16,72]{1,0:T(8,128)}', space=vmem, size = 0x2000, scoped, tag = 'scratch operand']
  #allocation7 [shape = 'f32[8,72]{1,0:T(8,128)}', space=vmem, size = 0x1000, scoped, tag = 'scratch operand']
  #allocation8 [shape = 'f32[32,2]{1,0:T(8,128)}', space=vmem, size = 0x4000, scoped, tag = 'scratch operand']
  #allocation9 [shape = 'f32[32,2]{1,0:T(8,128)}', space=vmem, size = 0x4000, scoped, tag = 'scratch operand']
  #allocation10 [shape = 'f32[10,2]{1,0:T(8,128)}', space=vmem, size = 0x2000, scoped, tag = 'scratch operand']
  #allocation11 [shape = 'f32[10,2]{1,0:T(8,128)}', space=vmem, size = 0x2000, scoped, tag = 'scratch operand']
  #allocation12 [shape = 'f32[8,904]{1,0:T(8,128)}', space=vmem, size = 0x8000, scoped, tag = 'scratch operand']
  #allocation13 [shape = 'f32[8,456]{1,0:T(8,128)}', space=vmem, size = 0x4000, scoped, tag = 'scratch operand']
  #allocation14 [shape = 'f32[16,328]{1,0:T(8,128)}', space=vmem, size = 0x6000, scoped, tag = 'scratch operand']
  #allocation15 [shape = 'f32[16,328]{1,0:T(8,128)}', space=vmem, size = 0x6000, scoped, tag = 'scratch operand']
  %s0 = inlined_call_operand.vmem [shape: f32[8], index: 0, kind: input, shape index: {}]
  %s1 = inlined_call_operand.vmem [shape: bf16[27,648], index: 1, kind: input, shape index: {}]
  %s2 = inlined_call_operand.vmem [shape: bf16[8,27], index: 2, kind: input, shape index: {}]
  %s3 = inlined_call_operand.vmem [shape: f32[8,1], index: 3, kind: input, shape index: {}]
  %s4 = inlined_call_operand.vmem [shape: bf16[8,72], index: 4, kind: input, shape index: {}]
  %s5 = inlined_call_operand.vmem [shape: f32[8,1], index: 5, kind: input, shape index: {}]
  %s6 = inlined_call_operand.vmem [shape: bf16[16,72], index: 6, kind: input, shape index: {}]
  %s7 = inlined_call_operand.vmem [shape: f32[16,1], index: 7, kind: input, shape index: {}]
  %s8 = inlined_call_operand.vmem [shape: bf16[16,144], index: 8, kind: input, shape index: {}]
  %s9 = inlined_call_operand.vmem [shape: f32[16,1], index: 9, kind: input, shape index: {}]
  %s10 = inlined_call_operand.vmem [shape: bf16[8,144], index: 10, kind: input, shape index: {}]
  %s11 = inlined_call_operand.vmem [shape: f32[8,1], index: 11, kind: input, shape index: {}]
  %s12 = inlined_call_operand.vmem [shape: bf16[32,128], index: 12, kind: input, shape index: {}]
  %s13 = inlined_call_operand.vmem [shape: f32[32,1], index: 13, kind: input, shape index: {}]
  %s14 = inlined_call_operand.vmem [shape: bf16[32,32], index: 14, kind: input, shape index: {}]
  %s15 = inlined_call_operand.vmem [shape: f32[32,1], index: 15, kind: input, shape index: {}]
  %s16 = inlined_call_operand.vmem [shape: bf16[10,32], index: 16, kind: input, shape index: {}]
  %s17 = inlined_call_operand.vmem [shape: f32[10,1], index: 17, kind: input, shape index: {}]
  %s18 = inlined_call_operand.vmem [shape: bf16[648,200], index: 18, kind: input, shape index: {}]
  %s19 = inlined_call_operand.vmem [shape: bf16[200,72], index: 19, kind: input, shape index: {}]
  %s20 = inlined_call_operand.vmem [shape: f32[1,648], index: 20, kind: input, shape index: {}]
  %s21 = inlined_call_operand.vmem [shape: f32[1,200], index: 21, kind: input, shape index: {}]
  %s22 = inlined_call_operand.vmem [shape: f32[1,72], index: 22, kind: input, shape index: {}]
  %s23 = inlined_call_operand.vmem [shape: bf16[128,8], index: 23, kind: input, shape index: {}]
  %s24 = inlined_call_operand.vmem [shape: f32[128,72], index: 24, kind: input, shape index: {}]
  %s25 = inlined_call_operand.vmem [shape: bf16[72,2], index: 25, kind: input, shape index: {}]
  %s26 = inlined_call_operand.vmem [shape: f32[2,10,2], index: 26, kind: output, shape index: {}]
  %s27 = sld [smem:[#allocation0]]
  $region145: #{tpu_custom_call.1} parent=0
    _
  %s29 = ssub.s32 1, %s27
  %s30 = scalar_select 0, %s29, %s27
  $region1: #{tpu_custom_call.1} parent=0
    #allocation16 [shape = 'u8[512]{0}', space=smem, size = 0x200, scoped, tag = 'input window, operand 0, single buffered']
    #allocation17 [shape = 's32[2]{0}', space=sflag, size = 0x8, scoped, tag = 'scoped memory for tpu_custom_call.1']
    %31 = vsyncpa [#allocation17], 0
    loop: start=0, step=1, limit=4
    $region2: #{tpu_custom_call.1} parent=1 // loop_pre_header
      _
    $region3: #{tpu_custom_call.1} parent=1 // loop_header
      %s33 = sphi 0, %s37
      %p34 = scmp.ge.s32.totalorder %s33, 4
      %s41 = sphi 0, %s41
      %s43 = sphi 0, %s41
      %s44 = sphi 0, %s43
      %s58 = sphi 0, %s44
      %s62 = sphi 0, %s62
      %s64 = sphi 0, %s62
      %s65 = sphi 0, %s64
      %s79 = sphi 0, %s65
      %s83 = sphi 0, %s83
      %s85 = sphi 0, %s83
      %s86 = sphi 0, %s85
      %s100 = sphi 0, %s86
      %s104 = sphi 0, %s104
      %s106 = sphi 0, %s104
      %s107 = sphi 0, %s106
      %s121 = sphi 0, %s107
      %s125 = sphi 0, %s125
      %s127 = sphi 0, %s125
      %s128 = sphi 0, %s127
      %s142 = sphi 0, %s128
      %s146 = sphi 0, %s146
      %s148 = sphi 0, %s146
      %s149 = sphi 0, %s148
      %s163 = sphi 0, %s149
      %s167 = sphi 0, %s167
      %s169 = sphi 0, %s167
      %s170 = sphi 0, %s169
      %s184 = sphi 0, %s170
      %s188 = sphi 0, %s188
      %s190 = sphi 0, %s188
      %s191 = sphi 0, %s190
      %s205 = sphi 0, %s191
      %s209 = sphi 0, %s209
      %s211 = sphi 0, %s209
      %s212 = sphi 0, %s211
      %s226 = sphi 0, %s212
      %s230 = sphi 0, %s230
      %s232 = sphi 0, %s230
      %s233 = sphi 0, %s232
      %s247 = sphi 0, %s233
      %s251 = sphi 0, %s251
      %s253 = sphi 0, %s251
      %s254 = sphi 0, %s253
      %s268 = sphi 0, %s254
      %s272 = sphi 0, %s272
      %s274 = sphi 0, %s272
      %s275 = sphi 0, %s274
      %s289 = sphi 0, %s275
      %s293 = sphi 0, %s293
      %s295 = sphi 0, %s293
      %s296 = sphi 0, %s295
      %s310 = sphi 0, %s296
      %s314 = sphi 0, %s314
      %s316 = sphi 0, %s314
      %s317 = sphi 0, %s316
      %s331 = sphi 0, %s317
      %s335 = sphi 0, %s335
      %s337 = sphi 0, %s335
      %s338 = sphi 0, %s337
      %s352 = sphi 0, %s338
      %s356 = sphi 0, %s356
      %s358 = sphi 0, %s356
      %s359 = sphi 0, %s358
      %s373 = sphi 0, %s359
      %s377 = sphi 0, %s377
      %s379 = sphi 0, %s377
      %s380 = sphi 0, %s379
      %s394 = sphi 0, %s380
      %s398 = sphi 0, %s398
      %s400 = sphi 0, %s398
      %s401 = sphi 0, %s400
      %s415 = sphi 0, %s401
      %s419 = sphi 0, %s419
      %s421 = sphi 0, %s419
      %s422 = sphi 0, %s421
      %s436 = sphi 0, %s422
      %s440 = sphi 0, %s440
      %s442 = sphi 0, %s440
      %s443 = sphi 0, %s442
      %s457 = sphi 0, %s443
      %s461 = sphi 0, %s461
      %s463 = sphi 0, %s461
      %s464 = sphi 0, %s463
      %s478 = sphi 0, %s464
      %s482 = sphi 0, %s482
      %s484 = sphi 0, %s482
      %s485 = sphi 0, %s484
      %s499 = sphi 0, %s485
      %s503 = sphi 0, %s503
      %s505 = sphi 0, %s503
      %s506 = sphi 0, %s505
      %s520 = sphi 0, %s506
      %s524 = sphi 0, %s524
      %s526 = sphi 0, %s524
      %s527 = sphi 0, %s526
      %s541 = sphi 0, %s527
      %s545 = sphi 0, %s545
      %s547 = sphi 0, %s545
      %s548 = sphi 0, %s547
      %s562 = sphi 0, %s548
      %s566 = sphi 0, %s566
      %s568 = sphi 0, %s566
      %s569 = sphi 0, %s568
      %s583 = sphi 0, %s569
      %s589 = sphi 0, %s591
      %s592 = sphi 0, %s589
      %s593 = sphi 0, %s592
      %s609 = sphi 0, %s593
    $region4: #{tpu_custom_call.1} parent=1 // loop_header_branch
      %36 = sbr.rel (%p34) target = $region8
    $region5: #{tpu_custom_call.1} parent=1 // loop_body
      %s38 = ssub.s32 %s33, 1
      %s39 = ssub.s32 %s33, 2
      %s40 = sadd.s32 %s33, 1
      %s42 = sadd.s32 %s41, 1
      %p45 = scmp.eq.s32.totalorder %s33, 1
      %p46 = scmp.ne.s32.totalorder %s41, %s43
      %p47 = scmp.eq.s32.totalorder %s33, 0
      %p48 = por %p46, %p47
      %p49 = scmp.ne.s32.totalorder %s41, %s43
      %p50 = scmp.eq.s32.totalorder %s38, 1
      %p51 = por %p49, %p50
      %p52 = scmp.ne.s32.totalorder %s43, %s44
      %p53 = scmp.eq.s32.totalorder %s38, 0
      %p54 = por %p52, %p53
      %p55 = scmp.ne.s32.totalorder %s43, %s44
      %p56 = scmp.eq.s32.totalorder %s39, 1
      %p57 = por %p55, %p56
      %p59 = scmp.ne.s32.totalorder %s44, %s58
      %p60 = scmp.eq.s32.totalorder %s39, 0
      %p61 = por %p59, %p60
      %s63 = sadd.s32 %s62, 1
      %p66 = scmp.eq.s32.totalorder %s33, 1
      %p67 = scmp.ne.s32.totalorder %s62, %s64
      %p68 = scmp.eq.s32.totalorder %s33, 0
      %p69 = por %p67, %p68
      %p70 = scmp.ne.s32.totalorder %s62, %s64
      %p71 = scmp.eq.s32.totalorder %s38, 1
      %p72 = por %p70, %p71
      %p73 = scmp.ne.s32.totalorder %s64, %s65
      %p74 = scmp.eq.s32.totalorder %s38, 0
      %p75 = por %p73, %p74
      %p76 = scmp.ne.s32.totalorder %s64, %s65
      %p77 = scmp.eq.s32.totalorder %s39, 1
      %p78 = por %p76, %p77
      %p80 = scmp.ne.s32.totalorder %s65, %s79
      %p81 = scmp.eq.s32.totalorder %s39, 0
      %p82 = por %p80, %p81
      %s84 = sadd.s32 %s83, 1
      %p87 = scmp.eq.s32.totalorder %s33, 1
      %p88 = scmp.ne.s32.totalorder %s83, %s85
      %p89 = scmp.eq.s32.totalorder %s33, 0
      %p90 = por %p88, %p89
      %p91 = scmp.ne.s32.totalorder %s83, %s85
      %p92 = scmp.eq.s32.totalorder %s38, 1
      %p93 = por %p91, %p92
      %p94 = scmp.ne.s32.totalorder %s85, %s86
      %p95 = scmp.eq.s32.totalorder %s38, 0
      %p96 = por %p94, %p95
      %p97 = scmp.ne.s32.totalorder %s85, %s86
      %p98 = scmp.eq.s32.totalorder %s39, 1
      %p99 = por %p97, %p98
      %p101 = scmp.ne.s32.totalorder %s86, %s100
      %p102 = scmp.eq.s32.totalorder %s39, 0
      %p103 = por %p101, %p102
      %s105 = sadd.s32 %s104, 1
      %p108 = scmp.eq.s32.totalorder %s33, 1
      %p109 = scmp.ne.s32.totalorder %s104, %s106
      %p110 = scmp.eq.s32.totalorder %s33, 0
      %p111 = por %p109, %p110
      %p112 = scmp.ne.s32.totalorder %s104, %s106
      %p113 = scmp.eq.s32.totalorder %s38, 1
      %p114 = por %p112, %p113
      %p115 = scmp.ne.s32.totalorder %s106, %s107
      %p116 = scmp.eq.s32.totalorder %s38, 0
      %p117 = por %p115, %p116
      %p118 = scmp.ne.s32.totalorder %s106, %s107
      %p119 = scmp.eq.s32.totalorder %s39, 1
      %p120 = por %p118, %p119
      %p122 = scmp.ne.s32.totalorder %s107, %s121
      %p123 = scmp.eq.s32.totalorder %s39, 0
      %p124 = por %p122, %p123
      %s126 = sadd.s32 %s125, 1
      %p129 = scmp.eq.s32.totalorder %s33, 1
      %p130 = scmp.ne.s32.totalorder %s125, %s127
      %p131 = scmp.eq.s32.totalorder %s33, 0
      %p132 = por %p130, %p131
      %p133 = scmp.ne.s32.totalorder %s125, %s127
      %p134 = scmp.eq.s32.totalorder %s38, 1
      %p135 = por %p133, %p134
      %p136 = scmp.ne.s32.totalorder %s127, %s128
      %p137 = scmp.eq.s32.totalorder %s38, 0
      %p138 = por %p136, %p137
      %p139 = scmp.ne.s32.totalorder %s127, %s128
      %p140 = scmp.eq.s32.totalorder %s39, 1
      %p141 = por %p139, %p140
      %p143 = scmp.ne.s32.totalorder %s128, %s142
      %p144 = scmp.eq.s32.totalorder %s39, 0
      %p145 = por %p143, %p144
      %s147 = sadd.s32 %s146, 1
      %p150 = scmp.eq.s32.totalorder %s33, 1
      %p151 = scmp.ne.s32.totalorder %s146, %s148
      %p152 = scmp.eq.s32.totalorder %s33, 0
      %p153 = por %p151, %p152
      %p154 = scmp.ne.s32.totalorder %s146, %s148
      %p155 = scmp.eq.s32.totalorder %s38, 1
      %p156 = por %p154, %p155
      %p157 = scmp.ne.s32.totalorder %s148, %s149
      %p158 = scmp.eq.s32.totalorder %s38, 0
      %p159 = por %p157, %p158
      %p160 = scmp.ne.s32.totalorder %s148, %s149
      %p161 = scmp.eq.s32.totalorder %s39, 1
      %p162 = por %p160, %p161
      %p164 = scmp.ne.s32.totalorder %s149, %s163
      %p165 = scmp.eq.s32.totalorder %s39, 0
      %p166 = por %p164, %p165
      %s168 = sadd.s32 %s167, 1
      %p171 = scmp.eq.s32.totalorder %s33, 1
      %p172 = scmp.ne.s32.totalorder %s167, %s169
      %p173 = scmp.eq.s32.totalorder %s33, 0
      %p174 = por %p172, %p173
      %p175 = scmp.ne.s32.totalorder %s167, %s169
      %p176 = scmp.eq.s32.totalorder %s38, 1
      %p177 = por %p175, %p176
      %p178 = scmp.ne.s32.totalorder %s169, %s170
      %p179 = scmp.eq.s32.totalorder %s38, 0
      %p180 = por %p178, %p179
      %p181 = scmp.ne.s32.totalorder %s169, %s170
      %p182 = scmp.eq.s32.totalorder %s39, 1
      %p183 = por %p181, %p182
      %p185 = scmp.ne.s32.totalorder %s170, %s184
      %p186 = scmp.eq.s32.totalorder %s39, 0
      %p187 = por %p185, %p186
      %s189 = sadd.s32 %s188, 1
      %p192 = scmp.eq.s32.totalorder %s33, 1
      %p193 = scmp.ne.s32.totalorder %s188, %s190
      %p194 = scmp.eq.s32.totalorder %s33, 0
      %p195 = por %p193, %p194
      %p196 = scmp.ne.s32.totalorder %s188, %s190
      %p197 = scmp.eq.s32.totalorder %s38, 1
      %p198 = por %p196, %p197
      %p199 = scmp.ne.s32.totalorder %s190, %s191
      %p200 = scmp.eq.s32.totalorder %s38, 0
      %p201 = por %p199, %p200
      %p202 = scmp.ne.s32.totalorder %s190, %s191
      %p203 = scmp.eq.s32.totalorder %s39, 1
      %p204 = por %p202, %p203
      %p206 = scmp.ne.s32.totalorder %s191, %s205
      %p207 = scmp.eq.s32.totalorder %s39, 0
      %p208 = por %p206, %p207
      %s210 = sadd.s32 %s209, 1
      %p213 = scmp.eq.s32.totalorder %s33, 1
      %p214 = scmp.ne.s32.totalorder %s209, %s211
      %p215 = scmp.eq.s32.totalorder %s33, 0
      %p216 = por %p214, %p215
      %p217 = scmp.ne.s32.totalorder %s209, %s211
      %p218 = scmp.eq.s32.totalorder %s38, 1
      %p219 = por %p217, %p218
      %p220 = scmp.ne.s32.totalorder %s211, %s212
      %p221 = scmp.eq.s32.totalorder %s38, 0
      %p222 = por %p220, %p221
      %p223 = scmp.ne.s32.totalorder %s211, %s212
      %p224 = scmp.eq.s32.totalorder %s39, 1
      %p225 = por %p223, %p224
      %p227 = scmp.ne.s32.totalorder %s212, %s226
      %p228 = scmp.eq.s32.totalorder %s39, 0
      %p229 = por %p227, %p228
      %s231 = sadd.s32 %s230, 1
      %p234 = scmp.eq.s32.totalorder %s33, 1
      %p235 = scmp.ne.s32.totalorder %s230, %s232
      %p236 = scmp.eq.s32.totalorder %s33, 0
      %p237 = por %p235, %p236
      %p238 = scmp.ne.s32.totalorder %s230, %s232
      %p239 = scmp.eq.s32.totalorder %s38, 1
      %p240 = por %p238, %p239
      %p241 = scmp.ne.s32.totalorder %s232, %s233
      %p242 = scmp.eq.s32.totalorder %s38, 0
      %p243 = por %p241, %p242
      %p244 = scmp.ne.s32.totalorder %s232, %s233
      %p245 = scmp.eq.s32.totalorder %s39, 1
      %p246 = por %p244, %p245
      %p248 = scmp.ne.s32.totalorder %s233, %s247
      %p249 = scmp.eq.s32.totalorder %s39, 0
      %p250 = por %p248, %p249
      %s252 = sadd.s32 %s251, 1
      %p255 = scmp.eq.s32.totalorder %s33, 1
      %p256 = scmp.ne.s32.totalorder %s251, %s253
      %p257 = scmp.eq.s32.totalorder %s33, 0
      %p258 = por %p256, %p257
      %p259 = scmp.ne.s32.totalorder %s251, %s253
      %p260 = scmp.eq.s32.totalorder %s38, 1
      %p261 = por %p259, %p260
      %p262 = scmp.ne.s32.totalorder %s253, %s254
      %p263 = scmp.eq.s32.totalorder %s38, 0
      %p264 = por %p262, %p263
      %p265 = scmp.ne.s32.totalorder %s253, %s254
      %p266 = scmp.eq.s32.totalorder %s39, 1
      %p267 = por %p265, %p266
      %p269 = scmp.ne.s32.totalorder %s254, %s268
      %p270 = scmp.eq.s32.totalorder %s39, 0
      %p271 = por %p269, %p270
      %s273 = sadd.s32 %s272, 1
      %p276 = scmp.eq.s32.totalorder %s33, 1
      %p277 = scmp.ne.s32.totalorder %s272, %s274
      %p278 = scmp.eq.s32.totalorder %s33, 0
      %p279 = por %p277, %p278
      %p280 = scmp.ne.s32.totalorder %s272, %s274
      %p281 = scmp.eq.s32.totalorder %s38, 1
      %p282 = por %p280, %p281
      %p283 = scmp.ne.s32.totalorder %s274, %s275
      %p284 = scmp.eq.s32.totalorder %s38, 0
      %p285 = por %p283, %p284
      %p286 = scmp.ne.s32.totalorder %s274, %s275
      %p287 = scmp.eq.s32.totalorder %s39, 1
      %p288 = por %p286, %p287
      %p290 = scmp.ne.s32.totalorder %s275, %s289
      %p291 = scmp.eq.s32.totalorder %s39, 0
      %p292 = por %p290, %p291
      %s294 = sadd.s32 %s293, 1
      %p297 = scmp.eq.s32.totalorder %s33, 1
      %p298 = scmp.ne.s32.totalorder %s293, %s295
      %p299 = scmp.eq.s32.totalorder %s33, 0
      %p300 = por %p298, %p299
      %p301 = scmp.ne.s32.totalorder %s293, %s295
      %p302 = scmp.eq.s32.totalorder %s38, 1
      %p303 = por %p301, %p302
      %p304 = scmp.ne.s32.totalorder %s295, %s296
      %p305 = scmp.eq.s32.totalorder %s38, 0
      %p306 = por %p304, %p305
      %p307 = scmp.ne.s32.totalorder %s295, %s296
      %p308 = scmp.eq.s32.totalorder %s39, 1
      %p309 = por %p307, %p308
      %p311 = scmp.ne.s32.totalorder %s296, %s310
      %p312 = scmp.eq.s32.totalorder %s39, 0
      %p313 = por %p311, %p312
      %s315 = sadd.s32 %s314, 1
      %p318 = scmp.eq.s32.totalorder %s33, 1
      %p319 = scmp.ne.s32.totalorder %s314, %s316
      %p320 = scmp.eq.s32.totalorder %s33, 0
      %p321 = por %p319, %p320
      %p322 = scmp.ne.s32.totalorder %s314, %s316
      %p323 = scmp.eq.s32.totalorder %s38, 1
      %p324 = por %p322, %p323
      %p325 = scmp.ne.s32.totalorder %s316, %s317
      %p326 = scmp.eq.s32.totalorder %s38, 0
      %p327 = por %p325, %p326
      %p328 = scmp.ne.s32.totalorder %s316, %s317
      %p329 = scmp.eq.s32.totalorder %s39, 1
      %p330 = por %p328, %p329
      %p332 = scmp.ne.s32.totalorder %s317, %s331
      %p333 = scmp.eq.s32.totalorder %s39, 0
      %p334 = por %p332, %p333
      %s336 = sadd.s32 %s335, 1
      %p339 = scmp.eq.s32.totalorder %s33, 1
      %p340 = scmp.ne.s32.totalorder %s335, %s337
      %p341 = scmp.eq.s32.totalorder %s33, 0
      %p342 = por %p340, %p341
      %p343 = scmp.ne.s32.totalorder %s335, %s337
      %p344 = scmp.eq.s32.totalorder %s38, 1
      %p345 = por %p343, %p344
      %p346 = scmp.ne.s32.totalorder %s337, %s338
      %p347 = scmp.eq.s32.totalorder %s38, 0
      %p348 = por %p346, %p347
      %p349 = scmp.ne.s32.totalorder %s337, %s338
      %p350 = scmp.eq.s32.totalorder %s39, 1
      %p351 = por %p349, %p350
      %p353 = scmp.ne.s32.totalorder %s338, %s352
      %p354 = scmp.eq.s32.totalorder %s39, 0
      %p355 = por %p353, %p354
      %s357 = sadd.s32 %s356, 1
      %p360 = scmp.eq.s32.totalorder %s33, 1
      %p361 = scmp.ne.s32.totalorder %s356, %s358
      %p362 = scmp.eq.s32.totalorder %s33, 0
      %p363 = por %p361, %p362
      %p364 = scmp.ne.s32.totalorder %s356, %s358
      %p365 = scmp.eq.s32.totalorder %s38, 1
      %p366 = por %p364, %p365
      %p367 = scmp.ne.s32.totalorder %s358, %s359
      %p368 = scmp.eq.s32.totalorder %s38, 0
      %p369 = por %p367, %p368
      %p370 = scmp.ne.s32.totalorder %s358, %s359
      %p371 = scmp.eq.s32.totalorder %s39, 1
      %p372 = por %p370, %p371
      %p374 = scmp.ne.s32.totalorder %s359, %s373
      %p375 = scmp.eq.s32.totalorder %s39, 0
      %p376 = por %p374, %p375
      %s378 = sadd.s32 %s377, 1
      %p381 = scmp.eq.s32.totalorder %s33, 1
      %p382 = scmp.ne.s32.totalorder %s377, %s379
      %p383 = scmp.eq.s32.totalorder %s33, 0
      %p384 = por %p382, %p383
      %p385 = scmp.ne.s32.totalorder %s377, %s379
      %p386 = scmp.eq.s32.totalorder %s38, 1
      %p387 = por %p385, %p386
      %p388 = scmp.ne.s32.totalorder %s379, %s380
      %p389 = scmp.eq.s32.totalorder %s38, 0
      %p390 = por %p388, %p389
      %p391 = scmp.ne.s32.totalorder %s379, %s380
      %p392 = scmp.eq.s32.totalorder %s39, 1
      %p393 = por %p391, %p392
      %p395 = scmp.ne.s32.totalorder %s380, %s394
      %p396 = scmp.eq.s32.totalorder %s39, 0
      %p397 = por %p395, %p396
      %s399 = sadd.s32 %s398, 1
      %p402 = scmp.eq.s32.totalorder %s33, 1
      %p403 = scmp.ne.s32.totalorder %s398, %s400
      %p404 = scmp.eq.s32.totalorder %s33, 0
      %p405 = por %p403, %p404
      %p406 = scmp.ne.s32.totalorder %s398, %s400
      %p407 = scmp.eq.s32.totalorder %s38, 1
      %p408 = por %p406, %p407
      %p409 = scmp.ne.s32.totalorder %s400, %s401
      %p410 = scmp.eq.s32.totalorder %s38, 0
      %p411 = por %p409, %p410
      %p412 = scmp.ne.s32.totalorder %s400, %s401
      %p413 = scmp.eq.s32.totalorder %s39, 1
      %p414 = por %p412, %p413
      %p416 = scmp.ne.s32.totalorder %s401, %s415
      %p417 = scmp.eq.s32.totalorder %s39, 0
      %p418 = por %p416, %p417
      %s420 = sadd.s32 %s419, 1
      %p423 = scmp.eq.s32.totalorder %s33, 1
      %p424 = scmp.ne.s32.totalorder %s419, %s421
      %p425 = scmp.eq.s32.totalorder %s33, 0
      %p426 = por %p424, %p425
      %p427 = scmp.ne.s32.totalorder %s419, %s421
      %p428 = scmp.eq.s32.totalorder %s38, 1
      %p429 = por %p427, %p428
      %p430 = scmp.ne.s32.totalorder %s421, %s422
      %p431 = scmp.eq.s32.totalorder %s38, 0
      %p432 = por %p430, %p431
      %p433 = scmp.ne.s32.totalorder %s421, %s422
      %p434 = scmp.eq.s32.totalorder %s39, 1
      %p435 = por %p433, %p434
      %p437 = scmp.ne.s32.totalorder %s422, %s436
      %p438 = scmp.eq.s32.totalorder %s39, 0
      %p439 = por %p437, %p438
      %s441 = sadd.s32 %s440, 1
      %p444 = scmp.eq.s32.totalorder %s33, 1
      %p445 = scmp.ne.s32.totalorder %s440, %s442
      %p446 = scmp.eq.s32.totalorder %s33, 0
      %p447 = por %p445, %p446
      %p448 = scmp.ne.s32.totalorder %s440, %s442
      %p449 = scmp.eq.s32.totalorder %s38, 1
      %p450 = por %p448, %p449
      %p451 = scmp.ne.s32.totalorder %s442, %s443
      %p452 = scmp.eq.s32.totalorder %s38, 0
      %p453 = por %p451, %p452
      %p454 = scmp.ne.s32.totalorder %s442, %s443
      %p455 = scmp.eq.s32.totalorder %s39, 1
      %p456 = por %p454, %p455
      %p458 = scmp.ne.s32.totalorder %s443, %s457
      %p459 = scmp.eq.s32.totalorder %s39, 0
      %p460 = por %p458, %p459
      %s462 = sadd.s32 %s461, 1
      %p465 = scmp.eq.s32.totalorder %s33, 1
      %p466 = scmp.ne.s32.totalorder %s461, %s463
      %p467 = scmp.eq.s32.totalorder %s33, 0
      %p468 = por %p466, %p467
      %p469 = scmp.ne.s32.totalorder %s461, %s463
      %p470 = scmp.eq.s32.totalorder %s38, 1
      %p471 = por %p469, %p470
      %p472 = scmp.ne.s32.totalorder %s463, %s464
      %p473 = scmp.eq.s32.totalorder %s38, 0
      %p474 = por %p472, %p473
      %p475 = scmp.ne.s32.totalorder %s463, %s464
      %p476 = scmp.eq.s32.totalorder %s39, 1
      %p477 = por %p475, %p476
      %p479 = scmp.ne.s32.totalorder %s464, %s478
      %p480 = scmp.eq.s32.totalorder %s39, 0
      %p481 = por %p479, %p480
      %s483 = sadd.s32 %s482, 1
      %p486 = scmp.eq.s32.totalorder %s33, 1
      %p487 = scmp.ne.s32.totalorder %s482, %s484
      %p488 = scmp.eq.s32.totalorder %s33, 0
      %p489 = por %p487, %p488
      %p490 = scmp.ne.s32.totalorder %s482, %s484
      %p491 = scmp.eq.s32.totalorder %s38, 1
      %p492 = por %p490, %p491
      %p493 = scmp.ne.s32.totalorder %s484, %s485
      %p494 = scmp.eq.s32.totalorder %s38, 0
      %p495 = por %p493, %p494
      %p496 = scmp.ne.s32.totalorder %s484, %s485
      %p497 = scmp.eq.s32.totalorder %s39, 1
      %p498 = por %p496, %p497
      %p500 = scmp.ne.s32.totalorder %s485, %s499
      %p501 = scmp.eq.s32.totalorder %s39, 0
      %p502 = por %p500, %p501
      %s504 = sadd.s32 %s503, 1
      %p507 = scmp.eq.s32.totalorder %s33, 1
      %p508 = scmp.ne.s32.totalorder %s503, %s505
      %p509 = scmp.eq.s32.totalorder %s33, 0
      %p510 = por %p508, %p509
      %p511 = scmp.ne.s32.totalorder %s503, %s505
      %p512 = scmp.eq.s32.totalorder %s38, 1
      %p513 = por %p511, %p512
      %p514 = scmp.ne.s32.totalorder %s505, %s506
      %p515 = scmp.eq.s32.totalorder %s38, 0
      %p516 = por %p514, %p515
      %p517 = scmp.ne.s32.totalorder %s505, %s506
      %p518 = scmp.eq.s32.totalorder %s39, 1
      %p519 = por %p517, %p518
      %p521 = scmp.ne.s32.totalorder %s506, %s520
      %p522 = scmp.eq.s32.totalorder %s39, 0
      %p523 = por %p521, %p522
      %s525 = sadd.s32 %s524, 1
      %p528 = scmp.eq.s32.totalorder %s33, 1
      %p529 = scmp.ne.s32.totalorder %s524, %s526
      %p530 = scmp.eq.s32.totalorder %s33, 0
      %p531 = por %p529, %p530
      %p532 = scmp.ne.s32.totalorder %s524, %s526
      %p533 = scmp.eq.s32.totalorder %s38, 1
      %p534 = por %p532, %p533
      %p535 = scmp.ne.s32.totalorder %s526, %s527
      %p536 = scmp.eq.s32.totalorder %s38, 0
      %p537 = por %p535, %p536
      %p538 = scmp.ne.s32.totalorder %s526, %s527
      %p539 = scmp.eq.s32.totalorder %s39, 1
      %p540 = por %p538, %p539
      %p542 = scmp.ne.s32.totalorder %s527, %s541
      %p543 = scmp.eq.s32.totalorder %s39, 0
      %p544 = por %p542, %p543
      %s546 = sadd.s32 %s545, 1
      %p549 = scmp.eq.s32.totalorder %s33, 1
      %p550 = scmp.ne.s32.totalorder %s545, %s547
      %p551 = scmp.eq.s32.totalorder %s33, 0
      %p552 = por %p550, %p551
      %p553 = scmp.ne.s32.totalorder %s545, %s547
      %p554 = scmp.eq.s32.totalorder %s38, 1
      %p555 = por %p553, %p554
      %p556 = scmp.ne.s32.totalorder %s547, %s548
      %p557 = scmp.eq.s32.totalorder %s38, 0
      %p558 = por %p556, %p557
      %p559 = scmp.ne.s32.totalorder %s547, %s548
      %p560 = scmp.eq.s32.totalorder %s39, 1
      %p561 = por %p559, %p560
      %p563 = scmp.ne.s32.totalorder %s548, %s562
      %p564 = scmp.eq.s32.totalorder %s39, 0
      %p565 = por %p563, %p564
      %s567 = sadd.s32 %s566, 1
      %p570 = scmp.eq.s32.totalorder %s33, 1
      %p571 = scmp.ne.s32.totalorder %s566, %s568
      %p572 = scmp.eq.s32.totalorder %s33, 0
      %p573 = por %p571, %p572
      %p574 = scmp.ne.s32.totalorder %s566, %s568
      %p575 = scmp.eq.s32.totalorder %s38, 1
      %p576 = por %p574, %p575
      %p577 = scmp.ne.s32.totalorder %s568, %s569
      %p578 = scmp.eq.s32.totalorder %s38, 0
      %p579 = por %p577, %p578
      %p580 = scmp.ne.s32.totalorder %s568, %s569
      %p581 = scmp.eq.s32.totalorder %s39, 1
      %p582 = por %p580, %p581
      %p584 = scmp.ne.s32.totalorder %s569, %s583
      %p585 = scmp.eq.s32.totalorder %s39, 0
      %p586 = por %p584, %p585
      %s587 = ssub.s32 %s33, %s40
      %p588 = scmp.eq.s32.totalorder %s587, 0
      %s590 = sadd.s32 %s589, 1
      %s591 = scalar_select %p588, %s589, %s590
      %p594 = pneg %p588
      %p595 = scmp.eq.s32.totalorder %s33, 1
      %p596 = por %p594, %p595
      %p597 = scmp.ne.s32.totalorder %s589, %s592
      %p598 = scmp.eq.s32.totalorder %s33, 0
      %p599 = por %p597, %p598
      %p600 = scmp.ne.s32.totalorder %s589, %s592
      %p601 = scmp.eq.s32.totalorder %s38, 1
      %p602 = por %p600, %p601
      %p603 = scmp.ne.s32.totalorder %s592, %s593
      %p604 = scmp.eq.s32.totalorder %s38, 0
      %p605 = por %p603, %p604
      %p606 = scmp.ne.s32.totalorder %s592, %s593
      %p607 = scmp.eq.s32.totalorder %s39, 1
      %p608 = por %p606, %p607
      %p610 = scmp.ne.s32.totalorder %s593, %s609
      %p611 = scmp.eq.s32.totalorder %s39, 0
      %p612 = por %p610, %p611
      %p613 = scmp.le.s32.totalorder 1, %s33
      %p614 = scmp.lt.s32.totalorder %s33, 3
      %p615 = pnand %p613, %p614
      %p616 = pneg %p615
      // Predicated region
      $region9: #{tpu_custom_call.1} parent=5 // pred_check
        _
      $region10: #{tpu_custom_call.1} parent=5 // pred_check_branch
        %618 = sbr.rel (%p615) target = $region12
      $region11: #{tpu_custom_call.1} parent=5 // pred_region
        %s619 = ssub.s32 %s33, 1
        // Predicated region
        $region13: #{tpu_custom_call.1} parent=11 // pred_check
          %p620 = pneg %p54
        $region14: #{tpu_custom_call.1} parent=11 // pred_check_branch
          %622 = sbr.rel (%p620) target = $region16
        $region15: #{tpu_custom_call.1} parent=11 // pred_region
          %s624 = ssub.s32 16, 16
          %625 = vsyncadd [#allocation17], %s624
          %s627 = sshll.u32 %s0, 4
          %s628 = int_to_ptr.vmem [resolvable:$true] %s627
          %630 = dma.vmem_to_smem %s628, 16, [#allocation16], [#allocation17]
        $region16: #{tpu_custom_call.1} parent=11 // pred_fallthru
          _
        // Predicated region
        $region17: #{tpu_custom_call.1} parent=11 // pred_check
          %p631 = pneg %p75
        $region18: #{tpu_custom_call.1} parent=11 // pred_check_branch
          %633 = sbr.rel (%p631) target = $region20
        $region19: #{tpu_custom_call.1} parent=11 // pred_region
          _
        $region20: #{tpu_custom_call.1} parent=11 // pred_fallthru
          _
        // Predicated region
        $region21: #{tpu_custom_call.1} parent=11 // pred_check
          %p634 = pneg %p96
        $region22: #{tpu_custom_call.1} parent=11 // pred_check_branch
          %636 = sbr.rel (%p634) target = $region24
        $region23: #{tpu_custom_call.1} parent=11 // pred_region
          _
        $region24: #{tpu_custom_call.1} parent=11 // pred_fallthru
          _
        // Predicated region
        $region25: #{tpu_custom_call.1} parent=11 // pred_check
          %p637 = pneg %p117
        $region26: #{tpu_custom_call.1} parent=11 // pred_check_branch
          %639 = sbr.rel (%p637) target = $region28
        $region27: #{tpu_custom_call.1} parent=11 // pred_region
          _
        $region28: #{tpu_custom_call.1} parent=11 // pred_fallthru
          _
        // Predicated region
        $region29: #{tpu_custom_call.1} parent=11 // pred_check
          %p640 = pneg %p138
        $region30: #{tpu_custom_call.1} parent=11 // pred_check_branch
          %642 = sbr.rel (%p640) target = $region32
        $region31: #{tpu_custom_call.1} parent=11 // pred_region
          _
        $region32: #{tpu_custom_call.1} parent=11 // pred_fallthru
          _
        // Predicated region
        $region33: #{tpu_custom_call.1} parent=11 // pred_check
          %p643 = pneg %p159
        $region34: #{tpu_custom_call.1} parent=11 // pred_check_branch
          %645 = sbr.rel (%p643) target = $region36
        $region35: #{tpu_custom_call.1} parent=11 // pred_region
          _
        $region36: #{tpu_custom_call.1} parent=11 // pred_fallthru
          _
        // Predicated region
        $region37: #{tpu_custom_call.1} parent=11 // pred_check
          %p646 = pneg %p180
        $region38: #{tpu_custom_call.1} parent=11 // pred_check_branch
          %648 = sbr.rel (%p646) target = $region40
        $region39: #{tpu_custom_call.1} parent=11 // pred_region
          _
        $region40: #{tpu_custom_call.1} parent=11 // pred_fallthru
          _
        // Predicated region
        $region41: #{tpu_custom_call.1} parent=11 // pred_check
          %p649 = pneg %p201
        $region42: #{tpu_custom_call.1} parent=11 // pred_check_branch
          %651 = sbr.rel (%p649) target = $region44
        $region43: #{tpu_custom_call.1} parent=11 // pred_region
          _
        $region44: #{tpu_custom_call.1} parent=11 // pred_fallthru
          _
        // Predicated region
        $region45: #{tpu_custom_call.1} parent=11 // pred_check
          %p652 = pneg %p222
        $region46: #{tpu_custom_call.1} parent=11 // pred_check_branch
          %654 = sbr.rel (%p652) target = $region48
        $region47: #{tpu_custom_call.1} parent=11 // pred_region
          _
        $region48: #{tpu_custom_call.1} parent=11 // pred_fallthru
          _
        // Predicated region
        $region49: #{tpu_custom_call.1} parent=11 // pred_check
          %p655 = pneg %p243
        $region50: #{tpu_custom_call.1} parent=11 // pred_check_branch
          %657 = sbr.rel (%p655) target = $region52
        $region51: #{tpu_custom_call.1} parent=11 // pred_region
          _
        $region52: #{tpu_custom_call.1} parent=11 // pred_fallthru
          _
        // Predicated region
        $region53: #{tpu_custom_call.1} parent=11 // pred_check
          %p658 = pneg %p264
        $region54: #{tpu_custom_call.1} parent=11 // pred_check_branch
          %660 = sbr.rel (%p658) target = $region56
        $region55: #{tpu_custom_call.1} parent=11 // pred_region
          _
        $region56: #{tpu_custom_call.1} parent=11 // pred_fallthru
          _
        // Predicated region
        $region57: #{tpu_custom_call.1} parent=11 // pred_check
          %p661 = pneg %p285
        $region58: #{tpu_custom_call.1} parent=11 // pred_check_branch
          %663 = sbr.rel (%p661) target = $region60
        $region59: #{tpu_custom_call.1} parent=11 // pred_region
          _
        $region60: #{tpu_custom_call.1} parent=11 // pred_fallthru
          _
        // Predicated region
        $region61: #{tpu_custom_call.1} parent=11 // pred_check
          %p664 = pneg %p306
        $region62: #{tpu_custom_call.1} parent=11 // pred_check_branch
          %666 = sbr.rel (%p664) target = $region64
        $region63: #{tpu_custom_call.1} parent=11 // pred_region
          _
        $region64: #{tpu_custom_call.1} parent=11 // pred_fallthru
          _
        // Predicated region
        $region65: #{tpu_custom_call.1} parent=11 // pred_check
          %p667 = pneg %p327
        $region66: #{tpu_custom_call.1} parent=11 // pred_check_branch
          %669 = sbr.rel (%p667) target = $region68
        $region67: #{tpu_custom_call.1} parent=11 // pred_region
          _
        $region68: #{tpu_custom_call.1} parent=11 // pred_fallthru
          _
        // Predicated region
        $region69: #{tpu_custom_call.1} parent=11 // pred_check
          %p670 = pneg %p348
        $region70: #{tpu_custom_call.1} parent=11 // pred_check_branch
          %672 = sbr.rel (%p670) target = $region72
        $region71: #{tpu_custom_call.1} parent=11 // pred_region
          _
        $region72: #{tpu_custom_call.1} parent=11 // pred_fallthru
          _
        // Predicated region
        $region73: #{tpu_custom_call.1} parent=11 // pred_check
          %p673 = pneg %p369
        $region74: #{tpu_custom_call.1} parent=11 // pred_check_branch
          %675 = sbr.rel (%p673) target = $region76
        $region75: #{tpu_custom_call.1} parent=11 // pred_region
          _
        $region76: #{tpu_custom_call.1} parent=11 // pred_fallthru
          _
        // Predicated region
        $region77: #{tpu_custom_call.1} parent=11 // pred_check
          %p676 = pneg %p390
        $region78: #{tpu_custom_call.1} parent=11 // pred_check_branch
          %678 = sbr.rel (%p676) target = $region80
        $region79: #{tpu_custom_call.1} parent=11 // pred_region
          _
        $region80: #{tpu_custom_call.1} parent=11 // pred_fallthru
          _
        // Predicated region
        $region81: #{tpu_custom_call.1} parent=11 // pred_check
          %p679 = pneg %p411
        $region82: #{tpu_custom_call.1} parent=11 // pred_check_branch
          %681 = sbr.rel (%p679) target = $region84
        $region83: #{tpu_custom_call.1} parent=11 // pred_region
          _
        $region84: #{tpu_custom_call.1} parent=11 // pred_fallthru
          _
        // Predicated region
        $region85: #{tpu_custom_call.1} parent=11 // pred_check
          %p682 = pneg %p432
        $region86: #{tpu_custom_call.1} parent=11 // pred_check_branch
          %684 = sbr.rel (%p682) target = $region88
        $region87: #{tpu_custom_call.1} parent=11 // pred_region
          _
        $region88: #{tpu_custom_call.1} parent=11 // pred_fallthru
          _
        // Predicated region
        $region89: #{tpu_custom_call.1} parent=11 // pred_check
          %p685 = pneg %p453
        $region90: #{tpu_custom_call.1} parent=11 // pred_check_branch
          %687 = sbr.rel (%p685) target = $region92
        $region91: #{tpu_custom_call.1} parent=11 // pred_region
          _
        $region92: #{tpu_custom_call.1} parent=11 // pred_fallthru
          _
        // Predicated region
        $region93: #{tpu_custom_call.1} parent=11 // pred_check
          %p688 = pneg %p474
        $region94: #{tpu_custom_call.1} parent=11 // pred_check_branch
          %690 = sbr.rel (%p688) target = $region96
        $region95: #{tpu_custom_call.1} parent=11 // pred_region
          _
        $region96: #{tpu_custom_call.1} parent=11 // pred_fallthru
          _
        // Predicated region
        $region97: #{tpu_custom_call.1} parent=11 // pred_check
          %p691 = pneg %p495
        $region98: #{tpu_custom_call.1} parent=11 // pred_check_branch
          %693 = sbr.rel (%p691) target = $region100
        $region99: #{tpu_custom_call.1} parent=11 // pred_region
          _
        $region100: #{tpu_custom_call.1} parent=11 // pred_fallthru
          _
        // Predicated region
        $region101: #{tpu_custom_call.1} parent=11 // pred_check
          %p694 = pneg %p516
        $region102: #{tpu_custom_call.1} parent=11 // pred_check_branch
          %696 = sbr.rel (%p694) target = $region104
        $region103: #{tpu_custom_call.1} parent=11 // pred_region
          _
        $region104: #{tpu_custom_call.1} parent=11 // pred_fallthru
          _
        // Predicated region
        $region105: #{tpu_custom_call.1} parent=11 // pred_check
          %p697 = pneg %p537
        $region106: #{tpu_custom_call.1} parent=11 // pred_check_branch
          %699 = sbr.rel (%p697) target = $region108
        $region107: #{tpu_custom_call.1} parent=11 // pred_region
          _
        $region108: #{tpu_custom_call.1} parent=11 // pred_fallthru
          _
        // Predicated region
        $region109: #{tpu_custom_call.1} parent=11 // pred_check
          %p700 = pneg %p558
        $region110: #{tpu_custom_call.1} parent=11 // pred_check_branch
          %702 = sbr.rel (%p700) target = $region112
        $region111: #{tpu_custom_call.1} parent=11 // pred_region
          _
        $region112: #{tpu_custom_call.1} parent=11 // pred_fallthru
          _
        // Predicated region
        $region113: #{tpu_custom_call.1} parent=11 // pred_check
          %p703 = pneg %p579
        $region114: #{tpu_custom_call.1} parent=11 // pred_check_branch
          %705 = sbr.rel (%p703) target = $region116
        $region115: #{tpu_custom_call.1} parent=11 // pred_region
          _
        $region116: #{tpu_custom_call.1} parent=11 // pred_fallthru
          _
      $region12: #{tpu_custom_call.1} parent=5 // pred_fallthru
        _
      %p706 = scmp.lt.s32.totalorder %s33, 2
      // Predicated region
      $region117: #{tpu_custom_call.1} parent=5 // pred_check
        %p707 = pneg %p706
      $region118: #{tpu_custom_call.1} parent=5 // pred_check_branch
        %709 = sbr.rel (%p707) target = $region120
      $region119: #{tpu_custom_call.1} parent=5 // pred_region
        _
      $region120: #{tpu_custom_call.1} parent=5 // pred_fallthru
        _
      %p710 = scmp.le.s32.totalorder 1, %s33
      %p711 = scmp.lt.s32.totalorder %s33, 3
      %p712 = pnand %p710, %p711
      %p713 = pneg %p712
      // Predicated region
      $region121: #{tpu_custom_call.1} parent=5 // pred_check
        _
      $region122: #{tpu_custom_call.1} parent=5 // pred_check_branch
        %715 = sbr.rel (%p712) target = $region124
      $region123: #{tpu_custom_call.1} parent=5 // pred_region
        %s716 = ssub.s32 %s33, 1
        // Predicated region
        $region125: #{tpu_custom_call.1} parent=123 // pred_check
          %p717 = pneg %p54
        $region126: #{tpu_custom_call.1} parent=123 // pred_check_branch
          %719 = sbr.rel (%p717) target = $region128
        $region127: #{tpu_custom_call.1} parent=123 // pred_region
          %720 = dma.done [#allocation17], 16
        $region128: #{tpu_custom_call.1} parent=123 // pred_fallthru
          _
        %721 = sfence
        %p722 = pneg %p54
        %p723 = pneg %p51
        %p724 = pneg %p75
        %p725 = pneg %p72
        %p726 = pneg %p96
        %p727 = pneg %p93
        %p728 = pneg %p117
        %p729 = pneg %p114
        %p730 = pneg %p138
        %p731 = pneg %p135
        %p732 = pneg %p159
        %p733 = pneg %p156
        %p734 = pneg %p180
        %p735 = pneg %p177
        %p736 = pneg %p201
        %p737 = pneg %p198
        %p738 = pneg %p222
        %p739 = pneg %p219
        %p740 = pneg %p243
        %p741 = pneg %p240
        %p742 = pneg %p264
        %p743 = pneg %p261
        %p744 = pneg %p285
        %p745 = pneg %p282
        %p746 = pneg %p306
        %p747 = pneg %p303
        %p748 = pneg %p327
        %p749 = pneg %p324
        %p750 = pneg %p348
        %p751 = pneg %p345
        %p752 = pneg %p369
        %p753 = pneg %p366
        %p754 = pneg %p390
        %p755 = pneg %p387
        %p756 = pneg %p411
        %p757 = pneg %p408
        %p758 = pneg %p432
        %p759 = pneg %p429
        %p760 = pneg %p453
        %p761 = pneg %p450
        %p762 = pneg %p474
        %p763 = pneg %p471
        %p764 = pneg %p495
        %p765 = pneg %p492
        %p766 = pneg %p516
        %p767 = pneg %p513
        %p768 = pneg %p537
        %p769 = pneg %p534
        %p770 = pneg %p558
        %p771 = pneg %p555
        %p772 = pneg %p579
        %p773 = pneg %p576
        %p774 = pneg %p605
        %p775 = pneg %p602
        %p776 = scmp.lt.s32.totalorder %s38, 1
        %s777 = scalar_select %p776, %s38, 1
        %s778 = smul.addr %s777, 2
        %s779 = smul.addr %s778, 8
        %s780 = scalar_lea.vmem %s26, %s779
        %p781 = scmp.lt.s32.totalorder %s38, 1
        %s782 = scalar_select %p781, %s38, 1
        %s783 = smul.addr %s782, 2
        %s784 = smul.addr %s783, 8
        %s785 = scalar_lea.vmem %s26, %s784
        %p787 = scmp.eq.s32.totalorder %s38, 0
        // Predicated region
        $region129: #{tpu_custom_call.1} parent=123 // pred_check
          %p788 = pneg %p787
        $region130: #{tpu_custom_call.1} parent=123 // pred_check_branch
          %790 = sbr.rel (%p788) target = $region132
        $region131: #{tpu_custom_call.1} parent=123 // pred_region
          %v791 = vld [vmem:[%s2] sm:$0xf]
          %v792 = vld [vmem:[%s1] sm:$0xff]
          %v793 = vld [vmem:[%s1 + $0x8] sm:$0xff]
          %v794 = vld [vmem:[%s1 + $0x10] sm:$0xff]
          %v795 = vld [vmem:[%s1 + $0x18] sm:$0xff]
          %v796 = vld [vmem:[%s1 + $0x20] sm:$0xff]
          %v797 = vld [vmem:[%s1 + $0x28] sm:$0xff]
          %v798 = vld [vmem:[%s1 + $0x30] sm:$0xff]
          %v799 = vld [vmem:[%s1 + $0x38] sm:$0xff]
          %v800 = vld [vmem:[%s1 + $0x40] sm:$0xff]
          %v801 = vld [vmem:[%s1 + $0x48] sm:$0x33]
          %v802 = vld [vmem:[%s1 + $0x50] sm:$0x33]
          %v803 = vld [vmem:[%s1 + $0x58] sm:$0x33]
          %v804 = vld [vmem:[%s3] sm:$0xff]
          %806 = vset.pattern.permute.xlu0 0
          %807 = vperm.xlu0 %806, %v804
          %v808 = vpop.permute.xlu0 %807
          %v822 = vunpack.c.l.b16 %v792
          %v823 = vunpack.c.h.b16 %v792
          %v824 = vunpack.c.l.b16 %v793
          %v825 = vunpack.c.h.b16 %v793
          %v826 = vunpack.c.l.b16 %v794
          %v827 = vunpack.c.h.b16 %v794
          %v828 = vunpack.c.l.b16 %v795
          %v829 = vunpack.c.h.b16 %v795
          %v830 = vunpack.c.l.b16 %v796
          %v831 = vunpack.c.h.b16 %v796
          %v832 = vunpack.c.l.b16 %v797
          %v833 = vunpack.c.h.b16 %v797
          %v834 = vunpack.c.l.b16 %v798
          %v835 = vunpack.c.h.b16 %v798
          %v836 = vunpack.c.l.b16 %v799
          %v837 = vunpack.c.h.b16 %v799
          %v838 = vunpack.c.l.b16 %v800
          %v839 = vunpack.c.h.b16 %v800
          %v840 = vunpack.c.l.b16 %v801
          %v841 = vunpack.c.h.b16 %v801
          %v842 = vunpack.c.l.b16 %v802
          %v843 = vunpack.c.h.b16 %v802
          %v844 = vunpack.c.l.b16 %v803
          %v845 = vunpack.c.h.b16 %v803
          %v846 = vpack.c.b16 %v828, %v822
          %v847 = vpack.c.b16 %v829, %v823
          %v848 = vpack.c.b16 %v830, %v824
          %v849 = vpack.c.b16 %v831, %v825
          %v850 = vpack.c.b16 %v832, %v826
          %v851 = vpack.c.b16 %v833, %v827
          %v852 = vpack.c.b16 %v840, %v834
          %v853 = vpack.c.b16 %v841, %v835
          %v854 = vpack.c.b16 %v842, %v836
          %v855 = vpack.c.b16 %v843, %v837
          %v856 = vpack.c.b16 %v844, %v838
          %v857 = vpack.c.b16 %v845, %v839
          %vm864 = vcmask 220160
          %v866 = vsel %vm864, %v791, 0
          %vm868 = vcmask 1044480
          %vm869 = vcmask 1045504
          %v870 = vsel %vm868, 4294967295, 65535
          %v871 = vsel %vm869, %v870, 0
          %v873 = vand.u32 %v852, %v871
          %v876 = vand.u32 %v853, %v871
          %v879 = vand.u32 %v854, %v871
          %v882 = vand.u32 %v855, %v871
          %v885 = vand.u32 %v856, %v871
          %v888 = vand.u32 %v857, %v871
          %890 = vmatprep.subr.bf16.mxu0 %v847
          %891 = vmatpush1.bf16.msra.mxu0 %v846
          %892 = vmatprep.subr.bf16.mxu0 %v876
          %893 = vmatpush1.bf16.msra.mxu0 %v873
          %894 = vmatprep.subr.bf16.mxu0 0
          %895 = vmatpush1.bf16.msra.mxu0 0
          %896 = vmatprep.subr.bf16.mxu0 0
          %897 = vmatpush1.bf16.msra.mxu0 0
          %898 = vmatprep.subr.bf16.mxu0 0
          %899 = vmatpush1.bf16.msra.mxu0 0
          %900 = vmatprep.subr.bf16.mxu0 0
          %901 = vmatpush1.bf16.msra.mxu0 0
          %902 = vmatprep.subr.bf16.mxu0 0
          %903 = vmatpush1.bf16.msra.mxu0 0
          %904 = vmatprep.subr.bf16.mxu0 0
          %905 = vmatpush1.bf16.msra.mxu0 0
          %906 = vmatprep.subr.bf16.mxu0 0
          %907 = vmatpush1.bf16.msra.mxu0 0
          %908 = vmatprep.subr.bf16.mxu0 0
          %909 = vmatpush1.bf16.msra.mxu0 0
          %910 = vmatprep.subr.bf16.mxu0 0
          %911 = vmatpush1.bf16.msra.mxu0 0
          %912 = vmatprep.subr.bf16.mxu0 0
          %913 = vmatpush1.bf16.msra.mxu0 0
          %914 = vmatprep.subr.bf16.mxu0 0
          %915 = vmatpush1.bf16.msra.mxu0 0
          %916 = vmatprep.subr.bf16.mxu0 0
          %917 = vmatpush1.bf16.msra.mxu0 0
          %918 = vmatprep.subr.bf16.mxu0 0
          %919 = vmatpush1.bf16.msra.mxu0 0
          %920 = vmatprep.subr.bf16.mxu0 0
          %921 = vmatpush1.bf16.msra.mxu0 0
          %922 = vmatprep.mubr.bf16.mxu0 0
          %923 = vmatmul.mubr.bf16.gmra.mrb[0].mxu0 %v866
          %v924 = vpop.f32.mrb[0].mxu0
          %v925 = vadd.f32 %v808, %v924
          %v926 = vpop.f32.mrb[0].mxu0
          %v927 = vadd.f32 %v808, %v926
          %v928 = vpop.f32.mrb[0].mxu0
          %v929 = vpop.f32.mrb[0].mxu0
          %930 = vdwg.mxu0
          %931 = vmatprep.subr.bf16.mxu0 %v849
          %932 = vmatpush1.bf16.msra.mxu0 %v848
          %933 = vmatprep.subr.bf16.mxu0 %v882
          %934 = vmatpush1.bf16.msra.mxu0 %v879
          %935 = vmatprep.subr.bf16.mxu0 0
          %936 = vmatpush1.bf16.msra.mxu0 0
          %937 = vmatprep.subr.bf16.mxu0 0
          %938 = vmatpush1.bf16.msra.mxu0 0
          %939 = vmatprep.subr.bf16.mxu0 0
          %940 = vmatpush1.bf16.msra.mxu0 0
          %941 = vmatprep.subr.bf16.mxu0 0
          %942 = vmatpush1.bf16.msra.mxu0 0
          %943 = vmatprep.subr.bf16.mxu0 0
          %944 = vmatpush1.bf16.msra.mxu0 0
          %945 = vmatprep.subr.bf16.mxu0 0
          %946 = vmatpush1.bf16.msra.mxu0 0
          %947 = vmatprep.subr.bf16.mxu0 0
          %948 = vmatpush1.bf16.msra.mxu0 0
          %949 = vmatprep.subr.bf16.mxu0 0
          %950 = vmatpush1.bf16.msra.mxu0 0
          %951 = vmatprep.subr.bf16.mxu0 0
          %952 = vmatpush1.bf16.msra.mxu0 0
          %953 = vmatprep.subr.bf16.mxu0 0
          %954 = vmatpush1.bf16.msra.mxu0 0
          %955 = vmatprep.subr.bf16.mxu0 0
          %956 = vmatpush1.bf16.msra.mxu0 0
          %957 = vmatprep.subr.bf16.mxu0 0
          %958 = vmatpush1.bf16.msra.mxu0 0
          %959 = vmatprep.subr.bf16.mxu0 0
          %960 = vmatpush1.bf16.msra.mxu0 0
          %961 = vmatprep.subr.bf16.mxu0 0
          %962 = vmatpush1.bf16.msra.mxu0 0
          %963 = vmatprep.mubr.bf16.mxu0 0
          %964 = vmatmul.mubr.bf16.gmra.mrb[0].mxu0 %v866
          %v965 = vpop.f32.mrb[0].mxu0
          %v966 = vadd.f32 %v808, %v965
          %v967 = vpop.f32.mrb[0].mxu0
          %v968 = vadd.f32 %v808, %v967
          %v969 = vpop.f32.mrb[0].mxu0
          %v970 = vpop.f32.mrb[0].mxu0
          %971 = vdwg.mxu0
          %972 = vmatprep.subr.bf16.mxu0 %v851
          %973 = vmatpush1.bf16.msra.mxu0 %v850
          %974 = vmatprep.subr.bf16.mxu0 %v888
          %975 = vmatpush1.bf16.msra.mxu0 %v885
          %976 = vmatprep.subr.bf16.mxu0 0
          %977 = vmatpush1.bf16.msra.mxu0 0
          %978 = vmatprep.subr.bf16.mxu0 0
          %979 = vmatpush1.bf16.msra.mxu0 0
          %980 = vmatprep.subr.bf16.mxu0 0
          %981 = vmatpush1.bf16.msra.mxu0 0
          %982 = vmatprep.subr.bf16.mxu0 0
          %983 = vmatpush1.bf16.msra.mxu0 0
          %984 = vmatprep.subr.bf16.mxu0 0
          %985 = vmatpush1.bf16.msra.mxu0 0
          %986 = vmatprep.subr.bf16.mxu0 0
          %987 = vmatpush1.bf16.msra.mxu0 0
          %988 = vmatprep.subr.bf16.mxu0 0
          %989 = vmatpush1.bf16.msra.mxu0 0
          %990 = vmatprep.subr.bf16.mxu0 0
          %991 = vmatpush1.bf16.msra.mxu0 0
          %992 = vmatprep.subr.bf16.mxu0 0
          %993 = vmatpush1.bf16.msra.mxu0 0
          %994 = vmatprep.subr.bf16.mxu0 0
          %995 = vmatpush1.bf16.msra.mxu0 0
          %996 = vmatprep.subr.bf16.mxu0 0
          %997 = vmatpush1.bf16.msra.mxu0 0
          %998 = vmatprep.subr.bf16.mxu0 0
          %999 = vmatpush1.bf16.msra.mxu0 0
          %1000 = vmatprep.subr.bf16.mxu0 0
          %1001 = vmatpush1.bf16.msra.mxu0 0
          %1002 = vmatprep.subr.bf16.mxu0 0
          %1003 = vmatpush1.bf16.msra.mxu0 0
          %1004 = vmatprep.mubr.bf16.mxu0 0
          %1005 = vmatmul.mubr.bf16.gmra.mrb[0].mxu0 %v866
          %v1006 = vpop.f32.mrb[0].mxu0
          %v1007 = vadd.f32 %v808, %v1006
          %v1008 = vpop.f32.mrb[0].mxu0
          %v1009 = vadd.f32 %v808, %v1008
          %v1010 = vpop.f32.mrb[0].mxu0
          %v1011 = vpop.f32.mrb[0].mxu0
          %1012 = vdwg.mxu0
          %v1013 = vld [vmem:[%s20] sm:$0x3f]
          %v1015 = vlaneseq
          %v1016 = vshrl.u32 %v1015, 7
          %v1017 = vsub.s32 0, %v1016
          %v1018 = vrot.slane %v1013, %v1017
          %v1019 = vlaneseq
          %v1020 = vshrl.u32 %v1019, 7
          %v1021 = vsub.s32 1, %v1020
          %v1022 = vrot.slane %v1013, %v1021
          %v1023 = vlaneseq
          %v1024 = vshrl.u32 %v1023, 7
          %v1025 = vsub.s32 2, %v1024
          %v1026 = vrot.slane %v1013, %v1025
          %v1027 = vlaneseq
          %v1028 = vshrl.u32 %v1027, 7
          %v1029 = vsub.s32 3, %v1028
          %v1030 = vrot.slane %v1013, %v1029
          %v1031 = vlaneseq
          %v1032 = vshrl.u32 %v1031, 7
          %v1033 = vsub.s32 4, %v1032
          %v1034 = vrot.slane %v1013, %v1033
          %v1035 = vlaneseq
          %v1036 = vshrl.u32 %v1035, 7
          %v1037 = vsub.s32 5, %v1036
          %v1038 = vrot.slane %v1013, %v1037
          %v1045 = vmul.f32 %v925, %v1018
          %v1046 = vmul.f32 %v927, %v1022
          %v1047 = vmul.f32 %v966, %v1026
          %v1048 = vmul.f32 %v968, %v1030
          %v1049 = vmul.f32 %v1007, %v1034
          %v1050 = vmul.f32 %v1009, %v1038
          %1051 = vst [vmem:[#allocation2] sm:$0xff] %v1045
          %1052 = vst [vmem:[#allocation2 + $0x8] sm:$0xff] %v1046
          %1053 = vst [vmem:[#allocation2 + $0x10] sm:$0xff] %v1047
          %1054 = vst [vmem:[#allocation2 + $0x18] sm:$0xff] %v1048
          %1055 = vst [vmem:[#allocation2 + $0x20] sm:$0xff] %v1049
          %vm1056 = vcmask 64512
          %1057 = vst.msk [vmem:[#allocation2 + $0x28] sm:$0xff] %vm1056, %v1050
          %1058 = vst [vmem:[#allocation3] sm:$0xff] 0.0
          %1059 = vst [vmem:[#allocation3 + $0x8] sm:$0xff] 0.0
          %1060 = vst [vmem:[#allocation3 + $0x10] sm:$0xff] 0.0
          %1061 = vst [vmem:[#allocation3 + $0x18] sm:$0xff] 0.0
          %1062 = vst [vmem:[#allocation3 + $0x20] sm:$0xff] 0.0
          %1063 = vst.msk [vmem:[#allocation3 + $0x28] sm:$0xff] %vm1056, 0.0
          %1064 = vst [vmem:[#allocation4] sm:$0xff] 0.0
          %1065 = vst [vmem:[#allocation4 + $0x8] sm:$0xff] 0.0
          %1066 = vst [vmem:[#allocation4 + $0x10] sm:$0xff] 0.0
          %1067 = vst [vmem:[#allocation4 + $0x18] sm:$0xff] 0.0
          %1068 = vst [vmem:[#allocation4 + $0x20] sm:$0xff] 0.0
          %1069 = vst.msk [vmem:[#allocation4 + $0x28] sm:$0xff] %vm1056, 0.0
          %1070 = vst [vmem:[#allocation5] sm:$0xff] 0.0
          %vm1071 = vcmask 588800
          %1072 = vst.msk [vmem:[#allocation5 + $0x8] sm:$0xff] %vm1071, 0.0
          %1073 = vst [vmem:[#allocation5 + $0x10] sm:$0xff] 0.0
          %1074 = vst.msk [vmem:[#allocation5 + $0x18] sm:$0xff] %vm1071, 0.0
          %1075 = vst.msk [vmem:[#allocation6] sm:$0xff] %vm1071, 0.0
          %1076 = vst.msk [vmem:[#allocation6 + $0x8] sm:$0xff] %vm1071, 0.0
          %1077 = vst.msk [vmem:[#allocation7] sm:$0xff] %vm1071, 0.0
          %vm1078 = vcmask 15360
          %1079 = vst.msk [vmem:[#allocation8] sm:$0xff] %vm1078, 0.0
          %1080 = vst.msk [vmem:[#allocation8 + $0x8] sm:$0xff] %vm1078, 0.0
          %1081 = vst.msk [vmem:[#allocation8 + $0x10] sm:$0xff] %vm1078, 0.0
          %1082 = vst.msk [vmem:[#allocation8 + $0x18] sm:$0xff] %vm1078, 0.0
          %1083 = vst.msk [vmem:[#allocation9] sm:$0xff] %vm1078, 0.0
          %1084 = vst.msk [vmem:[#allocation9 + $0x8] sm:$0xff] %vm1078, 0.0
          %1085 = vst.msk [vmem:[#allocation9 + $0x10] sm:$0xff] %vm1078, 0.0
          %1086 = vst.msk [vmem:[#allocation9 + $0x18] sm:$0xff] %vm1078, 0.0
          %1087 = vst.msk [vmem:[#allocation10] sm:$0xff] %vm1078, 0.0
          %vm1088 = vcmask 9216
          %1089 = vst.msk [vmem:[#allocation10 + $0x8] sm:$0x3] %vm1088, 0.0
          %1090 = vst.msk [vmem:[#allocation11] sm:$0xff] %vm1078, 0.0
          %1091 = vst.msk [vmem:[#allocation11 + $0x8] sm:$0x3] %vm1088, 0.0
          %1092 = vst [vmem:[#allocation12] sm:$0xff] 0.0
          %1093 = vst [vmem:[#allocation12 + $0x8] sm:$0xff] 0.0
          %1094 = vst [vmem:[#allocation12 + $0x10] sm:$0xff] 0.0
          %1095 = vst [vmem:[#allocation12 + $0x18] sm:$0xff] 0.0
          %1096 = vst [vmem:[#allocation12 + $0x20] sm:$0xff] 0.0
          %1097 = vst [vmem:[#allocation12 + $0x28] sm:$0xff] 0.0
          %1098 = vst [vmem:[#allocation12 + $0x30] sm:$0xff] 0.0
          %1099 = vst.msk [vmem:[#allocation12 + $0x38] sm:$0xff] %vm1056, 0.0
          %1100 = vst [vmem:[#allocation13] sm:$0xff] 0.0
          %1101 = vst [vmem:[#allocation13 + $0x8] sm:$0xff] 0.0
          %1102 = vst [vmem:[#allocation13 + $0x10] sm:$0xff] 0.0
          %1103 = vst.msk [vmem:[#allocation13 + $0x18] sm:$0xff] %vm1071, 0.0
          %1104 = vst [vmem:[#allocation14] sm:$0xff] 0.0
          %1105 = vst [vmem:[#allocation14 + $0x8] sm:$0xff] 0.0
          %1106 = vst.msk [vmem:[#allocation14 + $0x10] sm:$0xff] %vm1071, 0.0
          %1107 = vst [vmem:[#allocation14 + $0x18] sm:$0xff] 0.0
          %1108 = vst [vmem:[#allocation14 + $0x20] sm:$0xff] 0.0
          %1109 = vst.msk [vmem:[#allocation14 + $0x28] sm:$0xff] %vm1071, 0.0
          %1110 = vst [vmem:[#allocation15] sm:$0xff] 0.0
          %1111 = vst [vmem:[#allocation15 + $0x8] sm:$0xff] 0.0
          %1112 = vst.msk [vmem:[#allocation15 + $0x10] sm:$0xff] %vm1071, 0.0
          %1113 = vst [vmem:[#allocation15 + $0x18] sm:$0xff] 0.0
          %1114 = vst [vmem:[#allocation15 + $0x20] sm:$0xff] 0.0
          %1115 = vst.msk [vmem:[#allocation15 + $0x28] sm:$0xff] %vm1071, 0.0
        $region132: #{tpu_custom_call.1} parent=123 // pred_fallthru
          _
        %v1116 = vld [vmem:[#allocation2] sm:$0xff]
        %v1117 = vld [vmem:[#allocation2 + $0x8] sm:$0xff]
        %v1118 = vld [vmem:[#allocation2 + $0x10] sm:$0xff]
        %v1119 = vld [vmem:[#allocation2 + $0x18] sm:$0xff]
        %v1120 = vld [vmem:[#allocation2 + $0x20] sm:$0xff]
        %v1121 = vld [vmem:[#allocation2 + $0x28] sm:$0xff]
        %s1122 = sld [smem:[#allocation16]]
        %v1123 = vld [vmem:[#allocation3] sm:$0xff]
        %v1124 = vld [vmem:[#allocation3 + $0x8] sm:$0xff]
        %v1125 = vld [vmem:[#allocation3 + $0x10] sm:$0xff]
        %v1126 = vld [vmem:[#allocation3 + $0x18] sm:$0xff]
        %v1127 = vld [vmem:[#allocation3 + $0x20] sm:$0xff]
        %v1128 = vld [vmem:[#allocation3 + $0x28] sm:$0xff]
        %v1129 = vadd.f32 %v1123, %v1116
        %v1130 = vadd.f32 %v1124, %v1117
        %v1131 = vadd.f32 %v1125, %v1118
        %v1132 = vadd.f32 %v1126, %v1119
        %v1133 = vadd.f32 %v1127, %v1120
        %v1134 = vadd.f32 %v1128, %v1121
        %v1135 = vstv %s1122
        %vm1136 = vcmp.ge.f32.partialorder %v1129, %v1135
        %vm1137 = vcmp.ge.f32.partialorder %v1130, %v1135
        %vm1138 = vcmp.ge.f32.partialorder %v1131, %v1135
        %vm1139 = vcmp.ge.f32.partialorder %v1132, %v1135
        %vm1140 = vcmp.ge.f32.partialorder %v1133, %v1135
        %vm1141 = vcmp.ge.f32.partialorder %v1134, %v1135
        %v1142 = vsel %vm1136, %v1135, 0.0
        %v1143 = vsel %vm1137, %v1135, 0.0
        %v1144 = vsel %vm1138, %v1135, 0.0
        %v1145 = vsel %vm1139, %v1135, 0.0
        %v1146 = vsel %vm1140, %v1135, 0.0
        %v1147 = vsel %vm1141, %v1135, 0.0
        %v1148 = vsub.f32 %v1129, %v1142
        %v1149 = vsub.f32 %v1130, %v1143
        %v1150 = vsub.f32 %v1131, %v1144
        %v1151 = vsub.f32 %v1132, %v1145
        %v1152 = vsub.f32 %v1133, %v1146
        %v1153 = vsub.f32 %v1134, %v1147
        %1154 = vst [vmem:[#allocation3] sm:$0xff] %v1148
        %1155 = vst [vmem:[#allocation3 + $0x8] sm:$0xff] %v1149
        %1156 = vst [vmem:[#allocation3 + $0x10] sm:$0xff] %v1150
        %1157 = vst [vmem:[#allocation3 + $0x18] sm:$0xff] %v1151
        %1158 = vst [vmem:[#allocation3 + $0x20] sm:$0xff] %v1152
        %vm1159 = vcmask 64512
        %1160 = vst.msk [vmem:[#allocation3 + $0x28] sm:$0xff] %vm1159, %v1153
        %1161 = vst [vmem:[#allocation12 + $0x8] sm:$0xff] %v1142
        %1162 = vst [vmem:[#allocation12 + $0x10] sm:$0xff] %v1143
        %1163 = vst [vmem:[#allocation12 + $0x18] sm:$0xff] %v1144
        %1164 = vst [vmem:[#allocation12 + $0x20] sm:$0xff] %v1145
        %1165 = vst [vmem:[#allocation12 + $0x28] sm:$0xff] %v1146
        %1166 = vst.msk [vmem:[#allocation12 + $0x30] sm:$0xff] %vm1159, %v1147
        %v1167 = vld [vmem:[#allocation12] sm:$0xff]
        %v1168 = vld [vmem:[#allocation12 + $0x8] sm:$0xff]
        %v1169 = vld [vmem:[#allocation12 + $0x10] sm:$0xff]
        %v1170 = vld [vmem:[#allocation12 + $0x18] sm:$0xff]
        %v1171 = vld [vmem:[#allocation12 + $0x20] sm:$0xff]
        %v1172 = vld [vmem:[#allocation12 + $0x28] sm:$0xff]
        %v1173 = vld [vmem:[#allocation12 + $0x30] sm:$0xff]
        %1180 = vrot.lane.b32.xlu0 %v1167, 127
        %v1181 = vpop.permute.xlu0 %1180
        %1182 = vrot.lane.b32.xlu0 %v1168, 127
        %v1183 = vpop.permute.xlu0 %1182
        %1184 = vrot.lane.b32.xlu0 %v1169, 127
        %v1185 = vpop.permute.xlu0 %1184
        %1186 = vrot.lane.b32.xlu0 %v1170, 127
        %v1187 = vpop.permute.xlu0 %1186
        %1188 = vrot.lane.b32.xlu0 %v1171, 127
        %v1189 = vpop.permute.xlu0 %1188
        %1190 = vrot.lane.b32.xlu0 %v1172, 127
        %v1191 = vpop.permute.xlu0 %1190
        %vm1192 = vcmask 1039360
        %v1193 = vsel %vm1192, %v1181, %v1183
        %v1194 = vsel %vm1192, %v1183, %v1185
        %v1195 = vsel %vm1192, %v1185, %v1187
        %v1196 = vsel %vm1192, %v1187, %v1189
        %v1197 = vsel %vm1192, %v1189, %v1191
        %1204 = vrot.lane.b32.xlu0 %v1167, 126
        %v1205 = vpop.permute.xlu0 %1204
        %1206 = vrot.lane.b32.xlu0 %v1168, 126
        %v1207 = vpop.permute.xlu0 %1206
        %1208 = vrot.lane.b32.xlu0 %v1169, 126
        %v1209 = vpop.permute.xlu0 %1208
        %1210 = vrot.lane.b32.xlu0 %v1170, 126
        %v1211 = vpop.permute.xlu0 %1210
        %1212 = vrot.lane.b32.xlu0 %v1171, 126
        %v1213 = vpop.permute.xlu0 %1212
        %1214 = vrot.lane.b32.xlu0 %v1172, 126
        %v1215 = vpop.permute.xlu0 %1214
        %vm1216 = vcmask 1031168
        %v1217 = vsel %vm1216, %v1205, %v1207
        %v1218 = vsel %vm1216, %v1207, %v1209
        %v1219 = vsel %vm1216, %v1209, %v1211
        %v1220 = vsel %vm1216, %v1211, %v1213
        %v1221 = vsel %vm1216, %v1213, %v1215
        %1229 = vrot.lane.b32.xlu0 %v1167, 110
        %v1230 = vpop.permute.xlu0 %1229
        %1231 = vrot.lane.b32.xlu0 %v1168, 110
        %v1232 = vpop.permute.xlu0 %1231
        %1233 = vrot.lane.b32.xlu0 %v1169, 110
        %v1234 = vpop.permute.xlu0 %1233
        %1235 = vrot.lane.b32.xlu0 %v1170, 110
        %v1236 = vpop.permute.xlu0 %1235
        %1237 = vrot.lane.b32.xlu0 %v1171, 110
        %v1238 = vpop.permute.xlu0 %1237
        %1239 = vrot.lane.b32.xlu0 %v1172, 110
        %v1240 = vpop.permute.xlu0 %1239
        %1241 = vrot.lane.b32.xlu0 %v1173, 110
        %v1242 = vpop.permute.xlu0 %1241
        %vm1243 = vcmask 900096
        %v1244 = vsel %vm1243, %v1230, %v1232
        %v1245 = vsel %vm1243, %v1232, %v1234
        %v1246 = vsel %vm1243, %v1234, %v1236
        %v1247 = vsel %vm1243, %v1236, %v1238
        %v1248 = vsel %vm1243, %v1238, %v1240
        %v1249 = vsel %vm1243, %v1240, %v1242
        %1256 = vrot.lane.b32.xlu0 %v1168, 109
        %v1257 = vpop.permute.xlu0 %1256
        %1258 = vrot.lane.b32.xlu0 %v1169, 109
        %v1259 = vpop.permute.xlu0 %1258
        %1260 = vrot.lane.b32.xlu0 %v1170, 109
        %v1261 = vpop.permute.xlu0 %1260
        %1262 = vrot.lane.b32.xlu0 %v1171, 109
        %v1263 = vpop.permute.xlu0 %1262
        %1264 = vrot.lane.b32.xlu0 %v1172, 109
        %v1265 = vpop.permute.xlu0 %1264
        %1266 = vrot.lane.b32.xlu0 %v1173, 109
        %v1267 = vpop.permute.xlu0 %1266
        %vm1268 = vcmask 891904
        %v1269 = vsel %vm1268, %v1257, %v1259
        %v1270 = vsel %vm1268, %v1259, %v1261
        %v1271 = vsel %vm1268, %v1261, %v1263
        %v1272 = vsel %vm1268, %v1263, %v1265
        %v1273 = vsel %vm1268, %v1265, %v1267
        %1280 = vrot.lane.b32.xlu0 %v1168, 108
        %v1281 = vpop.permute.xlu0 %1280
        %1282 = vrot.lane.b32.xlu0 %v1169, 108
        %v1283 = vpop.permute.xlu0 %1282
        %1284 = vrot.lane.b32.xlu0 %v1170, 108
        %v1285 = vpop.permute.xlu0 %1284
        %1286 = vrot.lane.b32.xlu0 %v1171, 108
        %v1287 = vpop.permute.xlu0 %1286
        %1288 = vrot.lane.b32.xlu0 %v1172, 108
        %v1289 = vpop.permute.xlu0 %1288
        %1290 = vrot.lane.b32.xlu0 %v1173, 108
        %v1291 = vpop.permute.xlu0 %1290
        %vm1292 = vcmask 883712
        %v1293 = vsel %vm1292, %v1281, %v1283
        %v1294 = vsel %vm1292, %v1283, %v1285
        %v1295 = vsel %vm1292, %v1285, %v1287
        %v1296 = vsel %vm1292, %v1287, %v1289
        %v1297 = vsel %vm1292, %v1289, %v1291
        %1304 = vrot.lane.b32.xlu0 %v1168, 92
        %v1305 = vpop.permute.xlu0 %1304
        %1306 = vrot.lane.b32.xlu0 %v1169, 92
        %v1307 = vpop.permute.xlu0 %1306
        %1308 = vrot.lane.b32.xlu0 %v1170, 92
        %v1309 = vpop.permute.xlu0 %1308
        %1310 = vrot.lane.b32.xlu0 %v1171, 92
        %v1311 = vpop.permute.xlu0 %1310
        %1312 = vrot.lane.b32.xlu0 %v1172, 92
        %v1313 = vpop.permute.xlu0 %1312
        %1314 = vrot.lane.b32.xlu0 %v1173, 92
        %v1315 = vpop.permute.xlu0 %1314
        %vm1316 = vcmask 752640
        %v1317 = vsel %vm1316, %v1305, %v1307
        %v1318 = vsel %vm1316, %v1307, %v1309
        %v1319 = vsel %vm1316, %v1309, %v1311
        %v1320 = vsel %vm1316, %v1311, %v1313
        %v1321 = vsel %vm1316, %v1313, %v1315
        %1328 = vrot.lane.b32.xlu0 %v1168, 91
        %v1329 = vpop.permute.xlu0 %1328
        %1330 = vrot.lane.b32.xlu0 %v1169, 91
        %v1331 = vpop.permute.xlu0 %1330
        %1332 = vrot.lane.b32.xlu0 %v1170, 91
        %v1333 = vpop.permute.xlu0 %1332
        %1334 = vrot.lane.b32.xlu0 %v1171, 91
        %v1335 = vpop.permute.xlu0 %1334
        %1336 = vrot.lane.b32.xlu0 %v1172, 91
        %v1337 = vpop.permute.xlu0 %1336
        %1338 = vrot.lane.b32.xlu0 %v1173, 91
        %v1339 = vpop.permute.xlu0 %1338
        %vm1340 = vcmask 744448
        %v1341 = vsel %vm1340, %v1329, %v1331
        %v1342 = vsel %vm1340, %v1331, %v1333
        %v1343 = vsel %vm1340, %v1333, %v1335
        %v1344 = vsel %vm1340, %v1335, %v1337
        %v1345 = vsel %vm1340, %v1337, %v1339
        %1352 = vrot.lane.b32.xlu0 %v1168, 90
        %v1353 = vpop.permute.xlu0 %1352
        %1354 = vrot.lane.b32.xlu0 %v1169, 90
        %v1355 = vpop.permute.xlu0 %1354
        %1356 = vrot.lane.b32.xlu0 %v1170, 90
        %v1357 = vpop.permute.xlu0 %1356
        %1358 = vrot.lane.b32.xlu0 %v1171, 90
        %v1359 = vpop.permute.xlu0 %1358
        %1360 = vrot.lane.b32.xlu0 %v1172, 90
        %v1361 = vpop.permute.xlu0 %1360
        %1362 = vrot.lane.b32.xlu0 %v1173, 90
        %v1363 = vpop.permute.xlu0 %1362
        %vm1364 = vcmask 736256
        %v1365 = vsel %vm1364, %v1353, %v1355
        %v1366 = vsel %vm1364, %v1355, %v1357
        %v1367 = vsel %vm1364, %v1357, %v1359
        %v1368 = vsel %vm1364, %v1359, %v1361
        %v1369 = vsel %vm1364, %v1361, %v1363
        %v1376 = vpack.c.bf16 %v1193, %v1167
        %v1377 = vpack.c.bf16 %v1194, %v1168
        %v1378 = vpack.c.bf16 %v1195, %v1169
        %v1379 = vpack.c.bf16 %v1196, %v1170
        %v1380 = vpack.c.bf16 %v1197, %v1171
        %v1381 = vpack.c.bf16 %v1191, %v1172
        %v1382 = vpack.c.bf16 %v1244, %v1217
        %v1383 = vpack.c.bf16 %v1245, %v1218
        %v1384 = vpack.c.bf16 %v1246, %v1219
        %v1385 = vpack.c.bf16 %v1247, %v1220
        %v1386 = vpack.c.bf16 %v1248, %v1221
        %v1387 = vpack.c.bf16 %v1249, %v1215
        %v1388 = vpack.c.bf16 %v1281, %v1257
        %v1389 = vpack.c.bf16 %v1293, %v1269
        %v1390 = vpack.c.bf16 %v1294, %v1270
        %v1391 = vpack.c.bf16 %v1295, %v1271
        %v1392 = vpack.c.bf16 %v1296, %v1272
        %v1393 = vpack.c.bf16 %v1297, %v1273
        %v1394 = vpack.c.bf16 %v1329, %v1305
        %v1395 = vpack.c.bf16 %v1341, %v1317
        %v1396 = vpack.c.bf16 %v1342, %v1318
        %v1397 = vpack.c.bf16 %v1343, %v1319
        %v1398 = vpack.c.bf16 %v1344, %v1320
        %v1399 = vpack.c.bf16 %v1345, %v1321
        %v1400 = vpack.c.bf16 %v1353, %v1353
        %v1401 = vpack.c.bf16 %v1365, %v1365
        %v1402 = vpack.c.bf16 %v1366, %v1366
        %v1403 = vpack.c.bf16 %v1367, %v1367
        %v1404 = vpack.c.bf16 %v1368, %v1368
        %v1405 = vpack.c.bf16 %v1369, %v1369
        %v1406 = vld [vmem:[%s4] sm:$0xf]
        %v1407 = vld [vmem:[%s5] sm:$0xff]
        %1409 = vset.pattern.permute.xlu0 0
        %1410 = vperm.xlu0 %1409, %v1407
        %v1411 = vpop.permute.xlu0 %1410
        %1443 = vrot.lane.b32.xlu0 %v1376, 19
        %v1444 = vpop.permute.xlu0 %1443
        %1445 = vrot.lane.b32.xlu0 %v1377, 19
        %v1446 = vpop.permute.xlu0 %1445
        %1447 = vrot.lane.b32.xlu0 %v1378, 19
        %v1448 = vpop.permute.xlu0 %1447
        %1449 = vrot.lane.b32.xlu0 %v1379, 19
        %v1450 = vpop.permute.xlu0 %1449
        %1451 = vrot.lane.b32.xlu0 %v1380, 19
        %v1452 = vpop.permute.xlu0 %1451
        %1453 = vrot.lane.b32.xlu0 %v1381, 19
        %v1454 = vpop.permute.xlu0 %1453
        %1455 = vrot.lane.b32.xlu0 %v1382, 19
        %v1456 = vpop.permute.xlu0 %1455
        %1457 = vrot.lane.b32.xlu0 %v1383, 19
        %v1458 = vpop.permute.xlu0 %1457
        %1459 = vrot.lane.b32.xlu0 %v1384, 19
        %v1460 = vpop.permute.xlu0 %1459
        %1461 = vrot.lane.b32.xlu0 %v1385, 19
        %v1462 = vpop.permute.xlu0 %1461
        %1463 = vrot.lane.b32.xlu0 %v1386, 19
        %v1464 = vpop.permute.xlu0 %1463
        %1465 = vrot.lane.b32.xlu0 %v1387, 19
        %v1466 = vpop.permute.xlu0 %1465
        %1467 = vrot.lane.b32.xlu0 %v1388, 19
        %v1468 = vpop.permute.xlu0 %1467
        %1469 = vrot.lane.b32.xlu0 %v1389, 19
        %v1470 = vpop.permute.xlu0 %1469
        %1471 = vrot.lane.b32.xlu0 %v1390, 19
        %v1472 = vpop.permute.xlu0 %1471
        %1473 = vrot.lane.b32.xlu0 %v1391, 19
        %v1474 = vpop.permute.xlu0 %1473
        %1475 = vrot.lane.b32.xlu0 %v1392, 19
        %v1476 = vpop.permute.xlu0 %1475
        %1477 = vrot.lane.b32.xlu0 %v1393, 19
        %v1478 = vpop.permute.xlu0 %1477
        %1479 = vrot.lane.b32.xlu0 %v1394, 19
        %v1480 = vpop.permute.xlu0 %1479
        %1481 = vrot.lane.b32.xlu0 %v1395, 19
        %v1482 = vpop.permute.xlu0 %1481
        %1483 = vrot.lane.b32.xlu0 %v1396, 19
        %v1484 = vpop.permute.xlu0 %1483
        %1485 = vrot.lane.b32.xlu0 %v1397, 19
        %v1486 = vpop.permute.xlu0 %1485
        %1487 = vrot.lane.b32.xlu0 %v1398, 19
        %v1488 = vpop.permute.xlu0 %1487
        %1489 = vrot.lane.b32.xlu0 %v1399, 19
        %v1490 = vpop.permute.xlu0 %1489
        %1491 = vrot.lane.b32.xlu0 %v1400, 19
        %v1492 = vpop.permute.xlu0 %1491
        %1493 = vrot.lane.b32.xlu0 %v1401, 19
        %v1494 = vpop.permute.xlu0 %1493
        %1495 = vrot.lane.b32.xlu0 %v1402, 19
        %v1496 = vpop.permute.xlu0 %1495
        %1497 = vrot.lane.b32.xlu0 %v1403, 19
        %v1498 = vpop.permute.xlu0 %1497
        %1499 = vrot.lane.b32.xlu0 %v1404, 19
        %v1500 = vpop.permute.xlu0 %1499
        %1501 = vrot.lane.b32.xlu0 %v1405, 19
        %v1502 = vpop.permute.xlu0 %1501
        %vm1503 = vcmask 154624
        %v1504 = vsel %vm1503, %v1444, %v1446
        %v1505 = vsel %vm1503, %v1446, %v1448
        %v1506 = vsel %vm1503, %v1448, %v1450
        %v1507 = vsel %vm1503, %v1450, %v1452
        %v1508 = vsel %vm1503, %v1452, %v1454
        %v1509 = vsel %vm1503, %v1456, %v1458
        %v1510 = vsel %vm1503, %v1458, %v1460
        %v1511 = vsel %vm1503, %v1460, %v1462
        %v1512 = vsel %vm1503, %v1462, %v1464
        %v1513 = vsel %vm1503, %v1464, %v1466
        %v1514 = vsel %vm1503, %v1468, %v1470
        %v1515 = vsel %vm1503, %v1470, %v1472
        %v1516 = vsel %vm1503, %v1472, %v1474
        %v1517 = vsel %vm1503, %v1474, %v1476
        %v1518 = vsel %vm1503, %v1476, %v1478
        %v1519 = vsel %vm1503, %v1480, %v1482
        %v1520 = vsel %vm1503, %v1482, %v1484
        %v1521 = vsel %vm1503, %v1484, %v1486
        %v1522 = vsel %vm1503, %v1486, %v1488
        %v1523 = vsel %vm1503, %v1488, %v1490
        %v1524 = vsel %vm1503, %v1492, %v1494
        %v1525 = vsel %vm1503, %v1494, %v1496
        %v1526 = vsel %vm1503, %v1496, %v1498
        %v1527 = vsel %vm1503, %v1498, %v1500
        %v1528 = vsel %vm1503, %v1500, %v1502
        %vm1553 = vcmask 588800
        %v1555 = vsel %vm1553, %v1406, 0
        %vm1557 = vcmask 1043456
        %v1559 = vsel %vm1557, %v1524, 0
        %v1562 = vsel %vm1557, %v1525, 0
        %v1565 = vsel %vm1557, %v1526, 0
        %v1568 = vsel %vm1557, %v1527, 0
        %v1571 = vsel %vm1557, %v1528, 0
        %v1574 = vsel %vm1557, %v1502, 0
        %1576 = vmatprep.subr.bf16.mxu0 %v1505
        %1577 = vmatpush1.bf16.msra.mxu0 %v1504
        %1578 = vmatprep.subr.bf16.mxu0 %v1510
        %1579 = vmatpush1.bf16.msra.mxu0 %v1509
        %1580 = vmatprep.subr.bf16.mxu0 %v1515
        %1581 = vmatpush1.bf16.msra.mxu0 %v1514
        %1582 = vmatprep.subr.bf16.mxu0 %v1520
        %1583 = vmatpush1.bf16.msra.mxu0 %v1519
        %1584 = vmatprep.subr.bf16.mxu0 %v1562
        %1585 = vmatpush1.bf16.msra.mxu0 %v1559
        %1586 = vmatprep.subr.bf16.mxu0 0
        %1587 = vmatpush1.bf16.msra.mxu0 0
        %1588 = vmatprep.subr.bf16.mxu0 0
        %1589 = vmatpush1.bf16.msra.mxu0 0
        %1590 = vmatprep.subr.bf16.mxu0 0
        %1591 = vmatpush1.bf16.msra.mxu0 0
        %1592 = vmatprep.subr.bf16.mxu0 0
        %1593 = vmatpush1.bf16.msra.mxu0 0
        %1594 = vmatprep.subr.bf16.mxu0 0
        %1595 = vmatpush1.bf16.msra.mxu0 0
        %1596 = vmatprep.subr.bf16.mxu0 0
        %1597 = vmatpush1.bf16.msra.mxu0 0
        %1598 = vmatprep.subr.bf16.mxu0 0
        %1599 = vmatpush1.bf16.msra.mxu0 0
        %1600 = vmatprep.subr.bf16.mxu0 0
        %1601 = vmatpush1.bf16.msra.mxu0 0
        %1602 = vmatprep.subr.bf16.mxu0 0
        %1603 = vmatpush1.bf16.msra.mxu0 0
        %1604 = vmatprep.subr.bf16.mxu0 0
        %1605 = vmatpush1.bf16.msra.mxu0 0
        %1606 = vmatprep.subr.bf16.mxu0 0
        %1607 = vmatpush1.bf16.msra.mxu0 0
        %1608 = vmatprep.mubr.bf16.mxu0 0
        %1609 = vmatmul.mubr.bf16.gmra.mrb[0].mxu0 %v1555
        %v1610 = vpop.f32.mrb[0].mxu0
        %v1611 = vadd.f32 %v1411, %v1610
        %v1612 = vpop.f32.mrb[0].mxu0
        %v1613 = vadd.f32 %v1411, %v1612
        %v1614 = vpop.f32.mrb[0].mxu0
        %v1615 = vpop.f32.mrb[0].mxu0
        %1616 = vdwg.mxu0
        %1617 = vmatprep.subr.bf16.mxu0 %v1507
        %1618 = vmatpush1.bf16.msra.mxu0 %v1506
        %1619 = vmatprep.subr.bf16.mxu0 %v1512
        %1620 = vmatpush1.bf16.msra.mxu0 %v1511
        %1621 = vmatprep.subr.bf16.mxu0 %v1517
        %1622 = vmatpush1.bf16.msra.mxu0 %v1516
        %1623 = vmatprep.subr.bf16.mxu0 %v1522
        %1624 = vmatpush1.bf16.msra.mxu0 %v1521
        %1625 = vmatprep.subr.bf16.mxu0 %v1568
        %1626 = vmatpush1.bf16.msra.mxu0 %v1565
        %1627 = vmatprep.subr.bf16.mxu0 0
        %1628 = vmatpush1.bf16.msra.mxu0 0
        %1629 = vmatprep.subr.bf16.mxu0 0
        %1630 = vmatpush1.bf16.msra.mxu0 0
        %1631 = vmatprep.subr.bf16.mxu0 0
        %1632 = vmatpush1.bf16.msra.mxu0 0
        %1633 = vmatprep.subr.bf16.mxu0 0
        %1634 = vmatpush1.bf16.msra.mxu0 0
        %1635 = vmatprep.subr.bf16.mxu0 0
        %1636 = vmatpush1.bf16.msra.mxu0 0
        %1637 = vmatprep.subr.bf16.mxu0 0
        %1638 = vmatpush1.bf16.msra.mxu0 0
        %1639 = vmatprep.subr.bf16.mxu0 0
        %1640 = vmatpush1.bf16.msra.mxu0 0
        %1641 = vmatprep.subr.bf16.mxu0 0
        %1642 = vmatpush1.bf16.msra.mxu0 0
        %1643 = vmatprep.subr.bf16.mxu0 0
        %1644 = vmatpush1.bf16.msra.mxu0 0
        %1645 = vmatprep.subr.bf16.mxu0 0
        %1646 = vmatpush1.bf16.msra.mxu0 0
        %1647 = vmatprep.subr.bf16.mxu0 0
        %1648 = vmatpush1.bf16.msra.mxu0 0
        %1649 = vmatprep.mubr.bf16.mxu0 0
        %1650 = vmatmul.mubr.bf16.gmra.mrb[0].mxu0 %v1555
        %v1651 = vpop.f32.mrb[0].mxu0
        %v1652 = vadd.f32 %v1411, %v1651
        %v1653 = vpop.f32.mrb[0].mxu0
        %v1654 = vadd.f32 %v1411, %v1653
        %v1655 = vpop.f32.mrb[0].mxu0
        %v1656 = vpop.f32.mrb[0].mxu0
        %1657 = vdwg.mxu0
        %1658 = vmatprep.subr.bf16.mxu0 %v1454
        %1659 = vmatpush1.bf16.msra.mxu0 %v1508
        %1660 = vmatprep.subr.bf16.mxu0 %v1466
        %1661 = vmatpush1.bf16.msra.mxu0 %v1513
        %1662 = vmatprep.subr.bf16.mxu0 %v1478
        %1663 = vmatpush1.bf16.msra.mxu0 %v1518
        %1664 = vmatprep.subr.bf16.mxu0 %v1490
        %1665 = vmatpush1.bf16.msra.mxu0 %v1523
        %1666 = vmatprep.subr.bf16.mxu0 %v1574
        %1667 = vmatpush1.bf16.msra.mxu0 %v1571
        %1668 = vmatprep.subr.bf16.mxu0 0
        %1669 = vmatpush1.bf16.msra.mxu0 0
        %1670 = vmatprep.subr.bf16.mxu0 0
        %1671 = vmatpush1.bf16.msra.mxu0 0
        %1672 = vmatprep.subr.bf16.mxu0 0
        %1673 = vmatpush1.bf16.msra.mxu0 0
        %1674 = vmatprep.subr.bf16.mxu0 0
        %1675 = vmatpush1.bf16.msra.mxu0 0
        %1676 = vmatprep.subr.bf16.mxu0 0
        %1677 = vmatpush1.bf16.msra.mxu0 0
        %1678 = vmatprep.subr.bf16.mxu0 0
        %1679 = vmatpush1.bf16.msra.mxu0 0
        %1680 = vmatprep.subr.bf16.mxu0 0
        %1681 = vmatpush1.bf16.msra.mxu0 0
        %1682 = vmatprep.subr.bf16.mxu0 0
        %1683 = vmatpush1.bf16.msra.mxu0 0
        %1684 = vmatprep.subr.bf16.mxu0 0
        %1685 = vmatpush1.bf16.msra.mxu0 0
        %1686 = vmatprep.subr.bf16.mxu0 0
        %1687 = vmatpush1.bf16.msra.mxu0 0
        %1688 = vmatprep.subr.bf16.mxu0 0
        %1689 = vmatpush1.bf16.msra.mxu0 0
        %1690 = vmatprep.mubr.bf16.mxu0 0
        %1691 = vmatmul.mubr.bf16.gmra.mrb[0].mxu0 %v1555
        %v1692 = vpop.f32.mrb[0].mxu0
        %v1693 = vadd.f32 %v1411, %v1692
        %v1694 = vpop.f32.mrb[0].mxu0
        %v1695 = vadd.f32 %v1411, %v1694
        %v1696 = vpop.f32.mrb[0].mxu0
        %v1697 = vpop.f32.mrb[0].mxu0
        %1698 = vdwg.mxu0
        %v1699 = vld [vmem:[%s20] sm:$0x3f]
        %v1701 = vlaneseq
        %v1702 = vshrl.u32 %v1701, 7
        %v1703 = vsub.s32 0, %v1702
        %v1704 = vrot.slane %v1699, %v1703
        %v1705 = vlaneseq
        %v1706 = vshrl.u32 %v1705, 7
        %v1707 = vsub.s32 1, %v1706
        %v1708 = vrot.slane %v1699, %v1707
        %v1709 = vlaneseq
        %v1710 = vshrl.u32 %v1709, 7
        %v1711 = vsub.s32 2, %v1710
        %v1712 = vrot.slane %v1699, %v1711
        %v1713 = vlaneseq
        %v1714 = vshrl.u32 %v1713, 7
        %v1715 = vsub.s32 3, %v1714
        %v1716 = vrot.slane %v1699, %v1715
        %v1717 = vlaneseq
        %v1718 = vshrl.u32 %v1717, 7
        %v1719 = vsub.s32 4, %v1718
        %v1720 = vrot.slane %v1699, %v1719
        %v1721 = vlaneseq
        %v1722 = vshrl.u32 %v1721, 7
        %v1723 = vsub.s32 5, %v1722
        %v1724 = vrot.slane %v1699, %v1723
        %v1731 = vmul.f32 %v1611, %v1704
        %v1732 = vmul.f32 %v1613, %v1708
        %v1733 = vmul.f32 %v1652, %v1712
        %v1734 = vmul.f32 %v1654, %v1716
        %v1735 = vmul.f32 %v1693, %v1720
        %v1736 = vmul.f32 %v1695, %v1724
        %s1737 = sld [smem:[#allocation16 + $0x1]]
        %v1738 = vld [vmem:[#allocation4] sm:$0xff]
        %v1739 = vld [vmem:[#allocation4 + $0x8] sm:$0xff]
        %v1740 = vld [vmem:[#allocation4 + $0x10] sm:$0xff]
        %v1741 = vld [vmem:[#allocation4 + $0x18] sm:$0xff]
        %v1742 = vld [vmem:[#allocation4 + $0x20] sm:$0xff]
        %v1743 = vld [vmem:[#allocation4 + $0x28] sm:$0xff]
        %v1744 = vadd.f32 %v1738, %v1731
        %v1745 = vadd.f32 %v1739, %v1732
        %v1746 = vadd.f32 %v1740, %v1733
        %v1747 = vadd.f32 %v1741, %v1734
        %v1748 = vadd.f32 %v1742, %v1735
        %v1749 = vadd.f32 %v1743, %v1736
        %v1750 = vstv %s1737
        %vm1751 = vcmp.ge.f32.partialorder %v1744, %v1750
        %vm1752 = vcmp.ge.f32.partialorder %v1745, %v1750
        %vm1753 = vcmp.ge.f32.partialorder %v1746, %v1750
        %vm1754 = vcmp.ge.f32.partialorder %v1747, %v1750
        %vm1755 = vcmp.ge.f32.partialorder %v1748, %v1750
        %vm1756 = vcmp.ge.f32.partialorder %v1749, %v1750
        %v1757 = vsel %vm1751, %v1750, 0.0
        %v1758 = vsel %vm1752, %v1750, 0.0
        %v1759 = vsel %vm1753, %v1750, 0.0
        %v1760 = vsel %vm1754, %v1750, 0.0
        %v1761 = vsel %vm1755, %v1750, 0.0
        %v1762 = vsel %vm1756, %v1750, 0.0
        %v1763 = vsub.f32 %v1744, %v1757
        %v1764 = vsub.f32 %v1745, %v1758
        %v1765 = vsub.f32 %v1746, %v1759
        %v1766 = vsub.f32 %v1747, %v1760
        %v1767 = vsub.f32 %v1748, %v1761
        %v1768 = vsub.f32 %v1749, %v1762
        %1769 = vst [vmem:[#allocation4] sm:$0xff] %v1763
        %1770 = vst [vmem:[#allocation4 + $0x8] sm:$0xff] %v1764
        %1771 = vst [vmem:[#allocation4 + $0x10] sm:$0xff] %v1765
        %1772 = vst [vmem:[#allocation4 + $0x18] sm:$0xff] %v1766
        %1773 = vst [vmem:[#allocation4 + $0x20] sm:$0xff] %v1767
        %1774 = vst.msk [vmem:[#allocation4 + $0x28] sm:$0xff] %vm1159, %v1768
        %v1775 = vpack.c.bf16 %v1757, %v1757
        %v1776 = vpack.c.bf16 %v1758, %v1758
        %v1777 = vpack.c.bf16 %v1759, %v1759
        %v1778 = vpack.c.bf16 %v1760, %v1760
        %v1779 = vpack.c.bf16 %v1761, %v1761
        %v1780 = vpack.c.bf16 %v1762, %v1762
        %v1781 = vld [vmem:[%s18] sm:$0xff]
        %v1782 = vld [vmem:[%s18 + $0x8] sm:$0xff]
        %v1783 = vld [vmem:[%s18 + $0x10] sm:$0xff]
        %v1784 = vld [vmem:[%s18 + $0x18] sm:$0xff]
        %v1785 = vld [vmem:[%s18 + $0x20] sm:$0xff]
        %v1786 = vld [vmem:[%s18 + $0x28] sm:$0xff]
        %v1787 = vld [vmem:[%s18 + $0x30] sm:$0xff]
        %v1788 = vld [vmem:[%s18 + $0x38] sm:$0xff]
        %v1789 = vld [vmem:[%s18 + $0x40] sm:$0xff]
        %v1790 = vld [vmem:[%s18 + $0x48] sm:$0xff]
        %v1791 = vld [vmem:[%s18 + $0x50] sm:$0xff]
        %v1792 = vld [vmem:[%s18 + $0x58] sm:$0xff]
        %v1793 = vld [vmem:[%s18 + $0x60] sm:$0xff]
        %v1794 = vld [vmem:[%s18 + $0x68] sm:$0xff]
        %v1795 = vld [vmem:[%s18 + $0x70] sm:$0xff]
        %v1796 = vld [vmem:[%s18 + $0x78] sm:$0xff]
        %v1797 = vld [vmem:[%s18 + $0x80] sm:$0xff]
        %v1798 = vld [vmem:[%s18 + $0x88] sm:$0xff]
        %v1799 = vld [vmem:[%s18 + $0x90] sm:$0xff]
        %v1800 = vld [vmem:[%s18 + $0x98] sm:$0xff]
        %v1801 = vld [vmem:[%s18 + $0xa0] sm:$0xff]
        %v1802 = vld [vmem:[%s18 + $0xa8] sm:$0xff]
        %v1803 = vld [vmem:[%s18 + $0xb0] sm:$0xff]
        %v1804 = vld [vmem:[%s18 + $0xb8] sm:$0xff]
        %v1805 = vld [vmem:[%s18 + $0xc0] sm:$0xff]
        %v1806 = vld [vmem:[%s18 + $0xc8] sm:$0xff]
        %v1807 = vld [vmem:[%s18 + $0xd0] sm:$0xff]
        %v1808 = vld [vmem:[%s18 + $0xd8] sm:$0xff]
        %v1809 = vld [vmem:[%s18 + $0xe0] sm:$0xff]
        %v1810 = vld [vmem:[%s18 + $0xe8] sm:$0xff]
        %v1811 = vld [vmem:[%s18 + $0xf0] sm:$0xff]
        %v1812 = vld [vmem:[%s18 + $0xf8] sm:$0xff]
        %v1813 = vld [vmem:[%s18 + $0x100] sm:$0xff]
        %v1814 = vld [vmem:[%s18 + $0x108] sm:$0xff]
        %v1815 = vld [vmem:[%s18 + $0x110] sm:$0xff]
        %v1816 = vld [vmem:[%s18 + $0x118] sm:$0xff]
        %v1817 = vld [vmem:[%s18 + $0x120] sm:$0xff]
        %v1818 = vld [vmem:[%s18 + $0x128] sm:$0xff]
        %v1819 = vld [vmem:[%s18 + $0x130] sm:$0xff]
        %v1820 = vld [vmem:[%s18 + $0x138] sm:$0xff]
        %v1821 = vld [vmem:[%s18 + $0x140] sm:$0xff]
        %v1822 = vld [vmem:[%s18 + $0x148] sm:$0xff]
        %v1823 = vld [vmem:[%s18 + $0x150] sm:$0xff]
        %v1824 = vld [vmem:[%s18 + $0x158] sm:$0xff]
        %v1825 = vld [vmem:[%s18 + $0x160] sm:$0xff]
        %v1826 = vld [vmem:[%s18 + $0x168] sm:$0xff]
        %v1827 = vld [vmem:[%s18 + $0x170] sm:$0xff]
        %v1828 = vld [vmem:[%s18 + $0x178] sm:$0xff]
        %v1829 = vld [vmem:[%s18 + $0x180] sm:$0xff]
        %v1830 = vld [vmem:[%s18 + $0x188] sm:$0xff]
        %v1831 = vld [vmem:[%s18 + $0x190] sm:$0xff]
        %v1832 = vld [vmem:[%s18 + $0x198] sm:$0xff]
        %v1833 = vld [vmem:[%s18 + $0x1a0] sm:$0xff]
        %v1834 = vld [vmem:[%s18 + $0x1a8] sm:$0xff]
        %v1835 = vld [vmem:[%s18 + $0x1b0] sm:$0xff]
        %v1836 = vld [vmem:[%s18 + $0x1b8] sm:$0xff]
        %v1837 = vld [vmem:[%s18 + $0x1c0] sm:$0xff]
        %v1838 = vld [vmem:[%s18 + $0x1c8] sm:$0xff]
        %v1839 = vld [vmem:[%s18 + $0x1d0] sm:$0xff]
        %v1840 = vld [vmem:[%s18 + $0x1d8] sm:$0xff]
        %v1841 = vld [vmem:[%s18 + $0x1e0] sm:$0xff]
        %v1842 = vld [vmem:[%s18 + $0x1e8] sm:$0xff]
        %v1843 = vld [vmem:[%s18 + $0x1f0] sm:$0xff]
        %v1844 = vld [vmem:[%s18 + $0x1f8] sm:$0xff]
        %v1845 = vld [vmem:[%s18 + $0x200] sm:$0xff]
        %v1846 = vld [vmem:[%s18 + $0x208] sm:$0xff]
        %v1847 = vld [vmem:[%s18 + $0x210] sm:$0xff]
        %v1848 = vld [vmem:[%s18 + $0x218] sm:$0xff]
        %v1849 = vld [vmem:[%s18 + $0x220] sm:$0xff]
        %v1850 = vld [vmem:[%s18 + $0x228] sm:$0xff]
        %v1851 = vld [vmem:[%s18 + $0x230] sm:$0xff]
        %v1852 = vld [vmem:[%s18 + $0x238] sm:$0xff]
        %v1853 = vld [vmem:[%s18 + $0x240] sm:$0xff]
        %v1854 = vld [vmem:[%s18 + $0x248] sm:$0xff]
        %v1855 = vld [vmem:[%s18 + $0x250] sm:$0xff]
        %v1856 = vld [vmem:[%s18 + $0x258] sm:$0xff]
        %v1857 = vld [vmem:[%s18 + $0x260] sm:$0xff]
        %v1858 = vld [vmem:[%s18 + $0x268] sm:$0xff]
        %v1859 = vld [vmem:[%s18 + $0x270] sm:$0xff]
        %v1860 = vld [vmem:[%s18 + $0x278] sm:$0xff]
        %v1861 = vld [vmem:[%s18 + $0x280] sm:$0xff]
        %v1943 = vunpack.c.l.b16 %v1781
        %v1944 = vunpack.c.h.b16 %v1781
        %v1945 = vunpack.c.l.b16 %v1782
        %v1946 = vunpack.c.h.b16 %v1782
        %v1947 = vunpack.c.l.b16 %v1783
        %v1948 = vunpack.c.h.b16 %v1783
        %v1949 = vunpack.c.l.b16 %v1784
        %v1950 = vunpack.c.h.b16 %v1784
        %v1951 = vunpack.c.l.b16 %v1785
        %v1952 = vunpack.c.h.b16 %v1785
        %v1953 = vunpack.c.l.b16 %v1786
        %v1954 = vunpack.c.h.b16 %v1786
        %v1955 = vunpack.c.l.b16 %v1787
        %v1956 = vunpack.c.h.b16 %v1787
        %v1957 = vunpack.c.l.b16 %v1788
        %v1958 = vunpack.c.h.b16 %v1788
        %v1959 = vunpack.c.l.b16 %v1789
        %v1960 = vunpack.c.h.b16 %v1789
        %v1961 = vunpack.c.l.b16 %v1790
        %v1962 = vunpack.c.h.b16 %v1790
        %v1963 = vunpack.c.l.b16 %v1791
        %v1964 = vunpack.c.h.b16 %v1791
        %v1965 = vunpack.c.l.b16 %v1792
        %v1966 = vunpack.c.h.b16 %v1792
        %v1967 = vunpack.c.l.b16 %v1793
        %v1968 = vunpack.c.h.b16 %v1793
        %v1969 = vunpack.c.l.b16 %v1794
        %v1970 = vunpack.c.h.b16 %v1794
        %v1971 = vunpack.c.l.b16 %v1795
        %v1972 = vunpack.c.h.b16 %v1795
        %v1973 = vunpack.c.l.b16 %v1796
        %v1974 = vunpack.c.h.b16 %v1796
        %v1975 = vunpack.c.l.b16 %v1797
        %v1976 = vunpack.c.h.b16 %v1797
        %v1977 = vunpack.c.l.b16 %v1798
        %v1978 = vunpack.c.h.b16 %v1798
        %v1979 = vunpack.c.l.b16 %v1799
        %v1980 = vunpack.c.h.b16 %v1799
        %v1981 = vunpack.c.l.b16 %v1800
        %v1982 = vunpack.c.h.b16 %v1800
        %v1983 = vunpack.c.l.b16 %v1801
        %v1984 = vunpack.c.h.b16 %v1801
        %v1985 = vunpack.c.l.b16 %v1802
        %v1986 = vunpack.c.h.b16 %v1802
        %v1987 = vunpack.c.l.b16 %v1803
        %v1988 = vunpack.c.h.b16 %v1803
        %v1989 = vunpack.c.l.b16 %v1804
        %v1990 = vunpack.c.h.b16 %v1804
        %v1991 = vunpack.c.l.b16 %v1805
        %v1992 = vunpack.c.h.b16 %v1805
        %v1993 = vunpack.c.l.b16 %v1806
        %v1994 = vunpack.c.h.b16 %v1806
        %v1995 = vunpack.c.l.b16 %v1807
        %v1996 = vunpack.c.h.b16 %v1807
        %v1997 = vunpack.c.l.b16 %v1808
        %v1998 = vunpack.c.h.b16 %v1808
        %v1999 = vunpack.c.l.b16 %v1809
        %v2000 = vunpack.c.h.b16 %v1809
        %v2001 = vunpack.c.l.b16 %v1810
        %v2002 = vunpack.c.h.b16 %v1810
        %v2003 = vunpack.c.l.b16 %v1811
        %v2004 = vunpack.c.h.b16 %v1811
        %v2005 = vunpack.c.l.b16 %v1812
        %v2006 = vunpack.c.h.b16 %v1812
        %v2007 = vunpack.c.l.b16 %v1813
        %v2008 = vunpack.c.h.b16 %v1813
        %v2009 = vunpack.c.l.b16 %v1814
        %v2010 = vunpack.c.h.b16 %v1814
        %v2011 = vunpack.c.l.b16 %v1815
        %v2012 = vunpack.c.h.b16 %v1815
        %v2013 = vunpack.c.l.b16 %v1816
        %v2014 = vunpack.c.h.b16 %v1816
        %v2015 = vunpack.c.l.b16 %v1817
        %v2016 = vunpack.c.h.b16 %v1817
        %v2017 = vunpack.c.l.b16 %v1818
        %v2018 = vunpack.c.h.b16 %v1818
        %v2019 = vunpack.c.l.b16 %v1819
        %v2020 = vunpack.c.h.b16 %v1819
        %v2021 = vunpack.c.l.b16 %v1820
        %v2022 = vunpack.c.h.b16 %v1820
        %v2023 = vunpack.c.l.b16 %v1821
        %v2024 = vunpack.c.h.b16 %v1821
        %v2025 = vunpack.c.l.b16 %v1822
        %v2026 = vunpack.c.h.b16 %v1822
        %v2027 = vunpack.c.l.b16 %v1823
        %v2028 = vunpack.c.h.b16 %v1823
        %v2029 = vunpack.c.l.b16 %v1824
        %v2030 = vunpack.c.h.b16 %v1824
        %v2031 = vunpack.c.l.b16 %v1825
        %v2032 = vunpack.c.h.b16 %v1825
        %v2033 = vunpack.c.l.b16 %v1826
        %v2034 = vunpack.c.h.b16 %v1826
        %v2035 = vunpack.c.l.b16 %v1827
        %v2036 = vunpack.c.h.b16 %v1827
        %v2037 = vunpack.c.l.b16 %v1828
        %v2038 = vunpack.c.h.b16 %v1828
        %v2039 = vunpack.c.l.b16 %v1829
        %v2040 = vunpack.c.h.b16 %v1829
        %v2041 = vunpack.c.l.b16 %v1830
        %v2042 = vunpack.c.h.b16 %v1830
        %v2043 = vunpack.c.l.b16 %v1831
        %v2044 = vunpack.c.h.b16 %v1831
        %v2045 = vunpack.c.l.b16 %v1832
        %v2046 = vunpack.c.h.b16 %v1832
        %v2047 = vunpack.c.l.b16 %v1833
        %v2048 = vunpack.c.h.b16 %v1833
        %v2049 = vunpack.c.l.b16 %v1834
        %v2050 = vunpack.c.h.b16 %v1834
        %v2051 = vunpack.c.l.b16 %v1835
        %v2052 = vunpack.c.h.b16 %v1835
        %v2053 = vunpack.c.l.b16 %v1836
        %v2054 = vunpack.c.h.b16 %v1836
        %v2055 = vunpack.c.l.b16 %v1837
        %v2056 = vunpack.c.h.b16 %v1837
        %v2057 = vunpack.c.l.b16 %v1838
        %v2058 = vunpack.c.h.b16 %v1838
        %v2059 = vunpack.c.l.b16 %v1839
        %v2060 = vunpack.c.h.b16 %v1839
        %v2061 = vunpack.c.l.b16 %v1840
        %v2062 = vunpack.c.h.b16 %v1840
        %v2063 = vunpack.c.l.b16 %v1841
        %v2064 = vunpack.c.h.b16 %v1841
        %v2065 = vunpack.c.l.b16 %v1842
        %v2066 = vunpack.c.h.b16 %v1842
        %v2067 = vunpack.c.l.b16 %v1843
        %v2068 = vunpack.c.h.b16 %v1843
        %v2069 = vunpack.c.l.b16 %v1844
        %v2070 = vunpack.c.h.b16 %v1844
        %v2071 = vunpack.c.l.b16 %v1845
        %v2072 = vunpack.c.h.b16 %v1845
        %v2073 = vunpack.c.l.b16 %v1846
        %v2074 = vunpack.c.h.b16 %v1846
        %v2075 = vunpack.c.l.b16 %v1847
        %v2076 = vunpack.c.h.b16 %v1847
        %v2077 = vunpack.c.l.b16 %v1848
        %v2078 = vunpack.c.h.b16 %v1848
        %v2079 = vunpack.c.l.b16 %v1849
        %v2080 = vunpack.c.h.b16 %v1849
        %v2081 = vunpack.c.l.b16 %v1850
        %v2082 = vunpack.c.h.b16 %v1850
        %v2083 = vunpack.c.l.b16 %v1851
        %v2084 = vunpack.c.h.b16 %v1851
        %v2085 = vunpack.c.l.b16 %v1852
        %v2086 = vunpack.c.h.b16 %v1852
        %v2087 = vunpack.c.l.b16 %v1853
        %v2088 = vunpack.c.h.b16 %v1853
        %v2089 = vunpack.c.l.b16 %v1854
        %v2090 = vunpack.c.h.b16 %v1854
        %v2091 = vunpack.c.l.b16 %v1855
        %v2092 = vunpack.c.h.b16 %v1855
        %v2093 = vunpack.c.l.b16 %v1856
        %v2094 = vunpack.c.h.b16 %v1856
        %v2095 = vunpack.c.l.b16 %v1857
        %v2096 = vunpack.c.h.b16 %v1857
        %v2097 = vunpack.c.l.b16 %v1858
        %v2098 = vunpack.c.h.b16 %v1858
        %v2099 = vunpack.c.l.b16 %v1859
        %v2100 = vunpack.c.h.b16 %v1859
        %v2101 = vunpack.c.l.b16 %v1860
        %v2102 = vunpack.c.h.b16 %v1860
        %v2103 = vunpack.c.l.b16 %v1861
        %v2104 = vunpack.c.h.b16 %v1861
        %v2105 = vpack.c.b16 %v1945, %v1943
        %v2106 = vpack.c.b16 %v1946, %v1944
        %v2107 = vpack.c.b16 %v1949, %v1947
        %v2108 = vpack.c.b16 %v1950, %v1948
        %v2109 = vpack.c.b16 %v1953, %v1951
        %v2110 = vpack.c.b16 %v1954, %v1952
        %v2111 = vpack.c.b16 %v1957, %v1955
        %v2112 = vpack.c.b16 %v1958, %v1956
        %v2113 = vpack.c.b16 %v1961, %v1959
        %v2114 = vpack.c.b16 %v1962, %v1960
        %v2115 = vpack.c.b16 %v1965, %v1963
        %v2116 = vpack.c.b16 %v1966, %v1964
        %v2117 = vpack.c.b16 %v1969, %v1967
        %v2118 = vpack.c.b16 %v1970, %v1968
        %v2119 = vpack.c.b16 %v1973, %v1971
        %v2120 = vpack.c.b16 %v1974, %v1972
        %v2121 = vpack.c.b16 %v1977, %v1975
        %v2122 = vpack.c.b16 %v1978, %v1976
        %v2123 = vpack.c.b16 %v1981, %v1979
        %v2124 = vpack.c.b16 %v1982, %v1980
        %v2125 = vpack.c.b16 %v1985, %v1983
        %v2126 = vpack.c.b16 %v1986, %v1984
        %v2127 = vpack.c.b16 %v1989, %v1987
        %v2128 = vpack.c.b16 %v1990, %v1988
        %v2129 = vpack.c.b16 %v1993, %v1991
        %v2130 = vpack.c.b16 %v1994, %v1992
        %v2131 = vpack.c.b16 %v1997, %v1995
        %v2132 = vpack.c.b16 %v1998, %v1996
        %v2133 = vpack.c.b16 %v2001, %v1999
        %v2134 = vpack.c.b16 %v2002, %v2000
        %v2135 = vpack.c.b16 %v2005, %v2003
        %v2136 = vpack.c.b16 %v2006, %v2004
        %v2137 = vpack.c.b16 %v2009, %v2007
        %v2138 = vpack.c.b16 %v2010, %v2008
        %v2139 = vpack.c.b16 %v2013, %v2011
        %v2140 = vpack.c.b16 %v2014, %v2012
        %v2141 = vpack.c.b16 %v2017, %v2015
        %v2142 = vpack.c.b16 %v2018, %v2016
        %v2143 = vpack.c.b16 %v2021, %v2019
        %v2144 = vpack.c.b16 %v2022, %v2020
        %v2145 = vpack.c.b16 %v2025, %v2023
        %v2146 = vpack.c.b16 %v2026, %v2024
        %v2147 = vpack.c.b16 %v2029, %v2027
        %v2148 = vpack.c.b16 %v2030, %v2028
        %v2149 = vpack.c.b16 %v2033, %v2031
        %v2150 = vpack.c.b16 %v2034, %v2032
        %v2151 = vpack.c.b16 %v2037, %v2035
        %v2152 = vpack.c.b16 %v2038, %v2036
        %v2153 = vpack.c.b16 %v2041, %v2039
        %v2154 = vpack.c.b16 %v2042, %v2040
        %v2155 = vpack.c.b16 %v2045, %v2043
        %v2156 = vpack.c.b16 %v2046, %v2044
        %v2157 = vpack.c.b16 %v2049, %v2047
        %v2158 = vpack.c.b16 %v2050, %v2048
        %v2159 = vpack.c.b16 %v2053, %v2051
        %v2160 = vpack.c.b16 %v2054, %v2052
        %v2161 = vpack.c.b16 %v2057, %v2055
        %v2162 = vpack.c.b16 %v2058, %v2056
        %v2163 = vpack.c.b16 %v2061, %v2059
        %v2164 = vpack.c.b16 %v2062, %v2060
        %v2165 = vpack.c.b16 %v2065, %v2063
        %v2166 = vpack.c.b16 %v2066, %v2064
        %v2167 = vpack.c.b16 %v2069, %v2067
        %v2168 = vpack.c.b16 %v2070, %v2068
        %v2169 = vpack.c.b16 %v2073, %v2071
        %v2170 = vpack.c.b16 %v2074, %v2072
        %v2171 = vpack.c.b16 %v2077, %v2075
        %v2172 = vpack.c.b16 %v2078, %v2076
        %v2173 = vpack.c.b16 %v2081, %v2079
        %v2174 = vpack.c.b16 %v2082, %v2080
        %v2175 = vpack.c.b16 %v2085, %v2083
        %v2176 = vpack.c.b16 %v2086, %v2084
        %v2177 = vpack.c.b16 %v2089, %v2087
        %v2178 = vpack.c.b16 %v2090, %v2088
        %v2179 = vpack.c.b16 %v2093, %v2091
        %v2180 = vpack.c.b16 %v2094, %v2092
        %v2181 = vpack.c.b16 %v2097, %v2095
        %v2182 = vpack.c.b16 %v2098, %v2096
        %v2183 = vpack.c.b16 %v2101, %v2099
        %v2184 = vpack.c.b16 %v2102, %v2100
        %v2185 = vpack.c.b16 %v2103, %v2103
        %v2186 = vpack.c.b16 %v2104, %v2104
        %v2268 = vsel %vm1159, %v1780, 0
        %v2271 = vsel %vm1557, %v2185, 0
        %v2274 = vsel %vm1557, %v2186, 0
        %2276 = vmatprep.subr.bf16.mxu0 %v2106
        %2277 = vmatpush1.bf16.msra.mxu0 %v2105
        %2278 = vmatprep.subr.bf16.mxu0 %v2108
        %2279 = vmatpush1.bf16.msra.mxu0 %v2107
        %2280 = vmatprep.subr.bf16.mxu0 %v2110
        %2281 = vmatpush1.bf16.msra.mxu0 %v2109
        %2282 = vmatprep.subr.bf16.mxu0 %v2112
        %2283 = vmatpush1.bf16.msra.mxu0 %v2111
        %2284 = vmatprep.subr.bf16.mxu0 %v2114
        %2285 = vmatpush1.bf16.msra.mxu0 %v2113
        %2286 = vmatprep.subr.bf16.mxu0 %v2116
        %2287 = vmatpush1.bf16.msra.mxu0 %v2115
        %2288 = vmatprep.subr.bf16.mxu0 %v2118
        %2289 = vmatpush1.bf16.msra.mxu0 %v2117
        %2290 = vmatprep.subr.bf16.mxu0 %v2120
        %2291 = vmatpush1.bf16.msra.mxu0 %v2119
        %2292 = vmatprep.subr.bf16.mxu0 %v2122
        %2293 = vmatpush1.bf16.msra.mxu0 %v2121
        %2294 = vmatprep.subr.bf16.mxu0 %v2124
        %2295 = vmatpush1.bf16.msra.mxu0 %v2123
        %2296 = vmatprep.subr.bf16.mxu0 %v2126
        %2297 = vmatpush1.bf16.msra.mxu0 %v2125
        %2298 = vmatprep.subr.bf16.mxu0 %v2128
        %2299 = vmatpush1.bf16.msra.mxu0 %v2127
        %2300 = vmatprep.subr.bf16.mxu0 %v2130
        %2301 = vmatpush1.bf16.msra.mxu0 %v2129
        %2302 = vmatprep.subr.bf16.mxu0 %v2132
        %2303 = vmatpush1.bf16.msra.mxu0 %v2131
        %2304 = vmatprep.subr.bf16.mxu0 %v2134
        %2305 = vmatpush1.bf16.msra.mxu0 %v2133
        %2306 = vmatprep.subr.bf16.mxu0 %v2136
        %2307 = vmatpush1.bf16.msra.mxu0 %v2135
        %2308 = vmatprep.mubr.bf16.mxu0 %v1776
        %2309 = vmatmul.mubr.bf16.gmra.mrb[0].mxu0 %v1775
        %v2310 = vpop.f32.mrb[0].mxu0
        %v2311 = vadd.f32 0.0, %v2310
        %v2312 = vpop.f32.mrb[0].mxu0
        %v2313 = vadd.f32 0.0, %v2312
        %v2314 = vpop.f32.mrb[0].mxu0
        %v2315 = vpop.f32.mrb[0].mxu0
        %2316 = vdwg.mxu0
        %2317 = vmatprep.subr.bf16.mxu0 %v2138
        %2318 = vmatpush1.bf16.msra.mxu0 %v2137
        %2319 = vmatprep.subr.bf16.mxu0 %v2140
        %2320 = vmatpush1.bf16.msra.mxu0 %v2139
        %2321 = vmatprep.subr.bf16.mxu0 %v2142
        %2322 = vmatpush1.bf16.msra.mxu0 %v2141
        %2323 = vmatprep.subr.bf16.mxu0 %v2144
        %2324 = vmatpush1.bf16.msra.mxu0 %v2143
        %2325 = vmatprep.subr.bf16.mxu0 %v2146
        %2326 = vmatpush1.bf16.msra.mxu0 %v2145
        %2327 = vmatprep.subr.bf16.mxu0 %v2148
        %2328 = vmatpush1.bf16.msra.mxu0 %v2147
        %2329 = vmatprep.subr.bf16.mxu0 %v2150
        %2330 = vmatpush1.bf16.msra.mxu0 %v2149
        %2331 = vmatprep.subr.bf16.mxu0 %v2152
        %2332 = vmatpush1.bf16.msra.mxu0 %v2151
        %2333 = vmatprep.subr.bf16.mxu0 %v2154
        %2334 = vmatpush1.bf16.msra.mxu0 %v2153
        %2335 = vmatprep.subr.bf16.mxu0 %v2156
        %2336 = vmatpush1.bf16.msra.mxu0 %v2155
        %2337 = vmatprep.subr.bf16.mxu0 %v2158
        %2338 = vmatpush1.bf16.msra.mxu0 %v2157
        %2339 = vmatprep.subr.bf16.mxu0 %v2160
        %2340 = vmatpush1.bf16.msra.mxu0 %v2159
        %2341 = vmatprep.subr.bf16.mxu0 %v2162
        %2342 = vmatpush1.bf16.msra.mxu0 %v2161
        %2343 = vmatprep.subr.bf16.mxu0 %v2164
        %2344 = vmatpush1.bf16.msra.mxu0 %v2163
        %2345 = vmatprep.subr.bf16.mxu0 %v2166
        %2346 = vmatpush1.bf16.msra.mxu0 %v2165
        %2347 = vmatprep.subr.bf16.mxu0 %v2168
        %2348 = vmatpush1.bf16.msra.mxu0 %v2167
        %2349 = vmatprep.mubr.bf16.mxu0 %v1778
        %2350 = vmatmul.mubr.bf16.gmra.mrb[0].mxu0 %v1777
        %v2351 = vpop.f32.mrb[0].mxu0
        %v2352 = vadd.f32 %v2311, %v2351
        %v2353 = vpop.f32.mrb[0].mxu0
        %v2354 = vadd.f32 %v2313, %v2353
        %v2355 = vpop.f32.mrb[0].mxu0
        %v2356 = vpop.f32.mrb[0].mxu0
        %2357 = vdwg.mxu0
        %2358 = vmatprep.subr.bf16.mxu0 %v2170
        %2359 = vmatpush1.bf16.msra.mxu0 %v2169
        %2360 = vmatprep.subr.bf16.mxu0 %v2172
        %2361 = vmatpush1.bf16.msra.mxu0 %v2171
        %2362 = vmatprep.subr.bf16.mxu0 %v2174
        %2363 = vmatpush1.bf16.msra.mxu0 %v2173
        %2364 = vmatprep.subr.bf16.mxu0 %v2176
        %2365 = vmatpush1.bf16.msra.mxu0 %v2175
        %2366 = vmatprep.subr.bf16.mxu0 %v2178
        %2367 = vmatpush1.bf16.msra.mxu0 %v2177
        %2368 = vmatprep.subr.bf16.mxu0 %v2180
        %2369 = vmatpush1.bf16.msra.mxu0 %v2179
        %2370 = vmatprep.subr.bf16.mxu0 %v2182
        %2371 = vmatpush1.bf16.msra.mxu0 %v2181
        %2372 = vmatprep.subr.bf16.mxu0 %v2184
        %2373 = vmatpush1.bf16.msra.mxu0 %v2183
        %2374 = vmatprep.subr.bf16.mxu0 %v2274
        %2375 = vmatpush1.bf16.msra.mxu0 %v2271
        %2376 = vmatprep.subr.bf16.mxu0 0
        %2377 = vmatpush1.bf16.msra.mxu0 0
        %2378 = vmatprep.subr.bf16.mxu0 0
        %2379 = vmatpush1.bf16.msra.mxu0 0
        %2380 = vmatprep.subr.bf16.mxu0 0
        %2381 = vmatpush1.bf16.msra.mxu0 0
        %2382 = vmatprep.subr.bf16.mxu0 0
        %2383 = vmatpush1.bf16.msra.mxu0 0
        %2384 = vmatprep.subr.bf16.mxu0 0
        %2385 = vmatpush1.bf16.msra.mxu0 0
        %2386 = vmatprep.subr.bf16.mxu0 0
        %2387 = vmatpush1.bf16.msra.mxu0 0
        %2388 = vmatprep.subr.bf16.mxu0 0
        %2389 = vmatpush1.bf16.msra.mxu0 0
        %2390 = vmatprep.mubr.bf16.mxu0 %v2268
        %2391 = vmatmul.mubr.bf16.gmra.mrb[0].mxu0 %v1779
        %v2392 = vpop.f32.mrb[0].mxu0
        %v2393 = vadd.f32 %v2352, %v2392
        %v2394 = vpop.f32.mrb[0].mxu0
        %v2395 = vadd.f32 %v2354, %v2394
        %v2396 = vpop.f32.mrb[0].mxu0
        %v2397 = vpop.f32.mrb[0].mxu0
        %2398 = vdwg.mxu0
        %2399 = vst [vmem:[#allocation13 + $0x8] sm:$0xff] %v2393
        %2400 = vst.msk [vmem:[#allocation13 + $0x10] sm:$0xff] %vm1553, %v2395
        %v2401 = vld [vmem:[#allocation13] sm:$0xff]
        %v2402 = vld [vmem:[#allocation13 + $0x8] sm:$0xff]
        %v2403 = vld [vmem:[#allocation13 + $0x10] sm:$0xff]
        %2407 = vrot.lane.b32.xlu0 %v2401, 127
        %v2408 = vpop.permute.xlu0 %2407
        %2409 = vrot.lane.b32.xlu0 %v2402, 127
        %v2410 = vpop.permute.xlu0 %2409
        %2411 = vrot.lane.b32.xlu0 %v2403, 127
        %v2412 = vpop.permute.xlu0 %2411
        %v2413 = vsel %vm1192, %v2408, %v2410
        %v2414 = vsel %vm1192, %v2410, %v2412
        %2418 = vrot.lane.b32.xlu0 %v2401, 126
        %v2419 = vpop.permute.xlu0 %2418
        %2420 = vrot.lane.b32.xlu0 %v2402, 126
        %v2421 = vpop.permute.xlu0 %2420
        %2422 = vrot.lane.b32.xlu0 %v2403, 126
        %v2423 = vpop.permute.xlu0 %2422
        %v2424 = vsel %vm1216, %v2419, %v2421
        %v2425 = vsel %vm1216, %v2421, %v2423
        %2429 = vrot.lane.b32.xlu0 %v2401, 118
        %v2430 = vpop.permute.xlu0 %2429
        %2431 = vrot.lane.b32.xlu0 %v2402, 118
        %v2432 = vpop.permute.xlu0 %2431
        %2433 = vrot.lane.b32.xlu0 %v2403, 118
        %v2434 = vpop.permute.xlu0 %2433
        %vm2435 = vcmask 965632
        %v2436 = vsel %vm2435, %v2430, %v2432
        %v2437 = vsel %vm2435, %v2432, %v2434
        %2441 = vrot.lane.b32.xlu0 %v2402, 117
        %v2442 = vpop.permute.xlu0 %2441
        %2443 = vrot.lane.b32.xlu0 %v2403, 117
        %v2444 = vpop.permute.xlu0 %2443
        %vm2445 = vcmask 957440
        %v2446 = vsel %vm2445, %v2442, %v2444
        %2450 = vrot.lane.b32.xlu0 %v2402, 116
        %v2451 = vpop.permute.xlu0 %2450
        %2452 = vrot.lane.b32.xlu0 %v2403, 116
        %v2453 = vpop.permute.xlu0 %2452
        %vm2454 = vcmask 949248
        %v2455 = vsel %vm2454, %v2451, %v2453
        %2459 = vrot.lane.b32.xlu0 %v2402, 108
        %v2460 = vpop.permute.xlu0 %2459
        %2461 = vrot.lane.b32.xlu0 %v2403, 108
        %v2462 = vpop.permute.xlu0 %2461
        %v2463 = vsel %vm1292, %v2460, %v2462
        %2467 = vrot.lane.b32.xlu0 %v2402, 107
        %v2468 = vpop.permute.xlu0 %2467
        %2469 = vrot.lane.b32.xlu0 %v2403, 107
        %v2470 = vpop.permute.xlu0 %2469
        %vm2471 = vcmask 875520
        %v2472 = vsel %vm2471, %v2468, %v2470
        %2476 = vrot.lane.b32.xlu0 %v2402, 106
        %v2477 = vpop.permute.xlu0 %2476
        %2478 = vrot.lane.b32.xlu0 %v2403, 106
        %v2479 = vpop.permute.xlu0 %2478
        %vm2480 = vcmask 867328
        %v2481 = vsel %vm2480, %v2477, %v2479
        %v2485 = vpack.c.bf16 %v2413, %v2401
        %v2486 = vpack.c.bf16 %v2414, %v2402
        %v2487 = vpack.c.bf16 %v2412, %v2403
        %v2488 = vpack.c.bf16 %v2436, %v2424
        %v2489 = vpack.c.bf16 %v2437, %v2425
        %v2490 = vpack.c.bf16 %v2434, %v2423
        %v2491 = vpack.c.bf16 %v2451, %v2442
        %v2492 = vpack.c.bf16 %v2455, %v2446
        %v2493 = vpack.c.bf16 %v2453, %v2444
        %v2494 = vpack.c.bf16 %v2468, %v2460
        %v2495 = vpack.c.bf16 %v2472, %v2463
        %v2496 = vpack.c.bf16 %v2470, %v2462
        %v2497 = vpack.c.bf16 %v2477, %v2477
        %v2498 = vpack.c.bf16 %v2481, %v2481
        %v2499 = vpack.c.bf16 %v2479, %v2479
        %v2500 = vld [vmem:[%s6] sm:$0xf]
        %v2501 = vld [vmem:[%s6 + $0x4] sm:$0xf]
        %v2502 = vld [vmem:[%s7] sm:$0xff]
        %v2503 = vld [vmem:[%s7 + $0x8] sm:$0xff]
        %2505 = vset.pattern.permute.xlu0 0
        %2506 = vperm.xlu0 %2505, %v2502
        %v2507 = vpop.permute.xlu0 %2506
        %2510 = vset.pattern.permute.xlu0 0
        %2511 = vperm.xlu0 %2510, %v2503
        %v2512 = vpop.permute.xlu0 %2511
        %v2516 = vunpack.c.l.b16 %v2500
        %v2517 = vunpack.c.l.b16 %v2501
        %v2518 = vpack.c.b16 %v2517, %v2516
        %2534 = vrot.lane.b32.xlu0 %v2485, 11
        %v2535 = vpop.permute.xlu0 %2534
        %2536 = vrot.lane.b32.xlu0 %v2486, 11
        %v2537 = vpop.permute.xlu0 %2536
        %2538 = vrot.lane.b32.xlu0 %v2487, 11
        %v2539 = vpop.permute.xlu0 %2538
        %2540 = vrot.lane.b32.xlu0 %v2488, 11
        %v2541 = vpop.permute.xlu0 %2540
        %2542 = vrot.lane.b32.xlu0 %v2489, 11
        %v2543 = vpop.permute.xlu0 %2542
        %2544 = vrot.lane.b32.xlu0 %v2490, 11
        %v2545 = vpop.permute.xlu0 %2544
        %2546 = vrot.lane.b32.xlu0 %v2491, 11
        %v2547 = vpop.permute.xlu0 %2546
        %2548 = vrot.lane.b32.xlu0 %v2492, 11
        %v2549 = vpop.permute.xlu0 %2548
        %2550 = vrot.lane.b32.xlu0 %v2493, 11
        %v2551 = vpop.permute.xlu0 %2550
        %2552 = vrot.lane.b32.xlu0 %v2494, 11
        %v2553 = vpop.permute.xlu0 %2552
        %2554 = vrot.lane.b32.xlu0 %v2495, 11
        %v2555 = vpop.permute.xlu0 %2554
        %2556 = vrot.lane.b32.xlu0 %v2496, 11
        %v2557 = vpop.permute.xlu0 %2556
        %2558 = vrot.lane.b32.xlu0 %v2497, 11
        %v2559 = vpop.permute.xlu0 %2558
        %2560 = vrot.lane.b32.xlu0 %v2498, 11
        %v2561 = vpop.permute.xlu0 %2560
        %2562 = vrot.lane.b32.xlu0 %v2499, 11
        %v2563 = vpop.permute.xlu0 %2562
        %vm2564 = vcmask 89088
        %v2565 = vsel %vm2564, %v2535, %v2537
        %v2566 = vsel %vm2564, %v2537, %v2539
        %v2567 = vsel %vm2564, %v2541, %v2543
        %v2568 = vsel %vm2564, %v2543, %v2545
        %v2569 = vsel %vm2564, %v2547, %v2549
        %v2570 = vsel %vm2564, %v2549, %v2551
        %v2571 = vsel %vm2564, %v2553, %v2555
        %v2572 = vsel %vm2564, %v2555, %v2557
        %v2573 = vsel %vm2564, %v2559, %v2561
        %v2574 = vsel %vm2564, %v2561, %v2563
        %v2584 = vsel %vm1553, %v2518, 0
        %v2587 = vsel %vm1557, %v2573, 0
        %v2590 = vsel %vm1557, %v2574, 0
        %2592 = vmatprep.subr.bf16.mxu0 %v2566
        %2593 = vmatpush1.bf16.msra.mxu0 %v2565
        %2594 = vmatprep.subr.bf16.mxu0 %v2568
        %2595 = vmatpush1.bf16.msra.mxu0 %v2567
        %2596 = vmatprep.subr.bf16.mxu0 %v2570
        %2597 = vmatpush1.bf16.msra.mxu0 %v2569
        %2598 = vmatprep.subr.bf16.mxu0 %v2572
        %2599 = vmatpush1.bf16.msra.mxu0 %v2571
        %2600 = vmatprep.subr.bf16.mxu0 %v2590
        %2601 = vmatpush1.bf16.msra.mxu0 %v2587
        %2602 = vmatprep.subr.bf16.mxu0 0
        %2603 = vmatpush1.bf16.msra.mxu0 0
        %2604 = vmatprep.subr.bf16.mxu0 0
        %2605 = vmatpush1.bf16.msra.mxu0 0
        %2606 = vmatprep.subr.bf16.mxu0 0
        %2607 = vmatpush1.bf16.msra.mxu0 0
        %2608 = vmatprep.subr.bf16.mxu0 0
        %2609 = vmatpush1.bf16.msra.mxu0 0
        %2610 = vmatprep.subr.bf16.mxu0 0
        %2611 = vmatpush1.bf16.msra.mxu0 0
        %2612 = vmatprep.subr.bf16.mxu0 0
        %2613 = vmatpush1.bf16.msra.mxu0 0
        %2614 = vmatprep.subr.bf16.mxu0 0
        %2615 = vmatpush1.bf16.msra.mxu0 0
        %2616 = vmatprep.subr.bf16.mxu0 0
        %2617 = vmatpush1.bf16.msra.mxu0 0
        %2618 = vmatprep.subr.bf16.mxu0 0
        %2619 = vmatpush1.bf16.msra.mxu0 0
        %2620 = vmatprep.subr.bf16.mxu0 0
        %2621 = vmatpush1.bf16.msra.mxu0 0
        %2622 = vmatprep.subr.bf16.mxu0 0
        %2623 = vmatpush1.bf16.msra.mxu0 0
        %2624 = vmatprep.mubr.bf16.mxu0 0
        %2625 = vmatmul.mubr.bf16.gmra.mrb[0].mxu0 %v2584
        %v2626 = vpop.f32.mrb[0].mxu0
        %v2627 = vadd.f32 %v2507, %v2626
        %v2628 = vpop.f32.mrb[0].mxu0
        %v2629 = vadd.f32 %v2507, %v2628
        %v2630 = vpop.f32.mrb[0].mxu0
        %v2631 = vadd.f32 %v2512, %v2630
        %v2632 = vpop.f32.mrb[0].mxu0
        %v2633 = vadd.f32 %v2512, %v2632
        %2634 = vdwg.mxu0
        %v2635 = vld [vmem:[%s21] sm:$0x3]
        %v2637 = vlaneseq
        %v2638 = vshrl.u32 %v2637, 7
        %v2639 = vsub.s32 0, %v2638
        %v2640 = vrot.slane %v2635, %v2639
        %v2641 = vlaneseq
        %v2642 = vshrl.u32 %v2641, 7
        %v2643 = vsub.s32 1, %v2642
        %v2644 = vrot.slane %v2635, %v2643
        %v2647 = vmul.f32 %v2627, %v2640
        %v2648 = vmul.f32 %v2629, %v2644
        %v2649 = vmul.f32 %v2631, %v2640
        %v2650 = vmul.f32 %v2633, %v2644
        %s2651 = sld [smem:[#allocation16 + $0x2]]
        %v2652 = vld [vmem:[#allocation5] sm:$0xff]
        %v2653 = vld [vmem:[#allocation5 + $0x8] sm:$0xff]
        %v2654 = vld [vmem:[#allocation5 + $0x10] sm:$0xff]
        %v2655 = vld [vmem:[#allocation5 + $0x18] sm:$0xff]
        %v2656 = vadd.f32 %v2652, %v2647
        %v2657 = vadd.f32 %v2653, %v2648
        %v2658 = vadd.f32 %v2654, %v2649
        %v2659 = vadd.f32 %v2655, %v2650
        %v2660 = vstv %s2651
        %vm2661 = vcmp.ge.f32.partialorder %v2656, %v2660
        %vm2662 = vcmp.ge.f32.partialorder %v2657, %v2660
        %vm2663 = vcmp.ge.f32.partialorder %v2658, %v2660
        %vm2664 = vcmp.ge.f32.partialorder %v2659, %v2660
        %v2665 = vsel %vm2661, %v2660, 0.0
        %v2666 = vsel %vm2662, %v2660, 0.0
        %v2667 = vsel %vm2663, %v2660, 0.0
        %v2668 = vsel %vm2664, %v2660, 0.0
        %v2669 = vsub.f32 %v2656, %v2665
        %v2670 = vsub.f32 %v2657, %v2666
        %v2671 = vsub.f32 %v2658, %v2667
        %v2672 = vsub.f32 %v2659, %v2668
        %2673 = vst [vmem:[#allocation5] sm:$0xff] %v2669
        %2674 = vst.msk [vmem:[#allocation5 + $0x8] sm:$0xff] %vm1553, %v2670
        %2675 = vst [vmem:[#allocation5 + $0x10] sm:$0xff] %v2671
        %2676 = vst.msk [vmem:[#allocation5 + $0x18] sm:$0xff] %vm1553, %v2672
        %v2677 = vpack.c.bf16 %v2667, %v2665
        %v2678 = vpack.c.bf16 %v2668, %v2666
        %v2679 = vld [vmem:[%s19] sm:$0xf]
        %v2680 = vld [vmem:[%s19 + $0x4] sm:$0xf]
        %v2681 = vld [vmem:[%s19 + $0x8] sm:$0xf]
        %v2682 = vld [vmem:[%s19 + $0xc] sm:$0xf]
        %v2683 = vld [vmem:[%s19 + $0x10] sm:$0xf]
        %v2684 = vld [vmem:[%s19 + $0x14] sm:$0xf]
        %v2685 = vld [vmem:[%s19 + $0x18] sm:$0xf]
        %v2686 = vld [vmem:[%s19 + $0x1c] sm:$0xf]
        %v2687 = vld [vmem:[%s19 + $0x20] sm:$0xf]
        %v2688 = vld [vmem:[%s19 + $0x24] sm:$0xf]
        %v2689 = vld [vmem:[%s19 + $0x28] sm:$0xf]
        %v2690 = vld [vmem:[%s19 + $0x2c] sm:$0xf]
        %v2691 = vld [vmem:[%s19 + $0x30] sm:$0xf]
        %v2692 = vld [vmem:[%s19 + $0x34] sm:$0xf]
        %v2693 = vld [vmem:[%s19 + $0x38] sm:$0xf]
        %v2694 = vld [vmem:[%s19 + $0x3c] sm:$0xf]
        %v2695 = vld [vmem:[%s19 + $0x40] sm:$0xf]
        %v2696 = vld [vmem:[%s19 + $0x44] sm:$0xf]
        %v2697 = vld [vmem:[%s19 + $0x48] sm:$0xf]
        %v2698 = vld [vmem:[%s19 + $0x4c] sm:$0xf]
        %v2699 = vld [vmem:[%s19 + $0x50] sm:$0xf]
        %v2700 = vld [vmem:[%s19 + $0x54] sm:$0xf]
        %v2701 = vld [vmem:[%s19 + $0x58] sm:$0xf]
        %v2702 = vld [vmem:[%s19 + $0x5c] sm:$0xf]
        %v2703 = vld [vmem:[%s19 + $0x60] sm:$0xf]
        %v2729 = vunpack.c.l.b16 %v2679
        %v2730 = vunpack.c.l.b16 %v2680
        %v2731 = vunpack.c.l.b16 %v2681
        %v2732 = vunpack.c.l.b16 %v2682
        %v2733 = vunpack.c.l.b16 %v2683
        %v2734 = vunpack.c.l.b16 %v2684
        %v2735 = vunpack.c.l.b16 %v2685
        %v2736 = vunpack.c.l.b16 %v2686
        %v2737 = vunpack.c.l.b16 %v2687
        %v2738 = vunpack.c.l.b16 %v2688
        %v2739 = vunpack.c.l.b16 %v2689
        %v2740 = vunpack.c.l.b16 %v2690
        %v2741 = vunpack.c.l.b16 %v2691
        %v2742 = vunpack.c.l.b16 %v2692
        %v2743 = vunpack.c.l.b16 %v2693
        %v2744 = vunpack.c.l.b16 %v2694
        %v2745 = vunpack.c.l.b16 %v2695
        %v2746 = vunpack.c.l.b16 %v2696
        %v2747 = vunpack.c.l.b16 %v2697
        %v2748 = vunpack.c.l.b16 %v2698
        %v2749 = vunpack.c.l.b16 %v2699
        %v2750 = vunpack.c.l.b16 %v2700
        %v2751 = vunpack.c.l.b16 %v2701
        %v2752 = vunpack.c.l.b16 %v2702
        %v2753 = vunpack.c.l.b16 %v2703
        %v2754 = vpack.c.b16 %v2730, %v2729
        %v2755 = vpack.c.b16 %v2732, %v2731
        %v2756 = vpack.c.b16 %v2734, %v2733
        %v2757 = vpack.c.b16 %v2736, %v2735
        %v2758 = vpack.c.b16 %v2738, %v2737
        %v2759 = vpack.c.b16 %v2740, %v2739
        %v2760 = vpack.c.b16 %v2742, %v2741
        %v2761 = vpack.c.b16 %v2744, %v2743
        %v2762 = vpack.c.b16 %v2746, %v2745
        %v2763 = vpack.c.b16 %v2748, %v2747
        %v2764 = vpack.c.b16 %v2750, %v2749
        %v2765 = vpack.c.b16 %v2752, %v2751
        %v2766 = vpack.c.b16 %v2753, %v2753
        %v2780 = vsel %vm1553, %v2678, 0
        %v2783 = vsel %vm1557, %v2766, 0
        %2785 = vmatprep.subr.bf16.mxu0 0
        %2786 = vmatpush1.bf16.msra.mxu0 %v2754
        %2787 = vmatprep.subr.bf16.mxu0 0
        %2788 = vmatpush1.bf16.msra.mxu0 %v2755
        %2789 = vmatprep.subr.bf16.mxu0 0
        %2790 = vmatpush1.bf16.msra.mxu0 %v2756
        %2791 = vmatprep.subr.bf16.mxu0 0
        %2792 = vmatpush1.bf16.msra.mxu0 %v2757
        %2793 = vmatprep.subr.bf16.mxu0 0
        %2794 = vmatpush1.bf16.msra.mxu0 %v2758
        %2795 = vmatprep.subr.bf16.mxu0 0
        %2796 = vmatpush1.bf16.msra.mxu0 %v2759
        %2797 = vmatprep.subr.bf16.mxu0 0
        %2798 = vmatpush1.bf16.msra.mxu0 %v2760
        %2799 = vmatprep.subr.bf16.mxu0 0
        %2800 = vmatpush1.bf16.msra.mxu0 %v2761
        %2801 = vmatprep.subr.bf16.mxu0 0
        %2802 = vmatpush1.bf16.msra.mxu0 %v2762
        %2803 = vmatprep.subr.bf16.mxu0 0
        %2804 = vmatpush1.bf16.msra.mxu0 %v2763
        %2805 = vmatprep.subr.bf16.mxu0 0
        %2806 = vmatpush1.bf16.msra.mxu0 %v2764
        %2807 = vmatprep.subr.bf16.mxu0 0
        %2808 = vmatpush1.bf16.msra.mxu0 %v2765
        %2809 = vmatprep.subr.bf16.mxu0 0
        %2810 = vmatpush1.bf16.msra.mxu0 %v2783
        %2811 = vmatprep.subr.bf16.mxu0 0
        %2812 = vmatpush1.bf16.msra.mxu0 0
        %2813 = vmatprep.subr.bf16.mxu0 0
        %2814 = vmatpush1.bf16.msra.mxu0 0
        %2815 = vmatprep.subr.bf16.mxu0 0
        %2816 = vmatpush1.bf16.msra.mxu0 0
        %2817 = vmatprep.mubr.bf16.mxu0 %v2780
        %2818 = vmatmul.mubr.bf16.gmra.mrb[0].mxu0 %v2677
        %v2819 = vpop.f32.mrb[0].mxu0
        %v2820 = vadd.f32 0.0, %v2819
        %v2821 = vpop.f32.mrb[0].mxu0
        %v2822 = vpop.f32.mrb[0].mxu0
        %v2823 = vadd.f32 0.0, %v2822
        %v2824 = vpop.f32.mrb[0].mxu0
        %2825 = vdwg.mxu0
        %2826 = vst.msk [vmem:[#allocation14 + $0x8] sm:$0xff] %vm1553, %v2820
        %2827 = vst.msk [vmem:[#allocation14 + $0x20] sm:$0xff] %vm1553, %v2823
        %v2828 = vld [vmem:[#allocation14] sm:$0xff]
        %v2829 = vld [vmem:[#allocation14 + $0x8] sm:$0xff]
        %v2830 = vld [vmem:[#allocation14 + $0x18] sm:$0xff]
        %v2831 = vld [vmem:[#allocation14 + $0x20] sm:$0xff]
        %2836 = vrot.lane.b32.xlu0 %v2828, 127
        %v2837 = vpop.permute.xlu0 %2836
        %2838 = vrot.lane.b32.xlu0 %v2829, 127
        %v2839 = vpop.permute.xlu0 %2838
        %2840 = vrot.lane.b32.xlu0 %v2830, 127
        %v2841 = vpop.permute.xlu0 %2840
        %2842 = vrot.lane.b32.xlu0 %v2831, 127
        %v2843 = vpop.permute.xlu0 %2842
        %v2844 = vsel %vm1192, %v2837, %v2839
        %v2845 = vsel %vm1192, %v2841, %v2843
        %2850 = vrot.lane.b32.xlu0 %v2828, 126
        %v2851 = vpop.permute.xlu0 %2850
        %2852 = vrot.lane.b32.xlu0 %v2829, 126
        %v2853 = vpop.permute.xlu0 %2852
        %2854 = vrot.lane.b32.xlu0 %v2830, 126
        %v2855 = vpop.permute.xlu0 %2854
        %2856 = vrot.lane.b32.xlu0 %v2831, 126
        %v2857 = vpop.permute.xlu0 %2856
        %v2858 = vsel %vm1216, %v2851, %v2853
        %v2859 = vsel %vm1216, %v2855, %v2857
        %2864 = vrot.lane.b32.xlu0 %v2828, 122
        %v2865 = vpop.permute.xlu0 %2864
        %2866 = vrot.lane.b32.xlu0 %v2829, 122
        %v2867 = vpop.permute.xlu0 %2866
        %2868 = vrot.lane.b32.xlu0 %v2830, 122
        %v2869 = vpop.permute.xlu0 %2868
        %2870 = vrot.lane.b32.xlu0 %v2831, 122
        %v2871 = vpop.permute.xlu0 %2870
        %vm2872 = vcmask 998400
        %v2873 = vsel %vm2872, %v2865, %v2867
        %v2874 = vsel %vm2872, %v2869, %v2871
        %2879 = vrot.lane.b32.xlu0 %v2829, 121
        %v2880 = vpop.permute.xlu0 %2879
        %2881 = vrot.lane.b32.xlu0 %v2831, 121
        %v2882 = vpop.permute.xlu0 %2881
        %2885 = vrot.lane.b32.xlu0 %v2829, 120
        %v2886 = vpop.permute.xlu0 %2885
        %2887 = vrot.lane.b32.xlu0 %v2831, 120
        %v2888 = vpop.permute.xlu0 %2887
        %2891 = vrot.lane.b32.xlu0 %v2829, 116
        %v2892 = vpop.permute.xlu0 %2891
        %2893 = vrot.lane.b32.xlu0 %v2831, 116
        %v2894 = vpop.permute.xlu0 %2893
        %2897 = vrot.lane.b32.xlu0 %v2829, 115
        %v2898 = vpop.permute.xlu0 %2897
        %2899 = vrot.lane.b32.xlu0 %v2831, 115
        %v2900 = vpop.permute.xlu0 %2899
        %2903 = vrot.lane.b32.xlu0 %v2829, 114
        %v2904 = vpop.permute.xlu0 %2903
        %2905 = vrot.lane.b32.xlu0 %v2831, 114
        %v2906 = vpop.permute.xlu0 %2905
        %v2909 = vpack.c.bf16 %v2830, %v2828
        %v2910 = vpack.c.bf16 %v2831, %v2829
        %v2911 = vpack.c.bf16 %v2845, %v2844
        %v2912 = vpack.c.bf16 %v2843, %v2839
        %v2913 = vpack.c.bf16 %v2859, %v2858
        %v2914 = vpack.c.bf16 %v2857, %v2853
        %v2915 = vpack.c.bf16 %v2874, %v2873
        %v2916 = vpack.c.bf16 %v2871, %v2867
        %v2917 = vpack.c.bf16 %v2882, %v2880
        %v2918 = vpack.c.bf16 %v2888, %v2886
        %v2919 = vpack.c.bf16 %v2894, %v2892
        %v2920 = vpack.c.bf16 %v2900, %v2898
        %v2921 = vpack.c.bf16 %v2906, %v2904
        %v2922 = vld [vmem:[%s8] sm:$0xff]
        %v2923 = vld [vmem:[%s8 + $0x8] sm:$0xff]
        %v2924 = vld [vmem:[%s9] sm:$0xff]
        %v2925 = vld [vmem:[%s9 + $0x8] sm:$0xff]
        %2927 = vset.pattern.permute.xlu0 0
        %2928 = vperm.xlu0 %2927, %v2924
        %v2929 = vpop.permute.xlu0 %2928
        %2932 = vset.pattern.permute.xlu0 0
        %2933 = vperm.xlu0 %2932, %v2925
        %v2934 = vpop.permute.xlu0 %2933
        %v2938 = vunpack.c.l.b16 %v2922
        %v2939 = vunpack.c.h.b16 %v2922
        %v2940 = vunpack.c.l.b16 %v2923
        %v2941 = vunpack.c.h.b16 %v2923
        %v2942 = vpack.c.b16 %v2940, %v2938
        %v2943 = vpack.c.b16 %v2941, %v2939
        %2958 = vrot.lane.b32.xlu0 %v2909, 7
        %v2959 = vpop.permute.xlu0 %2958
        %2960 = vrot.lane.b32.xlu0 %v2910, 7
        %v2961 = vpop.permute.xlu0 %2960
        %2962 = vrot.lane.b32.xlu0 %v2911, 7
        %v2963 = vpop.permute.xlu0 %2962
        %2964 = vrot.lane.b32.xlu0 %v2912, 7
        %v2965 = vpop.permute.xlu0 %2964
        %2966 = vrot.lane.b32.xlu0 %v2913, 7
        %v2967 = vpop.permute.xlu0 %2966
        %2968 = vrot.lane.b32.xlu0 %v2914, 7
        %v2969 = vpop.permute.xlu0 %2968
        %2970 = vrot.lane.b32.xlu0 %v2915, 7
        %v2971 = vpop.permute.xlu0 %2970
        %2972 = vrot.lane.b32.xlu0 %v2916, 7
        %v2973 = vpop.permute.xlu0 %2972
        %2974 = vrot.lane.b32.xlu0 %v2917, 7
        %v2975 = vpop.permute.xlu0 %2974
        %2976 = vrot.lane.b32.xlu0 %v2918, 7
        %v2977 = vpop.permute.xlu0 %2976
        %2978 = vrot.lane.b32.xlu0 %v2919, 7
        %v2979 = vpop.permute.xlu0 %2978
        %2980 = vrot.lane.b32.xlu0 %v2920, 7
        %v2981 = vpop.permute.xlu0 %2980
        %2982 = vrot.lane.b32.xlu0 %v2921, 7
        %v2983 = vpop.permute.xlu0 %2982
        %vm2984 = vcmask 56320
        %v2985 = vsel %vm2984, %v2959, %v2961
        %v2986 = vsel %vm2984, %v2963, %v2965
        %v2987 = vsel %vm2984, %v2967, %v2969
        %v2988 = vsel %vm2984, %v2971, %v2973
        %vm2998 = vcmask 130048
        %v3000 = vsel %vm2998, %v2943, 0
        %3002 = vmatprep.subr.bf16.mxu0 0
        %3003 = vmatpush1.bf16.msra.mxu0 %v2985
        %3004 = vmatprep.subr.bf16.mxu0 0
        %3005 = vmatpush1.bf16.msra.mxu0 %v2986
        %3006 = vmatprep.subr.bf16.mxu0 0
        %3007 = vmatpush1.bf16.msra.mxu0 %v2987
        %3008 = vmatprep.subr.bf16.mxu0 0
        %3009 = vmatpush1.bf16.msra.mxu0 %v2988
        %3010 = vmatprep.subr.bf16.mxu0 0
        %3011 = vmatpush1.bf16.msra.mxu0 %v2975
        %3012 = vmatprep.subr.bf16.mxu0 0
        %3013 = vmatpush1.bf16.msra.mxu0 %v2977
        %3014 = vmatprep.subr.bf16.mxu0 0
        %3015 = vmatpush1.bf16.msra.mxu0 %v2979
        %3016 = vmatprep.subr.bf16.mxu0 0
        %3017 = vmatpush1.bf16.msra.mxu0 %v2981
        %3018 = vmatprep.subr.bf16.mxu0 0
        %3019 = vmatpush1.bf16.msra.mxu0 %v2983
        %3020 = vmatprep.subr.bf16.mxu0 0
        %3021 = vmatpush1.bf16.msra.mxu0 0
        %3022 = vmatprep.subr.bf16.mxu0 0
        %3023 = vmatpush1.bf16.msra.mxu0 0
        %3024 = vmatprep.subr.bf16.mxu0 0
        %3025 = vmatpush1.bf16.msra.mxu0 0
        %3026 = vmatprep.subr.bf16.mxu0 0
        %3027 = vmatpush1.bf16.msra.mxu0 0
        %3028 = vmatprep.subr.bf16.mxu0 0
        %3029 = vmatpush1.bf16.msra.mxu0 0
        %3030 = vmatprep.subr.bf16.mxu0 0
        %3031 = vmatpush1.bf16.msra.mxu0 0
        %3032 = vmatprep.subr.bf16.mxu0 0
        %3033 = vmatpush1.bf16.msra.mxu0 0
        %3034 = vmatprep.mubr.bf16.mxu0 %v3000
        %3035 = vmatmul.mubr.bf16.gmra.mrb[0].mxu0 %v2942
        %v3036 = vpop.f32.mrb[0].mxu0
        %v3037 = vadd.f32 %v2929, %v3036
        %v3038 = vpop.f32.mrb[0].mxu0
        %v3039 = vpop.f32.mrb[0].mxu0
        %v3040 = vadd.f32 %v2934, %v3039
        %v3041 = vpop.f32.mrb[0].mxu0
        %3042 = vdwg.mxu0
        %v3043 = vld [vmem:[%s22] sm:$0x1]
        %v3045 = vlaneseq
        %v3046 = vshrl.u32 %v3045, 7
        %v3047 = vsub.s32 0, %v3046
        %v3048 = vrot.slane %v3043, %v3047
        %v3050 = vmul.f32 %v3037, %v3048
        %v3051 = vmul.f32 %v3040, %v3048
        %s3052 = sld [smem:[#allocation16 + $0x3]]
        %v3053 = vld [vmem:[#allocation6] sm:$0xff]
        %v3054 = vld [vmem:[#allocation6 + $0x8] sm:$0xff]
        %v3055 = vadd.f32 %v3053, %v3050
        %v3056 = vadd.f32 %v3054, %v3051
        %v3057 = vstv %s3052
        %vm3058 = vcmp.ge.f32.partialorder %v3055, %v3057
        %vm3059 = vcmp.ge.f32.partialorder %v3056, %v3057
        %v3060 = vsel %vm3058, %v3057, 0.0
        %v3061 = vsel %vm3059, %v3057, 0.0
        %v3062 = vsub.f32 %v3055, %v3060
        %v3063 = vsub.f32 %v3056, %v3061
        %3064 = vst.msk [vmem:[#allocation6] sm:$0xff] %vm1553, %v3062
        %3065 = vst.msk [vmem:[#allocation6 + $0x8] sm:$0xff] %vm1553, %v3063
        %3066 = vst.msk [vmem:[#allocation15 + $0x8] sm:$0xff] %vm1553, %v3060
        %3067 = vst.msk [vmem:[#allocation15 + $0x20] sm:$0xff] %vm1553, %v3061
        %v3068 = vld [vmem:[#allocation15] sm:$0xff]
        %v3069 = vld [vmem:[#allocation15 + $0x8] sm:$0xff]
        %v3070 = vld [vmem:[#allocation15 + $0x18] sm:$0xff]
        %v3071 = vld [vmem:[#allocation15 + $0x20] sm:$0xff]
        %3076 = vrot.lane.b32.xlu0 %v3068, 127
        %v3077 = vpop.permute.xlu0 %3076
        %3078 = vrot.lane.b32.xlu0 %v3069, 127
        %v3079 = vpop.permute.xlu0 %3078
        %3080 = vrot.lane.b32.xlu0 %v3070, 127
        %v3081 = vpop.permute.xlu0 %3080
        %3082 = vrot.lane.b32.xlu0 %v3071, 127
        %v3083 = vpop.permute.xlu0 %3082
        %v3084 = vsel %vm1192, %v3077, %v3079
        %v3085 = vsel %vm1192, %v3081, %v3083
        %3090 = vrot.lane.b32.xlu0 %v3068, 126
        %v3091 = vpop.permute.xlu0 %3090
        %3092 = vrot.lane.b32.xlu0 %v3069, 126
        %v3093 = vpop.permute.xlu0 %3092
        %3094 = vrot.lane.b32.xlu0 %v3070, 126
        %v3095 = vpop.permute.xlu0 %3094
        %3096 = vrot.lane.b32.xlu0 %v3071, 126
        %v3097 = vpop.permute.xlu0 %3096
        %v3098 = vsel %vm1216, %v3091, %v3093
        %v3099 = vsel %vm1216, %v3095, %v3097
        %3104 = vrot.lane.b32.xlu0 %v3068, 122
        %v3105 = vpop.permute.xlu0 %3104
        %3106 = vrot.lane.b32.xlu0 %v3069, 122
        %v3107 = vpop.permute.xlu0 %3106
        %3108 = vrot.lane.b32.xlu0 %v3070, 122
        %v3109 = vpop.permute.xlu0 %3108
        %3110 = vrot.lane.b32.xlu0 %v3071, 122
        %v3111 = vpop.permute.xlu0 %3110
        %v3112 = vsel %vm2872, %v3105, %v3107
        %v3113 = vsel %vm2872, %v3109, %v3111
        %3118 = vrot.lane.b32.xlu0 %v3069, 121
        %v3119 = vpop.permute.xlu0 %3118
        %3120 = vrot.lane.b32.xlu0 %v3071, 121
        %v3121 = vpop.permute.xlu0 %3120
        %3124 = vrot.lane.b32.xlu0 %v3069, 120
        %v3125 = vpop.permute.xlu0 %3124
        %3126 = vrot.lane.b32.xlu0 %v3071, 120
        %v3127 = vpop.permute.xlu0 %3126
        %3130 = vrot.lane.b32.xlu0 %v3069, 116
        %v3131 = vpop.permute.xlu0 %3130
        %3132 = vrot.lane.b32.xlu0 %v3071, 116
        %v3133 = vpop.permute.xlu0 %3132
        %3136 = vrot.lane.b32.xlu0 %v3069, 115
        %v3137 = vpop.permute.xlu0 %3136
        %3138 = vrot.lane.b32.xlu0 %v3071, 115
        %v3139 = vpop.permute.xlu0 %3138
        %3142 = vrot.lane.b32.xlu0 %v3069, 114
        %v3143 = vpop.permute.xlu0 %3142
        %3144 = vrot.lane.b32.xlu0 %v3071, 114
        %v3145 = vpop.permute.xlu0 %3144
        %v3148 = vpack.c.bf16 %v3070, %v3068
        %v3149 = vpack.c.bf16 %v3071, %v3069
        %v3150 = vpack.c.bf16 %v3085, %v3084
        %v3151 = vpack.c.bf16 %v3083, %v3079
        %v3152 = vpack.c.bf16 %v3099, %v3098
        %v3153 = vpack.c.bf16 %v3097, %v3093
        %v3154 = vpack.c.bf16 %v3113, %v3112
        %v3155 = vpack.c.bf16 %v3111, %v3107
        %v3156 = vpack.c.bf16 %v3121, %v3119
        %v3157 = vpack.c.bf16 %v3127, %v3125
        %v3158 = vpack.c.bf16 %v3133, %v3131
        %v3159 = vpack.c.bf16 %v3139, %v3137
        %v3160 = vpack.c.bf16 %v3145, %v3143
        %v3161 = vld [vmem:[%s10] sm:$0xff]
        %v3162 = vld [vmem:[%s11] sm:$0xff]
        %3164 = vset.pattern.permute.xlu0 0
        %3165 = vperm.xlu0 %3164, %v3162
        %v3166 = vpop.permute.xlu0 %3165
        %v3169 = vunpack.c.l.b16 %v3161
        %v3170 = vunpack.c.h.b16 %v3161
        %v3171 = vpack.c.b16 %v3169, %v3169
        %v3172 = vpack.c.b16 %v3170, %v3170
        %3187 = vrot.lane.b32.xlu0 %v3148, 7
        %v3188 = vpop.permute.xlu0 %3187
        %3189 = vrot.lane.b32.xlu0 %v3149, 7
        %v3190 = vpop.permute.xlu0 %3189
        %3191 = vrot.lane.b32.xlu0 %v3150, 7
        %v3192 = vpop.permute.xlu0 %3191
        %3193 = vrot.lane.b32.xlu0 %v3151, 7
        %v3194 = vpop.permute.xlu0 %3193
        %3195 = vrot.lane.b32.xlu0 %v3152, 7
        %v3196 = vpop.permute.xlu0 %3195
        %3197 = vrot.lane.b32.xlu0 %v3153, 7
        %v3198 = vpop.permute.xlu0 %3197
        %3199 = vrot.lane.b32.xlu0 %v3154, 7
        %v3200 = vpop.permute.xlu0 %3199
        %3201 = vrot.lane.b32.xlu0 %v3155, 7
        %v3202 = vpop.permute.xlu0 %3201
        %3203 = vrot.lane.b32.xlu0 %v3156, 7
        %v3204 = vpop.permute.xlu0 %3203
        %3205 = vrot.lane.b32.xlu0 %v3157, 7
        %v3206 = vpop.permute.xlu0 %3205
        %3207 = vrot.lane.b32.xlu0 %v3158, 7
        %v3208 = vpop.permute.xlu0 %3207
        %3209 = vrot.lane.b32.xlu0 %v3159, 7
        %v3210 = vpop.permute.xlu0 %3209
        %3211 = vrot.lane.b32.xlu0 %v3160, 7
        %v3212 = vpop.permute.xlu0 %3211
        %v3213 = vsel %vm2984, %v3188, %v3190
        %v3214 = vsel %vm2984, %v3192, %v3194
        %v3215 = vsel %vm2984, %v3196, %v3198
        %v3216 = vsel %vm2984, %v3200, %v3202
        %v3227 = vsel %vm2998, %v3172, 0
        %3229 = vmatprep.subr.bf16.mxu0 0
        %3230 = vmatpush1.bf16.msra.mxu0 %v3213
        %3231 = vmatprep.subr.bf16.mxu0 0
        %3232 = vmatpush1.bf16.msra.mxu0 %v3214
        %3233 = vmatprep.subr.bf16.mxu0 0
        %3234 = vmatpush1.bf16.msra.mxu0 %v3215
        %3235 = vmatprep.subr.bf16.mxu0 0
        %3236 = vmatpush1.bf16.msra.mxu0 %v3216
        %3237 = vmatprep.subr.bf16.mxu0 0
        %3238 = vmatpush1.bf16.msra.mxu0 %v3204
        %3239 = vmatprep.subr.bf16.mxu0 0
        %3240 = vmatpush1.bf16.msra.mxu0 %v3206
        %3241 = vmatprep.subr.bf16.mxu0 0
        %3242 = vmatpush1.bf16.msra.mxu0 %v3208
        %3243 = vmatprep.subr.bf16.mxu0 0
        %3244 = vmatpush1.bf16.msra.mxu0 %v3210
        %3245 = vmatprep.subr.bf16.mxu0 0
        %3246 = vmatpush1.bf16.msra.mxu0 %v3212
        %3247 = vmatprep.subr.bf16.mxu0 0
        %3248 = vmatpush1.bf16.msra.mxu0 0
        %3249 = vmatprep.subr.bf16.mxu0 0
        %3250 = vmatpush1.bf16.msra.mxu0 0
        %3251 = vmatprep.subr.bf16.mxu0 0
        %3252 = vmatpush1.bf16.msra.mxu0 0
        %3253 = vmatprep.subr.bf16.mxu0 0
        %3254 = vmatpush1.bf16.msra.mxu0 0
        %3255 = vmatprep.subr.bf16.mxu0 0
        %3256 = vmatpush1.bf16.msra.mxu0 0
        %3257 = vmatprep.subr.bf16.mxu0 0
        %3258 = vmatpush1.bf16.msra.mxu0 0
        %3259 = vmatprep.subr.bf16.mxu0 0
        %3260 = vmatpush1.bf16.msra.mxu0 0
        %3261 = vmatprep.mubr.bf16.mxu0 %v3227
        %3262 = vmatmul.mubr.bf16.gmra.mrb[0].mxu0 %v3171
        %v3263 = vpop.f32.mrb[0].mxu0
        %v3264 = vadd.f32 %v3166, %v3263
        %v3265 = vpop.f32.mrb[0].mxu0
        %v3266 = vpop.f32.mrb[0].mxu0
        %v3267 = vpop.f32.mrb[0].mxu0
        %3268 = vdwg.mxu0
        %v3269 = vld [vmem:[%s22] sm:$0x1]
        %v3271 = vlaneseq
        %v3272 = vshrl.u32 %v3271, 7
        %v3273 = vsub.s32 0, %v3272
        %v3274 = vrot.slane %v3269, %v3273
        %v3276 = vmul.f32 %v3264, %v3274
        %s3277 = sld [smem:[#allocation16 + $0x4]]
        %v3278 = vld [vmem:[#allocation7] sm:$0xff]
        %v3279 = vadd.f32 %v3278, %v3276
        %v3280 = vstv %s3277
        %vm3281 = vcmp.ge.f32.partialorder %v3279, %v3280
        %v3282 = vsel %vm3281, %v3280, 0.0
        %v3283 = vsub.f32 %v3279, %v3282
        %3284 = vst.msk [vmem:[#allocation7] sm:$0xff] %vm1553, %v3283
        %v3285 = vld [vmem:[%s23] sm:$0xf]
        %v3286 = vld [vmem:[%s23 + $0x4] sm:$0xf]
        %v3287 = vld [vmem:[%s23 + $0x8] sm:$0xf]
        %v3288 = vld [vmem:[%s23 + $0xc] sm:$0xf]
        %v3289 = vld [vmem:[%s23 + $0x10] sm:$0xf]
        %v3290 = vld [vmem:[%s23 + $0x14] sm:$0xf]
        %v3291 = vld [vmem:[%s23 + $0x18] sm:$0xf]
        %v3292 = vld [vmem:[%s23 + $0x1c] sm:$0xf]
        %v3293 = vld [vmem:[%s23 + $0x20] sm:$0xf]
        %v3294 = vld [vmem:[%s23 + $0x24] sm:$0xf]
        %v3295 = vld [vmem:[%s23 + $0x28] sm:$0xf]
        %v3296 = vld [vmem:[%s23 + $0x2c] sm:$0xf]
        %v3297 = vld [vmem:[%s23 + $0x30] sm:$0xf]
        %v3298 = vld [vmem:[%s23 + $0x34] sm:$0xf]
        %v3299 = vld [vmem:[%s23 + $0x38] sm:$0xf]
        %v3300 = vld [vmem:[%s23 + $0x3c] sm:$0xf]
        %v3301 = vpack.c.bf16 %v3282, %v3282
        %v3318 = vunpack.c.l.b16 %v3285
        %v3319 = vunpack.c.l.b16 %v3286
        %v3320 = vunpack.c.l.b16 %v3287
        %v3321 = vunpack.c.l.b16 %v3288
        %v3322 = vunpack.c.l.b16 %v3289
        %v3323 = vunpack.c.l.b16 %v3290
        %v3324 = vunpack.c.l.b16 %v3291
        %v3325 = vunpack.c.l.b16 %v3292
        %v3326 = vunpack.c.l.b16 %v3293
        %v3327 = vunpack.c.l.b16 %v3294
        %v3328 = vunpack.c.l.b16 %v3295
        %v3329 = vunpack.c.l.b16 %v3296
        %v3330 = vunpack.c.l.b16 %v3297
        %v3331 = vunpack.c.l.b16 %v3298
        %v3332 = vunpack.c.l.b16 %v3299
        %v3333 = vunpack.c.l.b16 %v3300
        %v3334 = vpack.c.b16 %v3319, %v3318
        %v3335 = vpack.c.b16 %v3321, %v3320
        %v3336 = vpack.c.b16 %v3323, %v3322
        %v3337 = vpack.c.b16 %v3325, %v3324
        %v3338 = vpack.c.b16 %v3327, %v3326
        %v3339 = vpack.c.b16 %v3329, %v3328
        %v3340 = vpack.c.b16 %v3331, %v3330
        %v3341 = vpack.c.b16 %v3333, %v3332
        %v3343 = vsel %vm1159, %v3334, 0
        %v3346 = vsel %vm1159, %v3335, 0
        %v3349 = vsel %vm1159, %v3336, 0
        %v3352 = vsel %vm1159, %v3337, 0
        %v3355 = vsel %vm1159, %v3338, 0
        %v3358 = vsel %vm1159, %v3339, 0
        %v3361 = vsel %vm1159, %v3340, 0
        %v3364 = vsel %vm1159, %v3341, 0
        %v3367 = vsel %vm1557, %v3301, 0
        %3369 = vmatprep.subr.bf16.mxu0 0
        %3370 = vmatpush1.bf16.msra.mxu0 %v3367
        %3371 = vmatprep.subr.bf16.mxu0 0
        %3372 = vmatpush1.bf16.msra.mxu0 0
        %3373 = vmatprep.subr.bf16.mxu0 0
        %3374 = vmatpush1.bf16.msra.mxu0 0
        %3375 = vmatprep.subr.bf16.mxu0 0
        %3376 = vmatpush1.bf16.msra.mxu0 0
        %3377 = vmatprep.subr.bf16.mxu0 0
        %3378 = vmatpush1.bf16.msra.mxu0 0
        %3379 = vmatprep.subr.bf16.mxu0 0
        %3380 = vmatpush1.bf16.msra.mxu0 0
        %3381 = vmatprep.subr.bf16.mxu0 0
        %3382 = vmatpush1.bf16.msra.mxu0 0
        %3383 = vmatprep.subr.bf16.mxu0 0
        %3384 = vmatpush1.bf16.msra.mxu0 0
        %3385 = vmatprep.subr.bf16.mxu0 0
        %3386 = vmatpush1.bf16.msra.mxu0 0
        %3387 = vmatprep.subr.bf16.mxu0 0
        %3388 = vmatpush1.bf16.msra.mxu0 0
        %3389 = vmatprep.subr.bf16.mxu0 0
        %3390 = vmatpush1.bf16.msra.mxu0 0
        %3391 = vmatprep.subr.bf16.mxu0 0
        %3392 = vmatpush1.bf16.msra.mxu0 0
        %3393 = vmatprep.subr.bf16.mxu0 0
        %3394 = vmatpush1.bf16.msra.mxu0 0
        %3395 = vmatprep.subr.bf16.mxu0 0
        %3396 = vmatpush1.bf16.msra.mxu0 0
        %3397 = vmatprep.subr.bf16.mxu0 0
        %3398 = vmatpush1.bf16.msra.mxu0 0
        %3399 = vmatprep.subr.bf16.mxu0 0
        %3400 = vmatpush1.bf16.msra.mxu0 0
        %3401 = vmatprep.mubr.bf16.mxu0 0
        %3402 = vmatmul.mubr.bf16.gmra.mrb[0].mxu0 %v3343
        %v3403 = vpop.f32.mrb[0].mxu0
        %v3404 = vadd.f32 0.0, %v3403
        %v3405 = vpop.f32.mrb[0].mxu0
        %v3406 = vpop.f32.mrb[0].mxu0
        %v3407 = vadd.f32 0.0, %v3406
        %v3408 = vpop.f32.mrb[0].mxu0
        %3409 = vmatprep.mubr.bf16.mxu0 0
        %3410 = vmatmul.mubr.bf16.gmra.mrb[0].mxu0 %v3346
        %v3411 = vpop.f32.mrb[0].mxu0
        %v3412 = vadd.f32 0.0, %v3411
        %v3413 = vpop.f32.mrb[0].mxu0
        %v3414 = vpop.f32.mrb[0].mxu0
        %v3415 = vadd.f32 0.0, %v3414
        %v3416 = vpop.f32.mrb[0].mxu0
        %3417 = vmatprep.mubr.bf16.mxu0 0
        %3418 = vmatmul.mubr.bf16.gmra.mrb[0].mxu0 %v3349
        %v3419 = vpop.f32.mrb[0].mxu0
        %v3420 = vadd.f32 0.0, %v3419
        %v3421 = vpop.f32.mrb[0].mxu0
        %v3422 = vpop.f32.mrb[0].mxu0
        %v3423 = vadd.f32 0.0, %v3422
        %v3424 = vpop.f32.mrb[0].mxu0
        %3425 = vmatprep.mubr.bf16.mxu0 0
        %3426 = vmatmul.mubr.bf16.gmra.mrb[0].mxu0 %v3352
        %v3427 = vpop.f32.mrb[0].mxu0
        %v3428 = vadd.f32 0.0, %v3427
        %v3429 = vpop.f32.mrb[0].mxu0
        %v3430 = vpop.f32.mrb[0].mxu0
        %v3431 = vadd.f32 0.0, %v3430
        %v3432 = vpop.f32.mrb[0].mxu0
        %3433 = vmatprep.mubr.bf16.mxu0 0
        %3434 = vmatmul.mubr.bf16.gmra.mrb[0].mxu0 %v3355
        %v3435 = vpop.f32.mrb[0].mxu0
        %v3436 = vadd.f32 0.0, %v3435
        %v3437 = vpop.f32.mrb[0].mxu0
        %v3438 = vpop.f32.mrb[0].mxu0
        %v3439 = vadd.f32 0.0, %v3438
        %v3440 = vpop.f32.mrb[0].mxu0
        %3441 = vmatprep.mubr.bf16.mxu0 0
        %3442 = vmatmul.mubr.bf16.gmra.mrb[0].mxu0 %v3358
        %v3443 = vpop.f32.mrb[0].mxu0
        %v3444 = vadd.f32 0.0, %v3443
        %v3445 = vpop.f32.mrb[0].mxu0
        %v3446 = vpop.f32.mrb[0].mxu0
        %v3447 = vadd.f32 0.0, %v3446
        %v3448 = vpop.f32.mrb[0].mxu0
        %3449 = vmatprep.mubr.bf16.mxu0 0
        %3450 = vmatmul.mubr.bf16.gmra.mrb[0].mxu0 %v3361
        %v3451 = vpop.f32.mrb[0].mxu0
        %v3452 = vadd.f32 0.0, %v3451
        %v3453 = vpop.f32.mrb[0].mxu0
        %v3454 = vpop.f32.mrb[0].mxu0
        %v3455 = vadd.f32 0.0, %v3454
        %v3456 = vpop.f32.mrb[0].mxu0
        %3457 = vmatprep.mubr.bf16.mxu0 0
        %3458 = vmatmul.mubr.bf16.gmra.mrb[0].mxu0 %v3364
        %v3459 = vpop.f32.mrb[0].mxu0
        %v3460 = vadd.f32 0.0, %v3459
        %v3461 = vpop.f32.mrb[0].mxu0
        %v3462 = vpop.f32.mrb[0].mxu0
        %v3463 = vadd.f32 0.0, %v3462
        %v3464 = vpop.f32.mrb[0].mxu0
        %3465 = vdwg.mxu0
        %v3466 = vld [vmem:[%s24] sm:$0xff]
        %v3467 = vld [vmem:[%s24 + $0x8] sm:$0xff]
        %v3468 = vld [vmem:[%s24 + $0x10] sm:$0xff]
        %v3469 = vld [vmem:[%s24 + $0x18] sm:$0xff]
        %v3470 = vld [vmem:[%s24 + $0x20] sm:$0xff]
        %v3471 = vld [vmem:[%s24 + $0x28] sm:$0xff]
        %v3472 = vld [vmem:[%s24 + $0x30] sm:$0xff]
        %v3473 = vld [vmem:[%s24 + $0x38] sm:$0xff]
        %v3474 = vld [vmem:[%s24 + $0x40] sm:$0xff]
        %v3475 = vld [vmem:[%s24 + $0x48] sm:$0xff]
        %v3476 = vld [vmem:[%s24 + $0x50] sm:$0xff]
        %v3477 = vld [vmem:[%s24 + $0x58] sm:$0xff]
        %v3478 = vld [vmem:[%s24 + $0x60] sm:$0xff]
        %v3479 = vld [vmem:[%s24 + $0x68] sm:$0xff]
        %v3480 = vld [vmem:[%s24 + $0x70] sm:$0xff]
        %v3481 = vld [vmem:[%s24 + $0x78] sm:$0xff]
        %v3482 = vmul.f32 %v3404, %v3466
        %v3483 = vmul.f32 %v3407, %v3467
        %v3484 = vmul.f32 %v3412, %v3468
        %v3485 = vmul.f32 %v3415, %v3469
        %v3486 = vmul.f32 %v3420, %v3470
        %v3487 = vmul.f32 %v3423, %v3471
        %v3488 = vmul.f32 %v3428, %v3472
        %v3489 = vmul.f32 %v3431, %v3473
        %v3490 = vmul.f32 %v3436, %v3474
        %v3491 = vmul.f32 %v3439, %v3475
        %v3492 = vmul.f32 %v3444, %v3476
        %v3493 = vmul.f32 %v3447, %v3477
        %v3494 = vmul.f32 %v3452, %v3478
        %v3495 = vmul.f32 %v3455, %v3479
        %v3496 = vmul.f32 %v3460, %v3480
        %v3497 = vmul.f32 %v3463, %v3481
        %v3498 = vpack.c.bf16 %v3483, %v3482
        %v3499 = vpack.c.bf16 %v3485, %v3484
        %v3500 = vpack.c.bf16 %v3487, %v3486
        %v3501 = vpack.c.bf16 %v3489, %v3488
        %v3502 = vpack.c.bf16 %v3491, %v3490
        %v3503 = vpack.c.bf16 %v3493, %v3492
        %v3504 = vpack.c.bf16 %v3495, %v3494
        %v3505 = vpack.c.bf16 %v3497, %v3496
        %v3506 = vld [vmem:[%s25] sm:$0xf]
        %v3507 = vld [vmem:[%s25 + $0x4] sm:$0xf]
        %v3508 = vld [vmem:[%s25 + $0x8] sm:$0xf]
        %v3509 = vld [vmem:[%s25 + $0xc] sm:$0xf]
        %v3510 = vld [vmem:[%s25 + $0x10] sm:$0xf]
        %v3511 = vld [vmem:[%s25 + $0x14] sm:$0xf]
        %v3512 = vld [vmem:[%s25 + $0x18] sm:$0xf]
        %v3513 = vld [vmem:[%s25 + $0x1c] sm:$0xf]
        %v3514 = vld [vmem:[%s25 + $0x20] sm:$0xf]
        %v3524 = vunpack.c.l.b16 %v3506
        %v3525 = vunpack.c.l.b16 %v3507
        %v3526 = vunpack.c.l.b16 %v3508
        %v3527 = vunpack.c.l.b16 %v3509
        %v3528 = vunpack.c.l.b16 %v3510
        %v3529 = vunpack.c.l.b16 %v3511
        %v3530 = vunpack.c.l.b16 %v3512
        %v3531 = vunpack.c.l.b16 %v3513
        %v3532 = vunpack.c.l.b16 %v3514
        %v3533 = vpack.c.b16 %v3525, %v3524
        %v3534 = vpack.c.b16 %v3527, %v3526
        %v3535 = vpack.c.b16 %v3529, %v3528
        %v3536 = vpack.c.b16 %v3531, %v3530
        %v3537 = vpack.c.b16 %v3532, %v3532
        %v3543 = vsel %vm1553, %v3498, 0
        %v3546 = vsel %vm1553, %v3499, 0
        %v3549 = vsel %vm1553, %v3500, 0
        %v3552 = vsel %vm1553, %v3501, 0
        %v3555 = vsel %vm1553, %v3502, 0
        %v3558 = vsel %vm1553, %v3503, 0
        %v3561 = vsel %vm1553, %v3504, 0
        %v3564 = vsel %vm1553, %v3505, 0
        %v3567 = vsel %vm1557, %v3537, 0
        %3569 = vmatprep.subr.bf16.mxu0 0
        %3570 = vmatpush1.bf16.msra.mxu0 %v3533
        %3571 = vmatprep.subr.bf16.mxu0 0
        %3572 = vmatpush1.bf16.msra.mxu0 %v3534
        %3573 = vmatprep.subr.bf16.mxu0 0
        %3574 = vmatpush1.bf16.msra.mxu0 %v3535
        %3575 = vmatprep.subr.bf16.mxu0 0
        %3576 = vmatpush1.bf16.msra.mxu0 %v3536
        %3577 = vmatprep.subr.bf16.mxu0 0
        %3578 = vmatpush1.bf16.msra.mxu0 %v3567
        %3579 = vmatprep.subr.bf16.mxu0 0
        %3580 = vmatpush1.bf16.msra.mxu0 0
        %3581 = vmatprep.subr.bf16.mxu0 0
        %3582 = vmatpush1.bf16.msra.mxu0 0
        %3583 = vmatprep.subr.bf16.mxu0 0
        %3584 = vmatpush1.bf16.msra.mxu0 0
        %3585 = vmatprep.subr.bf16.mxu0 0
        %3586 = vmatpush1.bf16.msra.mxu0 0
        %3587 = vmatprep.subr.bf16.mxu0 0
        %3588 = vmatpush1.bf16.msra.mxu0 0
        %3589 = vmatprep.subr.bf16.mxu0 0
        %3590 = vmatpush1.bf16.msra.mxu0 0
        %3591 = vmatprep.subr.bf16.mxu0 0
        %3592 = vmatpush1.bf16.msra.mxu0 0
        %3593 = vmatprep.subr.bf16.mxu0 0
        %3594 = vmatpush1.bf16.msra.mxu0 0
        %3595 = vmatprep.subr.bf16.mxu0 0
        %3596 = vmatpush1.bf16.msra.mxu0 0
        %3597 = vmatprep.subr.bf16.mxu0 0
        %3598 = vmatpush1.bf16.msra.mxu0 0
        %3599 = vmatprep.subr.bf16.mxu0 0
        %3600 = vmatpush1.bf16.msra.mxu0 0
        %3601 = vmatprep.mubr.bf16.mxu0 0
        %3602 = vmatmul.mubr.bf16.gmra.mrb[0].mxu0 %v3543
        %v3603 = vpop.f32.mrb[0].mxu0
        %v3604 = vadd.f32 0.0, %v3603
        %v3605 = vpop.f32.mrb[0].mxu0
        %v3606 = vpop.f32.mrb[0].mxu0
        %v3607 = vadd.f32 0.0, %v3606
        %v3608 = vpop.f32.mrb[0].mxu0
        %3609 = vmatprep.mubr.bf16.mxu0 0
        %3610 = vmatmul.mubr.bf16.gmra.mrb[0].mxu0 %v3546
        %v3611 = vpop.f32.mrb[0].mxu0
        %v3612 = vadd.f32 0.0, %v3611
        %v3613 = vpop.f32.mrb[0].mxu0
        %v3614 = vpop.f32.mrb[0].mxu0
        %v3615 = vadd.f32 0.0, %v3614
        %v3616 = vpop.f32.mrb[0].mxu0
        %3617 = vmatprep.mubr.bf16.mxu0 0
        %3618 = vmatmul.mubr.bf16.gmra.mrb[0].mxu0 %v3549
        %v3619 = vpop.f32.mrb[0].mxu0
        %v3620 = vadd.f32 0.0, %v3619
        %v3621 = vpop.f32.mrb[0].mxu0
        %v3622 = vpop.f32.mrb[0].mxu0
        %v3623 = vadd.f32 0.0, %v3622
        %v3624 = vpop.f32.mrb[0].mxu0
        %3625 = vmatprep.mubr.bf16.mxu0 0
        %3626 = vmatmul.mubr.bf16.gmra.mrb[0].mxu0 %v3552
        %v3627 = vpop.f32.mrb[0].mxu0
        %v3628 = vadd.f32 0.0, %v3627
        %v3629 = vpop.f32.mrb[0].mxu0
        %v3630 = vpop.f32.mrb[0].mxu0
        %v3631 = vadd.f32 0.0, %v3630
        %v3632 = vpop.f32.mrb[0].mxu0
        %3633 = vmatprep.mubr.bf16.mxu0 0
        %3634 = vmatmul.mubr.bf16.gmra.mrb[0].mxu0 %v3555
        %v3635 = vpop.f32.mrb[0].mxu0
        %v3636 = vadd.f32 0.0, %v3635
        %v3637 = vpop.f32.mrb[0].mxu0
        %v3638 = vpop.f32.mrb[0].mxu0
        %v3639 = vadd.f32 0.0, %v3638
        %v3640 = vpop.f32.mrb[0].mxu0
        %3641 = vmatprep.mubr.bf16.mxu0 0
        %3642 = vmatmul.mubr.bf16.gmra.mrb[0].mxu0 %v3558
        %v3643 = vpop.f32.mrb[0].mxu0
        %v3644 = vadd.f32 0.0, %v3643
        %v3645 = vpop.f32.mrb[0].mxu0
        %v3646 = vpop.f32.mrb[0].mxu0
        %v3647 = vadd.f32 0.0, %v3646
        %v3648 = vpop.f32.mrb[0].mxu0
        %3649 = vmatprep.mubr.bf16.mxu0 0
        %3650 = vmatmul.mubr.bf16.gmra.mrb[0].mxu0 %v3561
        %v3651 = vpop.f32.mrb[0].mxu0
        %v3652 = vadd.f32 0.0, %v3651
        %v3653 = vpop.f32.mrb[0].mxu0
        %v3654 = vpop.f32.mrb[0].mxu0
        %v3655 = vadd.f32 0.0, %v3654
        %v3656 = vpop.f32.mrb[0].mxu0
        %3657 = vmatprep.mubr.bf16.mxu0 0
        %3658 = vmatmul.mubr.bf16.gmra.mrb[0].mxu0 %v3564
        %v3659 = vpop.f32.mrb[0].mxu0
        %v3660 = vadd.f32 0.0, %v3659
        %v3661 = vpop.f32.mrb[0].mxu0
        %v3662 = vpop.f32.mrb[0].mxu0
        %v3663 = vadd.f32 0.0, %v3662
        %v3664 = vpop.f32.mrb[0].mxu0
        %3665 = vdwg.mxu0
        %v3666 = vld [vmem:[%s12] sm:$0xf]
        %v3667 = vld [vmem:[%s12 + $0x4] sm:$0xf]
        %v3668 = vld [vmem:[%s12 + $0x8] sm:$0xf]
        %v3669 = vld [vmem:[%s12 + $0xc] sm:$0xf]
        %v3670 = vpack.c.bf16 %v3607, %v3604
        %v3671 = vpack.c.bf16 %v3615, %v3612
        %v3672 = vpack.c.bf16 %v3623, %v3620
        %v3673 = vpack.c.bf16 %v3631, %v3628
        %v3674 = vpack.c.bf16 %v3639, %v3636
        %v3675 = vpack.c.bf16 %v3647, %v3644
        %v3676 = vpack.c.bf16 %v3655, %v3652
        %v3677 = vpack.c.bf16 %v3663, %v3660
        %v3678 = vld [vmem:[%s13] sm:$0xff]
        %v3679 = vld [vmem:[%s13 + $0x8] sm:$0xff]
        %v3680 = vld [vmem:[%s13 + $0x10] sm:$0xff]
        %v3681 = vld [vmem:[%s13 + $0x18] sm:$0xff]
        %3683 = vset.pattern.permute.xlu0 0
        %3684 = vperm.xlu0 %3683, %v3678
        %v3685 = vpop.permute.xlu0 %3684
        %3688 = vset.pattern.permute.xlu0 0
        %3689 = vperm.xlu0 %3688, %v3679
        %v3690 = vpop.permute.xlu0 %3689
        %3693 = vset.pattern.permute.xlu0 0
        %3694 = vperm.xlu0 %3693, %v3680
        %v3695 = vpop.permute.xlu0 %3694
        %3698 = vset.pattern.permute.xlu0 0
        %3699 = vperm.xlu0 %3698, %v3681
        %v3700 = vpop.permute.xlu0 %3699
        %v3706 = vunpack.c.l.b16 %v3666
        %v3707 = vunpack.c.l.b16 %v3667
        %v3708 = vunpack.c.l.b16 %v3668
        %v3709 = vunpack.c.l.b16 %v3669
        %v3710 = vpack.c.b16 %v3707, %v3706
        %v3711 = vpack.c.b16 %v3709, %v3708
        %3714 = vmatprep.subr.bf16.mxu0 0
        %3715 = vmatpush1.bf16.msra.mxu0 %v3670
        %3716 = vmatprep.subr.bf16.mxu0 0
        %3717 = vmatpush1.bf16.msra.mxu0 %v3671
        %3718 = vmatprep.subr.bf16.mxu0 0
        %3719 = vmatpush1.bf16.msra.mxu0 %v3672
        %3720 = vmatprep.subr.bf16.mxu0 0
        %3721 = vmatpush1.bf16.msra.mxu0 %v3673
        %3722 = vmatprep.subr.bf16.mxu0 0
        %3723 = vmatpush1.bf16.msra.mxu0 %v3674
        %3724 = vmatprep.subr.bf16.mxu0 0
        %3725 = vmatpush1.bf16.msra.mxu0 %v3675
        %3726 = vmatprep.subr.bf16.mxu0 0
        %3727 = vmatpush1.bf16.msra.mxu0 %v3676
        %3728 = vmatprep.subr.bf16.mxu0 0
        %3729 = vmatpush1.bf16.msra.mxu0 %v3677
        %3730 = vmatprep.subr.bf16.mxu0 0
        %3731 = vmatpush1.bf16.msra.mxu0 0
        %3732 = vmatprep.subr.bf16.mxu0 0
        %3733 = vmatpush1.bf16.msra.mxu0 0
        %3734 = vmatprep.subr.bf16.mxu0 0
        %3735 = vmatpush1.bf16.msra.mxu0 0
        %3736 = vmatprep.subr.bf16.mxu0 0
        %3737 = vmatpush1.bf16.msra.mxu0 0
        %3738 = vmatprep.subr.bf16.mxu0 0
        %3739 = vmatpush1.bf16.msra.mxu0 0
        %3740 = vmatprep.subr.bf16.mxu0 0
        %3741 = vmatpush1.bf16.msra.mxu0 0
        %3742 = vmatprep.subr.bf16.mxu0 0
        %3743 = vmatpush1.bf16.msra.mxu0 0
        %3744 = vmatprep.subr.bf16.mxu0 0
        %3745 = vmatpush1.bf16.msra.mxu0 0
        %3746 = vmatprep.mubr.bf16.mxu0 0
        %3747 = vmatmul.mubr.bf16.gmra.mrb[0].mxu0 %v3710
        %v3748 = vpop.f32.mrb[0].mxu0
        %v3749 = vadd.f32 %v3685, %v3748
        %v3750 = vpop.f32.mrb[0].mxu0
        %v3751 = vpop.f32.mrb[0].mxu0
        %v3752 = vadd.f32 %v3690, %v3751
        %v3753 = vpop.f32.mrb[0].mxu0
        %3754 = vmatprep.mubr.bf16.mxu0 0
        %3755 = vmatmul.mubr.bf16.gmra.mrb[0].mxu0 %v3711
        %v3756 = vpop.f32.mrb[0].mxu0
        %v3757 = vadd.f32 %v3695, %v3756
        %v3758 = vpop.f32.mrb[0].mxu0
        %v3759 = vpop.f32.mrb[0].mxu0
        %v3760 = vadd.f32 %v3700, %v3759
        %v3761 = vpop.f32.mrb[0].mxu0
        %3762 = vdwg.mxu0
        %s3763 = sld [smem:[#allocation16 + $0x5]]
        %v3764 = vld [vmem:[#allocation8] sm:$0xff]
        %v3765 = vld [vmem:[#allocation8 + $0x8] sm:$0xff]
        %v3766 = vld [vmem:[#allocation8 + $0x10] sm:$0xff]
        %v3767 = vld [vmem:[#allocation8 + $0x18] sm:$0xff]
        %v3768 = vadd.f32 %v3764, %v3749
        %v3769 = vadd.f32 %v3765, %v3752
        %v3770 = vadd.f32 %v3766, %v3757
        %v3771 = vadd.f32 %v3767, %v3760
        %v3772 = vstv %s3763
        %vm3773 = vcmp.ge.f32.partialorder %v3768, %v3772
        %vm3774 = vcmp.ge.f32.partialorder %v3769, %v3772
        %vm3775 = vcmp.ge.f32.partialorder %v3770, %v3772
        %vm3776 = vcmp.ge.f32.partialorder %v3771, %v3772
        %v3777 = vsel %vm3773, %v3772, 0.0
        %v3778 = vsel %vm3774, %v3772, 0.0
        %v3779 = vsel %vm3775, %v3772, 0.0
        %v3780 = vsel %vm3776, %v3772, 0.0
        %v3781 = vsub.f32 %v3768, %v3777
        %v3782 = vsub.f32 %v3769, %v3778
        %v3783 = vsub.f32 %v3770, %v3779
        %v3784 = vsub.f32 %v3771, %v3780
        %vm3785 = vcmask 15360
        %3786 = vst.msk [vmem:[#allocation8] sm:$0xff] %vm3785, %v3781
        %3787 = vst.msk [vmem:[#allocation8 + $0x8] sm:$0xff] %vm3785, %v3782
        %3788 = vst.msk [vmem:[#allocation8 + $0x10] sm:$0xff] %vm3785, %v3783
        %3789 = vst.msk [vmem:[#allocation8 + $0x18] sm:$0xff] %vm3785, %v3784
        %v3790 = vld [vmem:[%s14] sm:$0xf]
        %v3791 = vld [vmem:[%s14 + $0x4] sm:$0xf]
        %v3792 = vld [vmem:[%s14 + $0x8] sm:$0xf]
        %v3793 = vld [vmem:[%s14 + $0xc] sm:$0xf]
        %v3794 = vpack.c.bf16 %v3778, %v3777
        %v3795 = vpack.c.bf16 %v3780, %v3779
        %v3796 = vld [vmem:[%s15] sm:$0xff]
        %v3797 = vld [vmem:[%s15 + $0x8] sm:$0xff]
        %v3798 = vld [vmem:[%s15 + $0x10] sm:$0xff]
        %v3799 = vld [vmem:[%s15 + $0x18] sm:$0xff]
        %3801 = vset.pattern.permute.xlu0 0
        %3802 = vperm.xlu0 %3801, %v3796
        %v3803 = vpop.permute.xlu0 %3802
        %3806 = vset.pattern.permute.xlu0 0
        %3807 = vperm.xlu0 %3806, %v3797
        %v3808 = vpop.permute.xlu0 %3807
        %3811 = vset.pattern.permute.xlu0 0
        %3812 = vperm.xlu0 %3811, %v3798
        %v3813 = vpop.permute.xlu0 %3812
        %3816 = vset.pattern.permute.xlu0 0
        %3817 = vperm.xlu0 %3816, %v3799
        %v3818 = vpop.permute.xlu0 %3817
        %v3824 = vunpack.c.l.b16 %v3790
        %v3825 = vunpack.c.l.b16 %v3791
        %v3826 = vunpack.c.l.b16 %v3792
        %v3827 = vunpack.c.l.b16 %v3793
        %v3828 = vpack.c.b16 %v3825, %v3824
        %v3829 = vpack.c.b16 %v3827, %v3826
        %vm3830 = vcmask 261120
        %v3832 = vsel %vm3830, %v3828, 0
        %v3835 = vsel %vm3830, %v3829, 0
        %3837 = vmatprep.subr.bf16.mxu0 0
        %3838 = vmatpush1.bf16.msra.mxu0 %v3794
        %3839 = vmatprep.subr.bf16.mxu0 0
        %3840 = vmatpush1.bf16.msra.mxu0 %v3795
        %3841 = vmatprep.subr.bf16.mxu0 0
        %3842 = vmatpush1.bf16.msra.mxu0 0
        %3843 = vmatprep.subr.bf16.mxu0 0
        %3844 = vmatpush1.bf16.msra.mxu0 0
        %3845 = vmatprep.subr.bf16.mxu0 0
        %3846 = vmatpush1.bf16.msra.mxu0 0
        %3847 = vmatprep.subr.bf16.mxu0 0
        %3848 = vmatpush1.bf16.msra.mxu0 0
        %3849 = vmatprep.subr.bf16.mxu0 0
        %3850 = vmatpush1.bf16.msra.mxu0 0
        %3851 = vmatprep.subr.bf16.mxu0 0
        %3852 = vmatpush1.bf16.msra.mxu0 0
        %3853 = vmatprep.subr.bf16.mxu0 0
        %3854 = vmatpush1.bf16.msra.mxu0 0
        %3855 = vmatprep.subr.bf16.mxu0 0
        %3856 = vmatpush1.bf16.msra.mxu0 0
        %3857 = vmatprep.subr.bf16.mxu0 0
        %3858 = vmatpush1.bf16.msra.mxu0 0
        %3859 = vmatprep.subr.bf16.mxu0 0
        %3860 = vmatpush1.bf16.msra.mxu0 0
        %3861 = vmatprep.subr.bf16.mxu0 0
        %3862 = vmatpush1.bf16.msra.mxu0 0
        %3863 = vmatprep.subr.bf16.mxu0 0
        %3864 = vmatpush1.bf16.msra.mxu0 0
        %3865 = vmatprep.subr.bf16.mxu0 0
        %3866 = vmatpush1.bf16.msra.mxu0 0
        %3867 = vmatprep.subr.bf16.mxu0 0
        %3868 = vmatpush1.bf16.msra.mxu0 0
        %3869 = vmatprep.mubr.bf16.mxu0 0
        %3870 = vmatmul.mubr.bf16.gmra.mrb[0].mxu0 %v3832
        %v3871 = vpop.f32.mrb[0].mxu0
        %v3872 = vadd.f32 %v3803, %v3871
        %v3873 = vpop.f32.mrb[0].mxu0
        %v3874 = vpop.f32.mrb[0].mxu0
        %v3875 = vadd.f32 %v3808, %v3874
        %v3876 = vpop.f32.mrb[0].mxu0
        %3877 = vmatprep.mubr.bf16.mxu0 0
        %3878 = vmatmul.mubr.bf16.gmra.mrb[0].mxu0 %v3835
        %v3879 = vpop.f32.mrb[0].mxu0
        %v3880 = vadd.f32 %v3813, %v3879
        %v3881 = vpop.f32.mrb[0].mxu0
        %v3882 = vpop.f32.mrb[0].mxu0
        %v3883 = vadd.f32 %v3818, %v3882
        %v3884 = vpop.f32.mrb[0].mxu0
        %3885 = vdwg.mxu0
        %s3886 = sld [smem:[#allocation16 + $0x6]]
        %v3887 = vld [vmem:[#allocation9] sm:$0xff]
        %v3888 = vld [vmem:[#allocation9 + $0x8] sm:$0xff]
        %v3889 = vld [vmem:[#allocation9 + $0x10] sm:$0xff]
        %v3890 = vld [vmem:[#allocation9 + $0x18] sm:$0xff]
        %v3891 = vadd.f32 %v3887, %v3872
        %v3892 = vadd.f32 %v3888, %v3875
        %v3893 = vadd.f32 %v3889, %v3880
        %v3894 = vadd.f32 %v3890, %v3883
        %v3895 = vstv %s3886
        %vm3896 = vcmp.ge.f32.partialorder %v3891, %v3895
        %vm3897 = vcmp.ge.f32.partialorder %v3892, %v3895
        %vm3898 = vcmp.ge.f32.partialorder %v3893, %v3895
        %vm3899 = vcmp.ge.f32.partialorder %v3894, %v3895
        %v3900 = vsel %vm3896, %v3895, 0.0
        %v3901 = vsel %vm3897, %v3895, 0.0
        %v3902 = vsel %vm3898, %v3895, 0.0
        %v3903 = vsel %vm3899, %v3895, 0.0
        %v3904 = vsub.f32 %v3891, %v3900
        %v3905 = vsub.f32 %v3892, %v3901
        %v3906 = vsub.f32 %v3893, %v3902
        %v3907 = vsub.f32 %v3894, %v3903
        %3908 = vst.msk [vmem:[#allocation9] sm:$0xff] %vm3785, %v3904
        %3909 = vst.msk [vmem:[#allocation9 + $0x8] sm:$0xff] %vm3785, %v3905
        %3910 = vst.msk [vmem:[#allocation9 + $0x10] sm:$0xff] %vm3785, %v3906
        %3911 = vst.msk [vmem:[#allocation9 + $0x18] sm:$0xff] %vm3785, %v3907
        %v3912 = vld [vmem:[%s16] sm:$0xf]
        %v3913 = vld [vmem:[%s16 + $0x4] sm:$0x1]
        %v3914 = vpack.c.bf16 %v3901, %v3900
        %v3915 = vpack.c.bf16 %v3903, %v3902
        %v3916 = vld [vmem:[%s17] sm:$0xff]
        %v3917 = vld [vmem:[%s17 + $0x8] sm:$0x3]
        %3919 = vset.pattern.permute.xlu0 0
        %3920 = vperm.xlu0 %3919, %v3916
        %v3921 = vpop.permute.xlu0 %3920
        %3924 = vset.pattern.permute.xlu0 0
        %3925 = vperm.xlu0 %3924, %v3917
        %v3926 = vpop.permute.xlu0 %3925
        %v3930 = vunpack.c.l.b16 %v3912
        %v3931 = vunpack.c.l.b16 %v3913
        %v3932 = vpack.c.b16 %v3931, %v3930
        %v3934 = vsel %vm3830, %v3932, 0
        %3936 = vmatprep.subr.bf16.mxu0 0
        %3937 = vmatpush1.bf16.msra.mxu0 %v3914
        %3938 = vmatprep.subr.bf16.mxu0 0
        %3939 = vmatpush1.bf16.msra.mxu0 %v3915
        %3940 = vmatprep.subr.bf16.mxu0 0
        %3941 = vmatpush1.bf16.msra.mxu0 0
        %3942 = vmatprep.subr.bf16.mxu0 0
        %3943 = vmatpush1.bf16.msra.mxu0 0
        %3944 = vmatprep.subr.bf16.mxu0 0
        %3945 = vmatpush1.bf16.msra.mxu0 0
        %3946 = vmatprep.subr.bf16.mxu0 0
        %3947 = vmatpush1.bf16.msra.mxu0 0
        %3948 = vmatprep.subr.bf16.mxu0 0
        %3949 = vmatpush1.bf16.msra.mxu0 0
        %3950 = vmatprep.subr.bf16.mxu0 0
        %3951 = vmatpush1.bf16.msra.mxu0 0
        %3952 = vmatprep.subr.bf16.mxu0 0
        %3953 = vmatpush1.bf16.msra.mxu0 0
        %3954 = vmatprep.subr.bf16.mxu0 0
        %3955 = vmatpush1.bf16.msra.mxu0 0
        %3956 = vmatprep.subr.bf16.mxu0 0
        %3957 = vmatpush1.bf16.msra.mxu0 0
        %3958 = vmatprep.subr.bf16.mxu0 0
        %3959 = vmatpush1.bf16.msra.mxu0 0
        %3960 = vmatprep.subr.bf16.mxu0 0
        %3961 = vmatpush1.bf16.msra.mxu0 0
        %3962 = vmatprep.subr.bf16.mxu0 0
        %3963 = vmatpush1.bf16.msra.mxu0 0
        %3964 = vmatprep.subr.bf16.mxu0 0
        %3965 = vmatpush1.bf16.msra.mxu0 0
        %3966 = vmatprep.subr.bf16.mxu0 0
        %3967 = vmatpush1.bf16.msra.mxu0 0
        %3968 = vmatprep.mubr.bf16.mxu0 0
        %3969 = vmatmul.mubr.bf16.gmra.mrb[0].mxu0 %v3934
        %v3970 = vpop.f32.mrb[0].mxu0
        %v3971 = vadd.f32 %v3921, %v3970
        %v3972 = vpop.f32.mrb[0].mxu0
        %v3973 = vpop.f32.mrb[0].mxu0
        %v3974 = vadd.f32 %v3926, %v3973
        %v3975 = vpop.f32.mrb[0].mxu0
        %3976 = vdwg.mxu0
        %s3977 = sld [smem:[#allocation16 + $0x7]]
        %v3978 = vld [vmem:[#allocation10] sm:$0xff]
        %v3979 = vld [vmem:[#allocation10 + $0x8] sm:$0x3]
        %v3980 = vadd.f32 %v3978, %v3971
        %v3981 = vadd.f32 %v3979, %v3974
        %v3982 = vstv %s3977
        %vm3983 = vcmp.ge.f32.partialorder %v3980, %v3982
        %vm3984 = vcmp.ge.f32.partialorder %v3981, %v3982
        %v3985 = vsel %vm3983, %v3982, 0.0
        %v3986 = vsel %vm3984, %v3982, 0.0
        %v3987 = vsub.f32 %v3980, %v3985
        %v3988 = vsub.f32 %v3981, %v3986
        %3989 = vst.msk [vmem:[#allocation10] sm:$0xff] %vm3785, %v3987
        %vm3990 = vcmask 9216
        %3991 = vst.msk [vmem:[#allocation10 + $0x8] sm:$0x3] %vm3990, %v3988
        %v3992 = vld [vmem:[#allocation11] sm:$0xff]
        %v3993 = vld [vmem:[#allocation11 + $0x8] sm:$0x3]
        %v3994 = vadd.f32 %v3992, %v3985
        %v3995 = vadd.f32 %v3993, %v3986
        %3996 = vst.msk [vmem:[#allocation11] sm:$0xff] %vm3785, %v3994
        %3997 = vst.msk [vmem:[#allocation11 + $0x8] sm:$0x3] %vm3990, %v3995
        %v3998 = vld [vmem:[#allocation2] sm:$0xff]
        %v3999 = vld [vmem:[#allocation2 + $0x8] sm:$0xff]
        %v4000 = vld [vmem:[#allocation2 + $0x10] sm:$0xff]
        %v4001 = vld [vmem:[#allocation2 + $0x18] sm:$0xff]
        %v4002 = vld [vmem:[#allocation2 + $0x20] sm:$0xff]
        %v4003 = vld [vmem:[#allocation2 + $0x28] sm:$0xff]
        %s4004 = sld [smem:[#allocation16]]
        %v4005 = vld [vmem:[#allocation3] sm:$0xff]
        %v4006 = vld [vmem:[#allocation3 + $0x8] sm:$0xff]
        %v4007 = vld [vmem:[#allocation3 + $0x10] sm:$0xff]
        %v4008 = vld [vmem:[#allocation3 + $0x18] sm:$0xff]
        %v4009 = vld [vmem:[#allocation3 + $0x20] sm:$0xff]
        %v4010 = vld [vmem:[#allocation3 + $0x28] sm:$0xff]
        %v4011 = vadd.f32 %v4005, %v3998
        %v4012 = vadd.f32 %v4006, %v3999
        %v4013 = vadd.f32 %v4007, %v4000
        %v4014 = vadd.f32 %v4008, %v4001
        %v4015 = vadd.f32 %v4009, %v4002
        %v4016 = vadd.f32 %v4010, %v4003
        %v4017 = vstv %s4004
        %vm4018 = vcmp.ge.f32.partialorder %v4011, %v4017
        %vm4019 = vcmp.ge.f32.partialorder %v4012, %v4017
        %vm4020 = vcmp.ge.f32.partialorder %v4013, %v4017
        %vm4021 = vcmp.ge.f32.partialorder %v4014, %v4017
        %vm4022 = vcmp.ge.f32.partialorder %v4015, %v4017
        %vm4023 = vcmp.ge.f32.partialorder %v4016, %v4017
        %v4024 = vsel %vm4018, %v4017, 0.0
        %v4025 = vsel %vm4019, %v4017, 0.0
        %v4026 = vsel %vm4020, %v4017, 0.0
        %v4027 = vsel %vm4021, %v4017, 0.0
        %v4028 = vsel %vm4022, %v4017, 0.0
        %v4029 = vsel %vm4023, %v4017, 0.0
        %v4030 = vsub.f32 %v4011, %v4024
        %v4031 = vsub.f32 %v4012, %v4025
        %v4032 = vsub.f32 %v4013, %v4026
        %v4033 = vsub.f32 %v4014, %v4027
        %v4034 = vsub.f32 %v4015, %v4028
        %v4035 = vsub.f32 %v4016, %v4029
        %4036 = vst [vmem:[#allocation3] sm:$0xff] %v4030
        %4037 = vst [vmem:[#allocation3 + $0x8] sm:$0xff] %v4031
        %4038 = vst [vmem:[#allocation3 + $0x10] sm:$0xff] %v4032
        %4039 = vst [vmem:[#allocation3 + $0x18] sm:$0xff] %v4033
        %4040 = vst [vmem:[#allocation3 + $0x20] sm:$0xff] %v4034
        %4041 = vst.msk [vmem:[#allocation3 + $0x28] sm:$0xff] %vm1159, %v4035
        %4042 = vst [vmem:[#allocation12 + $0x8] sm:$0xff] %v4024
        %4043 = vst [vmem:[#allocation12 + $0x10] sm:$0xff] %v4025
        %4044 = vst [vmem:[#allocation12 + $0x18] sm:$0xff] %v4026
        %4045 = vst [vmem:[#allocation12 + $0x20] sm:$0xff] %v4027
        %4046 = vst [vmem:[#allocation12 + $0x28] sm:$0xff] %v4028
        %4047 = vst.msk [vmem:[#allocation12 + $0x30] sm:$0xff] %vm1159, %v4029
        %v4048 = vld [vmem:[#allocation12] sm:$0xff]
        %v4049 = vld [vmem:[#allocation12 + $0x8] sm:$0xff]
        %v4050 = vld [vmem:[#allocation12 + $0x10] sm:$0xff]
        %v4051 = vld [vmem:[#allocation12 + $0x18] sm:$0xff]
        %v4052 = vld [vmem:[#allocation12 + $0x20] sm:$0xff]
        %v4053 = vld [vmem:[#allocation12 + $0x28] sm:$0xff]
        %v4054 = vld [vmem:[#allocation12 + $0x30] sm:$0xff]
        %4061 = vrot.lane.b32.xlu0 %v4048, 127
        %v4062 = vpop.permute.xlu0 %4061
        %4063 = vrot.lane.b32.xlu0 %v4049, 127
        %v4064 = vpop.permute.xlu0 %4063
        %4065 = vrot.lane.b32.xlu0 %v4050, 127
        %v4066 = vpop.permute.xlu0 %4065
        %4067 = vrot.lane.b32.xlu0 %v4051, 127
        %v4068 = vpop.permute.xlu0 %4067
        %4069 = vrot.lane.b32.xlu0 %v4052, 127
        %v4070 = vpop.permute.xlu0 %4069
        %4071 = vrot.lane.b32.xlu0 %v4053, 127
        %v4072 = vpop.permute.xlu0 %4071
        %v4073 = vsel %vm1192, %v4062, %v4064
        %v4074 = vsel %vm1192, %v4064, %v4066
        %v4075 = vsel %vm1192, %v4066, %v4068
        %v4076 = vsel %vm1192, %v4068, %v4070
        %v4077 = vsel %vm1192, %v4070, %v4072
        %4084 = vrot.lane.b32.xlu0 %v4048, 126
        %v4085 = vpop.permute.xlu0 %4084
        %4086 = vrot.lane.b32.xlu0 %v4049, 126
        %v4087 = vpop.permute.xlu0 %4086
        %4088 = vrot.lane.b32.xlu0 %v4050, 126
        %v4089 = vpop.permute.xlu0 %4088
        %4090 = vrot.lane.b32.xlu0 %v4051, 126
        %v4091 = vpop.permute.xlu0 %4090
        %4092 = vrot.lane.b32.xlu0 %v4052, 126
        %v4093 = vpop.permute.xlu0 %4092
        %4094 = vrot.lane.b32.xlu0 %v4053, 126
        %v4095 = vpop.permute.xlu0 %4094
        %v4096 = vsel %vm1216, %v4085, %v4087
        %v4097 = vsel %vm1216, %v4087, %v4089
        %v4098 = vsel %vm1216, %v4089, %v4091
        %v4099 = vsel %vm1216, %v4091, %v4093
        %v4100 = vsel %vm1216, %v4093, %v4095
        %4108 = vrot.lane.b32.xlu0 %v4048, 110
        %v4109 = vpop.permute.xlu0 %4108
        %4110 = vrot.lane.b32.xlu0 %v4049, 110
        %v4111 = vpop.permute.xlu0 %4110
        %4112 = vrot.lane.b32.xlu0 %v4050, 110
        %v4113 = vpop.permute.xlu0 %4112
        %4114 = vrot.lane.b32.xlu0 %v4051, 110
        %v4115 = vpop.permute.xlu0 %4114
        %4116 = vrot.lane.b32.xlu0 %v4052, 110
        %v4117 = vpop.permute.xlu0 %4116
        %4118 = vrot.lane.b32.xlu0 %v4053, 110
        %v4119 = vpop.permute.xlu0 %4118
        %4120 = vrot.lane.b32.xlu0 %v4054, 110
        %v4121 = vpop.permute.xlu0 %4120
        %v4122 = vsel %vm1243, %v4109, %v4111
        %v4123 = vsel %vm1243, %v4111, %v4113
        %v4124 = vsel %vm1243, %v4113, %v4115
        %v4125 = vsel %vm1243, %v4115, %v4117
        %v4126 = vsel %vm1243, %v4117, %v4119
        %v4127 = vsel %vm1243, %v4119, %v4121
        %4134 = vrot.lane.b32.xlu0 %v4049, 109
        %v4135 = vpop.permute.xlu0 %4134
        %4136 = vrot.lane.b32.xlu0 %v4050, 109
        %v4137 = vpop.permute.xlu0 %4136
        %4138 = vrot.lane.b32.xlu0 %v4051, 109
        %v4139 = vpop.permute.xlu0 %4138
        %4140 = vrot.lane.b32.xlu0 %v4052, 109
        %v4141 = vpop.permute.xlu0 %4140
        %4142 = vrot.lane.b32.xlu0 %v4053, 109
        %v4143 = vpop.permute.xlu0 %4142
        %4144 = vrot.lane.b32.xlu0 %v4054, 109
        %v4145 = vpop.permute.xlu0 %4144
        %v4146 = vsel %vm1268, %v4135, %v4137
        %v4147 = vsel %vm1268, %v4137, %v4139
        %v4148 = vsel %vm1268, %v4139, %v4141
        %v4149 = vsel %vm1268, %v4141, %v4143
        %v4150 = vsel %vm1268, %v4143, %v4145
        %4157 = vrot.lane.b32.xlu0 %v4049, 108
        %v4158 = vpop.permute.xlu0 %4157
        %4159 = vrot.lane.b32.xlu0 %v4050, 108
        %v4160 = vpop.permute.xlu0 %4159
        %4161 = vrot.lane.b32.xlu0 %v4051, 108
        %v4162 = vpop.permute.xlu0 %4161
        %4163 = vrot.lane.b32.xlu0 %v4052, 108
        %v4164 = vpop.permute.xlu0 %4163
        %4165 = vrot.lane.b32.xlu0 %v4053, 108
        %v4166 = vpop.permute.xlu0 %4165
        %4167 = vrot.lane.b32.xlu0 %v4054, 108
        %v4168 = vpop.permute.xlu0 %4167
        %v4169 = vsel %vm1292, %v4158, %v4160
        %v4170 = vsel %vm1292, %v4160, %v4162
        %v4171 = vsel %vm1292, %v4162, %v4164
        %v4172 = vsel %vm1292, %v4164, %v4166
        %v4173 = vsel %vm1292, %v4166, %v4168
        %4180 = vrot.lane.b32.xlu0 %v4049, 92
        %v4181 = vpop.permute.xlu0 %4180
        %4182 = vrot.lane.b32.xlu0 %v4050, 92
        %v4183 = vpop.permute.xlu0 %4182
        %4184 = vrot.lane.b32.xlu0 %v4051, 92
        %v4185 = vpop.permute.xlu0 %4184
        %4186 = vrot.lane.b32.xlu0 %v4052, 92
        %v4187 = vpop.permute.xlu0 %4186
        %4188 = vrot.lane.b32.xlu0 %v4053, 92
        %v4189 = vpop.permute.xlu0 %4188
        %4190 = vrot.lane.b32.xlu0 %v4054, 92
        %v4191 = vpop.permute.xlu0 %4190
        %v4192 = vsel %vm1316, %v4181, %v4183
        %v4193 = vsel %vm1316, %v4183, %v4185
        %v4194 = vsel %vm1316, %v4185, %v4187
        %v4195 = vsel %vm1316, %v4187, %v4189
        %v4196 = vsel %vm1316, %v4189, %v4191
        %4203 = vrot.lane.b32.xlu0 %v4049, 91
        %v4204 = vpop.permute.xlu0 %4203
        %4205 = vrot.lane.b32.xlu0 %v4050, 91
        %v4206 = vpop.permute.xlu0 %4205
        %4207 = vrot.lane.b32.xlu0 %v4051, 91
        %v4208 = vpop.permute.xlu0 %4207
        %4209 = vrot.lane.b32.xlu0 %v4052, 91
        %v4210 = vpop.permute.xlu0 %4209
        %4211 = vrot.lane.b32.xlu0 %v4053, 91
        %v4212 = vpop.permute.xlu0 %4211
        %4213 = vrot.lane.b32.xlu0 %v4054, 91
        %v4214 = vpop.permute.xlu0 %4213
        %v4215 = vsel %vm1340, %v4204, %v4206
        %v4216 = vsel %vm1340, %v4206, %v4208
        %v4217 = vsel %vm1340, %v4208, %v4210
        %v4218 = vsel %vm1340, %v4210, %v4212
        %v4219 = vsel %vm1340, %v4212, %v4214
        %4226 = vrot.lane.b32.xlu0 %v4049, 90
        %v4227 = vpop.permute.xlu0 %4226
        %4228 = vrot.lane.b32.xlu0 %v4050, 90
        %v4229 = vpop.permute.xlu0 %4228
        %4230 = vrot.lane.b32.xlu0 %v4051, 90
        %v4231 = vpop.permute.xlu0 %4230
        %4232 = vrot.lane.b32.xlu0 %v4052, 90
        %v4233 = vpop.permute.xlu0 %4232
        %4234 = vrot.lane.b32.xlu0 %v4053, 90
        %v4235 = vpop.permute.xlu0 %4234
        %4236 = vrot.lane.b32.xlu0 %v4054, 90
        %v4237 = vpop.permute.xlu0 %4236
        %v4238 = vsel %vm1364, %v4227, %v4229
        %v4239 = vsel %vm1364, %v4229, %v4231
        %v4240 = vsel %vm1364, %v4231, %v4233
        %v4241 = vsel %vm1364, %v4233, %v4235
        %v4242 = vsel %vm1364, %v4235, %v4237
        %v4249 = vpack.c.bf16 %v4073, %v4048
        %v4250 = vpack.c.bf16 %v4074, %v4049
        %v4251 = vpack.c.bf16 %v4075, %v4050
        %v4252 = vpack.c.bf16 %v4076, %v4051
        %v4253 = vpack.c.bf16 %v4077, %v4052
        %v4254 = vpack.c.bf16 %v4072, %v4053
        %v4255 = vpack.c.bf16 %v4122, %v4096
        %v4256 = vpack.c.bf16 %v4123, %v4097
        %v4257 = vpack.c.bf16 %v4124, %v4098
        %v4258 = vpack.c.bf16 %v4125, %v4099
        %v4259 = vpack.c.bf16 %v4126, %v4100
        %v4260 = vpack.c.bf16 %v4127, %v4095
        %v4261 = vpack.c.bf16 %v4158, %v4135
        %v4262 = vpack.c.bf16 %v4169, %v4146
        %v4263 = vpack.c.bf16 %v4170, %v4147
        %v4264 = vpack.c.bf16 %v4171, %v4148
        %v4265 = vpack.c.bf16 %v4172, %v4149
        %v4266 = vpack.c.bf16 %v4173, %v4150
        %v4267 = vpack.c.bf16 %v4204, %v4181
        %v4268 = vpack.c.bf16 %v4215, %v4192
        %v4269 = vpack.c.bf16 %v4216, %v4193
        %v4270 = vpack.c.bf16 %v4217, %v4194
        %v4271 = vpack.c.bf16 %v4218, %v4195
        %v4272 = vpack.c.bf16 %v4219, %v4196
        %v4273 = vpack.c.bf16 %v4227, %v4227
        %v4274 = vpack.c.bf16 %v4238, %v4238
        %v4275 = vpack.c.bf16 %v4239, %v4239
        %v4276 = vpack.c.bf16 %v4240, %v4240
        %v4277 = vpack.c.bf16 %v4241, %v4241
        %v4278 = vpack.c.bf16 %v4242, %v4242
        %v4279 = vld [vmem:[%s4] sm:$0xf]
        %v4280 = vld [vmem:[%s5] sm:$0xff]
        %4282 = vset.pattern.permute.xlu0 0
        %4283 = vperm.xlu0 %4282, %v4280
        %v4284 = vpop.permute.xlu0 %4283
        %4316 = vrot.lane.b32.xlu0 %v4249, 19
        %v4317 = vpop.permute.xlu0 %4316
        %4318 = vrot.lane.b32.xlu0 %v4250, 19
        %v4319 = vpop.permute.xlu0 %4318
        %4320 = vrot.lane.b32.xlu0 %v4251, 19
        %v4321 = vpop.permute.xlu0 %4320
        %4322 = vrot.lane.b32.xlu0 %v4252, 19
        %v4323 = vpop.permute.xlu0 %4322
        %4324 = vrot.lane.b32.xlu0 %v4253, 19
        %v4325 = vpop.permute.xlu0 %4324
        %4326 = vrot.lane.b32.xlu0 %v4254, 19
        %v4327 = vpop.permute.xlu0 %4326
        %4328 = vrot.lane.b32.xlu0 %v4255, 19
        %v4329 = vpop.permute.xlu0 %4328
        %4330 = vrot.lane.b32.xlu0 %v4256, 19
        %v4331 = vpop.permute.xlu0 %4330
        %4332 = vrot.lane.b32.xlu0 %v4257, 19
        %v4333 = vpop.permute.xlu0 %4332
        %4334 = vrot.lane.b32.xlu0 %v4258, 19
        %v4335 = vpop.permute.xlu0 %4334
        %4336 = vrot.lane.b32.xlu0 %v4259, 19
        %v4337 = vpop.permute.xlu0 %4336
        %4338 = vrot.lane.b32.xlu0 %v4260, 19
        %v4339 = vpop.permute.xlu0 %4338
        %4340 = vrot.lane.b32.xlu0 %v4261, 19
        %v4341 = vpop.permute.xlu0 %4340
        %4342 = vrot.lane.b32.xlu0 %v4262, 19
        %v4343 = vpop.permute.xlu0 %4342
        %4344 = vrot.lane.b32.xlu0 %v4263, 19
        %v4345 = vpop.permute.xlu0 %4344
        %4346 = vrot.lane.b32.xlu0 %v4264, 19
        %v4347 = vpop.permute.xlu0 %4346
        %4348 = vrot.lane.b32.xlu0 %v4265, 19
        %v4349 = vpop.permute.xlu0 %4348
        %4350 = vrot.lane.b32.xlu0 %v4266, 19
        %v4351 = vpop.permute.xlu0 %4350
        %4352 = vrot.lane.b32.xlu0 %v4267, 19
        %v4353 = vpop.permute.xlu0 %4352
        %4354 = vrot.lane.b32.xlu0 %v4268, 19
        %v4355 = vpop.permute.xlu0 %4354
        %4356 = vrot.lane.b32.xlu0 %v4269, 19
        %v4357 = vpop.permute.xlu0 %4356
        %4358 = vrot.lane.b32.xlu0 %v4270, 19
        %v4359 = vpop.permute.xlu0 %4358
        %4360 = vrot.lane.b32.xlu0 %v4271, 19
        %v4361 = vpop.permute.xlu0 %4360
        %4362 = vrot.lane.b32.xlu0 %v4272, 19
        %v4363 = vpop.permute.xlu0 %4362
        %4364 = vrot.lane.b32.xlu0 %v4273, 19
        %v4365 = vpop.permute.xlu0 %4364
        %4366 = vrot.lane.b32.xlu0 %v4274, 19
        %v4367 = vpop.permute.xlu0 %4366
        %4368 = vrot.lane.b32.xlu0 %v4275, 19
        %v4369 = vpop.permute.xlu0 %4368
        %4370 = vrot.lane.b32.xlu0 %v4276, 19
        %v4371 = vpop.permute.xlu0 %4370
        %4372 = vrot.lane.b32.xlu0 %v4277, 19
        %v4373 = vpop.permute.xlu0 %4372
        %4374 = vrot.lane.b32.xlu0 %v4278, 19
        %v4375 = vpop.permute.xlu0 %4374
        %v4376 = vsel %vm1503, %v4317, %v4319
        %v4377 = vsel %vm1503, %v4319, %v4321
        %v4378 = vsel %vm1503, %v4321, %v4323
        %v4379 = vsel %vm1503, %v4323, %v4325
        %v4380 = vsel %vm1503, %v4325, %v4327
        %v4381 = vsel %vm1503, %v4329, %v4331
        %v4382 = vsel %vm1503, %v4331, %v4333
        %v4383 = vsel %vm1503, %v4333, %v4335
        %v4384 = vsel %vm1503, %v4335, %v4337
        %v4385 = vsel %vm1503, %v4337, %v4339
        %v4386 = vsel %vm1503, %v4341, %v4343
        %v4387 = vsel %vm1503, %v4343, %v4345
        %v4388 = vsel %vm1503, %v4345, %v4347
        %v4389 = vsel %vm1503, %v4347, %v4349
        %v4390 = vsel %vm1503, %v4349, %v4351
        %v4391 = vsel %vm1503, %v4353, %v4355
        %v4392 = vsel %vm1503, %v4355, %v4357
        %v4393 = vsel %vm1503, %v4357, %v4359
        %v4394 = vsel %vm1503, %v4359, %v4361
        %v4395 = vsel %vm1503, %v4361, %v4363
        %v4396 = vsel %vm1503, %v4365, %v4367
        %v4397 = vsel %vm1503, %v4367, %v4369
        %v4398 = vsel %vm1503, %v4369, %v4371
        %v4399 = vsel %vm1503, %v4371, %v4373
        %v4400 = vsel %vm1503, %v4373, %v4375
        %v4426 = vsel %vm1553, %v4279, 0
        %v4429 = vsel %vm1557, %v4396, 0
        %v4432 = vsel %vm1557, %v4397, 0
        %v4435 = vsel %vm1557, %v4398, 0
        %v4438 = vsel %vm1557, %v4399, 0
        %v4441 = vsel %vm1557, %v4400, 0
        %v4444 = vsel %vm1557, %v4375, 0
        %4446 = vmatprep.subr.bf16.mxu0 %v4377
        %4447 = vmatpush1.bf16.msra.mxu0 %v4376
        %4448 = vmatprep.subr.bf16.mxu0 %v4382
        %4449 = vmatpush1.bf16.msra.mxu0 %v4381
        %4450 = vmatprep.subr.bf16.mxu0 %v4387
        %4451 = vmatpush1.bf16.msra.mxu0 %v4386
        %4452 = vmatprep.subr.bf16.mxu0 %v4392
        %4453 = vmatpush1.bf16.msra.mxu0 %v4391
        %4454 = vmatprep.subr.bf16.mxu0 %v4432
        %4455 = vmatpush1.bf16.msra.mxu0 %v4429
        %4456 = vmatprep.subr.bf16.mxu0 0
        %4457 = vmatpush1.bf16.msra.mxu0 0
        %4458 = vmatprep.subr.bf16.mxu0 0
        %4459 = vmatpush1.bf16.msra.mxu0 0
        %4460 = vmatprep.subr.bf16.mxu0 0
        %4461 = vmatpush1.bf16.msra.mxu0 0
        %4462 = vmatprep.subr.bf16.mxu0 0
        %4463 = vmatpush1.bf16.msra.mxu0 0
        %4464 = vmatprep.subr.bf16.mxu0 0
        %4465 = vmatpush1.bf16.msra.mxu0 0
        %4466 = vmatprep.subr.bf16.mxu0 0
        %4467 = vmatpush1.bf16.msra.mxu0 0
        %4468 = vmatprep.subr.bf16.mxu0 0
        %4469 = vmatpush1.bf16.msra.mxu0 0
        %4470 = vmatprep.subr.bf16.mxu0 0
        %4471 = vmatpush1.bf16.msra.mxu0 0
        %4472 = vmatprep.subr.bf16.mxu0 0
        %4473 = vmatpush1.bf16.msra.mxu0 0
        %4474 = vmatprep.subr.bf16.mxu0 0
        %4475 = vmatpush1.bf16.msra.mxu0 0
        %4476 = vmatprep.subr.bf16.mxu0 0
        %4477 = vmatpush1.bf16.msra.mxu0 0
        %4478 = vmatprep.mubr.bf16.mxu0 0
        %4479 = vmatmul.mubr.bf16.gmra.mrb[0].mxu0 %v4426
        %v4480 = vpop.f32.mrb[0].mxu0
        %v4481 = vadd.f32 %v4284, %v4480
        %v4482 = vpop.f32.mrb[0].mxu0
        %v4483 = vadd.f32 %v4284, %v4482
        %v4484 = vpop.f32.mrb[0].mxu0
        %v4485 = vpop.f32.mrb[0].mxu0
        %4486 = vdwg.mxu0
        %4487 = vmatprep.subr.bf16.mxu0 %v4379
        %4488 = vmatpush1.bf16.msra.mxu0 %v4378
        %4489 = vmatprep.subr.bf16.mxu0 %v4384
        %4490 = vmatpush1.bf16.msra.mxu0 %v4383
        %4491 = vmatprep.subr.bf16.mxu0 %v4389
        %4492 = vmatpush1.bf16.msra.mxu0 %v4388
        %4493 = vmatprep.subr.bf16.mxu0 %v4394
        %4494 = vmatpush1.bf16.msra.mxu0 %v4393
        %4495 = vmatprep.subr.bf16.mxu0 %v4438
        %4496 = vmatpush1.bf16.msra.mxu0 %v4435
        %4497 = vmatprep.subr.bf16.mxu0 0
        %4498 = vmatpush1.bf16.msra.mxu0 0
        %4499 = vmatprep.subr.bf16.mxu0 0
        %4500 = vmatpush1.bf16.msra.mxu0 0
        %4501 = vmatprep.subr.bf16.mxu0 0
        %4502 = vmatpush1.bf16.msra.mxu0 0
        %4503 = vmatprep.subr.bf16.mxu0 0
        %4504 = vmatpush1.bf16.msra.mxu0 0
        %4505 = vmatprep.subr.bf16.mxu0 0
        %4506 = vmatpush1.bf16.msra.mxu0 0
        %4507 = vmatprep.subr.bf16.mxu0 0
        %4508 = vmatpush1.bf16.msra.mxu0 0
        %4509 = vmatprep.subr.bf16.mxu0 0
        %4510 = vmatpush1.bf16.msra.mxu0 0
        %4511 = vmatprep.subr.bf16.mxu0 0
        %4512 = vmatpush1.bf16.msra.mxu0 0
        %4513 = vmatprep.subr.bf16.mxu0 0
        %4514 = vmatpush1.bf16.msra.mxu0 0
        %4515 = vmatprep.subr.bf16.mxu0 0
        %4516 = vmatpush1.bf16.msra.mxu0 0
        %4517 = vmatprep.subr.bf16.mxu0 0
        %4518 = vmatpush1.bf16.msra.mxu0 0
        %4519 = vmatprep.mubr.bf16.mxu0 0
        %4520 = vmatmul.mubr.bf16.gmra.mrb[0].mxu0 %v4426
        %v4521 = vpop.f32.mrb[0].mxu0
        %v4522 = vadd.f32 %v4284, %v4521
        %v4523 = vpop.f32.mrb[0].mxu0
        %v4524 = vadd.f32 %v4284, %v4523
        %v4525 = vpop.f32.mrb[0].mxu0
        %v4526 = vpop.f32.mrb[0].mxu0
        %4527 = vdwg.mxu0
        %4528 = vmatprep.subr.bf16.mxu0 %v4327
        %4529 = vmatpush1.bf16.msra.mxu0 %v4380
        %4530 = vmatprep.subr.bf16.mxu0 %v4339
        %4531 = vmatpush1.bf16.msra.mxu0 %v4385
        %4532 = vmatprep.subr.bf16.mxu0 %v4351
        %4533 = vmatpush1.bf16.msra.mxu0 %v4390
        %4534 = vmatprep.subr.bf16.mxu0 %v4363
        %4535 = vmatpush1.bf16.msra.mxu0 %v4395
        %4536 = vmatprep.subr.bf16.mxu0 %v4444
        %4537 = vmatpush1.bf16.msra.mxu0 %v4441
        %4538 = vmatprep.subr.bf16.mxu0 0
        %4539 = vmatpush1.bf16.msra.mxu0 0
        %4540 = vmatprep.subr.bf16.mxu0 0
        %4541 = vmatpush1.bf16.msra.mxu0 0
        %4542 = vmatprep.subr.bf16.mxu0 0
        %4543 = vmatpush1.bf16.msra.mxu0 0
        %4544 = vmatprep.subr.bf16.mxu0 0
        %4545 = vmatpush1.bf16.msra.mxu0 0
        %4546 = vmatprep.subr.bf16.mxu0 0
        %4547 = vmatpush1.bf16.msra.mxu0 0
        %4548 = vmatprep.subr.bf16.mxu0 0
        %4549 = vmatpush1.bf16.msra.mxu0 0
        %4550 = vmatprep.subr.bf16.mxu0 0
        %4551 = vmatpush1.bf16.msra.mxu0 0
        %4552 = vmatprep.subr.bf16.mxu0 0
        %4553 = vmatpush1.bf16.msra.mxu0 0
        %4554 = vmatprep.subr.bf16.mxu0 0
        %4555 = vmatpush1.bf16.msra.mxu0 0
        %4556 = vmatprep.subr.bf16.mxu0 0
        %4557 = vmatpush1.bf16.msra.mxu0 0
        %4558 = vmatprep.subr.bf16.mxu0 0
        %4559 = vmatpush1.bf16.msra.mxu0 0
        %4560 = vmatprep.mubr.bf16.mxu0 0
        %4561 = vmatmul.mubr.bf16.gmra.mrb[0].mxu0 %v4426
        %v4562 = vpop.f32.mrb[0].mxu0
        %v4563 = vadd.f32 %v4284, %v4562
        %v4564 = vpop.f32.mrb[0].mxu0
        %v4565 = vadd.f32 %v4284, %v4564
        %v4566 = vpop.f32.mrb[0].mxu0
        %v4567 = vpop.f32.mrb[0].mxu0
        %4568 = vdwg.mxu0
        %v4569 = vld [vmem:[%s20] sm:$0x3f]
        %v4571 = vlaneseq
        %v4572 = vshrl.u32 %v4571, 7
        %v4573 = vsub.s32 0, %v4572
        %v4574 = vrot.slane %v4569, %v4573
        %v4575 = vlaneseq
        %v4576 = vshrl.u32 %v4575, 7
        %v4577 = vsub.s32 1, %v4576
        %v4578 = vrot.slane %v4569, %v4577
        %v4579 = vlaneseq
        %v4580 = vshrl.u32 %v4579, 7
        %v4581 = vsub.s32 2, %v4580
        %v4582 = vrot.slane %v4569, %v4581
        %v4583 = vlaneseq
        %v4584 = vshrl.u32 %v4583, 7
        %v4585 = vsub.s32 3, %v4584
        %v4586 = vrot.slane %v4569, %v4585
        %v4587 = vlaneseq
        %v4588 = vshrl.u32 %v4587, 7
        %v4589 = vsub.s32 4, %v4588
        %v4590 = vrot.slane %v4569, %v4589
        %v4591 = vlaneseq
        %v4592 = vshrl.u32 %v4591, 7
        %v4593 = vsub.s32 5, %v4592
        %v4594 = vrot.slane %v4569, %v4593
        %v4601 = vmul.f32 %v4481, %v4574
        %v4602 = vmul.f32 %v4483, %v4578
        %v4603 = vmul.f32 %v4522, %v4582
        %v4604 = vmul.f32 %v4524, %v4586
        %v4605 = vmul.f32 %v4563, %v4590
        %v4606 = vmul.f32 %v4565, %v4594
        %s4607 = sld [smem:[#allocation16 + $0x1]]
        %v4608 = vld [vmem:[#allocation4] sm:$0xff]
        %v4609 = vld [vmem:[#allocation4 + $0x8] sm:$0xff]
        %v4610 = vld [vmem:[#allocation4 + $0x10] sm:$0xff]
        %v4611 = vld [vmem:[#allocation4 + $0x18] sm:$0xff]
        %v4612 = vld [vmem:[#allocation4 + $0x20] sm:$0xff]
        %v4613 = vld [vmem:[#allocation4 + $0x28] sm:$0xff]
        %v4614 = vadd.f32 %v4608, %v4601
        %v4615 = vadd.f32 %v4609, %v4602
        %v4616 = vadd.f32 %v4610, %v4603
        %v4617 = vadd.f32 %v4611, %v4604
        %v4618 = vadd.f32 %v4612, %v4605
        %v4619 = vadd.f32 %v4613, %v4606
        %v4620 = vstv %s4607
        %vm4621 = vcmp.ge.f32.partialorder %v4614, %v4620
        %vm4622 = vcmp.ge.f32.partialorder %v4615, %v4620
        %vm4623 = vcmp.ge.f32.partialorder %v4616, %v4620
        %vm4624 = vcmp.ge.f32.partialorder %v4617, %v4620
        %vm4625 = vcmp.ge.f32.partialorder %v4618, %v4620
        %vm4626 = vcmp.ge.f32.partialorder %v4619, %v4620
        %v4627 = vsel %vm4621, %v4620, 0.0
        %v4628 = vsel %vm4622, %v4620, 0.0
        %v4629 = vsel %vm4623, %v4620, 0.0
        %v4630 = vsel %vm4624, %v4620, 0.0
        %v4631 = vsel %vm4625, %v4620, 0.0
        %v4632 = vsel %vm4626, %v4620, 0.0
        %v4633 = vsub.f32 %v4614, %v4627
        %v4634 = vsub.f32 %v4615, %v4628
        %v4635 = vsub.f32 %v4616, %v4629
        %v4636 = vsub.f32 %v4617, %v4630
        %v4637 = vsub.f32 %v4618, %v4631
        %v4638 = vsub.f32 %v4619, %v4632
        %4639 = vst [vmem:[#allocation4] sm:$0xff] %v4633
        %4640 = vst [vmem:[#allocation4 + $0x8] sm:$0xff] %v4634
        %4641 = vst [vmem:[#allocation4 + $0x10] sm:$0xff] %v4635
        %4642 = vst [vmem:[#allocation4 + $0x18] sm:$0xff] %v4636
        %4643 = vst [vmem:[#allocation4 + $0x20] sm:$0xff] %v4637
        %4644 = vst.msk [vmem:[#allocation4 + $0x28] sm:$0xff] %vm1159, %v4638
        %v4645 = vpack.c.bf16 %v4627, %v4627
        %v4646 = vpack.c.bf16 %v4628, %v4628
        %v4647 = vpack.c.bf16 %v4629, %v4629
        %v4648 = vpack.c.bf16 %v4630, %v4630
        %v4649 = vpack.c.bf16 %v4631, %v4631
        %v4650 = vpack.c.bf16 %v4632, %v4632
        %v4651 = vld [vmem:[%s18] sm:$0xff]
        %v4652 = vld [vmem:[%s18 + $0x8] sm:$0xff]
        %v4653 = vld [vmem:[%s18 + $0x10] sm:$0xff]
        %v4654 = vld [vmem:[%s18 + $0x18] sm:$0xff]
        %v4655 = vld [vmem:[%s18 + $0x20] sm:$0xff]
        %v4656 = vld [vmem:[%s18 + $0x28] sm:$0xff]
        %v4657 = vld [vmem:[%s18 + $0x30] sm:$0xff]
        %v4658 = vld [vmem:[%s18 + $0x38] sm:$0xff]
        %v4659 = vld [vmem:[%s18 + $0x40] sm:$0xff]
        %v4660 = vld [vmem:[%s18 + $0x48] sm:$0xff]
        %v4661 = vld [vmem:[%s18 + $0x50] sm:$0xff]
        %v4662 = vld [vmem:[%s18 + $0x58] sm:$0xff]
        %v4663 = vld [vmem:[%s18 + $0x60] sm:$0xff]
        %v4664 = vld [vmem:[%s18 + $0x68] sm:$0xff]
        %v4665 = vld [vmem:[%s18 + $0x70] sm:$0xff]
        %v4666 = vld [vmem:[%s18 + $0x78] sm:$0xff]
        %v4667 = vld [vmem:[%s18 + $0x80] sm:$0xff]
        %v4668 = vld [vmem:[%s18 + $0x88] sm:$0xff]
        %v4669 = vld [vmem:[%s18 + $0x90] sm:$0xff]
        %v4670 = vld [vmem:[%s18 + $0x98] sm:$0xff]
        %v4671 = vld [vmem:[%s18 + $0xa0] sm:$0xff]
        %v4672 = vld [vmem:[%s18 + $0xa8] sm:$0xff]
        %v4673 = vld [vmem:[%s18 + $0xb0] sm:$0xff]
        %v4674 = vld [vmem:[%s18 + $0xb8] sm:$0xff]
        %v4675 = vld [vmem:[%s18 + $0xc0] sm:$0xff]
        %v4676 = vld [vmem:[%s18 + $0xc8] sm:$0xff]
        %v4677 = vld [vmem:[%s18 + $0xd0] sm:$0xff]
        %v4678 = vld [vmem:[%s18 + $0xd8] sm:$0xff]
        %v4679 = vld [vmem:[%s18 + $0xe0] sm:$0xff]
        %v4680 = vld [vmem:[%s18 + $0xe8] sm:$0xff]
        %v4681 = vld [vmem:[%s18 + $0xf0] sm:$0xff]
        %v4682 = vld [vmem:[%s18 + $0xf8] sm:$0xff]
        %v4683 = vld [vmem:[%s18 + $0x100] sm:$0xff]
        %v4684 = vld [vmem:[%s18 + $0x108] sm:$0xff]
        %v4685 = vld [vmem:[%s18 + $0x110] sm:$0xff]
        %v4686 = vld [vmem:[%s18 + $0x118] sm:$0xff]
        %v4687 = vld [vmem:[%s18 + $0x120] sm:$0xff]
        %v4688 = vld [vmem:[%s18 + $0x128] sm:$0xff]
        %v4689 = vld [vmem:[%s18 + $0x130] sm:$0xff]
        %v4690 = vld [vmem:[%s18 + $0x138] sm:$0xff]
        %v4691 = vld [vmem:[%s18 + $0x140] sm:$0xff]
        %v4692 = vld [vmem:[%s18 + $0x148] sm:$0xff]
        %v4693 = vld [vmem:[%s18 + $0x150] sm:$0xff]
        %v4694 = vld [vmem:[%s18 + $0x158] sm:$0xff]
        %v4695 = vld [vmem:[%s18 + $0x160] sm:$0xff]
        %v4696 = vld [vmem:[%s18 + $0x168] sm:$0xff]
        %v4697 = vld [vmem:[%s18 + $0x170] sm:$0xff]
        %v4698 = vld [vmem:[%s18 + $0x178] sm:$0xff]
        %v4699 = vld [vmem:[%s18 + $0x180] sm:$0xff]
        %v4700 = vld [vmem:[%s18 + $0x188] sm:$0xff]
        %v4701 = vld [vmem:[%s18 + $0x190] sm:$0xff]
        %v4702 = vld [vmem:[%s18 + $0x198] sm:$0xff]
        %v4703 = vld [vmem:[%s18 + $0x1a0] sm:$0xff]
        %v4704 = vld [vmem:[%s18 + $0x1a8] sm:$0xff]
        %v4705 = vld [vmem:[%s18 + $0x1b0] sm:$0xff]
        %v4706 = vld [vmem:[%s18 + $0x1b8] sm:$0xff]
        %v4707 = vld [vmem:[%s18 + $0x1c0] sm:$0xff]
        %v4708 = vld [vmem:[%s18 + $0x1c8] sm:$0xff]
        %v4709 = vld [vmem:[%s18 + $0x1d0] sm:$0xff]
        %v4710 = vld [vmem:[%s18 + $0x1d8] sm:$0xff]
        %v4711 = vld [vmem:[%s18 + $0x1e0] sm:$0xff]
        %v4712 = vld [vmem:[%s18 + $0x1e8] sm:$0xff]
        %v4713 = vld [vmem:[%s18 + $0x1f0] sm:$0xff]
        %v4714 = vld [vmem:[%s18 + $0x1f8] sm:$0xff]
        %v4715 = vld [vmem:[%s18 + $0x200] sm:$0xff]
        %v4716 = vld [vmem:[%s18 + $0x208] sm:$0xff]
        %v4717 = vld [vmem:[%s18 + $0x210] sm:$0xff]
        %v4718 = vld [vmem:[%s18 + $0x218] sm:$0xff]
        %v4719 = vld [vmem:[%s18 + $0x220] sm:$0xff]
        %v4720 = vld [vmem:[%s18 + $0x228] sm:$0xff]
        %v4721 = vld [vmem:[%s18 + $0x230] sm:$0xff]
        %v4722 = vld [vmem:[%s18 + $0x238] sm:$0xff]
        %v4723 = vld [vmem:[%s18 + $0x240] sm:$0xff]
        %v4724 = vld [vmem:[%s18 + $0x248] sm:$0xff]
        %v4725 = vld [vmem:[%s18 + $0x250] sm:$0xff]
        %v4726 = vld [vmem:[%s18 + $0x258] sm:$0xff]
        %v4727 = vld [vmem:[%s18 + $0x260] sm:$0xff]
        %v4728 = vld [vmem:[%s18 + $0x268] sm:$0xff]
        %v4729 = vld [vmem:[%s18 + $0x270] sm:$0xff]
        %v4730 = vld [vmem:[%s18 + $0x278] sm:$0xff]
        %v4731 = vld [vmem:[%s18 + $0x280] sm:$0xff]
        %v4813 = vunpack.c.l.b16 %v4651
        %v4814 = vunpack.c.h.b16 %v4651
        %v4815 = vunpack.c.l.b16 %v4652
        %v4816 = vunpack.c.h.b16 %v4652
        %v4817 = vunpack.c.l.b16 %v4653
        %v4818 = vunpack.c.h.b16 %v4653
        %v4819 = vunpack.c.l.b16 %v4654
        %v4820 = vunpack.c.h.b16 %v4654
        %v4821 = vunpack.c.l.b16 %v4655
        %v4822 = vunpack.c.h.b16 %v4655
        %v4823 = vunpack.c.l.b16 %v4656
        %v4824 = vunpack.c.h.b16 %v4656
        %v4825 = vunpack.c.l.b16 %v4657
        %v4826 = vunpack.c.h.b16 %v4657
        %v4827 = vunpack.c.l.b16 %v4658
        %v4828 = vunpack.c.h.b16 %v4658
        %v4829 = vunpack.c.l.b16 %v4659
        %v4830 = vunpack.c.h.b16 %v4659
        %v4831 = vunpack.c.l.b16 %v4660
        %v4832 = vunpack.c.h.b16 %v4660
        %v4833 = vunpack.c.l.b16 %v4661
        %v4834 = vunpack.c.h.b16 %v4661
        %v4835 = vunpack.c.l.b16 %v4662
        %v4836 = vunpack.c.h.b16 %v4662
        %v4837 = vunpack.c.l.b16 %v4663
        %v4838 = vunpack.c.h.b16 %v4663
        %v4839 = vunpack.c.l.b16 %v4664
        %v4840 = vunpack.c.h.b16 %v4664
        %v4841 = vunpack.c.l.b16 %v4665
        %v4842 = vunpack.c.h.b16 %v4665
        %v4843 = vunpack.c.l.b16 %v4666
        %v4844 = vunpack.c.h.b16 %v4666
        %v4845 = vunpack.c.l.b16 %v4667
        %v4846 = vunpack.c.h.b16 %v4667
        %v4847 = vunpack.c.l.b16 %v4668
        %v4848 = vunpack.c.h.b16 %v4668
        %v4849 = vunpack.c.l.b16 %v4669
        %v4850 = vunpack.c.h.b16 %v4669
        %v4851 = vunpack.c.l.b16 %v4670
        %v4852 = vunpack.c.h.b16 %v4670
        %v4853 = vunpack.c.l.b16 %v4671
        %v4854 = vunpack.c.h.b16 %v4671
        %v4855 = vunpack.c.l.b16 %v4672
        %v4856 = vunpack.c.h.b16 %v4672
        %v4857 = vunpack.c.l.b16 %v4673
        %v4858 = vunpack.c.h.b16 %v4673
        %v4859 = vunpack.c.l.b16 %v4674
        %v4860 = vunpack.c.h.b16 %v4674
        %v4861 = vunpack.c.l.b16 %v4675
        %v4862 = vunpack.c.h.b16 %v4675
        %v4863 = vunpack.c.l.b16 %v4676
        %v4864 = vunpack.c.h.b16 %v4676
        %v4865 = vunpack.c.l.b16 %v4677
        %v4866 = vunpack.c.h.b16 %v4677
        %v4867 = vunpack.c.l.b16 %v4678
        %v4868 = vunpack.c.h.b16 %v4678
        %v4869 = vunpack.c.l.b16 %v4679
        %v4870 = vunpack.c.h.b16 %v4679
        %v4871 = vunpack.c.l.b16 %v4680
        %v4872 = vunpack.c.h.b16 %v4680
        %v4873 = vunpack.c.l.b16 %v4681
        %v4874 = vunpack.c.h.b16 %v4681
        %v4875 = vunpack.c.l.b16 %v4682
        %v4876 = vunpack.c.h.b16 %v4682
        %v4877 = vunpack.c.l.b16 %v4683
        %v4878 = vunpack.c.h.b16 %v4683
        %v4879 = vunpack.c.l.b16 %v4684
        %v4880 = vunpack.c.h.b16 %v4684
        %v4881 = vunpack.c.l.b16 %v4685
        %v4882 = vunpack.c.h.b16 %v4685
        %v4883 = vunpack.c.l.b16 %v4686
        %v4884 = vunpack.c.h.b16 %v4686
        %v4885 = vunpack.c.l.b16 %v4687
        %v4886 = vunpack.c.h.b16 %v4687
        %v4887 = vunpack.c.l.b16 %v4688
        %v4888 = vunpack.c.h.b16 %v4688
        %v4889 = vunpack.c.l.b16 %v4689
        %v4890 = vunpack.c.h.b16 %v4689
        %v4891 = vunpack.c.l.b16 %v4690
        %v4892 = vunpack.c.h.b16 %v4690
        %v4893 = vunpack.c.l.b16 %v4691
        %v4894 = vunpack.c.h.b16 %v4691
        %v4895 = vunpack.c.l.b16 %v4692
        %v4896 = vunpack.c.h.b16 %v4692
        %v4897 = vunpack.c.l.b16 %v4693
        %v4898 = vunpack.c.h.b16 %v4693
        %v4899 = vunpack.c.l.b16 %v4694
        %v4900 = vunpack.c.h.b16 %v4694
        %v4901 = vunpack.c.l.b16 %v4695
        %v4902 = vunpack.c.h.b16 %v4695
        %v4903 = vunpack.c.l.b16 %v4696
        %v4904 = vunpack.c.h.b16 %v4696
        %v4905 = vunpack.c.l.b16 %v4697
        %v4906 = vunpack.c.h.b16 %v4697
        %v4907 = vunpack.c.l.b16 %v4698
        %v4908 = vunpack.c.h.b16 %v4698
        %v4909 = vunpack.c.l.b16 %v4699
        %v4910 = vunpack.c.h.b16 %v4699
        %v4911 = vunpack.c.l.b16 %v4700
        %v4912 = vunpack.c.h.b16 %v4700
        %v4913 = vunpack.c.l.b16 %v4701
        %v4914 = vunpack.c.h.b16 %v4701
        %v4915 = vunpack.c.l.b16 %v4702
        %v4916 = vunpack.c.h.b16 %v4702
        %v4917 = vunpack.c.l.b16 %v4703
        %v4918 = vunpack.c.h.b16 %v4703
        %v4919 = vunpack.c.l.b16 %v4704
        %v4920 = vunpack.c.h.b16 %v4704
        %v4921 = vunpack.c.l.b16 %v4705
        %v4922 = vunpack.c.h.b16 %v4705
        %v4923 = vunpack.c.l.b16 %v4706
        %v4924 = vunpack.c.h.b16 %v4706
        %v4925 = vunpack.c.l.b16 %v4707
        %v4926 = vunpack.c.h.b16 %v4707
        %v4927 = vunpack.c.l.b16 %v4708
        %v4928 = vunpack.c.h.b16 %v4708
        %v4929 = vunpack.c.l.b16 %v4709
        %v4930 = vunpack.c.h.b16 %v4709
        %v4931 = vunpack.c.l.b16 %v4710
        %v4932 = vunpack.c.h.b16 %v4710
        %v4933 = vunpack.c.l.b16 %v4711
        %v4934 = vunpack.c.h.b16 %v4711
        %v4935 = vunpack.c.l.b16 %v4712
        %v4936 = vunpack.c.h.b16 %v4712
        %v4937 = vunpack.c.l.b16 %v4713
        %v4938 = vunpack.c.h.b16 %v4713
        %v4939 = vunpack.c.l.b16 %v4714
        %v4940 = vunpack.c.h.b16 %v4714
        %v4941 = vunpack.c.l.b16 %v4715
        %v4942 = vunpack.c.h.b16 %v4715
        %v4943 = vunpack.c.l.b16 %v4716
        %v4944 = vunpack.c.h.b16 %v4716
        %v4945 = vunpack.c.l.b16 %v4717
        %v4946 = vunpack.c.h.b16 %v4717
        %v4947 = vunpack.c.l.b16 %v4718
        %v4948 = vunpack.c.h.b16 %v4718
        %v4949 = vunpack.c.l.b16 %v4719
        %v4950 = vunpack.c.h.b16 %v4719
        %v4951 = vunpack.c.l.b16 %v4720
        %v4952 = vunpack.c.h.b16 %v4720
        %v4953 = vunpack.c.l.b16 %v4721
        %v4954 = vunpack.c.h.b16 %v4721
        %v4955 = vunpack.c.l.b16 %v4722
        %v4956 = vunpack.c.h.b16 %v4722
        %v4957 = vunpack.c.l.b16 %v4723
        %v4958 = vunpack.c.h.b16 %v4723
        %v4959 = vunpack.c.l.b16 %v4724
        %v4960 = vunpack.c.h.b16 %v4724
        %v4961 = vunpack.c.l.b16 %v4725
        %v4962 = vunpack.c.h.b16 %v4725
        %v4963 = vunpack.c.l.b16 %v4726
        %v4964 = vunpack.c.h.b16 %v4726
        %v4965 = vunpack.c.l.b16 %v4727
        %v4966 = vunpack.c.h.b16 %v4727
        %v4967 = vunpack.c.l.b16 %v4728
        %v4968 = vunpack.c.h.b16 %v4728
        %v4969 = vunpack.c.l.b16 %v4729
        %v4970 = vunpack.c.h.b16 %v4729
        %v4971 = vunpack.c.l.b16 %v4730
        %v4972 = vunpack.c.h.b16 %v4730
        %v4973 = vunpack.c.l.b16 %v4731
        %v4974 = vunpack.c.h.b16 %v4731
        %v4975 = vpack.c.b16 %v4815, %v4813
        %v4976 = vpack.c.b16 %v4816, %v4814
        %v4977 = vpack.c.b16 %v4819, %v4817
        %v4978 = vpack.c.b16 %v4820, %v4818
        %v4979 = vpack.c.b16 %v4823, %v4821
        %v4980 = vpack.c.b16 %v4824, %v4822
        %v4981 = vpack.c.b16 %v4827, %v4825
        %v4982 = vpack.c.b16 %v4828, %v4826
        %v4983 = vpack.c.b16 %v4831, %v4829
        %v4984 = vpack.c.b16 %v4832, %v4830
        %v4985 = vpack.c.b16 %v4835, %v4833
        %v4986 = vpack.c.b16 %v4836, %v4834
        %v4987 = vpack.c.b16 %v4839, %v4837
        %v4988 = vpack.c.b16 %v4840, %v4838
        %v4989 = vpack.c.b16 %v4843, %v4841
        %v4990 = vpack.c.b16 %v4844, %v4842
        %v4991 = vpack.c.b16 %v4847, %v4845
        %v4992 = vpack.c.b16 %v4848, %v4846
        %v4993 = vpack.c.b16 %v4851, %v4849
        %v4994 = vpack.c.b16 %v4852, %v4850
        %v4995 = vpack.c.b16 %v4855, %v4853
        %v4996 = vpack.c.b16 %v4856, %v4854
        %v4997 = vpack.c.b16 %v4859, %v4857
        %v4998 = vpack.c.b16 %v4860, %v4858
        %v4999 = vpack.c.b16 %v4863, %v4861
        %v5000 = vpack.c.b16 %v4864, %v4862
        %v5001 = vpack.c.b16 %v4867, %v4865
        %v5002 = vpack.c.b16 %v4868, %v4866
        %v5003 = vpack.c.b16 %v4871, %v4869
        %v5004 = vpack.c.b16 %v4872, %v4870
        %v5005 = vpack.c.b16 %v4875, %v4873
        %v5006 = vpack.c.b16 %v4876, %v4874
        %v5007 = vpack.c.b16 %v4879, %v4877
        %v5008 = vpack.c.b16 %v4880, %v4878
        %v5009 = vpack.c.b16 %v4883, %v4881
        %v5010 = vpack.c.b16 %v4884, %v4882
        %v5011 = vpack.c.b16 %v4887, %v4885
        %v5012 = vpack.c.b16 %v4888, %v4886
        %v5013 = vpack.c.b16 %v4891, %v4889
        %v5014 = vpack.c.b16 %v4892, %v4890
        %v5015 = vpack.c.b16 %v4895, %v4893
        %v5016 = vpack.c.b16 %v4896, %v4894
        %v5017 = vpack.c.b16 %v4899, %v4897
        %v5018 = vpack.c.b16 %v4900, %v4898
        %v5019 = vpack.c.b16 %v4903, %v4901
        %v5020 = vpack.c.b16 %v4904, %v4902
        %v5021 = vpack.c.b16 %v4907, %v4905
        %v5022 = vpack.c.b16 %v4908, %v4906
        %v5023 = vpack.c.b16 %v4911, %v4909
        %v5024 = vpack.c.b16 %v4912, %v4910
        %v5025 = vpack.c.b16 %v4915, %v4913
        %v5026 = vpack.c.b16 %v4916, %v4914
        %v5027 = vpack.c.b16 %v4919, %v4917
        %v5028 = vpack.c.b16 %v4920, %v4918
        %v5029 = vpack.c.b16 %v4923, %v4921
        %v5030 = vpack.c.b16 %v4924, %v4922
        %v5031 = vpack.c.b16 %v4927, %v4925
        %v5032 = vpack.c.b16 %v4928, %v4926
        %v5033 = vpack.c.b16 %v4931, %v4929
        %v5034 = vpack.c.b16 %v4932, %v4930
        %v5035 = vpack.c.b16 %v4935, %v4933
        %v5036 = vpack.c.b16 %v4936, %v4934
        %v5037 = vpack.c.b16 %v4939, %v4937
        %v5038 = vpack.c.b16 %v4940, %v4938
        %v5039 = vpack.c.b16 %v4943, %v4941
        %v5040 = vpack.c.b16 %v4944, %v4942
        %v5041 = vpack.c.b16 %v4947, %v4945
        %v5042 = vpack.c.b16 %v4948, %v4946
        %v5043 = vpack.c.b16 %v4951, %v4949
        %v5044 = vpack.c.b16 %v4952, %v4950
        %v5045 = vpack.c.b16 %v4955, %v4953
        %v5046 = vpack.c.b16 %v4956, %v4954
        %v5047 = vpack.c.b16 %v4959, %v4957
        %v5048 = vpack.c.b16 %v4960, %v4958
        %v5049 = vpack.c.b16 %v4963, %v4961
        %v5050 = vpack.c.b16 %v4964, %v4962
        %v5051 = vpack.c.b16 %v4967, %v4965
        %v5052 = vpack.c.b16 %v4968, %v4966
        %v5053 = vpack.c.b16 %v4971, %v4969
        %v5054 = vpack.c.b16 %v4972, %v4970
        %v5055 = vpack.c.b16 %v4973, %v4973
        %v5056 = vpack.c.b16 %v4974, %v4974
        %v5138 = vsel %vm1159, %v4650, 0
        %v5141 = vsel %vm1557, %v5055, 0
        %v5144 = vsel %vm1557, %v5056, 0
        %5146 = vmatprep.subr.bf16.mxu0 %v4976
        %5147 = vmatpush1.bf16.msra.mxu0 %v4975
        %5148 = vmatprep.subr.bf16.mxu0 %v4978
        %5149 = vmatpush1.bf16.msra.mxu0 %v4977
        %5150 = vmatprep.subr.bf16.mxu0 %v4980
        %5151 = vmatpush1.bf16.msra.mxu0 %v4979
        %5152 = vmatprep.subr.bf16.mxu0 %v4982
        %5153 = vmatpush1.bf16.msra.mxu0 %v4981
        %5154 = vmatprep.subr.bf16.mxu0 %v4984
        %5155 = vmatpush1.bf16.msra.mxu0 %v4983
        %5156 = vmatprep.subr.bf16.mxu0 %v4986
        %5157 = vmatpush1.bf16.msra.mxu0 %v4985
        %5158 = vmatprep.subr.bf16.mxu0 %v4988
        %5159 = vmatpush1.bf16.msra.mxu0 %v4987
        %5160 = vmatprep.subr.bf16.mxu0 %v4990
        %5161 = vmatpush1.bf16.msra.mxu0 %v4989
        %5162 = vmatprep.subr.bf16.mxu0 %v4992
        %5163 = vmatpush1.bf16.msra.mxu0 %v4991
        %5164 = vmatprep.subr.bf16.mxu0 %v4994
        %5165 = vmatpush1.bf16.msra.mxu0 %v4993
        %5166 = vmatprep.subr.bf16.mxu0 %v4996
        %5167 = vmatpush1.bf16.msra.mxu0 %v4995
        %5168 = vmatprep.subr.bf16.mxu0 %v4998
        %5169 = vmatpush1.bf16.msra.mxu0 %v4997
        %5170 = vmatprep.subr.bf16.mxu0 %v5000
        %5171 = vmatpush1.bf16.msra.mxu0 %v4999
        %5172 = vmatprep.subr.bf16.mxu0 %v5002
        %5173 = vmatpush1.bf16.msra.mxu0 %v5001
        %5174 = vmatprep.subr.bf16.mxu0 %v5004
        %5175 = vmatpush1.bf16.msra.mxu0 %v5003
        %5176 = vmatprep.subr.bf16.mxu0 %v5006
        %5177 = vmatpush1.bf16.msra.mxu0 %v5005
        %5178 = vmatprep.mubr.bf16.mxu0 %v4646
        %5179 = vmatmul.mubr.bf16.gmra.mrb[0].mxu0 %v4645
        %v5180 = vpop.f32.mrb[0].mxu0
        %v5181 = vadd.f32 0.0, %v5180
        %v5182 = vpop.f32.mrb[0].mxu0
        %v5183 = vadd.f32 0.0, %v5182
        %v5184 = vpop.f32.mrb[0].mxu0
        %v5185 = vpop.f32.mrb[0].mxu0
        %5186 = vdwg.mxu0
        %5187 = vmatprep.subr.bf16.mxu0 %v5008
        %5188 = vmatpush1.bf16.msra.mxu0 %v5007
        %5189 = vmatprep.subr.bf16.mxu0 %v5010
        %5190 = vmatpush1.bf16.msra.mxu0 %v5009
        %5191 = vmatprep.subr.bf16.mxu0 %v5012
        %5192 = vmatpush1.bf16.msra.mxu0 %v5011
        %5193 = vmatprep.subr.bf16.mxu0 %v5014
        %5194 = vmatpush1.bf16.msra.mxu0 %v5013
        %5195 = vmatprep.subr.bf16.mxu0 %v5016
        %5196 = vmatpush1.bf16.msra.mxu0 %v5015
        %5197 = vmatprep.subr.bf16.mxu0 %v5018
        %5198 = vmatpush1.bf16.msra.mxu0 %v5017
        %5199 = vmatprep.subr.bf16.mxu0 %v5020
        %5200 = vmatpush1.bf16.msra.mxu0 %v5019
        %5201 = vmatprep.subr.bf16.mxu0 %v5022
        %5202 = vmatpush1.bf16.msra.mxu0 %v5021
        %5203 = vmatprep.subr.bf16.mxu0 %v5024
        %5204 = vmatpush1.bf16.msra.mxu0 %v5023
        %5205 = vmatprep.subr.bf16.mxu0 %v5026
        %5206 = vmatpush1.bf16.msra.mxu0 %v5025
        %5207 = vmatprep.subr.bf16.mxu0 %v5028
        %5208 = vmatpush1.bf16.msra.mxu0 %v5027
        %5209 = vmatprep.subr.bf16.mxu0 %v5030
        %5210 = vmatpush1.bf16.msra.mxu0 %v5029
        %5211 = vmatprep.subr.bf16.mxu0 %v5032
        %5212 = vmatpush1.bf16.msra.mxu0 %v5031
        %5213 = vmatprep.subr.bf16.mxu0 %v5034
        %5214 = vmatpush1.bf16.msra.mxu0 %v5033
        %5215 = vmatprep.subr.bf16.mxu0 %v5036
        %5216 = vmatpush1.bf16.msra.mxu0 %v5035
        %5217 = vmatprep.subr.bf16.mxu0 %v5038
        %5218 = vmatpush1.bf16.msra.mxu0 %v5037
        %5219 = vmatprep.mubr.bf16.mxu0 %v4648
        %5220 = vmatmul.mubr.bf16.gmra.mrb[0].mxu0 %v4647
        %v5221 = vpop.f32.mrb[0].mxu0
        %v5222 = vadd.f32 %v5181, %v5221
        %v5223 = vpop.f32.mrb[0].mxu0
        %v5224 = vadd.f32 %v5183, %v5223
        %v5225 = vpop.f32.mrb[0].mxu0
        %v5226 = vpop.f32.mrb[0].mxu0
        %5227 = vdwg.mxu0
        %5228 = vmatprep.subr.bf16.mxu0 %v5040
        %5229 = vmatpush1.bf16.msra.mxu0 %v5039
        %5230 = vmatprep.subr.bf16.mxu0 %v5042
        %5231 = vmatpush1.bf16.msra.mxu0 %v5041
        %5232 = vmatprep.subr.bf16.mxu0 %v5044
        %5233 = vmatpush1.bf16.msra.mxu0 %v5043
        %5234 = vmatprep.subr.bf16.mxu0 %v5046
        %5235 = vmatpush1.bf16.msra.mxu0 %v5045
        %5236 = vmatprep.subr.bf16.mxu0 %v5048
        %5237 = vmatpush1.bf16.msra.mxu0 %v5047
        %5238 = vmatprep.subr.bf16.mxu0 %v5050
        %5239 = vmatpush1.bf16.msra.mxu0 %v5049
        %5240 = vmatprep.subr.bf16.mxu0 %v5052
        %5241 = vmatpush1.bf16.msra.mxu0 %v5051
        %5242 = vmatprep.subr.bf16.mxu0 %v5054
        %5243 = vmatpush1.bf16.msra.mxu0 %v5053
        %5244 = vmatprep.subr.bf16.mxu0 %v5144
        %5245 = vmatpush1.bf16.msra.mxu0 %v5141
        %5246 = vmatprep.subr.bf16.mxu0 0
        %5247 = vmatpush1.bf16.msra.mxu0 0
        %5248 = vmatprep.subr.bf16.mxu0 0
        %5249 = vmatpush1.bf16.msra.mxu0 0
        %5250 = vmatprep.subr.bf16.mxu0 0
        %5251 = vmatpush1.bf16.msra.mxu0 0
        %5252 = vmatprep.subr.bf16.mxu0 0
        %5253 = vmatpush1.bf16.msra.mxu0 0
        %5254 = vmatprep.subr.bf16.mxu0 0
        %5255 = vmatpush1.bf16.msra.mxu0 0
        %5256 = vmatprep.subr.bf16.mxu0 0
        %5257 = vmatpush1.bf16.msra.mxu0 0
        %5258 = vmatprep.subr.bf16.mxu0 0
        %5259 = vmatpush1.bf16.msra.mxu0 0
        %5260 = vmatprep.mubr.bf16.mxu0 %v5138
        %5261 = vmatmul.mubr.bf16.gmra.mrb[0].mxu0 %v4649
        %v5262 = vpop.f32.mrb[0].mxu0
        %v5263 = vadd.f32 %v5222, %v5262
        %v5264 = vpop.f32.mrb[0].mxu0
        %v5265 = vadd.f32 %v5224, %v5264
        %v5266 = vpop.f32.mrb[0].mxu0
        %v5267 = vpop.f32.mrb[0].mxu0
        %5268 = vdwg.mxu0
        %5269 = vst [vmem:[#allocation13 + $0x8] sm:$0xff] %v5263
        %5270 = vst.msk [vmem:[#allocation13 + $0x10] sm:$0xff] %vm1553, %v5265
        %v5271 = vld [vmem:[#allocation13] sm:$0xff]
        %v5272 = vld [vmem:[#allocation13 + $0x8] sm:$0xff]
        %v5273 = vld [vmem:[#allocation13 + $0x10] sm:$0xff]
        %5277 = vrot.lane.b32.xlu0 %v5271, 127
        %v5278 = vpop.permute.xlu0 %5277
        %5279 = vrot.lane.b32.xlu0 %v5272, 127
        %v5280 = vpop.permute.xlu0 %5279
        %5281 = vrot.lane.b32.xlu0 %v5273, 127
        %v5282 = vpop.permute.xlu0 %5281
        %v5283 = vsel %vm1192, %v5278, %v5280
        %v5284 = vsel %vm1192, %v5280, %v5282
        %5288 = vrot.lane.b32.xlu0 %v5271, 126
        %v5289 = vpop.permute.xlu0 %5288
        %5290 = vrot.lane.b32.xlu0 %v5272, 126
        %v5291 = vpop.permute.xlu0 %5290
        %5292 = vrot.lane.b32.xlu0 %v5273, 126
        %v5293 = vpop.permute.xlu0 %5292
        %v5294 = vsel %vm1216, %v5289, %v5291
        %v5295 = vsel %vm1216, %v5291, %v5293
        %5299 = vrot.lane.b32.xlu0 %v5271, 118
        %v5300 = vpop.permute.xlu0 %5299
        %5301 = vrot.lane.b32.xlu0 %v5272, 118
        %v5302 = vpop.permute.xlu0 %5301
        %5303 = vrot.lane.b32.xlu0 %v5273, 118
        %v5304 = vpop.permute.xlu0 %5303
        %v5305 = vsel %vm2435, %v5300, %v5302
        %v5306 = vsel %vm2435, %v5302, %v5304
        %5310 = vrot.lane.b32.xlu0 %v5272, 117
        %v5311 = vpop.permute.xlu0 %5310
        %5312 = vrot.lane.b32.xlu0 %v5273, 117
        %v5313 = vpop.permute.xlu0 %5312
        %v5314 = vsel %vm2445, %v5311, %v5313
        %5318 = vrot.lane.b32.xlu0 %v5272, 116
        %v5319 = vpop.permute.xlu0 %5318
        %5320 = vrot.lane.b32.xlu0 %v5273, 116
        %v5321 = vpop.permute.xlu0 %5320
        %v5322 = vsel %vm2454, %v5319, %v5321
        %5326 = vrot.lane.b32.xlu0 %v5272, 108
        %v5327 = vpop.permute.xlu0 %5326
        %5328 = vrot.lane.b32.xlu0 %v5273, 108
        %v5329 = vpop.permute.xlu0 %5328
        %v5330 = vsel %vm1292, %v5327, %v5329
        %5334 = vrot.lane.b32.xlu0 %v5272, 107
        %v5335 = vpop.permute.xlu0 %5334
        %5336 = vrot.lane.b32.xlu0 %v5273, 107
        %v5337 = vpop.permute.xlu0 %5336
        %v5338 = vsel %vm2471, %v5335, %v5337
        %5342 = vrot.lane.b32.xlu0 %v5272, 106
        %v5343 = vpop.permute.xlu0 %5342
        %5344 = vrot.lane.b32.xlu0 %v5273, 106
        %v5345 = vpop.permute.xlu0 %5344
        %v5346 = vsel %vm2480, %v5343, %v5345
        %v5350 = vpack.c.bf16 %v5283, %v5271
        %v5351 = vpack.c.bf16 %v5284, %v5272
        %v5352 = vpack.c.bf16 %v5282, %v5273
        %v5353 = vpack.c.bf16 %v5305, %v5294
        %v5354 = vpack.c.bf16 %v5306, %v5295
        %v5355 = vpack.c.bf16 %v5304, %v5293
        %v5356 = vpack.c.bf16 %v5319, %v5311
        %v5357 = vpack.c.bf16 %v5322, %v5314
        %v5358 = vpack.c.bf16 %v5321, %v5313
        %v5359 = vpack.c.bf16 %v5335, %v5327
        %v5360 = vpack.c.bf16 %v5338, %v5330
        %v5361 = vpack.c.bf16 %v5337, %v5329
        %v5362 = vpack.c.bf16 %v5343, %v5343
        %v5363 = vpack.c.bf16 %v5346, %v5346
        %v5364 = vpack.c.bf16 %v5345, %v5345
        %v5365 = vld [vmem:[%s6] sm:$0xf]
        %v5366 = vld [vmem:[%s6 + $0x4] sm:$0xf]
        %v5367 = vld [vmem:[%s7] sm:$0xff]
        %v5368 = vld [vmem:[%s7 + $0x8] sm:$0xff]
        %5370 = vset.pattern.permute.xlu0 0
        %5371 = vperm.xlu0 %5370, %v5367
        %v5372 = vpop.permute.xlu0 %5371
        %5375 = vset.pattern.permute.xlu0 0
        %5376 = vperm.xlu0 %5375, %v5368
        %v5377 = vpop.permute.xlu0 %5376
        %v5381 = vunpack.c.l.b16 %v5365
        %v5382 = vunpack.c.l.b16 %v5366
        %v5383 = vpack.c.b16 %v5382, %v5381
        %5399 = vrot.lane.b32.xlu0 %v5350, 11
        %v5400 = vpop.permute.xlu0 %5399
        %5401 = vrot.lane.b32.xlu0 %v5351, 11
        %v5402 = vpop.permute.xlu0 %5401
        %5403 = vrot.lane.b32.xlu0 %v5352, 11
        %v5404 = vpop.permute.xlu0 %5403
        %5405 = vrot.lane.b32.xlu0 %v5353, 11
        %v5406 = vpop.permute.xlu0 %5405
        %5407 = vrot.lane.b32.xlu0 %v5354, 11
        %v5408 = vpop.permute.xlu0 %5407
        %5409 = vrot.lane.b32.xlu0 %v5355, 11
        %v5410 = vpop.permute.xlu0 %5409
        %5411 = vrot.lane.b32.xlu0 %v5356, 11
        %v5412 = vpop.permute.xlu0 %5411
        %5413 = vrot.lane.b32.xlu0 %v5357, 11
        %v5414 = vpop.permute.xlu0 %5413
        %5415 = vrot.lane.b32.xlu0 %v5358, 11
        %v5416 = vpop.permute.xlu0 %5415
        %5417 = vrot.lane.b32.xlu0 %v5359, 11
        %v5418 = vpop.permute.xlu0 %5417
        %5419 = vrot.lane.b32.xlu0 %v5360, 11
        %v5420 = vpop.permute.xlu0 %5419
        %5421 = vrot.lane.b32.xlu0 %v5361, 11
        %v5422 = vpop.permute.xlu0 %5421
        %5423 = vrot.lane.b32.xlu0 %v5362, 11
        %v5424 = vpop.permute.xlu0 %5423
        %5425 = vrot.lane.b32.xlu0 %v5363, 11
        %v5426 = vpop.permute.xlu0 %5425
        %5427 = vrot.lane.b32.xlu0 %v5364, 11
        %v5428 = vpop.permute.xlu0 %5427
        %v5429 = vsel %vm2564, %v5400, %v5402
        %v5430 = vsel %vm2564, %v5402, %v5404
        %v5431 = vsel %vm2564, %v5406, %v5408
        %v5432 = vsel %vm2564, %v5408, %v5410
        %v5433 = vsel %vm2564, %v5412, %v5414
        %v5434 = vsel %vm2564, %v5414, %v5416
        %v5435 = vsel %vm2564, %v5418, %v5420
        %v5436 = vsel %vm2564, %v5420, %v5422
        %v5437 = vsel %vm2564, %v5424, %v5426
        %v5438 = vsel %vm2564, %v5426, %v5428
        %v5448 = vsel %vm1553, %v5383, 0
        %v5451 = vsel %vm1557, %v5437, 0
        %v5454 = vsel %vm1557, %v5438, 0
        %5456 = vmatprep.subr.bf16.mxu0 %v5430
        %5457 = vmatpush1.bf16.msra.mxu0 %v5429
        %5458 = vmatprep.subr.bf16.mxu0 %v5432
        %5459 = vmatpush1.bf16.msra.mxu0 %v5431
        %5460 = vmatprep.subr.bf16.mxu0 %v5434
        %5461 = vmatpush1.bf16.msra.mxu0 %v5433
        %5462 = vmatprep.subr.bf16.mxu0 %v5436
        %5463 = vmatpush1.bf16.msra.mxu0 %v5435
        %5464 = vmatprep.subr.bf16.mxu0 %v5454
        %5465 = vmatpush1.bf16.msra.mxu0 %v5451
        %5466 = vmatprep.subr.bf16.mxu0 0
        %5467 = vmatpush1.bf16.msra.mxu0 0
        %5468 = vmatprep.subr.bf16.mxu0 0
        %5469 = vmatpush1.bf16.msra.mxu0 0
        %5470 = vmatprep.subr.bf16.mxu0 0
        %5471 = vmatpush1.bf16.msra.mxu0 0
        %5472 = vmatprep.subr.bf16.mxu0 0
        %5473 = vmatpush1.bf16.msra.mxu0 0
        %5474 = vmatprep.subr.bf16.mxu0 0
        %5475 = vmatpush1.bf16.msra.mxu0 0
        %5476 = vmatprep.subr.bf16.mxu0 0
        %5477 = vmatpush1.bf16.msra.mxu0 0
        %5478 = vmatprep.subr.bf16.mxu0 0
        %5479 = vmatpush1.bf16.msra.mxu0 0
        %5480 = vmatprep.subr.bf16.mxu0 0
        %5481 = vmatpush1.bf16.msra.mxu0 0
        %5482 = vmatprep.subr.bf16.mxu0 0
        %5483 = vmatpush1.bf16.msra.mxu0 0
        %5484 = vmatprep.subr.bf16.mxu0 0
        %5485 = vmatpush1.bf16.msra.mxu0 0
        %5486 = vmatprep.subr.bf16.mxu0 0
        %5487 = vmatpush1.bf16.msra.mxu0 0
        %5488 = vmatprep.mubr.bf16.mxu0 0
        %5489 = vmatmul.mubr.bf16.gmra.mrb[0].mxu0 %v5448
        %v5490 = vpop.f32.mrb[0].mxu0
        %v5491 = vadd.f32 %v5372, %v5490
        %v5492 = vpop.f32.mrb[0].mxu0
        %v5493 = vadd.f32 %v5372, %v5492
        %v5494 = vpop.f32.mrb[0].mxu0
        %v5495 = vadd.f32 %v5377, %v5494
        %v5496 = vpop.f32.mrb[0].mxu0
        %v5497 = vadd.f32 %v5377, %v5496
        %5498 = vdwg.mxu0
        %v5499 = vld [vmem:[%s21] sm:$0x3]
        %v5501 = vlaneseq
        %v5502 = vshrl.u32 %v5501, 7
        %v5503 = vsub.s32 0, %v5502
        %v5504 = vrot.slane %v5499, %v5503
        %v5505 = vlaneseq
        %v5506 = vshrl.u32 %v5505, 7
        %v5507 = vsub.s32 1, %v5506
        %v5508 = vrot.slane %v5499, %v5507
        %v5511 = vmul.f32 %v5491, %v5504
        %v5512 = vmul.f32 %v5493, %v5508
        %v5513 = vmul.f32 %v5495, %v5504
        %v5514 = vmul.f32 %v5497, %v5508
        %s5515 = sld [smem:[#allocation16 + $0x2]]
        %v5516 = vld [vmem:[#allocation5] sm:$0xff]
        %v5517 = vld [vmem:[#allocation5 + $0x8] sm:$0xff]
        %v5518 = vld [vmem:[#allocation5 + $0x10] sm:$0xff]
        %v5519 = vld [vmem:[#allocation5 + $0x18] sm:$0xff]
        %v5520 = vadd.f32 %v5516, %v5511
        %v5521 = vadd.f32 %v5517, %v5512
        %v5522 = vadd.f32 %v5518, %v5513
        %v5523 = vadd.f32 %v5519, %v5514
        %v5524 = vstv %s5515
        %vm5525 = vcmp.ge.f32.partialorder %v5520, %v5524
        %vm5526 = vcmp.ge.f32.partialorder %v5521, %v5524
        %vm5527 = vcmp.ge.f32.partialorder %v5522, %v5524
        %vm5528 = vcmp.ge.f32.partialorder %v5523, %v5524
        %v5529 = vsel %vm5525, %v5524, 0.0
        %v5530 = vsel %vm5526, %v5524, 0.0
        %v5531 = vsel %vm5527, %v5524, 0.0
        %v5532 = vsel %vm5528, %v5524, 0.0
        %v5533 = vsub.f32 %v5520, %v5529
        %v5534 = vsub.f32 %v5521, %v5530
        %v5535 = vsub.f32 %v5522, %v5531
        %v5536 = vsub.f32 %v5523, %v5532
        %5537 = vst [vmem:[#allocation5] sm:$0xff] %v5533
        %5538 = vst.msk [vmem:[#allocation5 + $0x8] sm:$0xff] %vm1553, %v5534
        %5539 = vst [vmem:[#allocation5 + $0x10] sm:$0xff] %v5535
        %5540 = vst.msk [vmem:[#allocation5 + $0x18] sm:$0xff] %vm1553, %v5536
        %v5541 = vpack.c.bf16 %v5531, %v5529
        %v5542 = vpack.c.bf16 %v5532, %v5530
        %v5543 = vld [vmem:[%s19] sm:$0xf]
        %v5544 = vld [vmem:[%s19 + $0x4] sm:$0xf]
        %v5545 = vld [vmem:[%s19 + $0x8] sm:$0xf]
        %v5546 = vld [vmem:[%s19 + $0xc] sm:$0xf]
        %v5547 = vld [vmem:[%s19 + $0x10] sm:$0xf]
        %v5548 = vld [vmem:[%s19 + $0x14] sm:$0xf]
        %v5549 = vld [vmem:[%s19 + $0x18] sm:$0xf]
        %v5550 = vld [vmem:[%s19 + $0x1c] sm:$0xf]
        %v5551 = vld [vmem:[%s19 + $0x20] sm:$0xf]
        %v5552 = vld [vmem:[%s19 + $0x24] sm:$0xf]
        %v5553 = vld [vmem:[%s19 + $0x28] sm:$0xf]
        %v5554 = vld [vmem:[%s19 + $0x2c] sm:$0xf]
        %v5555 = vld [vmem:[%s19 + $0x30] sm:$0xf]
        %v5556 = vld [vmem:[%s19 + $0x34] sm:$0xf]
        %v5557 = vld [vmem:[%s19 + $0x38] sm:$0xf]
        %v5558 = vld [vmem:[%s19 + $0x3c] sm:$0xf]
        %v5559 = vld [vmem:[%s19 + $0x40] sm:$0xf]
        %v5560 = vld [vmem:[%s19 + $0x44] sm:$0xf]
        %v5561 = vld [vmem:[%s19 + $0x48] sm:$0xf]
        %v5562 = vld [vmem:[%s19 + $0x4c] sm:$0xf]
        %v5563 = vld [vmem:[%s19 + $0x50] sm:$0xf]
        %v5564 = vld [vmem:[%s19 + $0x54] sm:$0xf]
        %v5565 = vld [vmem:[%s19 + $0x58] sm:$0xf]
        %v5566 = vld [vmem:[%s19 + $0x5c] sm:$0xf]
        %v5567 = vld [vmem:[%s19 + $0x60] sm:$0xf]
        %v5593 = vunpack.c.l.b16 %v5543
        %v5594 = vunpack.c.l.b16 %v5544
        %v5595 = vunpack.c.l.b16 %v5545
        %v5596 = vunpack.c.l.b16 %v5546
        %v5597 = vunpack.c.l.b16 %v5547
        %v5598 = vunpack.c.l.b16 %v5548
        %v5599 = vunpack.c.l.b16 %v5549
        %v5600 = vunpack.c.l.b16 %v5550
        %v5601 = vunpack.c.l.b16 %v5551
        %v5602 = vunpack.c.l.b16 %v5552
        %v5603 = vunpack.c.l.b16 %v5553
        %v5604 = vunpack.c.l.b16 %v5554
        %v5605 = vunpack.c.l.b16 %v5555
        %v5606 = vunpack.c.l.b16 %v5556
        %v5607 = vunpack.c.l.b16 %v5557
        %v5608 = vunpack.c.l.b16 %v5558
        %v5609 = vunpack.c.l.b16 %v5559
        %v5610 = vunpack.c.l.b16 %v5560
        %v5611 = vunpack.c.l.b16 %v5561
        %v5612 = vunpack.c.l.b16 %v5562
        %v5613 = vunpack.c.l.b16 %v5563
        %v5614 = vunpack.c.l.b16 %v5564
        %v5615 = vunpack.c.l.b16 %v5565
        %v5616 = vunpack.c.l.b16 %v5566
        %v5617 = vunpack.c.l.b16 %v5567
        %v5618 = vpack.c.b16 %v5594, %v5593
        %v5619 = vpack.c.b16 %v5596, %v5595
        %v5620 = vpack.c.b16 %v5598, %v5597
        %v5621 = vpack.c.b16 %v5600, %v5599
        %v5622 = vpack.c.b16 %v5602, %v5601
        %v5623 = vpack.c.b16 %v5604, %v5603
        %v5624 = vpack.c.b16 %v5606, %v5605
        %v5625 = vpack.c.b16 %v5608, %v5607
        %v5626 = vpack.c.b16 %v5610, %v5609
        %v5627 = vpack.c.b16 %v5612, %v5611
        %v5628 = vpack.c.b16 %v5614, %v5613
        %v5629 = vpack.c.b16 %v5616, %v5615
        %v5630 = vpack.c.b16 %v5617, %v5617
        %v5644 = vsel %vm1553, %v5542, 0
        %v5647 = vsel %vm1557, %v5630, 0
        %5649 = vmatprep.subr.bf16.mxu0 0
        %5650 = vmatpush1.bf16.msra.mxu0 %v5618
        %5651 = vmatprep.subr.bf16.mxu0 0
        %5652 = vmatpush1.bf16.msra.mxu0 %v5619
        %5653 = vmatprep.subr.bf16.mxu0 0
        %5654 = vmatpush1.bf16.msra.mxu0 %v5620
        %5655 = vmatprep.subr.bf16.mxu0 0
        %5656 = vmatpush1.bf16.msra.mxu0 %v5621
        %5657 = vmatprep.subr.bf16.mxu0 0
        %5658 = vmatpush1.bf16.msra.mxu0 %v5622
        %5659 = vmatprep.subr.bf16.mxu0 0
        %5660 = vmatpush1.bf16.msra.mxu0 %v5623
        %5661 = vmatprep.subr.bf16.mxu0 0
        %5662 = vmatpush1.bf16.msra.mxu0 %v5624
        %5663 = vmatprep.subr.bf16.mxu0 0
        %5664 = vmatpush1.bf16.msra.mxu0 %v5625
        %5665 = vmatprep.subr.bf16.mxu0 0
        %5666 = vmatpush1.bf16.msra.mxu0 %v5626
        %5667 = vmatprep.subr.bf16.mxu0 0
        %5668 = vmatpush1.bf16.msra.mxu0 %v5627
        %5669 = vmatprep.subr.bf16.mxu0 0
        %5670 = vmatpush1.bf16.msra.mxu0 %v5628
        %5671 = vmatprep.subr.bf16.mxu0 0
        %5672 = vmatpush1.bf16.msra.mxu0 %v5629
        %5673 = vmatprep.subr.bf16.mxu0 0
        %5674 = vmatpush1.bf16.msra.mxu0 %v5647
        %5675 = vmatprep.subr.bf16.mxu0 0
        %5676 = vmatpush1.bf16.msra.mxu0 0
        %5677 = vmatprep.subr.bf16.mxu0 0
        %5678 = vmatpush1.bf16.msra.mxu0 0
        %5679 = vmatprep.subr.bf16.mxu0 0
        %5680 = vmatpush1.bf16.msra.mxu0 0
        %5681 = vmatprep.mubr.bf16.mxu0 %v5644
        %5682 = vmatmul.mubr.bf16.gmra.mrb[0].mxu0 %v5541
        %v5683 = vpop.f32.mrb[0].mxu0
        %v5684 = vadd.f32 0.0, %v5683
        %v5685 = vpop.f32.mrb[0].mxu0
        %v5686 = vpop.f32.mrb[0].mxu0
        %v5687 = vadd.f32 0.0, %v5686
        %v5688 = vpop.f32.mrb[0].mxu0
        %5689 = vdwg.mxu0
        %5690 = vst.msk [vmem:[#allocation14 + $0x8] sm:$0xff] %vm1553, %v5684
        %5691 = vst.msk [vmem:[#allocation14 + $0x20] sm:$0xff] %vm1553, %v5687
        %v5692 = vld [vmem:[#allocation14] sm:$0xff]
        %v5693 = vld [vmem:[#allocation14 + $0x8] sm:$0xff]
        %v5694 = vld [vmem:[#allocation14 + $0x18] sm:$0xff]
        %v5695 = vld [vmem:[#allocation14 + $0x20] sm:$0xff]
        %5700 = vrot.lane.b32.xlu0 %v5692, 127
        %v5701 = vpop.permute.xlu0 %5700
        %5702 = vrot.lane.b32.xlu0 %v5693, 127
        %v5703 = vpop.permute.xlu0 %5702
        %5704 = vrot.lane.b32.xlu0 %v5694, 127
        %v5705 = vpop.permute.xlu0 %5704
        %5706 = vrot.lane.b32.xlu0 %v5695, 127
        %v5707 = vpop.permute.xlu0 %5706
        %v5708 = vsel %vm1192, %v5701, %v5703
        %v5709 = vsel %vm1192, %v5705, %v5707
        %5714 = vrot.lane.b32.xlu0 %v5692, 126
        %v5715 = vpop.permute.xlu0 %5714
        %5716 = vrot.lane.b32.xlu0 %v5693, 126
        %v5717 = vpop.permute.xlu0 %5716
        %5718 = vrot.lane.b32.xlu0 %v5694, 126
        %v5719 = vpop.permute.xlu0 %5718
        %5720 = vrot.lane.b32.xlu0 %v5695, 126
        %v5721 = vpop.permute.xlu0 %5720
        %v5722 = vsel %vm1216, %v5715, %v5717
        %v5723 = vsel %vm1216, %v5719, %v5721
        %5728 = vrot.lane.b32.xlu0 %v5692, 122
        %v5729 = vpop.permute.xlu0 %5728
        %5730 = vrot.lane.b32.xlu0 %v5693, 122
        %v5731 = vpop.permute.xlu0 %5730
        %5732 = vrot.lane.b32.xlu0 %v5694, 122
        %v5733 = vpop.permute.xlu0 %5732
        %5734 = vrot.lane.b32.xlu0 %v5695, 122
        %v5735 = vpop.permute.xlu0 %5734
        %v5736 = vsel %vm2872, %v5729, %v5731
        %v5737 = vsel %vm2872, %v5733, %v5735
        %5742 = vrot.lane.b32.xlu0 %v5693, 121
        %v5743 = vpop.permute.xlu0 %5742
        %5744 = vrot.lane.b32.xlu0 %v5695, 121
        %v5745 = vpop.permute.xlu0 %5744
        %5748 = vrot.lane.b32.xlu0 %v5693, 120
        %v5749 = vpop.permute.xlu0 %5748
        %5750 = vrot.lane.b32.xlu0 %v5695, 120
        %v5751 = vpop.permute.xlu0 %5750
        %5754 = vrot.lane.b32.xlu0 %v5693, 116
        %v5755 = vpop.permute.xlu0 %5754
        %5756 = vrot.lane.b32.xlu0 %v5695, 116
        %v5757 = vpop.permute.xlu0 %5756
        %5760 = vrot.lane.b32.xlu0 %v5693, 115
        %v5761 = vpop.permute.xlu0 %5760
        %5762 = vrot.lane.b32.xlu0 %v5695, 115
        %v5763 = vpop.permute.xlu0 %5762
        %5766 = vrot.lane.b32.xlu0 %v5693, 114
        %v5767 = vpop.permute.xlu0 %5766
        %5768 = vrot.lane.b32.xlu0 %v5695, 114
        %v5769 = vpop.permute.xlu0 %5768
        %v5772 = vpack.c.bf16 %v5694, %v5692
        %v5773 = vpack.c.bf16 %v5695, %v5693
        %v5774 = vpack.c.bf16 %v5709, %v5708
        %v5775 = vpack.c.bf16 %v5707, %v5703
        %v5776 = vpack.c.bf16 %v5723, %v5722
        %v5777 = vpack.c.bf16 %v5721, %v5717
        %v5778 = vpack.c.bf16 %v5737, %v5736
        %v5779 = vpack.c.bf16 %v5735, %v5731
        %v5780 = vpack.c.bf16 %v5745, %v5743
        %v5781 = vpack.c.bf16 %v5751, %v5749
        %v5782 = vpack.c.bf16 %v5757, %v5755
        %v5783 = vpack.c.bf16 %v5763, %v5761
        %v5784 = vpack.c.bf16 %v5769, %v5767
        %v5785 = vld [vmem:[%s8] sm:$0xff]
        %v5786 = vld [vmem:[%s8 + $0x8] sm:$0xff]
        %v5787 = vld [vmem:[%s9] sm:$0xff]
        %v5788 = vld [vmem:[%s9 + $0x8] sm:$0xff]
        %5790 = vset.pattern.permute.xlu0 0
        %5791 = vperm.xlu0 %5790, %v5787
        %v5792 = vpop.permute.xlu0 %5791
        %5795 = vset.pattern.permute.xlu0 0
        %5796 = vperm.xlu0 %5795, %v5788
        %v5797 = vpop.permute.xlu0 %5796
        %v5801 = vunpack.c.l.b16 %v5785
        %v5802 = vunpack.c.h.b16 %v5785
        %v5803 = vunpack.c.l.b16 %v5786
        %v5804 = vunpack.c.h.b16 %v5786
        %v5805 = vpack.c.b16 %v5803, %v5801
        %v5806 = vpack.c.b16 %v5804, %v5802
        %5821 = vrot.lane.b32.xlu0 %v5772, 7
        %v5822 = vpop.permute.xlu0 %5821
        %5823 = vrot.lane.b32.xlu0 %v5773, 7
        %v5824 = vpop.permute.xlu0 %5823
        %5825 = vrot.lane.b32.xlu0 %v5774, 7
        %v5826 = vpop.permute.xlu0 %5825
        %5827 = vrot.lane.b32.xlu0 %v5775, 7
        %v5828 = vpop.permute.xlu0 %5827
        %5829 = vrot.lane.b32.xlu0 %v5776, 7
        %v5830 = vpop.permute.xlu0 %5829
        %5831 = vrot.lane.b32.xlu0 %v5777, 7
        %v5832 = vpop.permute.xlu0 %5831
        %5833 = vrot.lane.b32.xlu0 %v5778, 7
        %v5834 = vpop.permute.xlu0 %5833
        %5835 = vrot.lane.b32.xlu0 %v5779, 7
        %v5836 = vpop.permute.xlu0 %5835
        %5837 = vrot.lane.b32.xlu0 %v5780, 7
        %v5838 = vpop.permute.xlu0 %5837
        %5839 = vrot.lane.b32.xlu0 %v5781, 7
        %v5840 = vpop.permute.xlu0 %5839
        %5841 = vrot.lane.b32.xlu0 %v5782, 7
        %v5842 = vpop.permute.xlu0 %5841
        %5843 = vrot.lane.b32.xlu0 %v5783, 7
        %v5844 = vpop.permute.xlu0 %5843
        %5845 = vrot.lane.b32.xlu0 %v5784, 7
        %v5846 = vpop.permute.xlu0 %5845
        %v5847 = vsel %vm2984, %v5822, %v5824
        %v5848 = vsel %vm2984, %v5826, %v5828
        %v5849 = vsel %vm2984, %v5830, %v5832
        %v5850 = vsel %vm2984, %v5834, %v5836
        %v5861 = vsel %vm2998, %v5806, 0
        %5863 = vmatprep.subr.bf16.mxu0 0
        %5864 = vmatpush1.bf16.msra.mxu0 %v5847
        %5865 = vmatprep.subr.bf16.mxu0 0
        %5866 = vmatpush1.bf16.msra.mxu0 %v5848
        %5867 = vmatprep.subr.bf16.mxu0 0
        %5868 = vmatpush1.bf16.msra.mxu0 %v5849
        %5869 = vmatprep.subr.bf16.mxu0 0
        %5870 = vmatpush1.bf16.msra.mxu0 %v5850
        %5871 = vmatprep.subr.bf16.mxu0 0
        %5872 = vmatpush1.bf16.msra.mxu0 %v5838
        %5873 = vmatprep.subr.bf16.mxu0 0
        %5874 = vmatpush1.bf16.msra.mxu0 %v5840
        %5875 = vmatprep.subr.bf16.mxu0 0
        %5876 = vmatpush1.bf16.msra.mxu0 %v5842
        %5877 = vmatprep.subr.bf16.mxu0 0
        %5878 = vmatpush1.bf16.msra.mxu0 %v5844
        %5879 = vmatprep.subr.bf16.mxu0 0
        %5880 = vmatpush1.bf16.msra.mxu0 %v5846
        %5881 = vmatprep.subr.bf16.mxu0 0
        %5882 = vmatpush1.bf16.msra.mxu0 0
        %5883 = vmatprep.subr.bf16.mxu0 0
        %5884 = vmatpush1.bf16.msra.mxu0 0
        %5885 = vmatprep.subr.bf16.mxu0 0
        %5886 = vmatpush1.bf16.msra.mxu0 0
        %5887 = vmatprep.subr.bf16.mxu0 0
        %5888 = vmatpush1.bf16.msra.mxu0 0
        %5889 = vmatprep.subr.bf16.mxu0 0
        %5890 = vmatpush1.bf16.msra.mxu0 0
        %5891 = vmatprep.subr.bf16.mxu0 0
        %5892 = vmatpush1.bf16.msra.mxu0 0
        %5893 = vmatprep.subr.bf16.mxu0 0
        %5894 = vmatpush1.bf16.msra.mxu0 0
        %5895 = vmatprep.mubr.bf16.mxu0 %v5861
        %5896 = vmatmul.mubr.bf16.gmra.mrb[0].mxu0 %v5805
        %v5897 = vpop.f32.mrb[0].mxu0
        %v5898 = vadd.f32 %v5792, %v5897
        %v5899 = vpop.f32.mrb[0].mxu0
        %v5900 = vpop.f32.mrb[0].mxu0
        %v5901 = vadd.f32 %v5797, %v5900
        %v5902 = vpop.f32.mrb[0].mxu0
        %5903 = vdwg.mxu0
        %v5904 = vld [vmem:[%s22] sm:$0x1]
        %v5906 = vlaneseq
        %v5907 = vshrl.u32 %v5906, 7
        %v5908 = vsub.s32 0, %v5907
        %v5909 = vrot.slane %v5904, %v5908
        %v5911 = vmul.f32 %v5898, %v5909
        %v5912 = vmul.f32 %v5901, %v5909
        %s5913 = sld [smem:[#allocation16 + $0x3]]
        %v5914 = vld [vmem:[#allocation6] sm:$0xff]
        %v5915 = vld [vmem:[#allocation6 + $0x8] sm:$0xff]
        %v5916 = vadd.f32 %v5914, %v5911
        %v5917 = vadd.f32 %v5915, %v5912
        %v5918 = vstv %s5913
        %vm5919 = vcmp.ge.f32.partialorder %v5916, %v5918
        %vm5920 = vcmp.ge.f32.partialorder %v5917, %v5918
        %v5921 = vsel %vm5919, %v5918, 0.0
        %v5922 = vsel %vm5920, %v5918, 0.0
        %v5923 = vsub.f32 %v5916, %v5921
        %v5924 = vsub.f32 %v5917, %v5922
        %5925 = vst.msk [vmem:[#allocation6] sm:$0xff] %vm1553, %v5923
        %5926 = vst.msk [vmem:[#allocation6 + $0x8] sm:$0xff] %vm1553, %v5924
        %5927 = vst.msk [vmem:[#allocation15 + $0x8] sm:$0xff] %vm1553, %v5921
        %5928 = vst.msk [vmem:[#allocation15 + $0x20] sm:$0xff] %vm1553, %v5922
        %v5929 = vld [vmem:[#allocation15] sm:$0xff]
        %v5930 = vld [vmem:[#allocation15 + $0x8] sm:$0xff]
        %v5931 = vld [vmem:[#allocation15 + $0x18] sm:$0xff]
        %v5932 = vld [vmem:[#allocation15 + $0x20] sm:$0xff]
        %5937 = vrot.lane.b32.xlu0 %v5929, 127
        %v5938 = vpop.permute.xlu0 %5937
        %5939 = vrot.lane.b32.xlu0 %v5930, 127
        %v5940 = vpop.permute.xlu0 %5939
        %5941 = vrot.lane.b32.xlu0 %v5931, 127
        %v5942 = vpop.permute.xlu0 %5941
        %5943 = vrot.lane.b32.xlu0 %v5932, 127
        %v5944 = vpop.permute.xlu0 %5943
        %v5945 = vsel %vm1192, %v5938, %v5940
        %v5946 = vsel %vm1192, %v5942, %v5944
        %5951 = vrot.lane.b32.xlu0 %v5929, 126
        %v5952 = vpop.permute.xlu0 %5951
        %5953 = vrot.lane.b32.xlu0 %v5930, 126
        %v5954 = vpop.permute.xlu0 %5953
        %5955 = vrot.lane.b32.xlu0 %v5931, 126
        %v5956 = vpop.permute.xlu0 %5955
        %5957 = vrot.lane.b32.xlu0 %v5932, 126
        %v5958 = vpop.permute.xlu0 %5957
        %v5959 = vsel %vm1216, %v5952, %v5954
        %v5960 = vsel %vm1216, %v5956, %v5958
        %5965 = vrot.lane.b32.xlu0 %v5929, 122
        %v5966 = vpop.permute.xlu0 %5965
        %5967 = vrot.lane.b32.xlu0 %v5930, 122
        %v5968 = vpop.permute.xlu0 %5967
        %5969 = vrot.lane.b32.xlu0 %v5931, 122
        %v5970 = vpop.permute.xlu0 %5969
        %5971 = vrot.lane.b32.xlu0 %v5932, 122
        %v5972 = vpop.permute.xlu0 %5971
        %v5973 = vsel %vm2872, %v5966, %v5968
        %v5974 = vsel %vm2872, %v5970, %v5972
        %5979 = vrot.lane.b32.xlu0 %v5930, 121
        %v5980 = vpop.permute.xlu0 %5979
        %5981 = vrot.lane.b32.xlu0 %v5932, 121
        %v5982 = vpop.permute.xlu0 %5981
        %5985 = vrot.lane.b32.xlu0 %v5930, 120
        %v5986 = vpop.permute.xlu0 %5985
        %5987 = vrot.lane.b32.xlu0 %v5932, 120
        %v5988 = vpop.permute.xlu0 %5987
        %5991 = vrot.lane.b32.xlu0 %v5930, 116
        %v5992 = vpop.permute.xlu0 %5991
        %5993 = vrot.lane.b32.xlu0 %v5932, 116
        %v5994 = vpop.permute.xlu0 %5993
        %5997 = vrot.lane.b32.xlu0 %v5930, 115
        %v5998 = vpop.permute.xlu0 %5997
        %5999 = vrot.lane.b32.xlu0 %v5932, 115
        %v6000 = vpop.permute.xlu0 %5999
        %6003 = vrot.lane.b32.xlu0 %v5930, 114
        %v6004 = vpop.permute.xlu0 %6003
        %6005 = vrot.lane.b32.xlu0 %v5932, 114
        %v6006 = vpop.permute.xlu0 %6005
        %v6009 = vpack.c.bf16 %v5931, %v5929
        %v6010 = vpack.c.bf16 %v5932, %v5930
        %v6011 = vpack.c.bf16 %v5946, %v5945
        %v6012 = vpack.c.bf16 %v5944, %v5940
        %v6013 = vpack.c.bf16 %v5960, %v5959
        %v6014 = vpack.c.bf16 %v5958, %v5954
        %v6015 = vpack.c.bf16 %v5974, %v5973
        %v6016 = vpack.c.bf16 %v5972, %v5968
        %v6017 = vpack.c.bf16 %v5982, %v5980
        %v6018 = vpack.c.bf16 %v5988, %v5986
        %v6019 = vpack.c.bf16 %v5994, %v5992
        %v6020 = vpack.c.bf16 %v6000, %v5998
        %v6021 = vpack.c.bf16 %v6006, %v6004
        %v6022 = vld [vmem:[%s10] sm:$0xff]
        %v6023 = vld [vmem:[%s11] sm:$0xff]
        %6025 = vset.pattern.permute.xlu0 0
        %6026 = vperm.xlu0 %6025, %v6023
        %v6027 = vpop.permute.xlu0 %6026
        %v6030 = vunpack.c.l.b16 %v6022
        %v6031 = vunpack.c.h.b16 %v6022
        %v6032 = vpack.c.b16 %v6030, %v6030
        %v6033 = vpack.c.b16 %v6031, %v6031
        %6048 = vrot.lane.b32.xlu0 %v6009, 7
        %v6049 = vpop.permute.xlu0 %6048
        %6050 = vrot.lane.b32.xlu0 %v6010, 7
        %v6051 = vpop.permute.xlu0 %6050
        %6052 = vrot.lane.b32.xlu0 %v6011, 7
        %v6053 = vpop.permute.xlu0 %6052
        %6054 = vrot.lane.b32.xlu0 %v6012, 7
        %v6055 = vpop.permute.xlu0 %6054
        %6056 = vrot.lane.b32.xlu0 %v6013, 7
        %v6057 = vpop.permute.xlu0 %6056
        %6058 = vrot.lane.b32.xlu0 %v6014, 7
        %v6059 = vpop.permute.xlu0 %6058
        %6060 = vrot.lane.b32.xlu0 %v6015, 7
        %v6061 = vpop.permute.xlu0 %6060
        %6062 = vrot.lane.b32.xlu0 %v6016, 7
        %v6063 = vpop.permute.xlu0 %6062
        %6064 = vrot.lane.b32.xlu0 %v6017, 7
        %v6065 = vpop.permute.xlu0 %6064
        %6066 = vrot.lane.b32.xlu0 %v6018, 7
        %v6067 = vpop.permute.xlu0 %6066
        %6068 = vrot.lane.b32.xlu0 %v6019, 7
        %v6069 = vpop.permute.xlu0 %6068
        %6070 = vrot.lane.b32.xlu0 %v6020, 7
        %v6071 = vpop.permute.xlu0 %6070
        %6072 = vrot.lane.b32.xlu0 %v6021, 7
        %v6073 = vpop.permute.xlu0 %6072
        %v6074 = vsel %vm2984, %v6049, %v6051
        %v6075 = vsel %vm2984, %v6053, %v6055
        %v6076 = vsel %vm2984, %v6057, %v6059
        %v6077 = vsel %vm2984, %v6061, %v6063
        %v6088 = vsel %vm2998, %v6033, 0
        %6090 = vmatprep.subr.bf16.mxu0 0
        %6091 = vmatpush1.bf16.msra.mxu0 %v6074
        %6092 = vmatprep.subr.bf16.mxu0 0
        %6093 = vmatpush1.bf16.msra.mxu0 %v6075
        %6094 = vmatprep.subr.bf16.mxu0 0
        %6095 = vmatpush1.bf16.msra.mxu0 %v6076
        %6096 = vmatprep.subr.bf16.mxu0 0
        %6097 = vmatpush1.bf16.msra.mxu0 %v6077
        %6098 = vmatprep.subr.bf16.mxu0 0
        %6099 = vmatpush1.bf16.msra.mxu0 %v6065
        %6100 = vmatprep.subr.bf16.mxu0 0
        %6101 = vmatpush1.bf16.msra.mxu0 %v6067
        %6102 = vmatprep.subr.bf16.mxu0 0
        %6103 = vmatpush1.bf16.msra.mxu0 %v6069
        %6104 = vmatprep.subr.bf16.mxu0 0
        %6105 = vmatpush1.bf16.msra.mxu0 %v6071
        %6106 = vmatprep.subr.bf16.mxu0 0
        %6107 = vmatpush1.bf16.msra.mxu0 %v6073
        %6108 = vmatprep.subr.bf16.mxu0 0
        %6109 = vmatpush1.bf16.msra.mxu0 0
        %6110 = vmatprep.subr.bf16.mxu0 0
        %6111 = vmatpush1.bf16.msra.mxu0 0
        %6112 = vmatprep.subr.bf16.mxu0 0
        %6113 = vmatpush1.bf16.msra.mxu0 0
        %6114 = vmatprep.subr.bf16.mxu0 0
        %6115 = vmatpush1.bf16.msra.mxu0 0
        %6116 = vmatprep.subr.bf16.mxu0 0
        %6117 = vmatpush1.bf16.msra.mxu0 0
        %6118 = vmatprep.subr.bf16.mxu0 0
        %6119 = vmatpush1.bf16.msra.mxu0 0
        %6120 = vmatprep.subr.bf16.mxu0 0
        %6121 = vmatpush1.bf16.msra.mxu0 0
        %6122 = vmatprep.mubr.bf16.mxu0 %v6088
        %6123 = vmatmul.mubr.bf16.gmra.mrb[0].mxu0 %v6032
        %v6124 = vpop.f32.mrb[0].mxu0
        %v6125 = vadd.f32 %v6027, %v6124
        %v6126 = vpop.f32.mrb[0].mxu0
        %v6127 = vpop.f32.mrb[0].mxu0
        %v6128 = vpop.f32.mrb[0].mxu0
        %6129 = vdwg.mxu0
        %v6130 = vld [vmem:[%s22] sm:$0x1]
        %v6132 = vlaneseq
        %v6133 = vshrl.u32 %v6132, 7
        %v6134 = vsub.s32 0, %v6133
        %v6135 = vrot.slane %v6130, %v6134
        %v6137 = vmul.f32 %v6125, %v6135
        %s6138 = sld [smem:[#allocation16 + $0x4]]
        %v6139 = vld [vmem:[#allocation7] sm:$0xff]
        %v6140 = vadd.f32 %v6139, %v6137
        %v6141 = vstv %s6138
        %vm6142 = vcmp.ge.f32.partialorder %v6140, %v6141
        %v6143 = vsel %vm6142, %v6141, 0.0
        %v6144 = vsub.f32 %v6140, %v6143
        %6145 = vst.msk [vmem:[#allocation7] sm:$0xff] %vm1553, %v6144
        %v6146 = vld [vmem:[%s23] sm:$0xf]
        %v6147 = vld [vmem:[%s23 + $0x4] sm:$0xf]
        %v6148 = vld [vmem:[%s23 + $0x8] sm:$0xf]
        %v6149 = vld [vmem:[%s23 + $0xc] sm:$0xf]
        %v6150 = vld [vmem:[%s23 + $0x10] sm:$0xf]
        %v6151 = vld [vmem:[%s23 + $0x14] sm:$0xf]
        %v6152 = vld [vmem:[%s23 + $0x18] sm:$0xf]
        %v6153 = vld [vmem:[%s23 + $0x1c] sm:$0xf]
        %v6154 = vld [vmem:[%s23 + $0x20] sm:$0xf]
        %v6155 = vld [vmem:[%s23 + $0x24] sm:$0xf]
        %v6156 = vld [vmem:[%s23 + $0x28] sm:$0xf]
        %v6157 = vld [vmem:[%s23 + $0x2c] sm:$0xf]
        %v6158 = vld [vmem:[%s23 + $0x30] sm:$0xf]
        %v6159 = vld [vmem:[%s23 + $0x34] sm:$0xf]
        %v6160 = vld [vmem:[%s23 + $0x38] sm:$0xf]
        %v6161 = vld [vmem:[%s23 + $0x3c] sm:$0xf]
        %v6162 = vpack.c.bf16 %v6143, %v6143
        %v6179 = vunpack.c.l.b16 %v6146
        %v6180 = vunpack.c.l.b16 %v6147
        %v6181 = vunpack.c.l.b16 %v6148
        %v6182 = vunpack.c.l.b16 %v6149
        %v6183 = vunpack.c.l.b16 %v6150
        %v6184 = vunpack.c.l.b16 %v6151
        %v6185 = vunpack.c.l.b16 %v6152
        %v6186 = vunpack.c.l.b16 %v6153
        %v6187 = vunpack.c.l.b16 %v6154
        %v6188 = vunpack.c.l.b16 %v6155
        %v6189 = vunpack.c.l.b16 %v6156
        %v6190 = vunpack.c.l.b16 %v6157
        %v6191 = vunpack.c.l.b16 %v6158
        %v6192 = vunpack.c.l.b16 %v6159
        %v6193 = vunpack.c.l.b16 %v6160
        %v6194 = vunpack.c.l.b16 %v6161
        %v6195 = vpack.c.b16 %v6180, %v6179
        %v6196 = vpack.c.b16 %v6182, %v6181
        %v6197 = vpack.c.b16 %v6184, %v6183
        %v6198 = vpack.c.b16 %v6186, %v6185
        %v6199 = vpack.c.b16 %v6188, %v6187
        %v6200 = vpack.c.b16 %v6190, %v6189
        %v6201 = vpack.c.b16 %v6192, %v6191
        %v6202 = vpack.c.b16 %v6194, %v6193
        %v6204 = vsel %vm1159, %v6195, 0
        %v6207 = vsel %vm1159, %v6196, 0
        %v6210 = vsel %vm1159, %v6197, 0
        %v6213 = vsel %vm1159, %v6198, 0
        %v6216 = vsel %vm1159, %v6199, 0
        %v6219 = vsel %vm1159, %v6200, 0
        %v6222 = vsel %vm1159, %v6201, 0
        %v6225 = vsel %vm1159, %v6202, 0
        %v6228 = vsel %vm1557, %v6162, 0
        %6230 = vmatprep.subr.bf16.mxu0 0
        %6231 = vmatpush1.bf16.msra.mxu0 %v6228
        %6232 = vmatprep.subr.bf16.mxu0 0
        %6233 = vmatpush1.bf16.msra.mxu0 0
        %6234 = vmatprep.subr.bf16.mxu0 0
        %6235 = vmatpush1.bf16.msra.mxu0 0
        %6236 = vmatprep.subr.bf16.mxu0 0
        %6237 = vmatpush1.bf16.msra.mxu0 0
        %6238 = vmatprep.subr.bf16.mxu0 0
        %6239 = vmatpush1.bf16.msra.mxu0 0
        %6240 = vmatprep.subr.bf16.mxu0 0
        %6241 = vmatpush1.bf16.msra.mxu0 0
        %6242 = vmatprep.subr.bf16.mxu0 0
        %6243 = vmatpush1.bf16.msra.mxu0 0
        %6244 = vmatprep.subr.bf16.mxu0 0
        %6245 = vmatpush1.bf16.msra.mxu0 0
        %6246 = vmatprep.subr.bf16.mxu0 0
        %6247 = vmatpush1.bf16.msra.mxu0 0
        %6248 = vmatprep.subr.bf16.mxu0 0
        %6249 = vmatpush1.bf16.msra.mxu0 0
        %6250 = vmatprep.subr.bf16.mxu0 0
        %6251 = vmatpush1.bf16.msra.mxu0 0
        %6252 = vmatprep.subr.bf16.mxu0 0
        %6253 = vmatpush1.bf16.msra.mxu0 0
        %6254 = vmatprep.subr.bf16.mxu0 0
        %6255 = vmatpush1.bf16.msra.mxu0 0
        %6256 = vmatprep.subr.bf16.mxu0 0
        %6257 = vmatpush1.bf16.msra.mxu0 0
        %6258 = vmatprep.subr.bf16.mxu0 0
        %6259 = vmatpush1.bf16.msra.mxu0 0
        %6260 = vmatprep.subr.bf16.mxu0 0
        %6261 = vmatpush1.bf16.msra.mxu0 0
        %6262 = vmatprep.mubr.bf16.mxu0 0
        %6263 = vmatmul.mubr.bf16.gmra.mrb[0].mxu0 %v6204
        %v6264 = vpop.f32.mrb[0].mxu0
        %v6265 = vadd.f32 0.0, %v6264
        %v6266 = vpop.f32.mrb[0].mxu0
        %v6267 = vpop.f32.mrb[0].mxu0
        %v6268 = vadd.f32 0.0, %v6267
        %v6269 = vpop.f32.mrb[0].mxu0
        %6270 = vmatprep.mubr.bf16.mxu0 0
        %6271 = vmatmul.mubr.bf16.gmra.mrb[0].mxu0 %v6207
        %v6272 = vpop.f32.mrb[0].mxu0
        %v6273 = vadd.f32 0.0, %v6272
        %v6274 = vpop.f32.mrb[0].mxu0
        %v6275 = vpop.f32.mrb[0].mxu0
        %v6276 = vadd.f32 0.0, %v6275
        %v6277 = vpop.f32.mrb[0].mxu0
        %6278 = vmatprep.mubr.bf16.mxu0 0
        %6279 = vmatmul.mubr.bf16.gmra.mrb[0].mxu0 %v6210
        %v6280 = vpop.f32.mrb[0].mxu0
        %v6281 = vadd.f32 0.0, %v6280
        %v6282 = vpop.f32.mrb[0].mxu0
        %v6283 = vpop.f32.mrb[0].mxu0
        %v6284 = vadd.f32 0.0, %v6283
        %v6285 = vpop.f32.mrb[0].mxu0
        %6286 = vmatprep.mubr.bf16.mxu0 0
        %6287 = vmatmul.mubr.bf16.gmra.mrb[0].mxu0 %v6213
        %v6288 = vpop.f32.mrb[0].mxu0
        %v6289 = vadd.f32 0.0, %v6288
        %v6290 = vpop.f32.mrb[0].mxu0
        %v6291 = vpop.f32.mrb[0].mxu0
        %v6292 = vadd.f32 0.0, %v6291
        %v6293 = vpop.f32.mrb[0].mxu0
        %6294 = vmatprep.mubr.bf16.mxu0 0
        %6295 = vmatmul.mubr.bf16.gmra.mrb[0].mxu0 %v6216
        %v6296 = vpop.f32.mrb[0].mxu0
        %v6297 = vadd.f32 0.0, %v6296
        %v6298 = vpop.f32.mrb[0].mxu0
        %v6299 = vpop.f32.mrb[0].mxu0
        %v6300 = vadd.f32 0.0, %v6299
        %v6301 = vpop.f32.mrb[0].mxu0
        %6302 = vmatprep.mubr.bf16.mxu0 0
        %6303 = vmatmul.mubr.bf16.gmra.mrb[0].mxu0 %v6219
        %v6304 = vpop.f32.mrb[0].mxu0
        %v6305 = vadd.f32 0.0, %v6304
        %v6306 = vpop.f32.mrb[0].mxu0
        %v6307 = vpop.f32.mrb[0].mxu0
        %v6308 = vadd.f32 0.0, %v6307
        %v6309 = vpop.f32.mrb[0].mxu0
        %6310 = vmatprep.mubr.bf16.mxu0 0
        %6311 = vmatmul.mubr.bf16.gmra.mrb[0].mxu0 %v6222
        %v6312 = vpop.f32.mrb[0].mxu0
        %v6313 = vadd.f32 0.0, %v6312
        %v6314 = vpop.f32.mrb[0].mxu0
        %v6315 = vpop.f32.mrb[0].mxu0
        %v6316 = vadd.f32 0.0, %v6315
        %v6317 = vpop.f32.mrb[0].mxu0
        %6318 = vmatprep.mubr.bf16.mxu0 0
        %6319 = vmatmul.mubr.bf16.gmra.mrb[0].mxu0 %v6225
        %v6320 = vpop.f32.mrb[0].mxu0
        %v6321 = vadd.f32 0.0, %v6320
        %v6322 = vpop.f32.mrb[0].mxu0
        %v6323 = vpop.f32.mrb[0].mxu0
        %v6324 = vadd.f32 0.0, %v6323
        %v6325 = vpop.f32.mrb[0].mxu0
        %6326 = vdwg.mxu0
        %v6327 = vld [vmem:[%s24] sm:$0xff]
        %v6328 = vld [vmem:[%s24 + $0x8] sm:$0xff]
        %v6329 = vld [vmem:[%s24 + $0x10] sm:$0xff]
        %v6330 = vld [vmem:[%s24 + $0x18] sm:$0xff]
        %v6331 = vld [vmem:[%s24 + $0x20] sm:$0xff]
        %v6332 = vld [vmem:[%s24 + $0x28] sm:$0xff]
        %v6333 = vld [vmem:[%s24 + $0x30] sm:$0xff]
        %v6334 = vld [vmem:[%s24 + $0x38] sm:$0xff]
        %v6335 = vld [vmem:[%s24 + $0x40] sm:$0xff]
        %v6336 = vld [vmem:[%s24 + $0x48] sm:$0xff]
        %v6337 = vld [vmem:[%s24 + $0x50] sm:$0xff]
        %v6338 = vld [vmem:[%s24 + $0x58] sm:$0xff]
        %v6339 = vld [vmem:[%s24 + $0x60] sm:$0xff]
        %v6340 = vld [vmem:[%s24 + $0x68] sm:$0xff]
        %v6341 = vld [vmem:[%s24 + $0x70] sm:$0xff]
        %v6342 = vld [vmem:[%s24 + $0x78] sm:$0xff]
        %v6343 = vmul.f32 %v6265, %v6327
        %v6344 = vmul.f32 %v6268, %v6328
        %v6345 = vmul.f32 %v6273, %v6329
        %v6346 = vmul.f32 %v6276, %v6330
        %v6347 = vmul.f32 %v6281, %v6331
        %v6348 = vmul.f32 %v6284, %v6332
        %v6349 = vmul.f32 %v6289, %v6333
        %v6350 = vmul.f32 %v6292, %v6334
        %v6351 = vmul.f32 %v6297, %v6335
        %v6352 = vmul.f32 %v6300, %v6336
        %v6353 = vmul.f32 %v6305, %v6337
        %v6354 = vmul.f32 %v6308, %v6338
        %v6355 = vmul.f32 %v6313, %v6339
        %v6356 = vmul.f32 %v6316, %v6340
        %v6357 = vmul.f32 %v6321, %v6341
        %v6358 = vmul.f32 %v6324, %v6342
        %v6359 = vpack.c.bf16 %v6344, %v6343
        %v6360 = vpack.c.bf16 %v6346, %v6345
        %v6361 = vpack.c.bf16 %v6348, %v6347
        %v6362 = vpack.c.bf16 %v6350, %v6349
        %v6363 = vpack.c.bf16 %v6352, %v6351
        %v6364 = vpack.c.bf16 %v6354, %v6353
        %v6365 = vpack.c.bf16 %v6356, %v6355
        %v6366 = vpack.c.bf16 %v6358, %v6357
        %v6367 = vld [vmem:[%s25] sm:$0xf]
        %v6368 = vld [vmem:[%s25 + $0x4] sm:$0xf]
        %v6369 = vld [vmem:[%s25 + $0x8] sm:$0xf]
        %v6370 = vld [vmem:[%s25 + $0xc] sm:$0xf]
        %v6371 = vld [vmem:[%s25 + $0x10] sm:$0xf]
        %v6372 = vld [vmem:[%s25 + $0x14] sm:$0xf]
        %v6373 = vld [vmem:[%s25 + $0x18] sm:$0xf]
        %v6374 = vld [vmem:[%s25 + $0x1c] sm:$0xf]
        %v6375 = vld [vmem:[%s25 + $0x20] sm:$0xf]
        %v6385 = vunpack.c.l.b16 %v6367
        %v6386 = vunpack.c.l.b16 %v6368
        %v6387 = vunpack.c.l.b16 %v6369
        %v6388 = vunpack.c.l.b16 %v6370
        %v6389 = vunpack.c.l.b16 %v6371
        %v6390 = vunpack.c.l.b16 %v6372
        %v6391 = vunpack.c.l.b16 %v6373
        %v6392 = vunpack.c.l.b16 %v6374
        %v6393 = vunpack.c.l.b16 %v6375
        %v6394 = vpack.c.b16 %v6386, %v6385
        %v6395 = vpack.c.b16 %v6388, %v6387
        %v6396 = vpack.c.b16 %v6390, %v6389
        %v6397 = vpack.c.b16 %v6392, %v6391
        %v6398 = vpack.c.b16 %v6393, %v6393
        %v6404 = vsel %vm1553, %v6359, 0
        %v6407 = vsel %vm1553, %v6360, 0
        %v6410 = vsel %vm1553, %v6361, 0
        %v6413 = vsel %vm1553, %v6362, 0
        %v6416 = vsel %vm1553, %v6363, 0
        %v6419 = vsel %vm1553, %v6364, 0
        %v6422 = vsel %vm1553, %v6365, 0
        %v6425 = vsel %vm1553, %v6366, 0
        %v6428 = vsel %vm1557, %v6398, 0
        %6430 = vmatprep.subr.bf16.mxu0 0
        %6431 = vmatpush1.bf16.msra.mxu0 %v6394
        %6432 = vmatprep.subr.bf16.mxu0 0
        %6433 = vmatpush1.bf16.msra.mxu0 %v6395
        %6434 = vmatprep.subr.bf16.mxu0 0
        %6435 = vmatpush1.bf16.msra.mxu0 %v6396
        %6436 = vmatprep.subr.bf16.mxu0 0
        %6437 = vmatpush1.bf16.msra.mxu0 %v6397
        %6438 = vmatprep.subr.bf16.mxu0 0
        %6439 = vmatpush1.bf16.msra.mxu0 %v6428
        %6440 = vmatprep.subr.bf16.mxu0 0
        %6441 = vmatpush1.bf16.msra.mxu0 0
        %6442 = vmatprep.subr.bf16.mxu0 0
        %6443 = vmatpush1.bf16.msra.mxu0 0
        %6444 = vmatprep.subr.bf16.mxu0 0
        %6445 = vmatpush1.bf16.msra.mxu0 0
        %6446 = vmatprep.subr.bf16.mxu0 0
        %6447 = vmatpush1.bf16.msra.mxu0 0
        %6448 = vmatprep.subr.bf16.mxu0 0
        %6449 = vmatpush1.bf16.msra.mxu0 0
        %6450 = vmatprep.subr.bf16.mxu0 0
        %6451 = vmatpush1.bf16.msra.mxu0 0
        %6452 = vmatprep.subr.bf16.mxu0 0
        %6453 = vmatpush1.bf16.msra.mxu0 0
        %6454 = vmatprep.subr.bf16.mxu0 0
        %6455 = vmatpush1.bf16.msra.mxu0 0
        %6456 = vmatprep.subr.bf16.mxu0 0
        %6457 = vmatpush1.bf16.msra.mxu0 0
        %6458 = vmatprep.subr.bf16.mxu0 0
        %6459 = vmatpush1.bf16.msra.mxu0 0
        %6460 = vmatprep.subr.bf16.mxu0 0
        %6461 = vmatpush1.bf16.msra.mxu0 0
        %6462 = vmatprep.mubr.bf16.mxu0 0
        %6463 = vmatmul.mubr.bf16.gmra.mrb[0].mxu0 %v6404
        %v6464 = vpop.f32.mrb[0].mxu0
        %v6465 = vadd.f32 0.0, %v6464
        %v6466 = vpop.f32.mrb[0].mxu0
        %v6467 = vpop.f32.mrb[0].mxu0
        %v6468 = vadd.f32 0.0, %v6467
        %v6469 = vpop.f32.mrb[0].mxu0
        %6470 = vmatprep.mubr.bf16.mxu0 0
        %6471 = vmatmul.mubr.bf16.gmra.mrb[0].mxu0 %v6407
        %v6472 = vpop.f32.mrb[0].mxu0
        %v6473 = vadd.f32 0.0, %v6472
        %v6474 = vpop.f32.mrb[0].mxu0
        %v6475 = vpop.f32.mrb[0].mxu0
        %v6476 = vadd.f32 0.0, %v6475
        %v6477 = vpop.f32.mrb[0].mxu0
        %6478 = vmatprep.mubr.bf16.mxu0 0
        %6479 = vmatmul.mubr.bf16.gmra.mrb[0].mxu0 %v6410
        %v6480 = vpop.f32.mrb[0].mxu0
        %v6481 = vadd.f32 0.0, %v6480
        %v6482 = vpop.f32.mrb[0].mxu0
        %v6483 = vpop.f32.mrb[0].mxu0
        %v6484 = vadd.f32 0.0, %v6483
        %v6485 = vpop.f32.mrb[0].mxu0
        %6486 = vmatprep.mubr.bf16.mxu0 0
        %6487 = vmatmul.mubr.bf16.gmra.mrb[0].mxu0 %v6413
        %v6488 = vpop.f32.mrb[0].mxu0
        %v6489 = vadd.f32 0.0, %v6488
        %v6490 = vpop.f32.mrb[0].mxu0
        %v6491 = vpop.f32.mrb[0].mxu0
        %v6492 = vadd.f32 0.0, %v6491
        %v6493 = vpop.f32.mrb[0].mxu0
        %6494 = vmatprep.mubr.bf16.mxu0 0
        %6495 = vmatmul.mubr.bf16.gmra.mrb[0].mxu0 %v6416
        %v6496 = vpop.f32.mrb[0].mxu0
        %v6497 = vadd.f32 0.0, %v6496
        %v6498 = vpop.f32.mrb[0].mxu0
        %v6499 = vpop.f32.mrb[0].mxu0
        %v6500 = vadd.f32 0.0, %v6499
        %v6501 = vpop.f32.mrb[0].mxu0
        %6502 = vmatprep.mubr.bf16.mxu0 0
        %6503 = vmatmul.mubr.bf16.gmra.mrb[0].mxu0 %v6419
        %v6504 = vpop.f32.mrb[0].mxu0
        %v6505 = vadd.f32 0.0, %v6504
        %v6506 = vpop.f32.mrb[0].mxu0
        %v6507 = vpop.f32.mrb[0].mxu0
        %v6508 = vadd.f32 0.0, %v6507
        %v6509 = vpop.f32.mrb[0].mxu0
        %6510 = vmatprep.mubr.bf16.mxu0 0
        %6511 = vmatmul.mubr.bf16.gmra.mrb[0].mxu0 %v6422
        %v6512 = vpop.f32.mrb[0].mxu0
        %v6513 = vadd.f32 0.0, %v6512
        %v6514 = vpop.f32.mrb[0].mxu0
        %v6515 = vpop.f32.mrb[0].mxu0
        %v6516 = vadd.f32 0.0, %v6515
        %v6517 = vpop.f32.mrb[0].mxu0
        %6518 = vmatprep.mubr.bf16.mxu0 0
        %6519 = vmatmul.mubr.bf16.gmra.mrb[0].mxu0 %v6425
        %v6520 = vpop.f32.mrb[0].mxu0
        %v6521 = vadd.f32 0.0, %v6520
        %v6522 = vpop.f32.mrb[0].mxu0
        %v6523 = vpop.f32.mrb[0].mxu0
        %v6524 = vadd.f32 0.0, %v6523
        %v6525 = vpop.f32.mrb[0].mxu0
        %6526 = vdwg.mxu0
        %v6527 = vld [vmem:[%s12] sm:$0xf]
        %v6528 = vld [vmem:[%s12 + $0x4] sm:$0xf]
        %v6529 = vld [vmem:[%s12 + $0x8] sm:$0xf]
        %v6530 = vld [vmem:[%s12 + $0xc] sm:$0xf]
        %v6531 = vpack.c.bf16 %v6468, %v6465
        %v6532 = vpack.c.bf16 %v6476, %v6473
        %v6533 = vpack.c.bf16 %v6484, %v6481
        %v6534 = vpack.c.bf16 %v6492, %v6489
        %v6535 = vpack.c.bf16 %v6500, %v6497
        %v6536 = vpack.c.bf16 %v6508, %v6505
        %v6537 = vpack.c.bf16 %v6516, %v6513
        %v6538 = vpack.c.bf16 %v6524, %v6521
        %v6539 = vld [vmem:[%s13] sm:$0xff]
        %v6540 = vld [vmem:[%s13 + $0x8] sm:$0xff]
        %v6541 = vld [vmem:[%s13 + $0x10] sm:$0xff]
        %v6542 = vld [vmem:[%s13 + $0x18] sm:$0xff]
        %6544 = vset.pattern.permute.xlu0 0
        %6545 = vperm.xlu0 %6544, %v6539
        %v6546 = vpop.permute.xlu0 %6545
        %6549 = vset.pattern.permute.xlu0 0
        %6550 = vperm.xlu0 %6549, %v6540
        %v6551 = vpop.permute.xlu0 %6550
        %6554 = vset.pattern.permute.xlu0 0
        %6555 = vperm.xlu0 %6554, %v6541
        %v6556 = vpop.permute.xlu0 %6555
        %6559 = vset.pattern.permute.xlu0 0
        %6560 = vperm.xlu0 %6559, %v6542
        %v6561 = vpop.permute.xlu0 %6560
        %v6567 = vunpack.c.l.b16 %v6527
        %v6568 = vunpack.c.l.b16 %v6528
        %v6569 = vunpack.c.l.b16 %v6529
        %v6570 = vunpack.c.l.b16 %v6530
        %v6571 = vpack.c.b16 %v6568, %v6567
        %v6572 = vpack.c.b16 %v6570, %v6569
        %6575 = vmatprep.subr.bf16.mxu0 0
        %6576 = vmatpush1.bf16.msra.mxu0 %v6531
        %6577 = vmatprep.subr.bf16.mxu0 0
        %6578 = vmatpush1.bf16.msra.mxu0 %v6532
        %6579 = vmatprep.subr.bf16.mxu0 0
        %6580 = vmatpush1.bf16.msra.mxu0 %v6533
        %6581 = vmatprep.subr.bf16.mxu0 0
        %6582 = vmatpush1.bf16.msra.mxu0 %v6534
        %6583 = vmatprep.subr.bf16.mxu0 0
        %6584 = vmatpush1.bf16.msra.mxu0 %v6535
        %6585 = vmatprep.subr.bf16.mxu0 0
        %6586 = vmatpush1.bf16.msra.mxu0 %v6536
        %6587 = vmatprep.subr.bf16.mxu0 0
        %6588 = vmatpush1.bf16.msra.mxu0 %v6537
        %6589 = vmatprep.subr.bf16.mxu0 0
        %6590 = vmatpush1.bf16.msra.mxu0 %v6538
        %6591 = vmatprep.subr.bf16.mxu0 0
        %6592 = vmatpush1.bf16.msra.mxu0 0
        %6593 = vmatprep.subr.bf16.mxu0 0
        %6594 = vmatpush1.bf16.msra.mxu0 0
        %6595 = vmatprep.subr.bf16.mxu0 0
        %6596 = vmatpush1.bf16.msra.mxu0 0
        %6597 = vmatprep.subr.bf16.mxu0 0
        %6598 = vmatpush1.bf16.msra.mxu0 0
        %6599 = vmatprep.subr.bf16.mxu0 0
        %6600 = vmatpush1.bf16.msra.mxu0 0
        %6601 = vmatprep.subr.bf16.mxu0 0
        %6602 = vmatpush1.bf16.msra.mxu0 0
        %6603 = vmatprep.subr.bf16.mxu0 0
        %6604 = vmatpush1.bf16.msra.mxu0 0
        %6605 = vmatprep.subr.bf16.mxu0 0
        %6606 = vmatpush1.bf16.msra.mxu0 0
        %6607 = vmatprep.mubr.bf16.mxu0 0
        %6608 = vmatmul.mubr.bf16.gmra.mrb[0].mxu0 %v6571
        %v6609 = vpop.f32.mrb[0].mxu0
        %v6610 = vadd.f32 %v6546, %v6609
        %v6611 = vpop.f32.mrb[0].mxu0
        %v6612 = vpop.f32.mrb[0].mxu0
        %v6613 = vadd.f32 %v6551, %v6612
        %v6614 = vpop.f32.mrb[0].mxu0
        %6615 = vmatprep.mubr.bf16.mxu0 0
        %6616 = vmatmul.mubr.bf16.gmra.mrb[0].mxu0 %v6572
        %v6617 = vpop.f32.mrb[0].mxu0
        %v6618 = vadd.f32 %v6556, %v6617
        %v6619 = vpop.f32.mrb[0].mxu0
        %v6620 = vpop.f32.mrb[0].mxu0
        %v6621 = vadd.f32 %v6561, %v6620
        %v6622 = vpop.f32.mrb[0].mxu0
        %6623 = vdwg.mxu0
        %s6624 = sld [smem:[#allocation16 + $0x5]]
        %v6625 = vld [vmem:[#allocation8] sm:$0xff]
        %v6626 = vld [vmem:[#allocation8 + $0x8] sm:$0xff]
        %v6627 = vld [vmem:[#allocation8 + $0x10] sm:$0xff]
        %v6628 = vld [vmem:[#allocation8 + $0x18] sm:$0xff]
        %v6629 = vadd.f32 %v6625, %v6610
        %v6630 = vadd.f32 %v6626, %v6613
        %v6631 = vadd.f32 %v6627, %v6618
        %v6632 = vadd.f32 %v6628, %v6621
        %v6633 = vstv %s6624
        %vm6634 = vcmp.ge.f32.partialorder %v6629, %v6633
        %vm6635 = vcmp.ge.f32.partialorder %v6630, %v6633
        %vm6636 = vcmp.ge.f32.partialorder %v6631, %v6633
        %vm6637 = vcmp.ge.f32.partialorder %v6632, %v6633
        %v6638 = vsel %vm6634, %v6633, 0.0
        %v6639 = vsel %vm6635, %v6633, 0.0
        %v6640 = vsel %vm6636, %v6633, 0.0
        %v6641 = vsel %vm6637, %v6633, 0.0
        %v6642 = vsub.f32 %v6629, %v6638
        %v6643 = vsub.f32 %v6630, %v6639
        %v6644 = vsub.f32 %v6631, %v6640
        %v6645 = vsub.f32 %v6632, %v6641
        %6646 = vst.msk [vmem:[#allocation8] sm:$0xff] %vm3785, %v6642
        %6647 = vst.msk [vmem:[#allocation8 + $0x8] sm:$0xff] %vm3785, %v6643
        %6648 = vst.msk [vmem:[#allocation8 + $0x10] sm:$0xff] %vm3785, %v6644
        %6649 = vst.msk [vmem:[#allocation8 + $0x18] sm:$0xff] %vm3785, %v6645
        %v6650 = vld [vmem:[%s14] sm:$0xf]
        %v6651 = vld [vmem:[%s14 + $0x4] sm:$0xf]
        %v6652 = vld [vmem:[%s14 + $0x8] sm:$0xf]
        %v6653 = vld [vmem:[%s14 + $0xc] sm:$0xf]
        %v6654 = vpack.c.bf16 %v6639, %v6638
        %v6655 = vpack.c.bf16 %v6641, %v6640
        %v6656 = vld [vmem:[%s15] sm:$0xff]
        %v6657 = vld [vmem:[%s15 + $0x8] sm:$0xff]
        %v6658 = vld [vmem:[%s15 + $0x10] sm:$0xff]
        %v6659 = vld [vmem:[%s15 + $0x18] sm:$0xff]
        %6661 = vset.pattern.permute.xlu0 0
        %6662 = vperm.xlu0 %6661, %v6656
        %v6663 = vpop.permute.xlu0 %6662
        %6666 = vset.pattern.permute.xlu0 0
        %6667 = vperm.xlu0 %6666, %v6657
        %v6668 = vpop.permute.xlu0 %6667
        %6671 = vset.pattern.permute.xlu0 0
        %6672 = vperm.xlu0 %6671, %v6658
        %v6673 = vpop.permute.xlu0 %6672
        %6676 = vset.pattern.permute.xlu0 0
        %6677 = vperm.xlu0 %6676, %v6659
        %v6678 = vpop.permute.xlu0 %6677
        %v6684 = vunpack.c.l.b16 %v6650
        %v6685 = vunpack.c.l.b16 %v6651
        %v6686 = vunpack.c.l.b16 %v6652
        %v6687 = vunpack.c.l.b16 %v6653
        %v6688 = vpack.c.b16 %v6685, %v6684
        %v6689 = vpack.c.b16 %v6687, %v6686
        %v6691 = vsel %vm3830, %v6688, 0
        %v6694 = vsel %vm3830, %v6689, 0
        %6696 = vmatprep.subr.bf16.mxu0 0
        %6697 = vmatpush1.bf16.msra.mxu0 %v6654
        %6698 = vmatprep.subr.bf16.mxu0 0
        %6699 = vmatpush1.bf16.msra.mxu0 %v6655
        %6700 = vmatprep.subr.bf16.mxu0 0
        %6701 = vmatpush1.bf16.msra.mxu0 0
        %6702 = vmatprep.subr.bf16.mxu0 0
        %6703 = vmatpush1.bf16.msra.mxu0 0
        %6704 = vmatprep.subr.bf16.mxu0 0
        %6705 = vmatpush1.bf16.msra.mxu0 0
        %6706 = vmatprep.subr.bf16.mxu0 0
        %6707 = vmatpush1.bf16.msra.mxu0 0
        %6708 = vmatprep.subr.bf16.mxu0 0
        %6709 = vmatpush1.bf16.msra.mxu0 0
        %6710 = vmatprep.subr.bf16.mxu0 0
        %6711 = vmatpush1.bf16.msra.mxu0 0
        %6712 = vmatprep.subr.bf16.mxu0 0
        %6713 = vmatpush1.bf16.msra.mxu0 0
        %6714 = vmatprep.subr.bf16.mxu0 0
        %6715 = vmatpush1.bf16.msra.mxu0 0
        %6716 = vmatprep.subr.bf16.mxu0 0
        %6717 = vmatpush1.bf16.msra.mxu0 0
        %6718 = vmatprep.subr.bf16.mxu0 0
        %6719 = vmatpush1.bf16.msra.mxu0 0
        %6720 = vmatprep.subr.bf16.mxu0 0
        %6721 = vmatpush1.bf16.msra.mxu0 0
        %6722 = vmatprep.subr.bf16.mxu0 0
        %6723 = vmatpush1.bf16.msra.mxu0 0
        %6724 = vmatprep.subr.bf16.mxu0 0
        %6725 = vmatpush1.bf16.msra.mxu0 0
        %6726 = vmatprep.subr.bf16.mxu0 0
        %6727 = vmatpush1.bf16.msra.mxu0 0
        %6728 = vmatprep.mubr.bf16.mxu0 0
        %6729 = vmatmul.mubr.bf16.gmra.mrb[0].mxu0 %v6691
        %v6730 = vpop.f32.mrb[0].mxu0
        %v6731 = vadd.f32 %v6663, %v6730
        %v6732 = vpop.f32.mrb[0].mxu0
        %v6733 = vpop.f32.mrb[0].mxu0
        %v6734 = vadd.f32 %v6668, %v6733
        %v6735 = vpop.f32.mrb[0].mxu0
        %6736 = vmatprep.mubr.bf16.mxu0 0
        %6737 = vmatmul.mubr.bf16.gmra.mrb[0].mxu0 %v6694
        %v6738 = vpop.f32.mrb[0].mxu0
        %v6739 = vadd.f32 %v6673, %v6738
        %v6740 = vpop.f32.mrb[0].mxu0
        %v6741 = vpop.f32.mrb[0].mxu0
        %v6742 = vadd.f32 %v6678, %v6741
        %v6743 = vpop.f32.mrb[0].mxu0
        %6744 = vdwg.mxu0
        %s6745 = sld [smem:[#allocation16 + $0x6]]
        %v6746 = vld [vmem:[#allocation9] sm:$0xff]
        %v6747 = vld [vmem:[#allocation9 + $0x8] sm:$0xff]
        %v6748 = vld [vmem:[#allocation9 + $0x10] sm:$0xff]
        %v6749 = vld [vmem:[#allocation9 + $0x18] sm:$0xff]
        %v6750 = vadd.f32 %v6746, %v6731
        %v6751 = vadd.f32 %v6747, %v6734
        %v6752 = vadd.f32 %v6748, %v6739
        %v6753 = vadd.f32 %v6749, %v6742
        %v6754 = vstv %s6745
        %vm6755 = vcmp.ge.f32.partialorder %v6750, %v6754
        %vm6756 = vcmp.ge.f32.partialorder %v6751, %v6754
        %vm6757 = vcmp.ge.f32.partialorder %v6752, %v6754
        %vm6758 = vcmp.ge.f32.partialorder %v6753, %v6754
        %v6759 = vsel %vm6755, %v6754, 0.0
        %v6760 = vsel %vm6756, %v6754, 0.0
        %v6761 = vsel %vm6757, %v6754, 0.0
        %v6762 = vsel %vm6758, %v6754, 0.0
        %v6763 = vsub.f32 %v6750, %v6759
        %v6764 = vsub.f32 %v6751, %v6760
        %v6765 = vsub.f32 %v6752, %v6761
        %v6766 = vsub.f32 %v6753, %v6762
        %6767 = vst.msk [vmem:[#allocation9] sm:$0xff] %vm3785, %v6763
        %6768 = vst.msk [vmem:[#allocation9 + $0x8] sm:$0xff] %vm3785, %v6764
        %6769 = vst.msk [vmem:[#allocation9 + $0x10] sm:$0xff] %vm3785, %v6765
        %6770 = vst.msk [vmem:[#allocation9 + $0x18] sm:$0xff] %vm3785, %v6766
        %v6771 = vld [vmem:[%s16] sm:$0xf]
        %v6772 = vld [vmem:[%s16 + $0x4] sm:$0x1]
        %v6773 = vpack.c.bf16 %v6760, %v6759
        %v6774 = vpack.c.bf16 %v6762, %v6761
        %v6775 = vld [vmem:[%s17] sm:$0xff]
        %v6776 = vld [vmem:[%s17 + $0x8] sm:$0x3]
        %6778 = vset.pattern.permute.xlu0 0
        %6779 = vperm.xlu0 %6778, %v6775
        %v6780 = vpop.permute.xlu0 %6779
        %6783 = vset.pattern.permute.xlu0 0
        %6784 = vperm.xlu0 %6783, %v6776
        %v6785 = vpop.permute.xlu0 %6784
        %v6789 = vunpack.c.l.b16 %v6771
        %v6790 = vunpack.c.l.b16 %v6772
        %v6791 = vpack.c.b16 %v6790, %v6789
        %v6793 = vsel %vm3830, %v6791, 0
        %6795 = vmatprep.subr.bf16.mxu0 0
        %6796 = vmatpush1.bf16.msra.mxu0 %v6773
        %6797 = vmatprep.subr.bf16.mxu0 0
        %6798 = vmatpush1.bf16.msra.mxu0 %v6774
        %6799 = vmatprep.subr.bf16.mxu0 0
        %6800 = vmatpush1.bf16.msra.mxu0 0
        %6801 = vmatprep.subr.bf16.mxu0 0
        %6802 = vmatpush1.bf16.msra.mxu0 0
        %6803 = vmatprep.subr.bf16.mxu0 0
        %6804 = vmatpush1.bf16.msra.mxu0 0
        %6805 = vmatprep.subr.bf16.mxu0 0
        %6806 = vmatpush1.bf16.msra.mxu0 0
        %6807 = vmatprep.subr.bf16.mxu0 0
        %6808 = vmatpush1.bf16.msra.mxu0 0
        %6809 = vmatprep.subr.bf16.mxu0 0
        %6810 = vmatpush1.bf16.msra.mxu0 0
        %6811 = vmatprep.subr.bf16.mxu0 0
        %6812 = vmatpush1.bf16.msra.mxu0 0
        %6813 = vmatprep.subr.bf16.mxu0 0
        %6814 = vmatpush1.bf16.msra.mxu0 0
        %6815 = vmatprep.subr.bf16.mxu0 0
        %6816 = vmatpush1.bf16.msra.mxu0 0
        %6817 = vmatprep.subr.bf16.mxu0 0
        %6818 = vmatpush1.bf16.msra.mxu0 0
        %6819 = vmatprep.subr.bf16.mxu0 0
        %6820 = vmatpush1.bf16.msra.mxu0 0
        %6821 = vmatprep.subr.bf16.mxu0 0
        %6822 = vmatpush1.bf16.msra.mxu0 0
        %6823 = vmatprep.subr.bf16.mxu0 0
        %6824 = vmatpush1.bf16.msra.mxu0 0
        %6825 = vmatprep.subr.bf16.mxu0 0
        %6826 = vmatpush1.bf16.msra.mxu0 0
        %6827 = vmatprep.mubr.bf16.mxu0 0
        %6828 = vmatmul.mubr.bf16.gmra.mrb[0].mxu0 %v6793
        %v6829 = vpop.f32.mrb[0].mxu0
        %v6830 = vadd.f32 %v6780, %v6829
        %v6831 = vpop.f32.mrb[0].mxu0
        %v6832 = vpop.f32.mrb[0].mxu0
        %v6833 = vadd.f32 %v6785, %v6832
        %v6834 = vpop.f32.mrb[0].mxu0
        %6835 = vdwg.mxu0
        %s6836 = sld [smem:[#allocation16 + $0x7]]
        %v6837 = vld [vmem:[#allocation10] sm:$0xff]
        %v6838 = vld [vmem:[#allocation10 + $0x8] sm:$0x3]
        %v6839 = vadd.f32 %v6837, %v6830
        %v6840 = vadd.f32 %v6838, %v6833
        %v6841 = vstv %s6836
        %vm6842 = vcmp.ge.f32.partialorder %v6839, %v6841
        %vm6843 = vcmp.ge.f32.partialorder %v6840, %v6841
        %v6844 = vsel %vm6842, %v6841, 0.0
        %v6845 = vsel %vm6843, %v6841, 0.0
        %v6846 = vsub.f32 %v6839, %v6844
        %v6847 = vsub.f32 %v6840, %v6845
        %6848 = vst.msk [vmem:[#allocation10] sm:$0xff] %vm3785, %v6846
        %6849 = vst.msk [vmem:[#allocation10 + $0x8] sm:$0x3] %vm3990, %v6847
        %v6850 = vld [vmem:[#allocation11] sm:$0xff]
        %v6851 = vld [vmem:[#allocation11 + $0x8] sm:$0x3]
        %v6852 = vadd.f32 %v6850, %v6844
        %v6853 = vadd.f32 %v6851, %v6845
        %6854 = vst.msk [vmem:[#allocation11] sm:$0xff] %vm3785, %v6852
        %6855 = vst.msk [vmem:[#allocation11 + $0x8] sm:$0x3] %vm3990, %v6853
        %s6856 = sadd.s32 %s38, 1
        %s6857 = smul.u32 %s6856, 2
        %s6858 = scvt.s32.f32 %s6857
        %v6859 = vld [vmem:[#allocation11] sm:$0xff]
        %v6860 = vld [vmem:[#allocation11 + $0x8] sm:$0x3]
        %v6861 = vstv %s6858
        %v6862 = vrcp.pop %v6861
        %v6863 = vmul.f32 %v6859, %v6862
        %v6864 = vmul.f32 %v6860, %v6862
        %6865 = vst.msk [vmem:[%s785] sm:$0xff] %vm3785, %v6863
        %6866 = vst.msk [vmem:[%s785 + $0x8] sm:$0x3] %vm3990, %v6864
        %p6867 = scmp.lt.s32.totalorder %s38, 1
        %s6868 = scalar_select %p6867, %s38, 1
        %s6869 = smul.addr %s6868, 2
        %s6870 = smul.addr %s6869, 8
        %s6871 = scalar_lea.vmem %s26, %s6870
        // Predicated region
        $region133: #{tpu_custom_call.1} parent=123 // pred_check
          %p6872 = pneg %p602
        $region134: #{tpu_custom_call.1} parent=123 // pred_check_branch
          %6874 = sbr.rel (%p6872) target = $region136
        $region135: #{tpu_custom_call.1} parent=123 // pred_region
          _
        $region136: #{tpu_custom_call.1} parent=123 // pred_fallthru
          _
      $region124: #{tpu_custom_call.1} parent=5 // pred_fallthru
        _
      %p6875 = scmp.le.s32.totalorder 2, %s33
      // Predicated region
      $region137: #{tpu_custom_call.1} parent=5 // pred_check
        %p6876 = pneg %p6875
      $region138: #{tpu_custom_call.1} parent=5 // pred_check_branch
        %6878 = sbr.rel (%p6876) target = $region140
      $region139: #{tpu_custom_call.1} parent=5 // pred_region
        %s6879 = ssub.s32 %s33, 2
        // Predicated region
        $region141: #{tpu_custom_call.1} parent=139 // pred_check
          %p6880 = pneg %p608
        $region142: #{tpu_custom_call.1} parent=139 // pred_check_branch
          %6882 = sbr.rel (%p6880) target = $region144
        $region143: #{tpu_custom_call.1} parent=139 // pred_region
          %p6883 = scmp.lt.s32.totalorder %s39, 1
          %s6884 = scalar_select %p6883, %s39, 1
          %s6885 = smul.addr %s6884, 2
          %s6886 = smul.addr %s6885, 8
          %s6887 = scalar_lea.vmem %s26, %s6886
        $region144: #{tpu_custom_call.1} parent=139 // pred_fallthru
          _
      $region140: #{tpu_custom_call.1} parent=5 // pred_fallthru
        _
    $region6: #{tpu_custom_call.1} parent=1 // loop_footer
      %s37 = sadd.s32 1, %s33
    $region7: #{tpu_custom_call.1} parent=1 // loop_footer_branch
      %32 = sbr.rel target = $region3
    $region8: #{tpu_custom_call.1} parent=1 // loop_exit
      _
    %6888 = vsyncpa [#allocation17], 1
    %s6889 = scalar_lea.sflag [#allocation17], 1
    %6890 = vsyncpa %s6889, 1

</llo_original>
